<compile_context>
chip_gen: v5e
topology: v5e:2x2
jax: 0.10.0
libtpu: 0.0.40
codegen_flags: <defaults>
</compile_context>

<pallas_src>
import functools
import math

import jax
import jax.numpy as jnp
from jax import lax
from jax.experimental import pallas as pl
from jax.experimental.pallas import tpu as pltpu


def _leaky_relu(x, slope=0.2):
    return jnp.where(x > 0, x, slope * x)


def _round_up(x, m):
    return (x + m - 1) // m * m


def _bn_fold(bn, eps=0.8):
    """Eval-mode BatchNorm1d folded to per-feature (scale, shift)."""
    scale = bn["gamma"] * lax.rsqrt(bn["var"] + eps)
    shift = bn["beta"] - bn["mean"] * scale
    return scale.reshape(1, -1), shift.reshape(1, -1)


# --------------------------------------------------------------------------- #
# Kernel
# --------------------------------------------------------------------------- #
def _generator_kernel(noise_ref, eb1_ref, w1_ref,
                      w2_ref, t2_ref,
                      w3_ref, t3_ref,
                      w4_ref, t4_ref,
                      w5_ref, b5_ref, out_ref):
    """One batch tile of the 5-layer generator MLP; all weights VMEM-resident."""
    bf16 = jnp.bfloat16
    f32 = jnp.float32

    # Layer 1: noise @ W1_noise + (precomputed emb@W1_emb + b1), LeakyReLU.
    h = (jnp.dot(noise_ref[...].astype(bf16), w1_ref[...],
                 preferred_element_type=f32)
         + eb1_ref[...])
    h = _leaky_relu(h).astype(bf16)

    def block(h, w_ref, t_ref):
        # BN already folded into w/t: z = h @ (W*scale) + (b*scale + shift).
        z = jnp.dot(h, w_ref[...], preferred_element_type=f32) + t_ref[...]
        return _leaky_relu(z).astype(bf16)

    h = block(h, w2_ref, t2_ref)   # 128  -> 256
    h = block(h, w3_ref, t3_ref)   # 256  -> 512
    h = block(h, w4_ref, t4_ref)   # 512  -> 1024

    out = jnp.tanh(jnp.dot(h, w5_ref[...], preferred_element_type=f32)
                   + b5_ref[...])
    out_ref[...] = out.astype(out_ref.dtype)


# --------------------------------------------------------------------------- #
# Host-side parameter preparation (fold BN / emb-matmul once, in f32)
# --------------------------------------------------------------------------- #
def fold_params(params):
    """Fold eval-mode BN + embedding matmul into the weights (f32, then bf16)."""
    f32 = jnp.float32
    bf16 = jnp.bfloat16

    # Precompute the label-embedding contribution to layer 1, bias included.
    eb1 = (params["emb"].astype(f32) @ params["w1_emb"].astype(f32)
           + params["b1"])                                   # (n_labels, 128) f32

    def fold(w, b, bn):
        s, t = _bn_fold(bn)                                  # (1, out) each
        return (w * s).astype(bf16), b * s + t               # fold in f32, then cast

    w2, t2 = fold(params["w2"], params["b2"], params["bn2"])
    w3, t3 = fold(params["w3"], params["b3"], params["bn3"])
    w4, t4 = fold(params["w4"], params["b4"], params["bn4"])

    # Pad output columns to a lane-dense multiple of 128.
    d_img = params["w5"].shape[1]
    pad = _round_up(d_img, 128) - d_img
    w5 = jnp.pad(params["w5"], ((0, 0), (0, pad))).astype(bf16)
    b5 = jnp.pad(params["b5"], ((0, 0), (0, pad)))

    return dict(eb1=eb1,
                w1n=params["w1_noise"].astype(bf16),
                w2=w2, t2=t2, w3=w3, t3=t3, w4=w4, t4=t4,
                w5=w5, b5=b5)


def _tile_config(batch):
    """Chip-dependent batch tile and grid-axis semantics."""
    kind = jax.devices()[0].device_kind.lower()
    if "v5" in kind:
        # 4x128 MXU, single vst slot: tm=128 matches the MXU, no spill blow-up.
        tm = min(128, _round_up(batch, 8))
    elif "v7" in kind:
        # 2 TCs share the weight DMA bill; small batches: one tile on one core.
        tm = _round_up(batch, 8) if batch <= 512 else 256
    else:
        # v6e (and default): 2x256 MXU, fewer grid steps with tm=256.
        tm = min(256, _round_up(batch, 8))
    steps = _round_up(batch, tm) // tm
    semantics = ("parallel",) if steps > 1 else ("arbitrary",)
    return tm, semantics


# --------------------------------------------------------------------------- #
# Forward wrapper
# --------------------------------------------------------------------------- #
@functools.partial(jax.jit, static_argnames=("img_shape",))
def cgan_generator_forward(noise, labels, prepped, img_shape):
    """noise: (B, latent) f32, labels: (B,) i32 -> (B, *img_shape) f32."""
    B, latent = noise.shape
    d_img = math.prod(img_shape)
    d_img_p = prepped["w5"].shape[1]

    # Tiny gather of the precomputed (n_labels, 128) table; done in XLA.
    emb_b1 = prepped["eb1"][labels]                          # (B, 128) f32

    tm, semantics = _tile_config(B)
    Bp = _round_up(B, tm)
    if Bp != B:
        noise = jnp.pad(noise, ((0, Bp - B), (0, 0)))
        emb_b1 = jnp.pad(emb_b1, ((0, Bp - B), (0, 0)))

    operands = (noise, emb_b1, prepped["w1n"],
                prepped["w2"], prepped["t2"],
                prepped["w3"], prepped["t3"],
                prepped["w4"], prepped["t4"],
                prepped["w5"], prepped["b5"])

    def row_spec(d):
        return pl.BlockSpec((tm, d), lambda i: (i, 0))

    def const_spec(x):
        return pl.BlockSpec(x.shape, lambda i: (0, 0))

    in_specs = [row_spec(latent), row_spec(128)]
    in_specs += [const_spec(x) for x in operands[2:]]

    # Advisory cost hint so XLA can overlap this ~us custom call.
    flops = 2 * Bp * (latent * 128 + 128 * 256 + 256 * 512
                      + 512 * 1024 + 1024 * d_img_p)
    weight_bytes = sum(int(x.size) * x.dtype.itemsize for x in operands[2:])
    bytes_accessed = weight_bytes + Bp * (latent + 128) * 4 + Bp * d_img_p * 4

    out = pl.pallas_call(
        _generator_kernel,
        out_shape=jax.ShapeDtypeStruct((Bp, d_img_p), jnp.float32),
        grid_spec=pltpu.PrefetchScalarGridSpec(
            num_scalar_prefetch=0,
            grid=(Bp // tm,),
            in_specs=in_specs,
            out_specs=pl.BlockSpec((tm, d_img_p), lambda i: (i, 0)),
        ),
        compiler_params=pltpu.CompilerParams(dimension_semantics=semantics),
        cost_estimate=pl.CostEstimate(flops=int(flops),
                                      transcendentals=int(Bp * d_img_p),
                                      bytes_accessed=int(bytes_accessed)),
    )(*operands)

    return out[:B, :d_img].reshape((B,) + tuple(img_shape))


# --------------------------------------------------------------------------- #
# Init & pure-JAX reference
# --------------------------------------------------------------------------- #
def init_params(key, n_labels, latent_dim, img_shape):
    """PyTorch-default-style init; raw weights stored (in, out) in float32."""
    d_img = math.prod(img_shape)

    def linear(k, fan_in, fan_out):
        kw, kb = jax.random.split(k)
        bound = 1.0 / math.sqrt(fan_in)
        w = jax.random.uniform(kw, (fan_in, fan_out), jnp.float32, -bound, bound)
        b = jax.random.uniform(kb, (1, fan_out), jnp.float32, -bound, bound)
        return w, b

    def bn(k, n):
        kg, kb, km, kv = jax.random.split(k, 4)
        return dict(gamma=1.0 + 0.1 * jax.random.normal(kg, (n,), jnp.float32),
                    beta=0.1 * jax.random.normal(kb, (n,), jnp.float32),
                    mean=0.1 * jax.random.normal(km, (n,), jnp.float32),
                    var=jax.random.uniform(kv, (n,), jnp.float32, 0.8, 1.2))

    keys = jax.random.split(key, 10)
    emb = jax.random.normal(keys[0], (n_labels, n_labels), jnp.float32)

    # Layer 1 drawn jointly so both halves share the fan_in = latent+labels bound.
    # gen_input = [emb, noise] -> first n_labels rows multiply the embedding.
    w1, b1 = linear(keys[1], n_labels + latent_dim, 128)
    w1_emb, w1_noise = w1[:n_labels], w1[n_labels:]

    w2, b2 = linear(keys[2], 128, 256)
    w3, b3 = linear(keys[3], 256, 512)
    w4, b4 = linear(keys[4], 512, 1024)
    w5, b5 = linear(keys[5], 1024, d_img)

    return dict(emb=emb,
                w1_emb=w1_emb, w1_noise=w1_noise, b1=b1,
                w2=w2, b2=b2, bn2=bn(keys[6], 256),
                w3=w3, b3=b3, bn3=bn(keys[7], 512),
                w4=w4, b4=b4, bn4=bn(keys[8], 1024),
                w5=w5, b5=b5)


def reference_forward(noise, labels, params, img_shape):
    """Pure-JAX f32 reference (same eval-mode BN semantics, no Pallas)."""
    emb = params["emb"][labels]
    h = emb @ params["w1_emb"] + noise @ params["w1_noise"] + params["b1"]
    h = _leaky_relu(h)
    for i in (2, 3, 4):
        s, t = _bn_fold(params[f"bn{i}"])
        h = (h @ params[f"w{i}"] + params[f"b{i}"]) * s + t
        h = _leaky_relu(h)
    out = jnp.tanh(h @ params["w5"] + params["b5"])
    return out.reshape((noise.shape[0],) + tuple(img_shape))


if __name__ == "__main__":
    n_labels = 10
    latent_dim = 64
    img_shape = (1, 16, 16)          # (C, H, W) -> 256 outputs (lane-dense)
    batch = 256                      # single 256-row tile on v6e/v7x, 2x128 on v5e

    key = jax.random.PRNGKey(0)
    k_params, k_noise, k_lab = jax.random.split(key, 3)

    params = init_params(k_params, n_labels, latent_dim, img_shape)
    prepped = fold_params(params)    # one-time host-side fold (BN + emb matmul)

    noise = jax.random.normal(k_noise, (batch, latent_dim), jnp.float32)
    labels = jax.random.randint(k_lab, (batch,), 0, n_labels, jnp.int32)

    img = cgan_generator_forward(noise, labels, prepped, img_shape)
    img = jax.block_until_ready(img)

    ref = reference_forward(noise, labels, params, img_shape)
    assert img.shape == (batch,) + img_shape
    max_err = float(jnp.max(jnp.abs(img - ref)))
    # bf16 weights/activations vs f32 reference; tanh-bounded outputs -> small abs err.
    assert jnp.allclose(img, ref, atol=3e-2, rtol=3e-2), f"max abs err {max_err}"

    print("KERNEL_OK")
</pallas_src>

<mosaic_0001>
module attributes {stable_mosaic.version = 11 : i64} {
  func.func @_generator_kernel(%arg0: i32, %arg1: memref<256x64xf32, #tpu.memory_space<vmem>>, %arg2: memref<256x128xf32, #tpu.memory_space<vmem>>, %arg3: memref<64x128xbf16, #tpu.memory_space<vmem>>, %arg4: memref<128x256xbf16, #tpu.memory_space<vmem>>, %arg5: memref<1x256xf32, #tpu.memory_space<vmem>>, %arg6: memref<256x512xbf16, #tpu.memory_space<vmem>>, %arg7: memref<1x512xf32, #tpu.memory_space<vmem>>, %arg8: memref<512x1024xbf16, #tpu.memory_space<vmem>>, %arg9: memref<1x1024xf32, #tpu.memory_space<vmem>>, %arg10: memref<1024x256xbf16, #tpu.memory_space<vmem>>, %arg11: memref<1x256xf32, #tpu.memory_space<vmem>>, %arg12: memref<256x256xf32, #tpu.memory_space<vmem>>) attributes {dimension_semantics = [#tpu.dimension_semantics<arbitrary>], iteration_bounds = array<i64: 1>, scalar_prefetch = 0 : i64, scratch_operands = 0 : i64, tpu.core_type = #tpu.core_type<tc>, window_params = [{transform_indices = @transform_0, window_bounds = array<i64: 256, 64>}, {transform_indices = @transform_1, window_bounds = array<i64: 256, 128>}, {pipeline_mode = #tpu.pipeline_mode<synchronous>, transform_indices = @transform_2, window_bounds = array<i64: 64, 128>}, {pipeline_mode = #tpu.pipeline_mode<synchronous>, transform_indices = @transform_3, window_bounds = array<i64: 128, 256>}, {pipeline_mode = #tpu.pipeline_mode<synchronous>, transform_indices = @transform_4, window_bounds = array<i64: 1, 256>}, {pipeline_mode = #tpu.pipeline_mode<synchronous>, transform_indices = @transform_5, window_bounds = array<i64: 256, 512>}, {pipeline_mode = #tpu.pipeline_mode<synchronous>, transform_indices = @transform_6, window_bounds = array<i64: 1, 512>}, {pipeline_mode = #tpu.pipeline_mode<synchronous>, transform_indices = @transform_7, window_bounds = array<i64: 512, 1024>}, {pipeline_mode = #tpu.pipeline_mode<synchronous>, transform_indices = @transform_8, window_bounds = array<i64: 1, 1024>}, {pipeline_mode = #tpu.pipeline_mode<synchronous>, transform_indices = @transform_9, window_bounds = array<i64: 1024, 256>}, {pipeline_mode = #tpu.pipeline_mode<synchronous>, transform_indices = @transform_10, window_bounds = array<i64: 1, 256>}, {transform_indices = @transform_11, window_bounds = array<i64: 256, 256>}]} {
    %c0 = arith.constant 0 : index
    %c0_0 = arith.constant 0 : index
    %0 = vector.load %arg1[%c0, %c0_0] : memref<256x64xf32, #tpu.memory_space<vmem>>, vector<256x64xf32>
    %1 = arith.truncf %0 : vector<256x64xf32> to vector<256x64xbf16>
    %c0_1 = arith.constant 0 : index
    %c0_2 = arith.constant 0 : index
    %2 = vector.load %arg3[%c0_1, %c0_2] : memref<64x128xbf16, #tpu.memory_space<vmem>>, vector<64x128xbf16>
    %cst = arith.constant dense<0.000000e+00> : vector<256x128xf32>
    %3 = tpu.matmul %1, %2, %cst {dimension_numbers = #tpu.dot_dimension_numbers<[1], [0], [0], [1], [0, 0, 1, 1], [], []>} : vector<256x64xbf16>, vector<64x128xbf16>, vector<256x128xf32> -> vector<256x128xf32>
    %c0_3 = arith.constant 0 : index
    %c0_4 = arith.constant 0 : index
    %4 = vector.load %arg2[%c0_3, %c0_4] : memref<256x128xf32, #tpu.memory_space<vmem>>, vector<256x128xf32>
    %5 = arith.addf %3, %4 : vector<256x128xf32>
    %cst_5 = arith.constant 0.000000e+00 : f32
    %6 = vector.broadcast %cst_5 : f32 to vector<256x128xf32>
    %7 = arith.cmpf ogt, %5, %6 : vector<256x128xf32>
    %cst_6 = arith.constant 2.000000e-01 : f32
    %8 = vector.broadcast %cst_6 : f32 to vector<256x128xf32>
    %9 = arith.mulf %8, %5 : vector<256x128xf32>
    %10 = arith.select %7, %5, %9 : vector<256x128xi1>, vector<256x128xf32>
    %11 = arith.truncf %10 : vector<256x128xf32> to vector<256x128xbf16>
    %c0_7 = arith.constant 0 : index
    %c0_8 = arith.constant 0 : index
    %12 = vector.load %arg4[%c0_7, %c0_8] : memref<128x256xbf16, #tpu.memory_space<vmem>>, vector<128x256xbf16>
    %cst_9 = arith.constant dense<0.000000e+00> : vector<256x256xf32>
    %13 = tpu.matmul %11, %12, %cst_9 {dimension_numbers = #tpu.dot_dimension_numbers<[1], [0], [0], [1], [0, 0, 1, 1], [], []>} : vector<256x128xbf16>, vector<128x256xbf16>, vector<256x256xf32> -> vector<256x256xf32>
    %c0_10 = arith.constant 0 : index
    %c0_11 = arith.constant 0 : index
    %14 = vector.load %arg5[%c0_10, %c0_11] : memref<1x256xf32, #tpu.memory_space<vmem>>, vector<1x256xf32>
    %15 = vector.broadcast %14 : vector<1x256xf32> to vector<256x256xf32>
    %16 = arith.addf %13, %15 : vector<256x256xf32>
    %cst_12 = arith.constant 0.000000e+00 : f32
    %17 = vector.broadcast %cst_12 : f32 to vector<256x256xf32>
    %18 = arith.cmpf ogt, %16, %17 : vector<256x256xf32>
    %cst_13 = arith.constant 2.000000e-01 : f32
    %19 = vector.broadcast %cst_13 : f32 to vector<256x256xf32>
    %20 = arith.mulf %19, %16 : vector<256x256xf32>
    %21 = arith.select %18, %16, %20 : vector<256x256xi1>, vector<256x256xf32>
    %22 = arith.truncf %21 : vector<256x256xf32> to vector<256x256xbf16>
    %c0_14 = arith.constant 0 : index
    %c0_15 = arith.constant 0 : index
    %23 = vector.load %arg6[%c0_14, %c0_15] : memref<256x512xbf16, #tpu.memory_space<vmem>>, vector<256x512xbf16>
    %cst_16 = arith.constant dense<0.000000e+00> : vector<256x512xf32>
    %24 = tpu.matmul %22, %23, %cst_16 {dimension_numbers = #tpu.dot_dimension_numbers<[1], [0], [0], [1], [0, 0, 1, 1], [], []>} : vector<256x256xbf16>, vector<256x512xbf16>, vector<256x512xf32> -> vector<256x512xf32>
    %c0_17 = arith.constant 0 : index
    %c0_18 = arith.constant 0 : index
    %25 = vector.load %arg7[%c0_17, %c0_18] : memref<1x512xf32, #tpu.memory_space<vmem>>, vector<1x512xf32>
    %26 = vector.broadcast %25 : vector<1x512xf32> to vector<256x512xf32>
    %27 = arith.addf %24, %26 : vector<256x512xf32>
    %cst_19 = arith.constant 0.000000e+00 : f32
    %28 = vector.broadcast %cst_19 : f32 to vector<256x512xf32>
    %29 = arith.cmpf ogt, %27, %28 : vector<256x512xf32>
    %cst_20 = arith.constant 2.000000e-01 : f32
    %30 = vector.broadcast %cst_20 : f32 to vector<256x512xf32>
    %31 = arith.mulf %30, %27 : vector<256x512xf32>
    %32 = arith.select %29, %27, %31 : vector<256x512xi1>, vector<256x512xf32>
    %33 = arith.truncf %32 : vector<256x512xf32> to vector<256x512xbf16>
    %c0_21 = arith.constant 0 : index
    %c0_22 = arith.constant 0 : index
    %34 = vector.load %arg8[%c0_21, %c0_22] : memref<512x1024xbf16, #tpu.memory_space<vmem>>, vector<512x1024xbf16>
    %cst_23 = arith.constant dense<0.000000e+00> : vector<256x1024xf32>
    %35 = tpu.matmul %33, %34, %cst_23 {dimension_numbers = #tpu.dot_dimension_numbers<[1], [0], [0], [1], [0, 0, 1, 1], [], []>} : vector<256x512xbf16>, vector<512x1024xbf16>, vector<256x1024xf32> -> vector<256x1024xf32>
    %c0_24 = arith.constant 0 : index
    %c0_25 = arith.constant 0 : index
    %36 = vector.load %arg9[%c0_24, %c0_25] : memref<1x1024xf32, #tpu.memory_space<vmem>>, vector<1x1024xf32>
    %37 = vector.broadcast %36 : vector<1x1024xf32> to vector<256x1024xf32>
    %38 = arith.addf %35, %37 : vector<256x1024xf32>
    %cst_26 = arith.constant 0.000000e+00 : f32
    %39 = vector.broadcast %cst_26 : f32 to vector<256x1024xf32>
    %40 = arith.cmpf ogt, %38, %39 : vector<256x1024xf32>
    %cst_27 = arith.constant 2.000000e-01 : f32
    %41 = vector.broadcast %cst_27 : f32 to vector<256x1024xf32>
    %42 = arith.mulf %41, %38 : vector<256x1024xf32>
    %43 = arith.select %40, %38, %42 : vector<256x1024xi1>, vector<256x1024xf32>
    %44 = arith.truncf %43 : vector<256x1024xf32> to vector<256x1024xbf16>
    %c0_28 = arith.constant 0 : index
    %c0_29 = arith.constant 0 : index
    %45 = vector.load %arg10[%c0_28, %c0_29] : memref<1024x256xbf16, #tpu.memory_space<vmem>>, vector<1024x256xbf16>
    %cst_30 = arith.constant dense<0.000000e+00> : vector<256x256xf32>
    %46 = tpu.matmul %44, %45, %cst_30 {dimension_numbers = #tpu.dot_dimension_numbers<[1], [0], [0], [1], [0, 0, 1, 1], [], []>} : vector<256x1024xbf16>, vector<1024x256xbf16>, vector<256x256xf32> -> vector<256x256xf32>
    %c0_31 = arith.constant 0 : index
    %c0_32 = arith.constant 0 : index
    %47 = vector.load %arg11[%c0_31, %c0_32] : memref<1x256xf32, #tpu.memory_space<vmem>>, vector<1x256xf32>
    %48 = vector.broadcast %47 : vector<1x256xf32> to vector<256x256xf32>
    %49 = arith.addf %46, %48 : vector<256x256xf32>
    %50 = math.tanh %49 : vector<256x256xf32>
    %c0_33 = arith.constant 0 : index
    %c0_34 = arith.constant 0 : index
    %51 = vector.load %arg12[%c0_33, %c0_34] : memref<256x256xf32, #tpu.memory_space<vmem>>, vector<256x256xf32>
    tpu.vector_store %arg12[%c0_33, %c0_34], %50 {strides = array<i32>} : memref<256x256xf32, #tpu.memory_space<vmem>>, vector<256x256xf32>,
    return
  }
  func.func @transform_0(%arg0: i32) -> (i32, i32) {
    %c0_i32 = arith.constant 0 : i32
    %c0_i32_0 = arith.constant 0 : i32
    return %arg0, %c0_i32 : i32, i32
  }
  func.func @transform_1(%arg0: i32) -> (i32, i32) {
    %c0_i32 = arith.constant 0 : i32
    %c0_i32_0 = arith.constant 0 : i32
    return %arg0, %c0_i32 : i32, i32
  }
  func.func @transform_2(%arg0: i32) -> (i32, i32) {
    %c0_i32 = arith.constant 0 : i32
    %c0_i32_0 = arith.constant 0 : i32
    %c0_i32_1 = arith.constant 0 : i32
    return %c0_i32, %c0_i32_0 : i32, i32
  }
  func.func @transform_3(%arg0: i32) -> (i32, i32) {
    %c0_i32 = arith.constant 0 : i32
    %c0_i32_0 = arith.constant 0 : i32
    %c0_i32_1 = arith.constant 0 : i32
    return %c0_i32, %c0_i32_0 : i32, i32
  }
  func.func @transform_4(%arg0: i32) -> (i32, i32) {
    %c0_i32 = arith.constant 0 : i32
    %c0_i32_0 = arith.constant 0 : i32
    %c0_i32_1 = arith.constant 0 : i32
    return %c0_i32, %c0_i32_0 : i32, i32
  }
  func.func @transform_5(%arg0: i32) -> (i32, i32) {
    %c0_i32 = arith.constant 0 : i32
    %c0_i32_0 = arith.constant 0 : i32
    %c0_i32_1 = arith.constant 0 : i32
    return %c0_i32, %c0_i32_0 : i32, i32
  }
  func.func @transform_6(%arg0: i32) -> (i32, i32) {
    %c0_i32 = arith.constant 0 : i32
    %c0_i32_0 = arith.constant 0 : i32
    %c0_i32_1 = arith.constant 0 : i32
    return %c0_i32, %c0_i32_0 : i32, i32
  }
  func.func @transform_7(%arg0: i32) -> (i32, i32) {
    %c0_i32 = arith.constant 0 : i32
    %c0_i32_0 = arith.constant 0 : i32
    %c0_i32_1 = arith.constant 0 : i32
    return %c0_i32, %c0_i32_0 : i32, i32
  }
  func.func @transform_8(%arg0: i32) -> (i32, i32) {
    %c0_i32 = arith.constant 0 : i32
    %c0_i32_0 = arith.constant 0 : i32
    %c0_i32_1 = arith.constant 0 : i32
    return %c0_i32, %c0_i32_0 : i32, i32
  }
  func.func @transform_9(%arg0: i32) -> (i32, i32) {
    %c0_i32 = arith.constant 0 : i32
    %c0_i32_0 = arith.constant 0 : i32
    %c0_i32_1 = arith.constant 0 : i32
    return %c0_i32, %c0_i32_0 : i32, i32
  }
  func.func @transform_10(%arg0: i32) -> (i32, i32) {
    %c0_i32 = arith.constant 0 : i32
    %c0_i32_0 = arith.constant 0 : i32
    %c0_i32_1 = arith.constant 0 : i32
    return %c0_i32, %c0_i32_0 : i32, i32
  }
  func.func @transform_11(%arg0: i32) -> (i32, i32) {
    %c0_i32 = arith.constant 0 : i32
    %c0_i32_0 = arith.constant 0 : i32
    return %arg0, %c0_i32 : i32, i32
  }
}

</mosaic_0001>

<llo_original>
// kernel: cgan_generator_forward.1
$region0: #{cgan_generator_forward.1}
  #allocation0 [shape = 'u32[]', space=smem, size = 0x4, offset = 0x4, fixed_abs, tag = 'smem constant byte address 0x4 - core index']
  #allocation1 [shape = 'u32[72,128]{1,0:T(1,128)}', space=vmem, size = 0x9000, scoped, tag = 'internal scratch']
  %s0 = inlined_call_operand.vmem [shape: f32[256,64], index: 0, kind: input, shape index: {}]
  %s1 = inlined_call_operand.vmem [shape: f32[256,128], index: 1, kind: input, shape index: {}]
  %s2 = inlined_call_operand.hbm [shape: bf16[64,128], index: 2, kind: input, shape index: {}]
  %s3 = inlined_call_operand.vmem [shape: bf16[128,256], index: 3, kind: input, shape index: {}]
  %s4 = inlined_call_operand.vmem [shape: f32[1,256], index: 4, kind: input, shape index: {}]
  %s5 = inlined_call_operand.vmem [shape: bf16[256,512], index: 5, kind: input, shape index: {}]
  %s6 = inlined_call_operand.vmem [shape: f32[1,512], index: 6, kind: input, shape index: {}]
  %s7 = inlined_call_operand.vmem [shape: bf16[512,1024], index: 7, kind: input, shape index: {}]
  %s8 = inlined_call_operand.vmem [shape: f32[1,1024], index: 8, kind: input, shape index: {}]
  %s9 = inlined_call_operand.hbm [shape: bf16[1024,256], index: 9, kind: input, shape index: {}]
  %s10 = inlined_call_operand.vmem [shape: f32[1,256], index: 10, kind: input, shape index: {}]
  %s11 = inlined_call_operand.vmem [shape: f32[256,256], index: 11, kind: output, shape index: {}]
  %s12 = sld [smem:[#allocation0]]
  $region62: #{cgan_generator_forward.1} parent=0
    _
  %s14 = ssub.s32 1, %s12
  %s15 = scalar_select 0, %s14, %s12
  $region1: #{cgan_generator_forward.1} parent=0
    #allocation2 [shape = 'u8[16384]{0}', space=vmem, size = 0x4000, scoped, tag = 'input window, operand 2, single buffered']
    #allocation3 [shape = 's32[1]{0}', space=sflag, size = 0x4, scoped, tag = 'scoped memory for cgan_generator_forward.1']
    #allocation4 [shape = 'u8[524288]{0}', space=vmem, size = 0x80000, scoped, tag = 'input window, operand 9, single buffered']
    #allocation5 [shape = 's32[1]{0}', space=sflag, size = 0x4, scoped, tag = 'scoped memory for cgan_generator_forward.1']
    %16 = vsyncpa [#allocation3], 0
    %17 = vsyncpa [#allocation5], 0
    // Predicated region
    $region2: #{cgan_generator_forward.1} parent=1 // pred_check
      _
    $region3: #{cgan_generator_forward.1} parent=1 // pred_check_branch
      %19 = sbr.rel (0) target = $region5
    $region4: #{cgan_generator_forward.1} parent=1 // pred_region
      _
    $region5: #{cgan_generator_forward.1} parent=1 // pred_fallthru
      _
    // Predicated region
    $region6: #{cgan_generator_forward.1} parent=1 // pred_check
      _
    $region7: #{cgan_generator_forward.1} parent=1 // pred_check_branch
      %21 = sbr.rel (0) target = $region9
    $region8: #{cgan_generator_forward.1} parent=1 // pred_region
      _
    $region9: #{cgan_generator_forward.1} parent=1 // pred_fallthru
      _
    // Predicated region
    $region10: #{cgan_generator_forward.1} parent=1 // pred_check
      _
    $region11: #{cgan_generator_forward.1} parent=1 // pred_check_branch
      %23 = sbr.rel (0) target = $region13
    $region12: #{cgan_generator_forward.1} parent=1 // pred_region
      %25 = vsyncadd [#allocation3], 0
      %s26 = sshll.u32 %s2, 4
      %s27 = int_to_ptr.hbm [resolvable:$true] %s26
      %s28 = sshll.u32 [#allocation2], 4
      %s29 = int_to_ptr.vmem [resolvable:$true] %s28
      %34 = dma.hbm_to_vmem [thread:$0]  %s27, 512, %s29, [#allocation3], 64, 64, 4
    $region13: #{cgan_generator_forward.1} parent=1 // pred_fallthru
      _
    // Predicated region
    $region14: #{cgan_generator_forward.1} parent=1 // pred_check
      _
    $region15: #{cgan_generator_forward.1} parent=1 // pred_check_branch
      %36 = sbr.rel (0) target = $region17
    $region16: #{cgan_generator_forward.1} parent=1 // pred_region
      _
    $region17: #{cgan_generator_forward.1} parent=1 // pred_fallthru
      _
    // Predicated region
    $region18: #{cgan_generator_forward.1} parent=1 // pred_check
      _
    $region19: #{cgan_generator_forward.1} parent=1 // pred_check_branch
      %38 = sbr.rel (0) target = $region21
    $region20: #{cgan_generator_forward.1} parent=1 // pred_region
      _
    $region21: #{cgan_generator_forward.1} parent=1 // pred_fallthru
      _
    // Predicated region
    $region22: #{cgan_generator_forward.1} parent=1 // pred_check
      _
    $region23: #{cgan_generator_forward.1} parent=1 // pred_check_branch
      %40 = sbr.rel (0) target = $region25
    $region24: #{cgan_generator_forward.1} parent=1 // pred_region
      _
    $region25: #{cgan_generator_forward.1} parent=1 // pred_fallthru
      _
    // Predicated region
    $region26: #{cgan_generator_forward.1} parent=1 // pred_check
      _
    $region27: #{cgan_generator_forward.1} parent=1 // pred_check_branch
      %42 = sbr.rel (0) target = $region29
    $region28: #{cgan_generator_forward.1} parent=1 // pred_region
      _
    $region29: #{cgan_generator_forward.1} parent=1 // pred_fallthru
      _
    // Predicated region
    $region30: #{cgan_generator_forward.1} parent=1 // pred_check
      _
    $region31: #{cgan_generator_forward.1} parent=1 // pred_check_branch
      %44 = sbr.rel (0) target = $region33
    $region32: #{cgan_generator_forward.1} parent=1 // pred_region
      _
    $region33: #{cgan_generator_forward.1} parent=1 // pred_fallthru
      _
    // Predicated region
    $region34: #{cgan_generator_forward.1} parent=1 // pred_check
      _
    $region35: #{cgan_generator_forward.1} parent=1 // pred_check_branch
      %46 = sbr.rel (0) target = $region37
    $region36: #{cgan_generator_forward.1} parent=1 // pred_region
      _
    $region37: #{cgan_generator_forward.1} parent=1 // pred_fallthru
      _
    // Predicated region
    $region38: #{cgan_generator_forward.1} parent=1 // pred_check
      _
    $region39: #{cgan_generator_forward.1} parent=1 // pred_check_branch
      %48 = sbr.rel (0) target = $region41
    $region40: #{cgan_generator_forward.1} parent=1 // pred_region
      %50 = vsyncadd [#allocation5], 0
      %s51 = sshll.u32 %s9, 4
      %s52 = int_to_ptr.hbm [resolvable:$true] %s51
      %s53 = sshll.u32 [#allocation4], 4
      %s54 = int_to_ptr.vmem [resolvable:$true] %s53
      %59 = dma.hbm_to_vmem [thread:$0]  %s52, 16384, %s54, [#allocation5], 128, 128, 8
    $region41: #{cgan_generator_forward.1} parent=1 // pred_fallthru
      _
    // Predicated region
    $region42: #{cgan_generator_forward.1} parent=1 // pred_check
      _
    $region43: #{cgan_generator_forward.1} parent=1 // pred_check_branch
      %61 = sbr.rel (0) target = $region45
    $region44: #{cgan_generator_forward.1} parent=1 // pred_region
      _
    $region45: #{cgan_generator_forward.1} parent=1 // pred_fallthru
      _
    // Predicated region
    $region46: #{cgan_generator_forward.1} parent=1 // pred_check
      _
    $region47: #{cgan_generator_forward.1} parent=1 // pred_check_branch
      %63 = sbr.rel (0) target = $region49
    $region48: #{cgan_generator_forward.1} parent=1 // pred_region
      %65 = dma.done [#allocation3], 512
    $region49: #{cgan_generator_forward.1} parent=1 // pred_fallthru
      _
    // Predicated region
    $region50: #{cgan_generator_forward.1} parent=1 // pred_check
      _
    $region51: #{cgan_generator_forward.1} parent=1 // pred_check_branch
      %67 = sbr.rel (0) target = $region53
    $region52: #{cgan_generator_forward.1} parent=1 // pred_region
      %69 = dma.done [#allocation5], 16384
    $region53: #{cgan_generator_forward.1} parent=1 // pred_fallthru
      _
    %v71 = vld [vmem:[%s0] sm:$0xff]
    %v72 = vld [vmem:[%s0 + $0x8] sm:$0xff]
    %v73 = vld [vmem:[%s0 + $0x10] sm:$0xff]
    %v74 = vld [vmem:[%s0 + $0x18] sm:$0xff]
    %v75 = vld [vmem:[%s0 + $0x20] sm:$0xff]
    %v76 = vld [vmem:[%s0 + $0x28] sm:$0xff]
    %v77 = vld [vmem:[%s0 + $0x30] sm:$0xff]
    %v78 = vld [vmem:[%s0 + $0x38] sm:$0xff]
    %v79 = vld [vmem:[%s0 + $0x40] sm:$0xff]
    %v80 = vld [vmem:[%s0 + $0x48] sm:$0xff]
    %v81 = vld [vmem:[%s0 + $0x50] sm:$0xff]
    %v82 = vld [vmem:[%s0 + $0x58] sm:$0xff]
    %v83 = vld [vmem:[%s0 + $0x60] sm:$0xff]
    %v84 = vld [vmem:[%s0 + $0x68] sm:$0xff]
    %v85 = vld [vmem:[%s0 + $0x70] sm:$0xff]
    %v86 = vld [vmem:[%s0 + $0x78] sm:$0xff]
    %v87 = vld [vmem:[%s0 + $0x80] sm:$0xff]
    %v88 = vld [vmem:[%s0 + $0x88] sm:$0xff]
    %v89 = vld [vmem:[%s0 + $0x90] sm:$0xff]
    %v90 = vld [vmem:[%s0 + $0x98] sm:$0xff]
    %v91 = vld [vmem:[%s0 + $0xa0] sm:$0xff]
    %v92 = vld [vmem:[%s0 + $0xa8] sm:$0xff]
    %v93 = vld [vmem:[%s0 + $0xb0] sm:$0xff]
    %v94 = vld [vmem:[%s0 + $0xb8] sm:$0xff]
    %v95 = vld [vmem:[%s0 + $0xc0] sm:$0xff]
    %v96 = vld [vmem:[%s0 + $0xc8] sm:$0xff]
    %v97 = vld [vmem:[%s0 + $0xd0] sm:$0xff]
    %v98 = vld [vmem:[%s0 + $0xd8] sm:$0xff]
    %v99 = vld [vmem:[%s0 + $0xe0] sm:$0xff]
    %v100 = vld [vmem:[%s0 + $0xe8] sm:$0xff]
    %v101 = vld [vmem:[%s0 + $0xf0] sm:$0xff]
    %v102 = vld [vmem:[%s0 + $0xf8] sm:$0xff]
    %v103 = vpack.c.bf16 %v72, %v71
    %v104 = vpack.c.bf16 %v74, %v73
    %v105 = vpack.c.bf16 %v76, %v75
    %v106 = vpack.c.bf16 %v78, %v77
    %v107 = vpack.c.bf16 %v80, %v79
    %v108 = vpack.c.bf16 %v82, %v81
    %v109 = vpack.c.bf16 %v84, %v83
    %v110 = vpack.c.bf16 %v86, %v85
    %v111 = vpack.c.bf16 %v88, %v87
    %v112 = vpack.c.bf16 %v90, %v89
    %v113 = vpack.c.bf16 %v92, %v91
    %v114 = vpack.c.bf16 %v94, %v93
    %v115 = vpack.c.bf16 %v96, %v95
    %v116 = vpack.c.bf16 %v98, %v97
    %v117 = vpack.c.bf16 %v100, %v99
    %v118 = vpack.c.bf16 %v102, %v101
    %v119 = vld [vmem:[#allocation2] sm:$0xf]
    %v120 = vld [vmem:[#allocation2 + $0x4] sm:$0xf]
    %v121 = vld [vmem:[#allocation2 + $0x8] sm:$0xf]
    %v122 = vld [vmem:[#allocation2 + $0xc] sm:$0xf]
    %v123 = vld [vmem:[#allocation2 + $0x10] sm:$0xf]
    %v124 = vld [vmem:[#allocation2 + $0x14] sm:$0xf]
    %v125 = vld [vmem:[#allocation2 + $0x18] sm:$0xf]
    %v126 = vld [vmem:[#allocation2 + $0x1c] sm:$0xf]
    %v127 = vld [vmem:[%s1] sm:$0xff]
    %v128 = vld [vmem:[%s1 + $0x8] sm:$0xff]
    %v129 = vld [vmem:[%s1 + $0x10] sm:$0xff]
    %v130 = vld [vmem:[%s1 + $0x18] sm:$0xff]
    %v131 = vld [vmem:[%s1 + $0x20] sm:$0xff]
    %v132 = vld [vmem:[%s1 + $0x28] sm:$0xff]
    %v133 = vld [vmem:[%s1 + $0x30] sm:$0xff]
    %v134 = vld [vmem:[%s1 + $0x38] sm:$0xff]
    %v135 = vld [vmem:[%s1 + $0x40] sm:$0xff]
    %v136 = vld [vmem:[%s1 + $0x48] sm:$0xff]
    %v137 = vld [vmem:[%s1 + $0x50] sm:$0xff]
    %v138 = vld [vmem:[%s1 + $0x58] sm:$0xff]
    %v139 = vld [vmem:[%s1 + $0x60] sm:$0xff]
    %v140 = vld [vmem:[%s1 + $0x68] sm:$0xff]
    %v141 = vld [vmem:[%s1 + $0x70] sm:$0xff]
    %v142 = vld [vmem:[%s1 + $0x78] sm:$0xff]
    %v143 = vld [vmem:[%s1 + $0x80] sm:$0xff]
    %v144 = vld [vmem:[%s1 + $0x88] sm:$0xff]
    %v145 = vld [vmem:[%s1 + $0x90] sm:$0xff]
    %v146 = vld [vmem:[%s1 + $0x98] sm:$0xff]
    %v147 = vld [vmem:[%s1 + $0xa0] sm:$0xff]
    %v148 = vld [vmem:[%s1 + $0xa8] sm:$0xff]
    %v149 = vld [vmem:[%s1 + $0xb0] sm:$0xff]
    %v150 = vld [vmem:[%s1 + $0xb8] sm:$0xff]
    %v151 = vld [vmem:[%s1 + $0xc0] sm:$0xff]
    %v152 = vld [vmem:[%s1 + $0xc8] sm:$0xff]
    %v153 = vld [vmem:[%s1 + $0xd0] sm:$0xff]
    %v154 = vld [vmem:[%s1 + $0xd8] sm:$0xff]
    %v155 = vld [vmem:[%s1 + $0xe0] sm:$0xff]
    %v156 = vld [vmem:[%s1 + $0xe8] sm:$0xff]
    %v157 = vld [vmem:[%s1 + $0xf0] sm:$0xff]
    %v158 = vld [vmem:[%s1 + $0xf8] sm:$0xff]
    %v167 = vunpack.c.l.b16 %v119
    %v168 = vunpack.c.l.b16 %v120
    %v169 = vunpack.c.l.b16 %v121
    %v170 = vunpack.c.l.b16 %v122
    %v171 = vunpack.c.l.b16 %v123
    %v172 = vunpack.c.l.b16 %v124
    %v173 = vunpack.c.l.b16 %v125
    %v174 = vunpack.c.l.b16 %v126
    %v175 = vpack.c.b16 %v168, %v167
    %v176 = vpack.c.b16 %v170, %v169
    %v177 = vpack.c.b16 %v172, %v171
    %v178 = vpack.c.b16 %v174, %v173
    %vm183 = vcmask 523264
    %v185 = vsel %vm183, %v103, 0
    %v188 = vsel %vm183, %v104, 0
    %v191 = vsel %vm183, %v105, 0
    %v194 = vsel %vm183, %v106, 0
    %v197 = vsel %vm183, %v107, 0
    %v200 = vsel %vm183, %v108, 0
    %v203 = vsel %vm183, %v109, 0
    %v206 = vsel %vm183, %v110, 0
    %v209 = vsel %vm183, %v111, 0
    %v212 = vsel %vm183, %v112, 0
    %v215 = vsel %vm183, %v113, 0
    %v218 = vsel %vm183, %v114, 0
    %v221 = vsel %vm183, %v115, 0
    %v224 = vsel %vm183, %v116, 0
    %v227 = vsel %vm183, %v117, 0
    %v230 = vsel %vm183, %v118, 0
    %232 = vmatpush.bf16.msra.mxu0 0
    %233 = vmatpush.bf16.msra.mxu0 0
    %234 = vmatpush.bf16.msra.mxu0 0
    %235 = vmatpush.bf16.msra.mxu0 0
    %236 = vmatpush.bf16.msra.mxu0 %v178
    %237 = vmatpush.bf16.msra.mxu0 %v177
    %238 = vmatpush.bf16.msra.mxu0 %v176
    %239 = vmatpush.bf16.msra.mxu0 %v175
    %240 = vmatmul.bf16.gmra.mxu0 %v185
    %v241 = vpop.f32.mrf.mxu0
    %v242 = vadd.f32 %v127, %v241
    %v243 = vpop.f32.mrf.mxu0
    %v244 = vadd.f32 %v128, %v243
    %245 = vmatmul.bf16.gmra.mxu0 %v188
    %v246 = vpop.f32.mrf.mxu0
    %v247 = vadd.f32 %v129, %v246
    %v248 = vpop.f32.mrf.mxu0
    %v249 = vadd.f32 %v130, %v248
    %250 = vmatmul.bf16.gmra.mxu0 %v191
    %v251 = vpop.f32.mrf.mxu0
    %v252 = vadd.f32 %v131, %v251
    %v253 = vpop.f32.mrf.mxu0
    %v254 = vadd.f32 %v132, %v253
    %255 = vmatmul.bf16.gmra.mxu0 %v194
    %v256 = vpop.f32.mrf.mxu0
    %v257 = vadd.f32 %v133, %v256
    %v258 = vpop.f32.mrf.mxu0
    %v259 = vadd.f32 %v134, %v258
    %260 = vmatmul.bf16.gmra.mxu0 %v197
    %v261 = vpop.f32.mrf.mxu0
    %v262 = vadd.f32 %v135, %v261
    %v263 = vpop.f32.mrf.mxu0
    %v264 = vadd.f32 %v136, %v263
    %265 = vmatmul.bf16.gmra.mxu0 %v200
    %v266 = vpop.f32.mrf.mxu0
    %v267 = vadd.f32 %v137, %v266
    %v268 = vpop.f32.mrf.mxu0
    %v269 = vadd.f32 %v138, %v268
    %270 = vmatmul.bf16.gmra.mxu0 %v203
    %v271 = vpop.f32.mrf.mxu0
    %v272 = vadd.f32 %v139, %v271
    %v273 = vpop.f32.mrf.mxu0
    %v274 = vadd.f32 %v140, %v273
    %275 = vmatmul.bf16.gmra.mxu0 %v206
    %v276 = vpop.f32.mrf.mxu0
    %v277 = vadd.f32 %v141, %v276
    %v278 = vpop.f32.mrf.mxu0
    %v279 = vadd.f32 %v142, %v278
    %280 = vmatmul.bf16.gmra.mxu0 %v209
    %v281 = vpop.f32.mrf.mxu0
    %v282 = vadd.f32 %v143, %v281
    %v283 = vpop.f32.mrf.mxu0
    %v284 = vadd.f32 %v144, %v283
    %285 = vmatmul.bf16.gmra.mxu0 %v212
    %v286 = vpop.f32.mrf.mxu0
    %v287 = vadd.f32 %v145, %v286
    %v288 = vpop.f32.mrf.mxu0
    %v289 = vadd.f32 %v146, %v288
    %290 = vmatmul.bf16.gmra.mxu0 %v215
    %v291 = vpop.f32.mrf.mxu0
    %v292 = vadd.f32 %v147, %v291
    %v293 = vpop.f32.mrf.mxu0
    %v294 = vadd.f32 %v148, %v293
    %295 = vmatmul.bf16.gmra.mxu0 %v218
    %v296 = vpop.f32.mrf.mxu0
    %v297 = vadd.f32 %v149, %v296
    %v298 = vpop.f32.mrf.mxu0
    %v299 = vadd.f32 %v150, %v298
    %300 = vmatmul.bf16.gmra.mxu0 %v221
    %v301 = vpop.f32.mrf.mxu0
    %v302 = vadd.f32 %v151, %v301
    %v303 = vpop.f32.mrf.mxu0
    %v304 = vadd.f32 %v152, %v303
    %305 = vmatmul.bf16.gmra.mxu0 %v224
    %v306 = vpop.f32.mrf.mxu0
    %v307 = vadd.f32 %v153, %v306
    %v308 = vpop.f32.mrf.mxu0
    %v309 = vadd.f32 %v154, %v308
    %310 = vmatmul.bf16.gmra.mxu0 %v227
    %v311 = vpop.f32.mrf.mxu0
    %v312 = vadd.f32 %v155, %v311
    %v313 = vpop.f32.mrf.mxu0
    %v314 = vadd.f32 %v156, %v313
    %315 = vmatmul.bf16.gmra.mxu0 %v230
    %v316 = vpop.f32.mrf.mxu0
    %v317 = vadd.f32 %v157, %v316
    %v318 = vpop.f32.mrf.mxu0
    %v319 = vadd.f32 %v158, %v318
    %320 = vdwg.mxu0
    %vm321 = vcmp.gt.f32.partialorder %v242, 0.0
    %vm322 = vcmp.gt.f32.partialorder %v244, 0.0
    %vm323 = vcmp.gt.f32.partialorder %v247, 0.0
    %vm324 = vcmp.gt.f32.partialorder %v249, 0.0
    %vm325 = vcmp.gt.f32.partialorder %v252, 0.0
    %vm326 = vcmp.gt.f32.partialorder %v254, 0.0
    %vm327 = vcmp.gt.f32.partialorder %v257, 0.0
    %vm328 = vcmp.gt.f32.partialorder %v259, 0.0
    %vm329 = vcmp.gt.f32.partialorder %v262, 0.0
    %vm330 = vcmp.gt.f32.partialorder %v264, 0.0
    %vm331 = vcmp.gt.f32.partialorder %v267, 0.0
    %vm332 = vcmp.gt.f32.partialorder %v269, 0.0
    %vm333 = vcmp.gt.f32.partialorder %v272, 0.0
    %vm334 = vcmp.gt.f32.partialorder %v274, 0.0
    %vm335 = vcmp.gt.f32.partialorder %v277, 0.0
    %vm336 = vcmp.gt.f32.partialorder %v279, 0.0
    %vm337 = vcmp.gt.f32.partialorder %v282, 0.0
    %vm338 = vcmp.gt.f32.partialorder %v284, 0.0
    %vm339 = vcmp.gt.f32.partialorder %v287, 0.0
    %vm340 = vcmp.gt.f32.partialorder %v289, 0.0
    %vm341 = vcmp.gt.f32.partialorder %v292, 0.0
    %vm342 = vcmp.gt.f32.partialorder %v294, 0.0
    %vm343 = vcmp.gt.f32.partialorder %v297, 0.0
    %vm344 = vcmp.gt.f32.partialorder %v299, 0.0
    %vm345 = vcmp.gt.f32.partialorder %v302, 0.0
    %vm346 = vcmp.gt.f32.partialorder %v304, 0.0
    %vm347 = vcmp.gt.f32.partialorder %v307, 0.0
    %vm348 = vcmp.gt.f32.partialorder %v309, 0.0
    %vm349 = vcmp.gt.f32.partialorder %v312, 0.0
    %vm350 = vcmp.gt.f32.partialorder %v314, 0.0
    %vm351 = vcmp.gt.f32.partialorder %v317, 0.0
    %vm352 = vcmp.gt.f32.partialorder %v319, 0.0
    %v353 = vmul.f32 %v242, 0.2
    %v354 = vmul.f32 %v244, 0.2
    %v355 = vmul.f32 %v247, 0.2
    %v356 = vmul.f32 %v249, 0.2
    %v357 = vmul.f32 %v252, 0.2
    %v358 = vmul.f32 %v254, 0.2
    %v359 = vmul.f32 %v257, 0.2
    %v360 = vmul.f32 %v259, 0.2
    %v361 = vmul.f32 %v262, 0.2
    %v362 = vmul.f32 %v264, 0.2
    %v363 = vmul.f32 %v267, 0.2
    %v364 = vmul.f32 %v269, 0.2
    %v365 = vmul.f32 %v272, 0.2
    %v366 = vmul.f32 %v274, 0.2
    %v367 = vmul.f32 %v277, 0.2
    %v368 = vmul.f32 %v279, 0.2
    %v369 = vmul.f32 %v282, 0.2
    %v370 = vmul.f32 %v284, 0.2
    %v371 = vmul.f32 %v287, 0.2
    %v372 = vmul.f32 %v289, 0.2
    %v373 = vmul.f32 %v292, 0.2
    %v374 = vmul.f32 %v294, 0.2
    %v375 = vmul.f32 %v297, 0.2
    %v376 = vmul.f32 %v299, 0.2
    %v377 = vmul.f32 %v302, 0.2
    %v378 = vmul.f32 %v304, 0.2
    %v379 = vmul.f32 %v307, 0.2
    %v380 = vmul.f32 %v309, 0.2
    %v381 = vmul.f32 %v312, 0.2
    %v382 = vmul.f32 %v314, 0.2
    %v383 = vmul.f32 %v317, 0.2
    %v384 = vmul.f32 %v319, 0.2
    %v385 = vsel %vm321, %v242, %v353
    %v386 = vsel %vm322, %v244, %v354
    %v387 = vsel %vm323, %v247, %v355
    %v388 = vsel %vm324, %v249, %v356
    %v389 = vsel %vm325, %v252, %v357
    %v390 = vsel %vm326, %v254, %v358
    %v391 = vsel %vm327, %v257, %v359
    %v392 = vsel %vm328, %v259, %v360
    %v393 = vsel %vm329, %v262, %v361
    %v394 = vsel %vm330, %v264, %v362
    %v395 = vsel %vm331, %v267, %v363
    %v396 = vsel %vm332, %v269, %v364
    %v397 = vsel %vm333, %v272, %v365
    %v398 = vsel %vm334, %v274, %v366
    %v399 = vsel %vm335, %v277, %v367
    %v400 = vsel %vm336, %v279, %v368
    %v401 = vsel %vm337, %v282, %v369
    %v402 = vsel %vm338, %v284, %v370
    %v403 = vsel %vm339, %v287, %v371
    %v404 = vsel %vm340, %v289, %v372
    %v405 = vsel %vm341, %v292, %v373
    %v406 = vsel %vm342, %v294, %v374
    %v407 = vsel %vm343, %v297, %v375
    %v408 = vsel %vm344, %v299, %v376
    %v409 = vsel %vm345, %v302, %v377
    %v410 = vsel %vm346, %v304, %v378
    %v411 = vsel %vm347, %v307, %v379
    %v412 = vsel %vm348, %v309, %v380
    %v413 = vsel %vm349, %v312, %v381
    %v414 = vsel %vm350, %v314, %v382
    %v415 = vsel %vm351, %v317, %v383
    %v416 = vsel %vm352, %v319, %v384
    %v417 = vpack.c.bf16 %v386, %v385
    %v418 = vpack.c.bf16 %v388, %v387
    %v419 = vpack.c.bf16 %v390, %v389
    %v420 = vpack.c.bf16 %v392, %v391
    %v421 = vpack.c.bf16 %v394, %v393
    %v422 = vpack.c.bf16 %v396, %v395
    %v423 = vpack.c.bf16 %v398, %v397
    %v424 = vpack.c.bf16 %v400, %v399
    %v425 = vpack.c.bf16 %v402, %v401
    %v426 = vpack.c.bf16 %v404, %v403
    %v427 = vpack.c.bf16 %v406, %v405
    %v428 = vpack.c.bf16 %v408, %v407
    %v429 = vpack.c.bf16 %v410, %v409
    %v430 = vpack.c.bf16 %v412, %v411
    %v431 = vpack.c.bf16 %v414, %v413
    %v432 = vpack.c.bf16 %v416, %v415
    %v433 = vld [vmem:[%s3] sm:$0xff]
    %v434 = vld [vmem:[%s3 + $0x8] sm:$0xff]
    %v435 = vld [vmem:[%s3 + $0x10] sm:$0xff]
    %v436 = vld [vmem:[%s3 + $0x18] sm:$0xff]
    %v437 = vld [vmem:[%s3 + $0x20] sm:$0xff]
    %v438 = vld [vmem:[%s3 + $0x28] sm:$0xff]
    %v439 = vld [vmem:[%s3 + $0x30] sm:$0xff]
    %v440 = vld [vmem:[%s3 + $0x38] sm:$0xff]
    %v441 = vld [vmem:[%s3 + $0x40] sm:$0xff]
    %v442 = vld [vmem:[%s3 + $0x48] sm:$0xff]
    %v443 = vld [vmem:[%s3 + $0x50] sm:$0xff]
    %v444 = vld [vmem:[%s3 + $0x58] sm:$0xff]
    %v445 = vld [vmem:[%s3 + $0x60] sm:$0xff]
    %v446 = vld [vmem:[%s3 + $0x68] sm:$0xff]
    %v447 = vld [vmem:[%s3 + $0x70] sm:$0xff]
    %v448 = vld [vmem:[%s3 + $0x78] sm:$0xff]
    %v449 = vld [vmem:[%s4] sm:$0x3]
    %v451 = vperm.slane %v449, 0
    %v452 = vperm.slane %v449, 1
    %v471 = vunpack.c.l.b16 %v433
    %v472 = vunpack.c.h.b16 %v433
    %v473 = vunpack.c.l.b16 %v434
    %v474 = vunpack.c.h.b16 %v434
    %v475 = vunpack.c.l.b16 %v435
    %v476 = vunpack.c.h.b16 %v435
    %v477 = vunpack.c.l.b16 %v436
    %v478 = vunpack.c.h.b16 %v436
    %v479 = vunpack.c.l.b16 %v437
    %v480 = vunpack.c.h.b16 %v437
    %v481 = vunpack.c.l.b16 %v438
    %v482 = vunpack.c.h.b16 %v438
    %v483 = vunpack.c.l.b16 %v439
    %v484 = vunpack.c.h.b16 %v439
    %v485 = vunpack.c.l.b16 %v440
    %v486 = vunpack.c.h.b16 %v440
    %v487 = vunpack.c.l.b16 %v441
    %v488 = vunpack.c.h.b16 %v441
    %v489 = vunpack.c.l.b16 %v442
    %v490 = vunpack.c.h.b16 %v442
    %v491 = vunpack.c.l.b16 %v443
    %v492 = vunpack.c.h.b16 %v443
    %v493 = vunpack.c.l.b16 %v444
    %v494 = vunpack.c.h.b16 %v444
    %v495 = vunpack.c.l.b16 %v445
    %v496 = vunpack.c.h.b16 %v445
    %v497 = vunpack.c.l.b16 %v446
    %v498 = vunpack.c.h.b16 %v446
    %v499 = vunpack.c.l.b16 %v447
    %v500 = vunpack.c.h.b16 %v447
    %v501 = vunpack.c.l.b16 %v448
    %v502 = vunpack.c.h.b16 %v448
    %v503 = vpack.c.b16 %v473, %v471
    %v504 = vpack.c.b16 %v474, %v472
    %v505 = vpack.c.b16 %v477, %v475
    %v506 = vpack.c.b16 %v478, %v476
    %v507 = vpack.c.b16 %v481, %v479
    %v508 = vpack.c.b16 %v482, %v480
    %v509 = vpack.c.b16 %v485, %v483
    %v510 = vpack.c.b16 %v486, %v484
    %v511 = vpack.c.b16 %v489, %v487
    %v512 = vpack.c.b16 %v490, %v488
    %v513 = vpack.c.b16 %v493, %v491
    %v514 = vpack.c.b16 %v494, %v492
    %v515 = vpack.c.b16 %v497, %v495
    %v516 = vpack.c.b16 %v498, %v496
    %v517 = vpack.c.b16 %v501, %v499
    %v518 = vpack.c.b16 %v502, %v500
    %535 = vmatpush.bf16.msra.mxu0 %v517
    %536 = vmatpush.bf16.msra.mxu0 %v515
    %537 = vmatpush.bf16.msra.mxu0 %v513
    %538 = vmatpush.bf16.msra.mxu0 %v511
    %539 = vmatpush.bf16.msra.mxu0 %v509
    %540 = vmatpush.bf16.msra.mxu0 %v507
    %541 = vmatpush.bf16.msra.mxu0 %v505
    %542 = vmatpush.bf16.msra.mxu0 %v503
    %543 = vmatmul.bf16.gmra.mxu0 %v417
    %v544 = vpop.f32.mrf.mxu0
    %v545 = vadd.f32 %v451, %v544
    %v546 = vpop.f32.mrf.mxu0
    %v547 = vadd.f32 %v451, %v546
    %548 = vmatmul.bf16.gmra.mxu0 %v418
    %v549 = vpop.f32.mrf.mxu0
    %v550 = vadd.f32 %v451, %v549
    %v551 = vpop.f32.mrf.mxu0
    %v552 = vadd.f32 %v451, %v551
    %553 = vmatmul.bf16.gmra.mxu0 %v419
    %v554 = vpop.f32.mrf.mxu0
    %v555 = vadd.f32 %v451, %v554
    %v556 = vpop.f32.mrf.mxu0
    %v557 = vadd.f32 %v451, %v556
    %558 = vmatmul.bf16.gmra.mxu0 %v420
    %v559 = vpop.f32.mrf.mxu0
    %v560 = vadd.f32 %v451, %v559
    %v561 = vpop.f32.mrf.mxu0
    %v562 = vadd.f32 %v451, %v561
    %563 = vmatmul.bf16.gmra.mxu0 %v421
    %v564 = vpop.f32.mrf.mxu0
    %v565 = vadd.f32 %v451, %v564
    %v566 = vpop.f32.mrf.mxu0
    %v567 = vadd.f32 %v451, %v566
    %568 = vmatmul.bf16.gmra.mxu0 %v422
    %v569 = vpop.f32.mrf.mxu0
    %v570 = vadd.f32 %v451, %v569
    %v571 = vpop.f32.mrf.mxu0
    %v572 = vadd.f32 %v451, %v571
    %573 = vmatmul.bf16.gmra.mxu0 %v423
    %v574 = vpop.f32.mrf.mxu0
    %v575 = vadd.f32 %v451, %v574
    %v576 = vpop.f32.mrf.mxu0
    %v577 = vadd.f32 %v451, %v576
    %578 = vmatmul.bf16.gmra.mxu0 %v424
    %v579 = vpop.f32.mrf.mxu0
    %v580 = vadd.f32 %v451, %v579
    %v581 = vpop.f32.mrf.mxu0
    %v582 = vadd.f32 %v451, %v581
    %583 = vmatmul.bf16.gmra.mxu0 %v425
    %v584 = vpop.f32.mrf.mxu0
    %v585 = vadd.f32 %v451, %v584
    %v586 = vpop.f32.mrf.mxu0
    %v587 = vadd.f32 %v451, %v586
    %588 = vmatmul.bf16.gmra.mxu0 %v426
    %v589 = vpop.f32.mrf.mxu0
    %v590 = vadd.f32 %v451, %v589
    %v591 = vpop.f32.mrf.mxu0
    %v592 = vadd.f32 %v451, %v591
    %593 = vmatmul.bf16.gmra.mxu0 %v427
    %v594 = vpop.f32.mrf.mxu0
    %v595 = vadd.f32 %v451, %v594
    %v596 = vpop.f32.mrf.mxu0
    %v597 = vadd.f32 %v451, %v596
    %598 = vmatmul.bf16.gmra.mxu0 %v428
    %v599 = vpop.f32.mrf.mxu0
    %v600 = vadd.f32 %v451, %v599
    %v601 = vpop.f32.mrf.mxu0
    %v602 = vadd.f32 %v451, %v601
    %603 = vmatmul.bf16.gmra.mxu0 %v429
    %v604 = vpop.f32.mrf.mxu0
    %v605 = vadd.f32 %v451, %v604
    %v606 = vpop.f32.mrf.mxu0
    %v607 = vadd.f32 %v451, %v606
    %608 = vmatmul.bf16.gmra.mxu0 %v430
    %v609 = vpop.f32.mrf.mxu0
    %v610 = vadd.f32 %v451, %v609
    %v611 = vpop.f32.mrf.mxu0
    %v612 = vadd.f32 %v451, %v611
    %613 = vmatmul.bf16.gmra.mxu0 %v431
    %v614 = vpop.f32.mrf.mxu0
    %v615 = vadd.f32 %v451, %v614
    %v616 = vpop.f32.mrf.mxu0
    %v617 = vadd.f32 %v451, %v616
    %618 = vmatmul.bf16.gmra.mxu0 %v432
    %v619 = vpop.f32.mrf.mxu0
    %v620 = vadd.f32 %v451, %v619
    %v621 = vpop.f32.mrf.mxu0
    %v622 = vadd.f32 %v451, %v621
    %623 = vdwg.mxu0
    %624 = vmatpush.bf16.msra.mxu0 %v518
    %625 = vmatpush.bf16.msra.mxu0 %v516
    %626 = vmatpush.bf16.msra.mxu0 %v514
    %627 = vmatpush.bf16.msra.mxu0 %v512
    %628 = vmatpush.bf16.msra.mxu0 %v510
    %629 = vmatpush.bf16.msra.mxu0 %v508
    %630 = vmatpush.bf16.msra.mxu0 %v506
    %631 = vmatpush.bf16.msra.mxu0 %v504
    %632 = vmatmul.bf16.gmra.mxu0 %v417
    %v633 = vpop.f32.mrf.mxu0
    %v634 = vadd.f32 %v452, %v633
    %v635 = vpop.f32.mrf.mxu0
    %v636 = vadd.f32 %v452, %v635
    %637 = vmatmul.bf16.gmra.mxu0 %v418
    %v638 = vpop.f32.mrf.mxu0
    %v639 = vadd.f32 %v452, %v638
    %v640 = vpop.f32.mrf.mxu0
    %v641 = vadd.f32 %v452, %v640
    %642 = vmatmul.bf16.gmra.mxu0 %v419
    %v643 = vpop.f32.mrf.mxu0
    %v644 = vadd.f32 %v452, %v643
    %v645 = vpop.f32.mrf.mxu0
    %v646 = vadd.f32 %v452, %v645
    %647 = vmatmul.bf16.gmra.mxu0 %v420
    %v648 = vpop.f32.mrf.mxu0
    %v649 = vadd.f32 %v452, %v648
    %v650 = vpop.f32.mrf.mxu0
    %v651 = vadd.f32 %v452, %v650
    %652 = vmatmul.bf16.gmra.mxu0 %v421
    %v653 = vpop.f32.mrf.mxu0
    %v654 = vadd.f32 %v452, %v653
    %v655 = vpop.f32.mrf.mxu0
    %v656 = vadd.f32 %v452, %v655
    %657 = vmatmul.bf16.gmra.mxu0 %v422
    %v658 = vpop.f32.mrf.mxu0
    %v659 = vadd.f32 %v452, %v658
    %v660 = vpop.f32.mrf.mxu0
    %v661 = vadd.f32 %v452, %v660
    %662 = vmatmul.bf16.gmra.mxu0 %v423
    %v663 = vpop.f32.mrf.mxu0
    %v664 = vadd.f32 %v452, %v663
    %v665 = vpop.f32.mrf.mxu0
    %v666 = vadd.f32 %v452, %v665
    %667 = vmatmul.bf16.gmra.mxu0 %v424
    %v668 = vpop.f32.mrf.mxu0
    %v669 = vadd.f32 %v452, %v668
    %v670 = vpop.f32.mrf.mxu0
    %v671 = vadd.f32 %v452, %v670
    %672 = vmatmul.bf16.gmra.mxu0 %v425
    %v673 = vpop.f32.mrf.mxu0
    %v674 = vadd.f32 %v452, %v673
    %v675 = vpop.f32.mrf.mxu0
    %v676 = vadd.f32 %v452, %v675
    %677 = vmatmul.bf16.gmra.mxu0 %v426
    %v678 = vpop.f32.mrf.mxu0
    %v679 = vadd.f32 %v452, %v678
    %v680 = vpop.f32.mrf.mxu0
    %v681 = vadd.f32 %v452, %v680
    %682 = vmatmul.bf16.gmra.mxu0 %v427
    %v683 = vpop.f32.mrf.mxu0
    %v684 = vadd.f32 %v452, %v683
    %v685 = vpop.f32.mrf.mxu0
    %v686 = vadd.f32 %v452, %v685
    %687 = vmatmul.bf16.gmra.mxu0 %v428
    %v688 = vpop.f32.mrf.mxu0
    %v689 = vadd.f32 %v452, %v688
    %v690 = vpop.f32.mrf.mxu0
    %v691 = vadd.f32 %v452, %v690
    %692 = vmatmul.bf16.gmra.mxu0 %v429
    %v693 = vpop.f32.mrf.mxu0
    %v694 = vadd.f32 %v452, %v693
    %v695 = vpop.f32.mrf.mxu0
    %v696 = vadd.f32 %v452, %v695
    %697 = vmatmul.bf16.gmra.mxu0 %v430
    %v698 = vpop.f32.mrf.mxu0
    %v699 = vadd.f32 %v452, %v698
    %v700 = vpop.f32.mrf.mxu0
    %v701 = vadd.f32 %v452, %v700
    %702 = vmatmul.bf16.gmra.mxu0 %v431
    %v703 = vpop.f32.mrf.mxu0
    %v704 = vadd.f32 %v452, %v703
    %v705 = vpop.f32.mrf.mxu0
    %v706 = vadd.f32 %v452, %v705
    %707 = vmatmul.bf16.gmra.mxu0 %v432
    %v708 = vpop.f32.mrf.mxu0
    %v709 = vadd.f32 %v452, %v708
    %v710 = vpop.f32.mrf.mxu0
    %v711 = vadd.f32 %v452, %v710
    %712 = vdwg.mxu0
    %vm713 = vcmp.gt.f32.partialorder %v545, 0.0
    %vm714 = vcmp.gt.f32.partialorder %v634, 0.0
    %vm715 = vcmp.gt.f32.partialorder %v547, 0.0
    %vm716 = vcmp.gt.f32.partialorder %v636, 0.0
    %vm717 = vcmp.gt.f32.partialorder %v550, 0.0
    %vm718 = vcmp.gt.f32.partialorder %v639, 0.0
    %vm719 = vcmp.gt.f32.partialorder %v552, 0.0
    %vm720 = vcmp.gt.f32.partialorder %v641, 0.0
    %vm721 = vcmp.gt.f32.partialorder %v555, 0.0
    %vm722 = vcmp.gt.f32.partialorder %v644, 0.0
    %vm723 = vcmp.gt.f32.partialorder %v557, 0.0
    %vm724 = vcmp.gt.f32.partialorder %v646, 0.0
    %vm725 = vcmp.gt.f32.partialorder %v560, 0.0
    %vm726 = vcmp.gt.f32.partialorder %v649, 0.0
    %vm727 = vcmp.gt.f32.partialorder %v562, 0.0
    %vm728 = vcmp.gt.f32.partialorder %v651, 0.0
    %vm729 = vcmp.gt.f32.partialorder %v565, 0.0
    %vm730 = vcmp.gt.f32.partialorder %v654, 0.0
    %vm731 = vcmp.gt.f32.partialorder %v567, 0.0
    %vm732 = vcmp.gt.f32.partialorder %v656, 0.0
    %vm733 = vcmp.gt.f32.partialorder %v570, 0.0
    %vm734 = vcmp.gt.f32.partialorder %v659, 0.0
    %vm735 = vcmp.gt.f32.partialorder %v572, 0.0
    %vm736 = vcmp.gt.f32.partialorder %v661, 0.0
    %vm737 = vcmp.gt.f32.partialorder %v575, 0.0
    %vm738 = vcmp.gt.f32.partialorder %v664, 0.0
    %vm739 = vcmp.gt.f32.partialorder %v577, 0.0
    %vm740 = vcmp.gt.f32.partialorder %v666, 0.0
    %vm741 = vcmp.gt.f32.partialorder %v580, 0.0
    %vm742 = vcmp.gt.f32.partialorder %v669, 0.0
    %vm743 = vcmp.gt.f32.partialorder %v582, 0.0
    %vm744 = vcmp.gt.f32.partialorder %v671, 0.0
    %vm745 = vcmp.gt.f32.partialorder %v585, 0.0
    %vm746 = vcmp.gt.f32.partialorder %v674, 0.0
    %vm747 = vcmp.gt.f32.partialorder %v587, 0.0
    %vm748 = vcmp.gt.f32.partialorder %v676, 0.0
    %vm749 = vcmp.gt.f32.partialorder %v590, 0.0
    %vm750 = vcmp.gt.f32.partialorder %v679, 0.0
    %vm751 = vcmp.gt.f32.partialorder %v592, 0.0
    %vm752 = vcmp.gt.f32.partialorder %v681, 0.0
    %vm753 = vcmp.gt.f32.partialorder %v595, 0.0
    %vm754 = vcmp.gt.f32.partialorder %v684, 0.0
    %vm755 = vcmp.gt.f32.partialorder %v597, 0.0
    %vm756 = vcmp.gt.f32.partialorder %v686, 0.0
    %vm757 = vcmp.gt.f32.partialorder %v600, 0.0
    %vm758 = vcmp.gt.f32.partialorder %v689, 0.0
    %vm759 = vcmp.gt.f32.partialorder %v602, 0.0
    %vm760 = vcmp.gt.f32.partialorder %v691, 0.0
    %vm761 = vcmp.gt.f32.partialorder %v605, 0.0
    %vm762 = vcmp.gt.f32.partialorder %v694, 0.0
    %vm763 = vcmp.gt.f32.partialorder %v607, 0.0
    %vm764 = vcmp.gt.f32.partialorder %v696, 0.0
    %vm765 = vcmp.gt.f32.partialorder %v610, 0.0
    %vm766 = vcmp.gt.f32.partialorder %v699, 0.0
    %vm767 = vcmp.gt.f32.partialorder %v612, 0.0
    %vm768 = vcmp.gt.f32.partialorder %v701, 0.0
    %vm769 = vcmp.gt.f32.partialorder %v615, 0.0
    %vm770 = vcmp.gt.f32.partialorder %v704, 0.0
    %vm771 = vcmp.gt.f32.partialorder %v617, 0.0
    %vm772 = vcmp.gt.f32.partialorder %v706, 0.0
    %vm773 = vcmp.gt.f32.partialorder %v620, 0.0
    %vm774 = vcmp.gt.f32.partialorder %v709, 0.0
    %vm775 = vcmp.gt.f32.partialorder %v622, 0.0
    %vm776 = vcmp.gt.f32.partialorder %v711, 0.0
    %v777 = vmul.f32 %v545, 0.2
    %v778 = vmul.f32 %v634, 0.2
    %v779 = vmul.f32 %v547, 0.2
    %v780 = vmul.f32 %v636, 0.2
    %v781 = vmul.f32 %v550, 0.2
    %v782 = vmul.f32 %v639, 0.2
    %v783 = vmul.f32 %v552, 0.2
    %v784 = vmul.f32 %v641, 0.2
    %v785 = vmul.f32 %v555, 0.2
    %v786 = vmul.f32 %v644, 0.2
    %v787 = vmul.f32 %v557, 0.2
    %v788 = vmul.f32 %v646, 0.2
    %v789 = vmul.f32 %v560, 0.2
    %v790 = vmul.f32 %v649, 0.2
    %v791 = vmul.f32 %v562, 0.2
    %v792 = vmul.f32 %v651, 0.2
    %v793 = vmul.f32 %v565, 0.2
    %v794 = vmul.f32 %v654, 0.2
    %v795 = vmul.f32 %v567, 0.2
    %v796 = vmul.f32 %v656, 0.2
    %v797 = vmul.f32 %v570, 0.2
    %v798 = vmul.f32 %v659, 0.2
    %v799 = vmul.f32 %v572, 0.2
    %v800 = vmul.f32 %v661, 0.2
    %v801 = vmul.f32 %v575, 0.2
    %v802 = vmul.f32 %v664, 0.2
    %v803 = vmul.f32 %v577, 0.2
    %v804 = vmul.f32 %v666, 0.2
    %v805 = vmul.f32 %v580, 0.2
    %v806 = vmul.f32 %v669, 0.2
    %v807 = vmul.f32 %v582, 0.2
    %v808 = vmul.f32 %v671, 0.2
    %v809 = vmul.f32 %v585, 0.2
    %v810 = vmul.f32 %v674, 0.2
    %v811 = vmul.f32 %v587, 0.2
    %v812 = vmul.f32 %v676, 0.2
    %v813 = vmul.f32 %v590, 0.2
    %v814 = vmul.f32 %v679, 0.2
    %v815 = vmul.f32 %v592, 0.2
    %v816 = vmul.f32 %v681, 0.2
    %v817 = vmul.f32 %v595, 0.2
    %v818 = vmul.f32 %v684, 0.2
    %v819 = vmul.f32 %v597, 0.2
    %v820 = vmul.f32 %v686, 0.2
    %v821 = vmul.f32 %v600, 0.2
    %v822 = vmul.f32 %v689, 0.2
    %v823 = vmul.f32 %v602, 0.2
    %v824 = vmul.f32 %v691, 0.2
    %v825 = vmul.f32 %v605, 0.2
    %v826 = vmul.f32 %v694, 0.2
    %v827 = vmul.f32 %v607, 0.2
    %v828 = vmul.f32 %v696, 0.2
    %v829 = vmul.f32 %v610, 0.2
    %v830 = vmul.f32 %v699, 0.2
    %v831 = vmul.f32 %v612, 0.2
    %v832 = vmul.f32 %v701, 0.2
    %v833 = vmul.f32 %v615, 0.2
    %v834 = vmul.f32 %v704, 0.2
    %v835 = vmul.f32 %v617, 0.2
    %v836 = vmul.f32 %v706, 0.2
    %v837 = vmul.f32 %v620, 0.2
    %v838 = vmul.f32 %v709, 0.2
    %v839 = vmul.f32 %v622, 0.2
    %v840 = vmul.f32 %v711, 0.2
    %v841 = vsel %vm713, %v545, %v777
    %v842 = vsel %vm714, %v634, %v778
    %v843 = vsel %vm715, %v547, %v779
    %v844 = vsel %vm716, %v636, %v780
    %v845 = vsel %vm717, %v550, %v781
    %v846 = vsel %vm718, %v639, %v782
    %v847 = vsel %vm719, %v552, %v783
    %v848 = vsel %vm720, %v641, %v784
    %v849 = vsel %vm721, %v555, %v785
    %v850 = vsel %vm722, %v644, %v786
    %v851 = vsel %vm723, %v557, %v787
    %v852 = vsel %vm724, %v646, %v788
    %v853 = vsel %vm725, %v560, %v789
    %v854 = vsel %vm726, %v649, %v790
    %v855 = vsel %vm727, %v562, %v791
    %v856 = vsel %vm728, %v651, %v792
    %v857 = vsel %vm729, %v565, %v793
    %v858 = vsel %vm730, %v654, %v794
    %v859 = vsel %vm731, %v567, %v795
    %v860 = vsel %vm732, %v656, %v796
    %v861 = vsel %vm733, %v570, %v797
    %v862 = vsel %vm734, %v659, %v798
    %v863 = vsel %vm735, %v572, %v799
    %v864 = vsel %vm736, %v661, %v800
    %v865 = vsel %vm737, %v575, %v801
    %v866 = vsel %vm738, %v664, %v802
    %v867 = vsel %vm739, %v577, %v803
    %v868 = vsel %vm740, %v666, %v804
    %v869 = vsel %vm741, %v580, %v805
    %v870 = vsel %vm742, %v669, %v806
    %v871 = vsel %vm743, %v582, %v807
    %v872 = vsel %vm744, %v671, %v808
    %v873 = vsel %vm745, %v585, %v809
    %v874 = vsel %vm746, %v674, %v810
    %v875 = vsel %vm747, %v587, %v811
    %v876 = vsel %vm748, %v676, %v812
    %v877 = vsel %vm749, %v590, %v813
    %v878 = vsel %vm750, %v679, %v814
    %v879 = vsel %vm751, %v592, %v815
    %v880 = vsel %vm752, %v681, %v816
    %v881 = vsel %vm753, %v595, %v817
    %v882 = vsel %vm754, %v684, %v818
    %v883 = vsel %vm755, %v597, %v819
    %v884 = vsel %vm756, %v686, %v820
    %v885 = vsel %vm757, %v600, %v821
    %v886 = vsel %vm758, %v689, %v822
    %v887 = vsel %vm759, %v602, %v823
    %v888 = vsel %vm760, %v691, %v824
    %v889 = vsel %vm761, %v605, %v825
    %v890 = vsel %vm762, %v694, %v826
    %v891 = vsel %vm763, %v607, %v827
    %v892 = vsel %vm764, %v696, %v828
    %v893 = vsel %vm765, %v610, %v829
    %v894 = vsel %vm766, %v699, %v830
    %v895 = vsel %vm767, %v612, %v831
    %v896 = vsel %vm768, %v701, %v832
    %v897 = vsel %vm769, %v615, %v833
    %v898 = vsel %vm770, %v704, %v834
    %v899 = vsel %vm771, %v617, %v835
    %v900 = vsel %vm772, %v706, %v836
    %v901 = vsel %vm773, %v620, %v837
    %v902 = vsel %vm774, %v709, %v838
    %v903 = vsel %vm775, %v622, %v839
    %v904 = vsel %vm776, %v711, %v840
    %v905 = vpack.c.bf16 %v843, %v841
    %v906 = vpack.c.bf16 %v844, %v842
    %v907 = vpack.c.bf16 %v847, %v845
    %v908 = vpack.c.bf16 %v848, %v846
    %v909 = vpack.c.bf16 %v851, %v849
    %v910 = vpack.c.bf16 %v852, %v850
    %v911 = vpack.c.bf16 %v855, %v853
    %v912 = vpack.c.bf16 %v856, %v854
    %v913 = vpack.c.bf16 %v859, %v857
    %v914 = vpack.c.bf16 %v860, %v858
    %v915 = vpack.c.bf16 %v863, %v861
    %v916 = vpack.c.bf16 %v864, %v862
    %v917 = vpack.c.bf16 %v867, %v865
    %v918 = vpack.c.bf16 %v868, %v866
    %v919 = vpack.c.bf16 %v871, %v869
    %v920 = vpack.c.bf16 %v872, %v870
    %v921 = vpack.c.bf16 %v875, %v873
    %v922 = vpack.c.bf16 %v876, %v874
    %v923 = vpack.c.bf16 %v879, %v877
    %v924 = vpack.c.bf16 %v880, %v878
    %v925 = vpack.c.bf16 %v883, %v881
    %v926 = vpack.c.bf16 %v884, %v882
    %v927 = vpack.c.bf16 %v887, %v885
    %v928 = vpack.c.bf16 %v888, %v886
    %v929 = vpack.c.bf16 %v891, %v889
    %v930 = vpack.c.bf16 %v892, %v890
    %v931 = vpack.c.bf16 %v895, %v893
    %v932 = vpack.c.bf16 %v896, %v894
    %v933 = vpack.c.bf16 %v899, %v897
    %v934 = vpack.c.bf16 %v900, %v898
    %v935 = vpack.c.bf16 %v903, %v901
    %v936 = vpack.c.bf16 %v904, %v902
    %v937 = vld [vmem:[%s5] sm:$0xff]
    %v938 = vld [vmem:[%s5 + $0x8] sm:$0xff]
    %v939 = vld [vmem:[%s5 + $0x10] sm:$0xff]
    %v940 = vld [vmem:[%s5 + $0x18] sm:$0xff]
    %v941 = vld [vmem:[%s5 + $0x20] sm:$0xff]
    %v942 = vld [vmem:[%s5 + $0x28] sm:$0xff]
    %v943 = vld [vmem:[%s5 + $0x30] sm:$0xff]
    %v944 = vld [vmem:[%s5 + $0x38] sm:$0xff]
    %v945 = vld [vmem:[%s5 + $0x40] sm:$0xff]
    %v946 = vld [vmem:[%s5 + $0x48] sm:$0xff]
    %v947 = vld [vmem:[%s5 + $0x50] sm:$0xff]
    %v948 = vld [vmem:[%s5 + $0x58] sm:$0xff]
    %v949 = vld [vmem:[%s5 + $0x60] sm:$0xff]
    %v950 = vld [vmem:[%s5 + $0x68] sm:$0xff]
    %v951 = vld [vmem:[%s5 + $0x70] sm:$0xff]
    %v952 = vld [vmem:[%s5 + $0x78] sm:$0xff]
    %v953 = vld [vmem:[%s5 + $0x80] sm:$0xff]
    %v954 = vld [vmem:[%s5 + $0x88] sm:$0xff]
    %v955 = vld [vmem:[%s5 + $0x90] sm:$0xff]
    %v956 = vld [vmem:[%s5 + $0x98] sm:$0xff]
    %v957 = vld [vmem:[%s5 + $0xa0] sm:$0xff]
    %v958 = vld [vmem:[%s5 + $0xa8] sm:$0xff]
    %v959 = vld [vmem:[%s5 + $0xb0] sm:$0xff]
    %v960 = vld [vmem:[%s5 + $0xb8] sm:$0xff]
    %v961 = vld [vmem:[%s5 + $0xc0] sm:$0xff]
    %v962 = vld [vmem:[%s5 + $0xc8] sm:$0xff]
    %v963 = vld [vmem:[%s5 + $0xd0] sm:$0xff]
    %v964 = vld [vmem:[%s5 + $0xd8] sm:$0xff]
    %v965 = vld [vmem:[%s5 + $0xe0] sm:$0xff]
    %v966 = vld [vmem:[%s5 + $0xe8] sm:$0xff]
    %v967 = vld [vmem:[%s5 + $0xf0] sm:$0xff]
    %v968 = vld [vmem:[%s5 + $0xf8] sm:$0xff]
    %v969 = vld [vmem:[%s5 + $0x100] sm:$0xff]
    %v970 = vld [vmem:[%s5 + $0x108] sm:$0xff]
    %v971 = vld [vmem:[%s5 + $0x110] sm:$0xff]
    %v972 = vld [vmem:[%s5 + $0x118] sm:$0xff]
    %v973 = vld [vmem:[%s5 + $0x120] sm:$0xff]
    %v974 = vld [vmem:[%s5 + $0x128] sm:$0xff]
    %v975 = vld [vmem:[%s5 + $0x130] sm:$0xff]
    %v976 = vld [vmem:[%s5 + $0x138] sm:$0xff]
    %v977 = vld [vmem:[%s5 + $0x140] sm:$0xff]
    %v978 = vld [vmem:[%s5 + $0x148] sm:$0xff]
    %v979 = vld [vmem:[%s5 + $0x150] sm:$0xff]
    %v980 = vld [vmem:[%s5 + $0x158] sm:$0xff]
    %v981 = vld [vmem:[%s5 + $0x160] sm:$0xff]
    %v982 = vld [vmem:[%s5 + $0x168] sm:$0xff]
    %v983 = vld [vmem:[%s5 + $0x170] sm:$0xff]
    %v984 = vld [vmem:[%s5 + $0x178] sm:$0xff]
    %v985 = vld [vmem:[%s5 + $0x180] sm:$0xff]
    %v986 = vld [vmem:[%s5 + $0x188] sm:$0xff]
    %v987 = vld [vmem:[%s5 + $0x190] sm:$0xff]
    %v988 = vld [vmem:[%s5 + $0x198] sm:$0xff]
    %v989 = vld [vmem:[%s5 + $0x1a0] sm:$0xff]
    %v990 = vld [vmem:[%s5 + $0x1a8] sm:$0xff]
    %v991 = vld [vmem:[%s5 + $0x1b0] sm:$0xff]
    %v992 = vld [vmem:[%s5 + $0x1b8] sm:$0xff]
    %v993 = vld [vmem:[%s5 + $0x1c0] sm:$0xff]
    %v994 = vld [vmem:[%s5 + $0x1c8] sm:$0xff]
    %v995 = vld [vmem:[%s5 + $0x1d0] sm:$0xff]
    %v996 = vld [vmem:[%s5 + $0x1d8] sm:$0xff]
    %v997 = vld [vmem:[%s5 + $0x1e0] sm:$0xff]
    %v998 = vld [vmem:[%s5 + $0x1e8] sm:$0xff]
    %v999 = vld [vmem:[%s5 + $0x1f0] sm:$0xff]
    %v1000 = vld [vmem:[%s5 + $0x1f8] sm:$0xff]
    %v1001 = vld [vmem:[%s6] sm:$0xf]
    %v1003 = vperm.slane %v1001, 0
    %v1004 = vperm.slane %v1001, 1
    %v1005 = vperm.slane %v1001, 2
    %v1006 = vperm.slane %v1001, 3
    %v1075 = vunpack.c.l.b16 %v937
    %v1076 = vunpack.c.h.b16 %v937
    %v1077 = vunpack.c.l.b16 %v938
    %v1078 = vunpack.c.h.b16 %v938
    %v1079 = vunpack.c.l.b16 %v939
    %v1080 = vunpack.c.h.b16 %v939
    %v1081 = vunpack.c.l.b16 %v940
    %v1082 = vunpack.c.h.b16 %v940
    %v1083 = vunpack.c.l.b16 %v941
    %v1084 = vunpack.c.h.b16 %v941
    %v1085 = vunpack.c.l.b16 %v942
    %v1086 = vunpack.c.h.b16 %v942
    %v1087 = vunpack.c.l.b16 %v943
    %v1088 = vunpack.c.h.b16 %v943
    %v1089 = vunpack.c.l.b16 %v944
    %v1090 = vunpack.c.h.b16 %v944
    %v1091 = vunpack.c.l.b16 %v945
    %v1092 = vunpack.c.h.b16 %v945
    %v1093 = vunpack.c.l.b16 %v946
    %v1094 = vunpack.c.h.b16 %v946
    %v1095 = vunpack.c.l.b16 %v947
    %v1096 = vunpack.c.h.b16 %v947
    %v1097 = vunpack.c.l.b16 %v948
    %v1098 = vunpack.c.h.b16 %v948
    %v1099 = vunpack.c.l.b16 %v949
    %v1100 = vunpack.c.h.b16 %v949
    %v1101 = vunpack.c.l.b16 %v950
    %v1102 = vunpack.c.h.b16 %v950
    %v1103 = vunpack.c.l.b16 %v951
    %v1104 = vunpack.c.h.b16 %v951
    %v1105 = vunpack.c.l.b16 %v952
    %v1106 = vunpack.c.h.b16 %v952
    %v1107 = vunpack.c.l.b16 %v953
    %v1108 = vunpack.c.h.b16 %v953
    %v1109 = vunpack.c.l.b16 %v954
    %v1110 = vunpack.c.h.b16 %v954
    %v1111 = vunpack.c.l.b16 %v955
    %v1112 = vunpack.c.h.b16 %v955
    %v1113 = vunpack.c.l.b16 %v956
    %v1114 = vunpack.c.h.b16 %v956
    %v1115 = vunpack.c.l.b16 %v957
    %v1116 = vunpack.c.h.b16 %v957
    %v1117 = vunpack.c.l.b16 %v958
    %v1118 = vunpack.c.h.b16 %v958
    %v1119 = vunpack.c.l.b16 %v959
    %v1120 = vunpack.c.h.b16 %v959
    %v1121 = vunpack.c.l.b16 %v960
    %v1122 = vunpack.c.h.b16 %v960
    %v1123 = vunpack.c.l.b16 %v961
    %v1124 = vunpack.c.h.b16 %v961
    %v1125 = vunpack.c.l.b16 %v962
    %v1126 = vunpack.c.h.b16 %v962
    %v1127 = vunpack.c.l.b16 %v963
    %v1128 = vunpack.c.h.b16 %v963
    %v1129 = vunpack.c.l.b16 %v964
    %v1130 = vunpack.c.h.b16 %v964
    %v1131 = vunpack.c.l.b16 %v965
    %v1132 = vunpack.c.h.b16 %v965
    %v1133 = vunpack.c.l.b16 %v966
    %v1134 = vunpack.c.h.b16 %v966
    %v1135 = vunpack.c.l.b16 %v967
    %v1136 = vunpack.c.h.b16 %v967
    %v1137 = vunpack.c.l.b16 %v968
    %v1138 = vunpack.c.h.b16 %v968
    %v1139 = vunpack.c.l.b16 %v969
    %v1140 = vunpack.c.h.b16 %v969
    %v1141 = vunpack.c.l.b16 %v970
    %v1142 = vunpack.c.h.b16 %v970
    %v1143 = vunpack.c.l.b16 %v971
    %v1144 = vunpack.c.h.b16 %v971
    %v1145 = vunpack.c.l.b16 %v972
    %v1146 = vunpack.c.h.b16 %v972
    %v1147 = vunpack.c.l.b16 %v973
    %v1148 = vunpack.c.h.b16 %v973
    %v1149 = vunpack.c.l.b16 %v974
    %v1150 = vunpack.c.h.b16 %v974
    %v1151 = vunpack.c.l.b16 %v975
    %v1152 = vunpack.c.h.b16 %v975
    %v1153 = vunpack.c.l.b16 %v976
    %v1154 = vunpack.c.h.b16 %v976
    %v1155 = vunpack.c.l.b16 %v977
    %v1156 = vunpack.c.h.b16 %v977
    %v1157 = vunpack.c.l.b16 %v978
    %v1158 = vunpack.c.h.b16 %v978
    %v1159 = vunpack.c.l.b16 %v979
    %v1160 = vunpack.c.h.b16 %v979
    %v1161 = vunpack.c.l.b16 %v980
    %v1162 = vunpack.c.h.b16 %v980
    %v1163 = vunpack.c.l.b16 %v981
    %v1164 = vunpack.c.h.b16 %v981
    %v1165 = vunpack.c.l.b16 %v982
    %v1166 = vunpack.c.h.b16 %v982
    %v1167 = vunpack.c.l.b16 %v983
    %v1168 = vunpack.c.h.b16 %v983
    %v1169 = vunpack.c.l.b16 %v984
    %v1170 = vunpack.c.h.b16 %v984
    %v1171 = vunpack.c.l.b16 %v985
    %v1172 = vunpack.c.h.b16 %v985
    %v1173 = vunpack.c.l.b16 %v986
    %v1174 = vunpack.c.h.b16 %v986
    %v1175 = vunpack.c.l.b16 %v987
    %v1176 = vunpack.c.h.b16 %v987
    %v1177 = vunpack.c.l.b16 %v988
    %v1178 = vunpack.c.h.b16 %v988
    %v1179 = vunpack.c.l.b16 %v989
    %v1180 = vunpack.c.h.b16 %v989
    %v1181 = vunpack.c.l.b16 %v990
    %v1182 = vunpack.c.h.b16 %v990
    %v1183 = vunpack.c.l.b16 %v991
    %v1184 = vunpack.c.h.b16 %v991
    %v1185 = vunpack.c.l.b16 %v992
    %v1186 = vunpack.c.h.b16 %v992
    %v1187 = vunpack.c.l.b16 %v993
    %v1188 = vunpack.c.h.b16 %v993
    %v1189 = vunpack.c.l.b16 %v994
    %v1190 = vunpack.c.h.b16 %v994
    %v1191 = vunpack.c.l.b16 %v995
    %v1192 = vunpack.c.h.b16 %v995
    %v1193 = vunpack.c.l.b16 %v996
    %v1194 = vunpack.c.h.b16 %v996
    %v1195 = vunpack.c.l.b16 %v997
    %v1196 = vunpack.c.h.b16 %v997
    %v1197 = vunpack.c.l.b16 %v998
    %v1198 = vunpack.c.h.b16 %v998
    %v1199 = vunpack.c.l.b16 %v999
    %v1200 = vunpack.c.h.b16 %v999
    %v1201 = vunpack.c.l.b16 %v1000
    %v1202 = vunpack.c.h.b16 %v1000
    %v1203 = vpack.c.b16 %v1079, %v1075
    %v1204 = vpack.c.b16 %v1080, %v1076
    %v1205 = vpack.c.b16 %v1081, %v1077
    %v1206 = vpack.c.b16 %v1082, %v1078
    %v1207 = vpack.c.b16 %v1087, %v1083
    %v1208 = vpack.c.b16 %v1088, %v1084
    %v1209 = vpack.c.b16 %v1089, %v1085
    %v1210 = vpack.c.b16 %v1090, %v1086
    %v1211 = vpack.c.b16 %v1095, %v1091
    %v1212 = vpack.c.b16 %v1096, %v1092
    %v1213 = vpack.c.b16 %v1097, %v1093
    %v1214 = vpack.c.b16 %v1098, %v1094
    %v1215 = vpack.c.b16 %v1103, %v1099
    %v1216 = vpack.c.b16 %v1104, %v1100
    %v1217 = vpack.c.b16 %v1105, %v1101
    %v1218 = vpack.c.b16 %v1106, %v1102
    %v1219 = vpack.c.b16 %v1111, %v1107
    %v1220 = vpack.c.b16 %v1112, %v1108
    %v1221 = vpack.c.b16 %v1113, %v1109
    %v1222 = vpack.c.b16 %v1114, %v1110
    %v1223 = vpack.c.b16 %v1119, %v1115
    %v1224 = vpack.c.b16 %v1120, %v1116
    %v1225 = vpack.c.b16 %v1121, %v1117
    %v1226 = vpack.c.b16 %v1122, %v1118
    %v1227 = vpack.c.b16 %v1127, %v1123
    %v1228 = vpack.c.b16 %v1128, %v1124
    %v1229 = vpack.c.b16 %v1129, %v1125
    %v1230 = vpack.c.b16 %v1130, %v1126
    %v1231 = vpack.c.b16 %v1135, %v1131
    %v1232 = vpack.c.b16 %v1136, %v1132
    %v1233 = vpack.c.b16 %v1137, %v1133
    %v1234 = vpack.c.b16 %v1138, %v1134
    %v1235 = vpack.c.b16 %v1143, %v1139
    %v1236 = vpack.c.b16 %v1144, %v1140
    %v1237 = vpack.c.b16 %v1145, %v1141
    %v1238 = vpack.c.b16 %v1146, %v1142
    %v1239 = vpack.c.b16 %v1151, %v1147
    %v1240 = vpack.c.b16 %v1152, %v1148
    %v1241 = vpack.c.b16 %v1153, %v1149
    %v1242 = vpack.c.b16 %v1154, %v1150
    %v1243 = vpack.c.b16 %v1159, %v1155
    %v1244 = vpack.c.b16 %v1160, %v1156
    %v1245 = vpack.c.b16 %v1161, %v1157
    %v1246 = vpack.c.b16 %v1162, %v1158
    %v1247 = vpack.c.b16 %v1167, %v1163
    %v1248 = vpack.c.b16 %v1168, %v1164
    %v1249 = vpack.c.b16 %v1169, %v1165
    %v1250 = vpack.c.b16 %v1170, %v1166
    %v1251 = vpack.c.b16 %v1175, %v1171
    %v1252 = vpack.c.b16 %v1176, %v1172
    %v1253 = vpack.c.b16 %v1177, %v1173
    %v1254 = vpack.c.b16 %v1178, %v1174
    %v1255 = vpack.c.b16 %v1183, %v1179
    %v1256 = vpack.c.b16 %v1184, %v1180
    %v1257 = vpack.c.b16 %v1185, %v1181
    %v1258 = vpack.c.b16 %v1186, %v1182
    %v1259 = vpack.c.b16 %v1191, %v1187
    %v1260 = vpack.c.b16 %v1192, %v1188
    %v1261 = vpack.c.b16 %v1193, %v1189
    %v1262 = vpack.c.b16 %v1194, %v1190
    %v1263 = vpack.c.b16 %v1199, %v1195
    %v1264 = vpack.c.b16 %v1200, %v1196
    %v1265 = vpack.c.b16 %v1201, %v1197
    %v1266 = vpack.c.b16 %v1202, %v1198
    %1331 = vmatpush.bf16.msra.mxu0 %v1231
    %1332 = vmatpush.bf16.msra.mxu0 %v1227
    %1333 = vmatpush.bf16.msra.mxu0 %v1223
    %1334 = vmatpush.bf16.msra.mxu0 %v1219
    %1335 = vmatpush.bf16.msra.mxu0 %v1215
    %1336 = vmatpush.bf16.msra.mxu0 %v1211
    %1337 = vmatpush.bf16.msra.mxu0 %v1207
    %1338 = vmatpush.bf16.msra.mxu0 %v1203
    %1339 = vmatmul.bf16.gmra.mxu0 %v905
    %v1340 = vpop.f32.mrf.mxu0
    %v1341 = vadd.f32 %v1003, %v1340
    %v1342 = vpop.f32.mrf.mxu0
    %v1343 = vadd.f32 %v1003, %v1342
    %1344 = vmatmul.bf16.gmra.mxu0 %v907
    %v1345 = vpop.f32.mrf.mxu0
    %v1346 = vadd.f32 %v1003, %v1345
    %v1347 = vpop.f32.mrf.mxu0
    %v1348 = vadd.f32 %v1003, %v1347
    %1349 = vmatmul.bf16.gmra.mxu0 %v909
    %v1350 = vpop.f32.mrf.mxu0
    %v1351 = vadd.f32 %v1003, %v1350
    %v1352 = vpop.f32.mrf.mxu0
    %v1353 = vadd.f32 %v1003, %v1352
    %1354 = vmatmul.bf16.gmra.mxu0 %v911
    %v1355 = vpop.f32.mrf.mxu0
    %v1356 = vadd.f32 %v1003, %v1355
    %v1357 = vpop.f32.mrf.mxu0
    %v1358 = vadd.f32 %v1003, %v1357
    %1359 = vmatmul.bf16.gmra.mxu0 %v913
    %v1360 = vpop.f32.mrf.mxu0
    %v1361 = vadd.f32 %v1003, %v1360
    %v1362 = vpop.f32.mrf.mxu0
    %v1363 = vadd.f32 %v1003, %v1362
    %1364 = vmatmul.bf16.gmra.mxu0 %v915
    %v1365 = vpop.f32.mrf.mxu0
    %v1366 = vadd.f32 %v1003, %v1365
    %v1367 = vpop.f32.mrf.mxu0
    %v1368 = vadd.f32 %v1003, %v1367
    %1369 = vmatmul.bf16.gmra.mxu0 %v917
    %v1370 = vpop.f32.mrf.mxu0
    %v1371 = vadd.f32 %v1003, %v1370
    %v1372 = vpop.f32.mrf.mxu0
    %v1373 = vadd.f32 %v1003, %v1372
    %1374 = vmatmul.bf16.gmra.mxu0 %v919
    %v1375 = vpop.f32.mrf.mxu0
    %v1376 = vadd.f32 %v1003, %v1375
    %v1377 = vpop.f32.mrf.mxu0
    %v1378 = vadd.f32 %v1003, %v1377
    %1379 = vmatmul.bf16.gmra.mxu0 %v921
    %v1380 = vpop.f32.mrf.mxu0
    %v1381 = vadd.f32 %v1003, %v1380
    %v1382 = vpop.f32.mrf.mxu0
    %v1383 = vadd.f32 %v1003, %v1382
    %1384 = vmatmul.bf16.gmra.mxu0 %v923
    %v1385 = vpop.f32.mrf.mxu0
    %v1386 = vadd.f32 %v1003, %v1385
    %v1387 = vpop.f32.mrf.mxu0
    %v1388 = vadd.f32 %v1003, %v1387
    %1389 = vmatmul.bf16.gmra.mxu0 %v925
    %v1390 = vpop.f32.mrf.mxu0
    %v1391 = vadd.f32 %v1003, %v1390
    %v1392 = vpop.f32.mrf.mxu0
    %v1393 = vadd.f32 %v1003, %v1392
    %1394 = vmatmul.bf16.gmra.mxu0 %v927
    %v1395 = vpop.f32.mrf.mxu0
    %v1396 = vadd.f32 %v1003, %v1395
    %v1397 = vpop.f32.mrf.mxu0
    %v1398 = vadd.f32 %v1003, %v1397
    %1399 = vmatmul.bf16.gmra.mxu0 %v929
    %v1400 = vpop.f32.mrf.mxu0
    %v1401 = vadd.f32 %v1003, %v1400
    %v1402 = vpop.f32.mrf.mxu0
    %v1403 = vadd.f32 %v1003, %v1402
    %1404 = vmatmul.bf16.gmra.mxu0 %v931
    %v1405 = vpop.f32.mrf.mxu0
    %v1406 = vadd.f32 %v1003, %v1405
    %v1407 = vpop.f32.mrf.mxu0
    %v1408 = vadd.f32 %v1003, %v1407
    %1409 = vmatmul.bf16.gmra.mxu0 %v933
    %v1410 = vpop.f32.mrf.mxu0
    %v1411 = vadd.f32 %v1003, %v1410
    %v1412 = vpop.f32.mrf.mxu0
    %v1413 = vadd.f32 %v1003, %v1412
    %1414 = vmatmul.bf16.gmra.mxu0 %v935
    %v1415 = vpop.f32.mrf.mxu0
    %v1416 = vadd.f32 %v1003, %v1415
    %v1417 = vpop.f32.mrf.mxu0
    %v1418 = vadd.f32 %v1003, %v1417
    %1419 = vdwg.mxu0
    %1420 = vmatpush.bf16.msra.mxu0 %v1263
    %1421 = vmatpush.bf16.msra.mxu0 %v1259
    %1422 = vmatpush.bf16.msra.mxu0 %v1255
    %1423 = vmatpush.bf16.msra.mxu0 %v1251
    %1424 = vmatpush.bf16.msra.mxu0 %v1247
    %1425 = vmatpush.bf16.msra.mxu0 %v1243
    %1426 = vmatpush.bf16.msra.mxu0 %v1239
    %1427 = vmatpush.bf16.msra.mxu0 %v1235
    %1428 = vmatmul.bf16.gmra.mxu0 %v906
    %v1429 = vpop.f32.mrf.mxu0
    %v1430 = vadd.f32 %v1341, %v1429
    %v1431 = vpop.f32.mrf.mxu0
    %v1432 = vadd.f32 %v1343, %v1431
    %1433 = vmatmul.bf16.gmra.mxu0 %v908
    %v1434 = vpop.f32.mrf.mxu0
    %v1435 = vadd.f32 %v1346, %v1434
    %v1436 = vpop.f32.mrf.mxu0
    %v1437 = vadd.f32 %v1348, %v1436
    %1438 = vmatmul.bf16.gmra.mxu0 %v910
    %v1439 = vpop.f32.mrf.mxu0
    %v1440 = vadd.f32 %v1351, %v1439
    %v1441 = vpop.f32.mrf.mxu0
    %v1442 = vadd.f32 %v1353, %v1441
    %1443 = vmatmul.bf16.gmra.mxu0 %v912
    %v1444 = vpop.f32.mrf.mxu0
    %v1445 = vadd.f32 %v1356, %v1444
    %v1446 = vpop.f32.mrf.mxu0
    %v1447 = vadd.f32 %v1358, %v1446
    %1448 = vmatmul.bf16.gmra.mxu0 %v914
    %v1449 = vpop.f32.mrf.mxu0
    %v1450 = vadd.f32 %v1361, %v1449
    %v1451 = vpop.f32.mrf.mxu0
    %v1452 = vadd.f32 %v1363, %v1451
    %1453 = vmatmul.bf16.gmra.mxu0 %v916
    %v1454 = vpop.f32.mrf.mxu0
    %v1455 = vadd.f32 %v1366, %v1454
    %v1456 = vpop.f32.mrf.mxu0
    %v1457 = vadd.f32 %v1368, %v1456
    %1458 = vmatmul.bf16.gmra.mxu0 %v918
    %v1459 = vpop.f32.mrf.mxu0
    %v1460 = vadd.f32 %v1371, %v1459
    %v1461 = vpop.f32.mrf.mxu0
    %v1462 = vadd.f32 %v1373, %v1461
    %1463 = vmatmul.bf16.gmra.mxu0 %v920
    %v1464 = vpop.f32.mrf.mxu0
    %v1465 = vadd.f32 %v1376, %v1464
    %v1466 = vpop.f32.mrf.mxu0
    %v1467 = vadd.f32 %v1378, %v1466
    %1468 = vmatmul.bf16.gmra.mxu0 %v922
    %v1469 = vpop.f32.mrf.mxu0
    %v1470 = vadd.f32 %v1381, %v1469
    %v1471 = vpop.f32.mrf.mxu0
    %v1472 = vadd.f32 %v1383, %v1471
    %1473 = vmatmul.bf16.gmra.mxu0 %v924
    %v1474 = vpop.f32.mrf.mxu0
    %v1475 = vadd.f32 %v1386, %v1474
    %v1476 = vpop.f32.mrf.mxu0
    %v1477 = vadd.f32 %v1388, %v1476
    %1478 = vmatmul.bf16.gmra.mxu0 %v926
    %v1479 = vpop.f32.mrf.mxu0
    %v1480 = vadd.f32 %v1391, %v1479
    %v1481 = vpop.f32.mrf.mxu0
    %v1482 = vadd.f32 %v1393, %v1481
    %1483 = vmatmul.bf16.gmra.mxu0 %v928
    %v1484 = vpop.f32.mrf.mxu0
    %v1485 = vadd.f32 %v1396, %v1484
    %v1486 = vpop.f32.mrf.mxu0
    %v1487 = vadd.f32 %v1398, %v1486
    %1488 = vmatmul.bf16.gmra.mxu0 %v930
    %v1489 = vpop.f32.mrf.mxu0
    %v1490 = vadd.f32 %v1401, %v1489
    %v1491 = vpop.f32.mrf.mxu0
    %v1492 = vadd.f32 %v1403, %v1491
    %1493 = vmatmul.bf16.gmra.mxu0 %v932
    %v1494 = vpop.f32.mrf.mxu0
    %v1495 = vadd.f32 %v1406, %v1494
    %v1496 = vpop.f32.mrf.mxu0
    %v1497 = vadd.f32 %v1408, %v1496
    %1498 = vmatmul.bf16.gmra.mxu0 %v934
    %v1499 = vpop.f32.mrf.mxu0
    %v1500 = vadd.f32 %v1411, %v1499
    %v1501 = vpop.f32.mrf.mxu0
    %v1502 = vadd.f32 %v1413, %v1501
    %1503 = vmatmul.bf16.gmra.mxu0 %v936
    %v1504 = vpop.f32.mrf.mxu0
    %v1505 = vadd.f32 %v1416, %v1504
    %v1506 = vpop.f32.mrf.mxu0
    %v1507 = vadd.f32 %v1418, %v1506
    %1508 = vdwg.mxu0
    %1509 = vmatpush.bf16.msra.mxu0 %v1232
    %1510 = vmatpush.bf16.msra.mxu0 %v1228
    %1511 = vmatpush.bf16.msra.mxu0 %v1224
    %1512 = vmatpush.bf16.msra.mxu0 %v1220
    %1513 = vmatpush.bf16.msra.mxu0 %v1216
    %1514 = vmatpush.bf16.msra.mxu0 %v1212
    %1515 = vmatpush.bf16.msra.mxu0 %v1208
    %1516 = vmatpush.bf16.msra.mxu0 %v1204
    %1517 = vmatmul.bf16.gmra.mxu0 %v905
    %v1518 = vpop.f32.mrf.mxu0
    %v1519 = vadd.f32 %v1004, %v1518
    %v1520 = vpop.f32.mrf.mxu0
    %v1521 = vadd.f32 %v1004, %v1520
    %1522 = vmatmul.bf16.gmra.mxu0 %v907
    %v1523 = vpop.f32.mrf.mxu0
    %v1524 = vadd.f32 %v1004, %v1523
    %v1525 = vpop.f32.mrf.mxu0
    %v1526 = vadd.f32 %v1004, %v1525
    %1527 = vmatmul.bf16.gmra.mxu0 %v909
    %v1528 = vpop.f32.mrf.mxu0
    %v1529 = vadd.f32 %v1004, %v1528
    %v1530 = vpop.f32.mrf.mxu0
    %v1531 = vadd.f32 %v1004, %v1530
    %1532 = vmatmul.bf16.gmra.mxu0 %v911
    %v1533 = vpop.f32.mrf.mxu0
    %v1534 = vadd.f32 %v1004, %v1533
    %v1535 = vpop.f32.mrf.mxu0
    %v1536 = vadd.f32 %v1004, %v1535
    %1537 = vmatmul.bf16.gmra.mxu0 %v913
    %v1538 = vpop.f32.mrf.mxu0
    %v1539 = vadd.f32 %v1004, %v1538
    %v1540 = vpop.f32.mrf.mxu0
    %v1541 = vadd.f32 %v1004, %v1540
    %1542 = vmatmul.bf16.gmra.mxu0 %v915
    %v1543 = vpop.f32.mrf.mxu0
    %v1544 = vadd.f32 %v1004, %v1543
    %v1545 = vpop.f32.mrf.mxu0
    %v1546 = vadd.f32 %v1004, %v1545
    %1547 = vmatmul.bf16.gmra.mxu0 %v917
    %v1548 = vpop.f32.mrf.mxu0
    %v1549 = vadd.f32 %v1004, %v1548
    %v1550 = vpop.f32.mrf.mxu0
    %v1551 = vadd.f32 %v1004, %v1550
    %1552 = vmatmul.bf16.gmra.mxu0 %v919
    %v1553 = vpop.f32.mrf.mxu0
    %v1554 = vadd.f32 %v1004, %v1553
    %v1555 = vpop.f32.mrf.mxu0
    %v1556 = vadd.f32 %v1004, %v1555
    %1557 = vmatmul.bf16.gmra.mxu0 %v921
    %v1558 = vpop.f32.mrf.mxu0
    %v1559 = vadd.f32 %v1004, %v1558
    %v1560 = vpop.f32.mrf.mxu0
    %v1561 = vadd.f32 %v1004, %v1560
    %1562 = vmatmul.bf16.gmra.mxu0 %v923
    %v1563 = vpop.f32.mrf.mxu0
    %v1564 = vadd.f32 %v1004, %v1563
    %v1565 = vpop.f32.mrf.mxu0
    %v1566 = vadd.f32 %v1004, %v1565
    %1567 = vmatmul.bf16.gmra.mxu0 %v925
    %v1568 = vpop.f32.mrf.mxu0
    %v1569 = vadd.f32 %v1004, %v1568
    %v1570 = vpop.f32.mrf.mxu0
    %v1571 = vadd.f32 %v1004, %v1570
    %1572 = vmatmul.bf16.gmra.mxu0 %v927
    %v1573 = vpop.f32.mrf.mxu0
    %v1574 = vadd.f32 %v1004, %v1573
    %v1575 = vpop.f32.mrf.mxu0
    %v1576 = vadd.f32 %v1004, %v1575
    %1577 = vmatmul.bf16.gmra.mxu0 %v929
    %v1578 = vpop.f32.mrf.mxu0
    %v1579 = vadd.f32 %v1004, %v1578
    %v1580 = vpop.f32.mrf.mxu0
    %v1581 = vadd.f32 %v1004, %v1580
    %1582 = vmatmul.bf16.gmra.mxu0 %v931
    %v1583 = vpop.f32.mrf.mxu0
    %v1584 = vadd.f32 %v1004, %v1583
    %v1585 = vpop.f32.mrf.mxu0
    %v1586 = vadd.f32 %v1004, %v1585
    %1587 = vmatmul.bf16.gmra.mxu0 %v933
    %v1588 = vpop.f32.mrf.mxu0
    %v1589 = vadd.f32 %v1004, %v1588
    %v1590 = vpop.f32.mrf.mxu0
    %v1591 = vadd.f32 %v1004, %v1590
    %1592 = vmatmul.bf16.gmra.mxu0 %v935
    %v1593 = vpop.f32.mrf.mxu0
    %v1594 = vadd.f32 %v1004, %v1593
    %v1595 = vpop.f32.mrf.mxu0
    %v1596 = vadd.f32 %v1004, %v1595
    %1597 = vdwg.mxu0
    %1598 = vmatpush.bf16.msra.mxu0 %v1264
    %1599 = vmatpush.bf16.msra.mxu0 %v1260
    %1600 = vmatpush.bf16.msra.mxu0 %v1256
    %1601 = vmatpush.bf16.msra.mxu0 %v1252
    %1602 = vmatpush.bf16.msra.mxu0 %v1248
    %1603 = vmatpush.bf16.msra.mxu0 %v1244
    %1604 = vmatpush.bf16.msra.mxu0 %v1240
    %1605 = vmatpush.bf16.msra.mxu0 %v1236
    %1606 = vmatmul.bf16.gmra.mxu0 %v906
    %v1607 = vpop.f32.mrf.mxu0
    %v1608 = vadd.f32 %v1519, %v1607
    %v1609 = vpop.f32.mrf.mxu0
    %v1610 = vadd.f32 %v1521, %v1609
    %1611 = vmatmul.bf16.gmra.mxu0 %v908
    %v1612 = vpop.f32.mrf.mxu0
    %v1613 = vadd.f32 %v1524, %v1612
    %v1614 = vpop.f32.mrf.mxu0
    %v1615 = vadd.f32 %v1526, %v1614
    %1616 = vmatmul.bf16.gmra.mxu0 %v910
    %v1617 = vpop.f32.mrf.mxu0
    %v1618 = vadd.f32 %v1529, %v1617
    %v1619 = vpop.f32.mrf.mxu0
    %v1620 = vadd.f32 %v1531, %v1619
    %1621 = vmatmul.bf16.gmra.mxu0 %v912
    %v1622 = vpop.f32.mrf.mxu0
    %v1623 = vadd.f32 %v1534, %v1622
    %v1624 = vpop.f32.mrf.mxu0
    %v1625 = vadd.f32 %v1536, %v1624
    %1626 = vmatmul.bf16.gmra.mxu0 %v914
    %v1627 = vpop.f32.mrf.mxu0
    %v1628 = vadd.f32 %v1539, %v1627
    %v1629 = vpop.f32.mrf.mxu0
    %v1630 = vadd.f32 %v1541, %v1629
    %1631 = vmatmul.bf16.gmra.mxu0 %v916
    %v1632 = vpop.f32.mrf.mxu0
    %v1633 = vadd.f32 %v1544, %v1632
    %v1634 = vpop.f32.mrf.mxu0
    %v1635 = vadd.f32 %v1546, %v1634
    %1636 = vmatmul.bf16.gmra.mxu0 %v918
    %v1637 = vpop.f32.mrf.mxu0
    %v1638 = vadd.f32 %v1549, %v1637
    %v1639 = vpop.f32.mrf.mxu0
    %v1640 = vadd.f32 %v1551, %v1639
    %1641 = vmatmul.bf16.gmra.mxu0 %v920
    %v1642 = vpop.f32.mrf.mxu0
    %v1643 = vadd.f32 %v1554, %v1642
    %v1644 = vpop.f32.mrf.mxu0
    %v1645 = vadd.f32 %v1556, %v1644
    %1646 = vmatmul.bf16.gmra.mxu0 %v922
    %v1647 = vpop.f32.mrf.mxu0
    %v1648 = vadd.f32 %v1559, %v1647
    %v1649 = vpop.f32.mrf.mxu0
    %v1650 = vadd.f32 %v1561, %v1649
    %1651 = vmatmul.bf16.gmra.mxu0 %v924
    %v1652 = vpop.f32.mrf.mxu0
    %v1653 = vadd.f32 %v1564, %v1652
    %v1654 = vpop.f32.mrf.mxu0
    %v1655 = vadd.f32 %v1566, %v1654
    %1656 = vmatmul.bf16.gmra.mxu0 %v926
    %v1657 = vpop.f32.mrf.mxu0
    %v1658 = vadd.f32 %v1569, %v1657
    %v1659 = vpop.f32.mrf.mxu0
    %v1660 = vadd.f32 %v1571, %v1659
    %1661 = vmatmul.bf16.gmra.mxu0 %v928
    %v1662 = vpop.f32.mrf.mxu0
    %v1663 = vadd.f32 %v1574, %v1662
    %v1664 = vpop.f32.mrf.mxu0
    %v1665 = vadd.f32 %v1576, %v1664
    %1666 = vmatmul.bf16.gmra.mxu0 %v930
    %v1667 = vpop.f32.mrf.mxu0
    %v1668 = vadd.f32 %v1579, %v1667
    %v1669 = vpop.f32.mrf.mxu0
    %v1670 = vadd.f32 %v1581, %v1669
    %1671 = vmatmul.bf16.gmra.mxu0 %v932
    %v1672 = vpop.f32.mrf.mxu0
    %v1673 = vadd.f32 %v1584, %v1672
    %v1674 = vpop.f32.mrf.mxu0
    %v1675 = vadd.f32 %v1586, %v1674
    %1676 = vmatmul.bf16.gmra.mxu0 %v934
    %v1677 = vpop.f32.mrf.mxu0
    %v1678 = vadd.f32 %v1589, %v1677
    %v1679 = vpop.f32.mrf.mxu0
    %v1680 = vadd.f32 %v1591, %v1679
    %1681 = vmatmul.bf16.gmra.mxu0 %v936
    %v1682 = vpop.f32.mrf.mxu0
    %v1683 = vadd.f32 %v1594, %v1682
    %v1684 = vpop.f32.mrf.mxu0
    %v1685 = vadd.f32 %v1596, %v1684
    %1686 = vdwg.mxu0
    %1687 = vmatpush.bf16.msra.mxu0 %v1233
    %1688 = vmatpush.bf16.msra.mxu0 %v1229
    %1689 = vmatpush.bf16.msra.mxu0 %v1225
    %1690 = vmatpush.bf16.msra.mxu0 %v1221
    %1691 = vmatpush.bf16.msra.mxu0 %v1217
    %1692 = vmatpush.bf16.msra.mxu0 %v1213
    %1693 = vmatpush.bf16.msra.mxu0 %v1209
    %1694 = vmatpush.bf16.msra.mxu0 %v1205
    %1695 = vmatmul.bf16.gmra.mxu0 %v905
    %v1696 = vpop.f32.mrf.mxu0
    %v1697 = vadd.f32 %v1005, %v1696
    %v1698 = vpop.f32.mrf.mxu0
    %v1699 = vadd.f32 %v1005, %v1698
    %1700 = vmatmul.bf16.gmra.mxu0 %v907
    %v1701 = vpop.f32.mrf.mxu0
    %v1702 = vadd.f32 %v1005, %v1701
    %v1703 = vpop.f32.mrf.mxu0
    %v1704 = vadd.f32 %v1005, %v1703
    %1705 = vmatmul.bf16.gmra.mxu0 %v909
    %v1706 = vpop.f32.mrf.mxu0
    %v1707 = vadd.f32 %v1005, %v1706
    %v1708 = vpop.f32.mrf.mxu0
    %v1709 = vadd.f32 %v1005, %v1708
    %1710 = vmatmul.bf16.gmra.mxu0 %v911
    %v1711 = vpop.f32.mrf.mxu0
    %v1712 = vadd.f32 %v1005, %v1711
    %v1713 = vpop.f32.mrf.mxu0
    %v1714 = vadd.f32 %v1005, %v1713
    %1715 = vmatmul.bf16.gmra.mxu0 %v913
    %v1716 = vpop.f32.mrf.mxu0
    %v1717 = vadd.f32 %v1005, %v1716
    %v1718 = vpop.f32.mrf.mxu0
    %v1719 = vadd.f32 %v1005, %v1718
    %1720 = vmatmul.bf16.gmra.mxu0 %v915
    %v1721 = vpop.f32.mrf.mxu0
    %v1722 = vadd.f32 %v1005, %v1721
    %v1723 = vpop.f32.mrf.mxu0
    %v1724 = vadd.f32 %v1005, %v1723
    %1725 = vmatmul.bf16.gmra.mxu0 %v917
    %v1726 = vpop.f32.mrf.mxu0
    %v1727 = vadd.f32 %v1005, %v1726
    %v1728 = vpop.f32.mrf.mxu0
    %v1729 = vadd.f32 %v1005, %v1728
    %1730 = vmatmul.bf16.gmra.mxu0 %v919
    %v1731 = vpop.f32.mrf.mxu0
    %v1732 = vadd.f32 %v1005, %v1731
    %v1733 = vpop.f32.mrf.mxu0
    %v1734 = vadd.f32 %v1005, %v1733
    %1735 = vmatmul.bf16.gmra.mxu0 %v921
    %v1736 = vpop.f32.mrf.mxu0
    %v1737 = vadd.f32 %v1005, %v1736
    %v1738 = vpop.f32.mrf.mxu0
    %v1739 = vadd.f32 %v1005, %v1738
    %1740 = vmatmul.bf16.gmra.mxu0 %v923
    %v1741 = vpop.f32.mrf.mxu0
    %v1742 = vadd.f32 %v1005, %v1741
    %v1743 = vpop.f32.mrf.mxu0
    %v1744 = vadd.f32 %v1005, %v1743
    %1745 = vmatmul.bf16.gmra.mxu0 %v925
    %v1746 = vpop.f32.mrf.mxu0
    %v1747 = vadd.f32 %v1005, %v1746
    %v1748 = vpop.f32.mrf.mxu0
    %v1749 = vadd.f32 %v1005, %v1748
    %1750 = vmatmul.bf16.gmra.mxu0 %v927
    %v1751 = vpop.f32.mrf.mxu0
    %v1752 = vadd.f32 %v1005, %v1751
    %v1753 = vpop.f32.mrf.mxu0
    %v1754 = vadd.f32 %v1005, %v1753
    %1755 = vmatmul.bf16.gmra.mxu0 %v929
    %v1756 = vpop.f32.mrf.mxu0
    %v1757 = vadd.f32 %v1005, %v1756
    %v1758 = vpop.f32.mrf.mxu0
    %v1759 = vadd.f32 %v1005, %v1758
    %1760 = vmatmul.bf16.gmra.mxu0 %v931
    %v1761 = vpop.f32.mrf.mxu0
    %v1762 = vadd.f32 %v1005, %v1761
    %v1763 = vpop.f32.mrf.mxu0
    %v1764 = vadd.f32 %v1005, %v1763
    %1765 = vmatmul.bf16.gmra.mxu0 %v933
    %v1766 = vpop.f32.mrf.mxu0
    %v1767 = vadd.f32 %v1005, %v1766
    %v1768 = vpop.f32.mrf.mxu0
    %v1769 = vadd.f32 %v1005, %v1768
    %1770 = vmatmul.bf16.gmra.mxu0 %v935
    %v1771 = vpop.f32.mrf.mxu0
    %v1772 = vadd.f32 %v1005, %v1771
    %v1773 = vpop.f32.mrf.mxu0
    %v1774 = vadd.f32 %v1005, %v1773
    %1775 = vdwg.mxu0
    %1776 = vmatpush.bf16.msra.mxu0 %v1265
    %1777 = vmatpush.bf16.msra.mxu0 %v1261
    %1778 = vmatpush.bf16.msra.mxu0 %v1257
    %1779 = vmatpush.bf16.msra.mxu0 %v1253
    %1780 = vmatpush.bf16.msra.mxu0 %v1249
    %1781 = vmatpush.bf16.msra.mxu0 %v1245
    %1782 = vmatpush.bf16.msra.mxu0 %v1241
    %1783 = vmatpush.bf16.msra.mxu0 %v1237
    %1784 = vmatmul.bf16.gmra.mxu0 %v906
    %v1785 = vpop.f32.mrf.mxu0
    %v1786 = vadd.f32 %v1697, %v1785
    %v1787 = vpop.f32.mrf.mxu0
    %v1788 = vadd.f32 %v1699, %v1787
    %1789 = vmatmul.bf16.gmra.mxu0 %v908
    %v1790 = vpop.f32.mrf.mxu0
    %v1791 = vadd.f32 %v1702, %v1790
    %v1792 = vpop.f32.mrf.mxu0
    %v1793 = vadd.f32 %v1704, %v1792
    %1794 = vmatmul.bf16.gmra.mxu0 %v910
    %v1795 = vpop.f32.mrf.mxu0
    %v1796 = vadd.f32 %v1707, %v1795
    %v1797 = vpop.f32.mrf.mxu0
    %v1798 = vadd.f32 %v1709, %v1797
    %1799 = vmatmul.bf16.gmra.mxu0 %v912
    %v1800 = vpop.f32.mrf.mxu0
    %v1801 = vadd.f32 %v1712, %v1800
    %v1802 = vpop.f32.mrf.mxu0
    %v1803 = vadd.f32 %v1714, %v1802
    %1804 = vmatmul.bf16.gmra.mxu0 %v914
    %v1805 = vpop.f32.mrf.mxu0
    %v1806 = vadd.f32 %v1717, %v1805
    %v1807 = vpop.f32.mrf.mxu0
    %v1808 = vadd.f32 %v1719, %v1807
    %1809 = vmatmul.bf16.gmra.mxu0 %v916
    %v1810 = vpop.f32.mrf.mxu0
    %v1811 = vadd.f32 %v1722, %v1810
    %v1812 = vpop.f32.mrf.mxu0
    %v1813 = vadd.f32 %v1724, %v1812
    %1814 = vmatmul.bf16.gmra.mxu0 %v918
    %v1815 = vpop.f32.mrf.mxu0
    %v1816 = vadd.f32 %v1727, %v1815
    %v1817 = vpop.f32.mrf.mxu0
    %v1818 = vadd.f32 %v1729, %v1817
    %1819 = vmatmul.bf16.gmra.mxu0 %v920
    %v1820 = vpop.f32.mrf.mxu0
    %v1821 = vadd.f32 %v1732, %v1820
    %v1822 = vpop.f32.mrf.mxu0
    %v1823 = vadd.f32 %v1734, %v1822
    %1824 = vmatmul.bf16.gmra.mxu0 %v922
    %v1825 = vpop.f32.mrf.mxu0
    %v1826 = vadd.f32 %v1737, %v1825
    %v1827 = vpop.f32.mrf.mxu0
    %v1828 = vadd.f32 %v1739, %v1827
    %1829 = vmatmul.bf16.gmra.mxu0 %v924
    %v1830 = vpop.f32.mrf.mxu0
    %v1831 = vadd.f32 %v1742, %v1830
    %v1832 = vpop.f32.mrf.mxu0
    %v1833 = vadd.f32 %v1744, %v1832
    %1834 = vmatmul.bf16.gmra.mxu0 %v926
    %v1835 = vpop.f32.mrf.mxu0
    %v1836 = vadd.f32 %v1747, %v1835
    %v1837 = vpop.f32.mrf.mxu0
    %v1838 = vadd.f32 %v1749, %v1837
    %1839 = vmatmul.bf16.gmra.mxu0 %v928
    %v1840 = vpop.f32.mrf.mxu0
    %v1841 = vadd.f32 %v1752, %v1840
    %v1842 = vpop.f32.mrf.mxu0
    %v1843 = vadd.f32 %v1754, %v1842
    %1844 = vmatmul.bf16.gmra.mxu0 %v930
    %v1845 = vpop.f32.mrf.mxu0
    %v1846 = vadd.f32 %v1757, %v1845
    %v1847 = vpop.f32.mrf.mxu0
    %v1848 = vadd.f32 %v1759, %v1847
    %1849 = vmatmul.bf16.gmra.mxu0 %v932
    %v1850 = vpop.f32.mrf.mxu0
    %v1851 = vadd.f32 %v1762, %v1850
    %v1852 = vpop.f32.mrf.mxu0
    %v1853 = vadd.f32 %v1764, %v1852
    %1854 = vmatmul.bf16.gmra.mxu0 %v934
    %v1855 = vpop.f32.mrf.mxu0
    %v1856 = vadd.f32 %v1767, %v1855
    %v1857 = vpop.f32.mrf.mxu0
    %v1858 = vadd.f32 %v1769, %v1857
    %1859 = vmatmul.bf16.gmra.mxu0 %v936
    %v1860 = vpop.f32.mrf.mxu0
    %v1861 = vadd.f32 %v1772, %v1860
    %v1862 = vpop.f32.mrf.mxu0
    %v1863 = vadd.f32 %v1774, %v1862
    %1864 = vdwg.mxu0
    %1865 = vmatpush.bf16.msra.mxu0 %v1234
    %1866 = vmatpush.bf16.msra.mxu0 %v1230
    %1867 = vmatpush.bf16.msra.mxu0 %v1226
    %1868 = vmatpush.bf16.msra.mxu0 %v1222
    %1869 = vmatpush.bf16.msra.mxu0 %v1218
    %1870 = vmatpush.bf16.msra.mxu0 %v1214
    %1871 = vmatpush.bf16.msra.mxu0 %v1210
    %1872 = vmatpush.bf16.msra.mxu0 %v1206
    %1873 = vmatmul.bf16.gmra.mxu0 %v905
    %v1874 = vpop.f32.mrf.mxu0
    %v1875 = vadd.f32 %v1006, %v1874
    %v1876 = vpop.f32.mrf.mxu0
    %v1877 = vadd.f32 %v1006, %v1876
    %1878 = vmatmul.bf16.gmra.mxu0 %v907
    %v1879 = vpop.f32.mrf.mxu0
    %v1880 = vadd.f32 %v1006, %v1879
    %v1881 = vpop.f32.mrf.mxu0
    %v1882 = vadd.f32 %v1006, %v1881
    %1883 = vmatmul.bf16.gmra.mxu0 %v909
    %v1884 = vpop.f32.mrf.mxu0
    %v1885 = vadd.f32 %v1006, %v1884
    %v1886 = vpop.f32.mrf.mxu0
    %v1887 = vadd.f32 %v1006, %v1886
    %1888 = vmatmul.bf16.gmra.mxu0 %v911
    %v1889 = vpop.f32.mrf.mxu0
    %v1890 = vadd.f32 %v1006, %v1889
    %v1891 = vpop.f32.mrf.mxu0
    %v1892 = vadd.f32 %v1006, %v1891
    %1893 = vmatmul.bf16.gmra.mxu0 %v913
    %v1894 = vpop.f32.mrf.mxu0
    %v1895 = vadd.f32 %v1006, %v1894
    %v1896 = vpop.f32.mrf.mxu0
    %v1897 = vadd.f32 %v1006, %v1896
    %1898 = vmatmul.bf16.gmra.mxu0 %v915
    %v1899 = vpop.f32.mrf.mxu0
    %v1900 = vadd.f32 %v1006, %v1899
    %v1901 = vpop.f32.mrf.mxu0
    %v1902 = vadd.f32 %v1006, %v1901
    %1903 = vmatmul.bf16.gmra.mxu0 %v917
    %v1904 = vpop.f32.mrf.mxu0
    %v1905 = vadd.f32 %v1006, %v1904
    %v1906 = vpop.f32.mrf.mxu0
    %v1907 = vadd.f32 %v1006, %v1906
    %1908 = vmatmul.bf16.gmra.mxu0 %v919
    %v1909 = vpop.f32.mrf.mxu0
    %v1910 = vadd.f32 %v1006, %v1909
    %v1911 = vpop.f32.mrf.mxu0
    %v1912 = vadd.f32 %v1006, %v1911
    %1913 = vmatmul.bf16.gmra.mxu0 %v921
    %v1914 = vpop.f32.mrf.mxu0
    %v1915 = vadd.f32 %v1006, %v1914
    %v1916 = vpop.f32.mrf.mxu0
    %v1917 = vadd.f32 %v1006, %v1916
    %1918 = vmatmul.bf16.gmra.mxu0 %v923
    %v1919 = vpop.f32.mrf.mxu0
    %v1920 = vadd.f32 %v1006, %v1919
    %v1921 = vpop.f32.mrf.mxu0
    %v1922 = vadd.f32 %v1006, %v1921
    %1923 = vmatmul.bf16.gmra.mxu0 %v925
    %v1924 = vpop.f32.mrf.mxu0
    %v1925 = vadd.f32 %v1006, %v1924
    %v1926 = vpop.f32.mrf.mxu0
    %v1927 = vadd.f32 %v1006, %v1926
    %1928 = vmatmul.bf16.gmra.mxu0 %v927
    %v1929 = vpop.f32.mrf.mxu0
    %v1930 = vadd.f32 %v1006, %v1929
    %v1931 = vpop.f32.mrf.mxu0
    %v1932 = vadd.f32 %v1006, %v1931
    %1933 = vmatmul.bf16.gmra.mxu0 %v929
    %v1934 = vpop.f32.mrf.mxu0
    %v1935 = vadd.f32 %v1006, %v1934
    %v1936 = vpop.f32.mrf.mxu0
    %v1937 = vadd.f32 %v1006, %v1936
    %1938 = vmatmul.bf16.gmra.mxu0 %v931
    %v1939 = vpop.f32.mrf.mxu0
    %v1940 = vadd.f32 %v1006, %v1939
    %v1941 = vpop.f32.mrf.mxu0
    %v1942 = vadd.f32 %v1006, %v1941
    %1943 = vmatmul.bf16.gmra.mxu0 %v933
    %v1944 = vpop.f32.mrf.mxu0
    %v1945 = vadd.f32 %v1006, %v1944
    %v1946 = vpop.f32.mrf.mxu0
    %v1947 = vadd.f32 %v1006, %v1946
    %1948 = vmatmul.bf16.gmra.mxu0 %v935
    %v1949 = vpop.f32.mrf.mxu0
    %v1950 = vadd.f32 %v1006, %v1949
    %v1951 = vpop.f32.mrf.mxu0
    %v1952 = vadd.f32 %v1006, %v1951
    %1953 = vdwg.mxu0
    %1954 = vmatpush.bf16.msra.mxu0 %v1266
    %1955 = vmatpush.bf16.msra.mxu0 %v1262
    %1956 = vmatpush.bf16.msra.mxu0 %v1258
    %1957 = vmatpush.bf16.msra.mxu0 %v1254
    %1958 = vmatpush.bf16.msra.mxu0 %v1250
    %1959 = vmatpush.bf16.msra.mxu0 %v1246
    %1960 = vmatpush.bf16.msra.mxu0 %v1242
    %1961 = vmatpush.bf16.msra.mxu0 %v1238
    %1962 = vmatmul.bf16.gmra.mxu0 %v906
    %v1963 = vpop.f32.mrf.mxu0
    %v1964 = vadd.f32 %v1875, %v1963
    %v1965 = vpop.f32.mrf.mxu0
    %v1966 = vadd.f32 %v1877, %v1965
    %1967 = vmatmul.bf16.gmra.mxu0 %v908
    %v1968 = vpop.f32.mrf.mxu0
    %v1969 = vadd.f32 %v1880, %v1968
    %v1970 = vpop.f32.mrf.mxu0
    %v1971 = vadd.f32 %v1882, %v1970
    %1972 = vmatmul.bf16.gmra.mxu0 %v910
    %v1973 = vpop.f32.mrf.mxu0
    %v1974 = vadd.f32 %v1885, %v1973
    %v1975 = vpop.f32.mrf.mxu0
    %v1976 = vadd.f32 %v1887, %v1975
    %1977 = vmatmul.bf16.gmra.mxu0 %v912
    %v1978 = vpop.f32.mrf.mxu0
    %v1979 = vadd.f32 %v1890, %v1978
    %v1980 = vpop.f32.mrf.mxu0
    %v1981 = vadd.f32 %v1892, %v1980
    %1982 = vmatmul.bf16.gmra.mxu0 %v914
    %v1983 = vpop.f32.mrf.mxu0
    %v1984 = vadd.f32 %v1895, %v1983
    %v1985 = vpop.f32.mrf.mxu0
    %v1986 = vadd.f32 %v1897, %v1985
    %1987 = vmatmul.bf16.gmra.mxu0 %v916
    %v1988 = vpop.f32.mrf.mxu0
    %v1989 = vadd.f32 %v1900, %v1988
    %v1990 = vpop.f32.mrf.mxu0
    %v1991 = vadd.f32 %v1902, %v1990
    %1992 = vmatmul.bf16.gmra.mxu0 %v918
    %v1993 = vpop.f32.mrf.mxu0
    %v1994 = vadd.f32 %v1905, %v1993
    %v1995 = vpop.f32.mrf.mxu0
    %v1996 = vadd.f32 %v1907, %v1995
    %1997 = vmatmul.bf16.gmra.mxu0 %v920
    %v1998 = vpop.f32.mrf.mxu0
    %v1999 = vadd.f32 %v1910, %v1998
    %v2000 = vpop.f32.mrf.mxu0
    %v2001 = vadd.f32 %v1912, %v2000
    %2002 = vmatmul.bf16.gmra.mxu0 %v922
    %v2003 = vpop.f32.mrf.mxu0
    %v2004 = vadd.f32 %v1915, %v2003
    %v2005 = vpop.f32.mrf.mxu0
    %v2006 = vadd.f32 %v1917, %v2005
    %2007 = vmatmul.bf16.gmra.mxu0 %v924
    %v2008 = vpop.f32.mrf.mxu0
    %v2009 = vadd.f32 %v1920, %v2008
    %v2010 = vpop.f32.mrf.mxu0
    %v2011 = vadd.f32 %v1922, %v2010
    %2012 = vmatmul.bf16.gmra.mxu0 %v926
    %v2013 = vpop.f32.mrf.mxu0
    %v2014 = vadd.f32 %v1925, %v2013
    %v2015 = vpop.f32.mrf.mxu0
    %v2016 = vadd.f32 %v1927, %v2015
    %2017 = vmatmul.bf16.gmra.mxu0 %v928
    %v2018 = vpop.f32.mrf.mxu0
    %v2019 = vadd.f32 %v1930, %v2018
    %v2020 = vpop.f32.mrf.mxu0
    %v2021 = vadd.f32 %v1932, %v2020
    %2022 = vmatmul.bf16.gmra.mxu0 %v930
    %v2023 = vpop.f32.mrf.mxu0
    %v2024 = vadd.f32 %v1935, %v2023
    %v2025 = vpop.f32.mrf.mxu0
    %v2026 = vadd.f32 %v1937, %v2025
    %2027 = vmatmul.bf16.gmra.mxu0 %v932
    %v2028 = vpop.f32.mrf.mxu0
    %v2029 = vadd.f32 %v1940, %v2028
    %v2030 = vpop.f32.mrf.mxu0
    %v2031 = vadd.f32 %v1942, %v2030
    %2032 = vmatmul.bf16.gmra.mxu0 %v934
    %v2033 = vpop.f32.mrf.mxu0
    %v2034 = vadd.f32 %v1945, %v2033
    %v2035 = vpop.f32.mrf.mxu0
    %v2036 = vadd.f32 %v1947, %v2035
    %2037 = vmatmul.bf16.gmra.mxu0 %v936
    %v2038 = vpop.f32.mrf.mxu0
    %v2039 = vadd.f32 %v1950, %v2038
    %v2040 = vpop.f32.mrf.mxu0
    %v2041 = vadd.f32 %v1952, %v2040
    %2042 = vdwg.mxu0
    %vm2043 = vcmp.gt.f32.partialorder %v1430, 0.0
    %vm2044 = vcmp.gt.f32.partialorder %v1608, 0.0
    %vm2045 = vcmp.gt.f32.partialorder %v1786, 0.0
    %vm2046 = vcmp.gt.f32.partialorder %v1964, 0.0
    %vm2047 = vcmp.gt.f32.partialorder %v1432, 0.0
    %vm2048 = vcmp.gt.f32.partialorder %v1610, 0.0
    %vm2049 = vcmp.gt.f32.partialorder %v1788, 0.0
    %vm2050 = vcmp.gt.f32.partialorder %v1966, 0.0
    %vm2051 = vcmp.gt.f32.partialorder %v1435, 0.0
    %vm2052 = vcmp.gt.f32.partialorder %v1613, 0.0
    %vm2053 = vcmp.gt.f32.partialorder %v1791, 0.0
    %vm2054 = vcmp.gt.f32.partialorder %v1969, 0.0
    %vm2055 = vcmp.gt.f32.partialorder %v1437, 0.0
    %vm2056 = vcmp.gt.f32.partialorder %v1615, 0.0
    %vm2057 = vcmp.gt.f32.partialorder %v1793, 0.0
    %vm2058 = vcmp.gt.f32.partialorder %v1971, 0.0
    %vm2059 = vcmp.gt.f32.partialorder %v1440, 0.0
    %vm2060 = vcmp.gt.f32.partialorder %v1618, 0.0
    %vm2061 = vcmp.gt.f32.partialorder %v1796, 0.0
    %vm2062 = vcmp.gt.f32.partialorder %v1974, 0.0
    %vm2063 = vcmp.gt.f32.partialorder %v1442, 0.0
    %vm2064 = vcmp.gt.f32.partialorder %v1620, 0.0
    %vm2065 = vcmp.gt.f32.partialorder %v1798, 0.0
    %vm2066 = vcmp.gt.f32.partialorder %v1976, 0.0
    %vm2067 = vcmp.gt.f32.partialorder %v1445, 0.0
    %vm2068 = vcmp.gt.f32.partialorder %v1623, 0.0
    %vm2069 = vcmp.gt.f32.partialorder %v1801, 0.0
    %vm2070 = vcmp.gt.f32.partialorder %v1979, 0.0
    %vm2071 = vcmp.gt.f32.partialorder %v1447, 0.0
    %vm2072 = vcmp.gt.f32.partialorder %v1625, 0.0
    %vm2073 = vcmp.gt.f32.partialorder %v1803, 0.0
    %vm2074 = vcmp.gt.f32.partialorder %v1981, 0.0
    %vm2075 = vcmp.gt.f32.partialorder %v1450, 0.0
    %vm2076 = vcmp.gt.f32.partialorder %v1628, 0.0
    %vm2077 = vcmp.gt.f32.partialorder %v1806, 0.0
    %vm2078 = vcmp.gt.f32.partialorder %v1984, 0.0
    %vm2079 = vcmp.gt.f32.partialorder %v1452, 0.0
    %vm2080 = vcmp.gt.f32.partialorder %v1630, 0.0
    %vm2081 = vcmp.gt.f32.partialorder %v1808, 0.0
    %vm2082 = vcmp.gt.f32.partialorder %v1986, 0.0
    %vm2083 = vcmp.gt.f32.partialorder %v1455, 0.0
    %vm2084 = vcmp.gt.f32.partialorder %v1633, 0.0
    %vm2085 = vcmp.gt.f32.partialorder %v1811, 0.0
    %vm2086 = vcmp.gt.f32.partialorder %v1989, 0.0
    %vm2087 = vcmp.gt.f32.partialorder %v1457, 0.0
    %vm2088 = vcmp.gt.f32.partialorder %v1635, 0.0
    %vm2089 = vcmp.gt.f32.partialorder %v1813, 0.0
    %vm2090 = vcmp.gt.f32.partialorder %v1991, 0.0
    %vm2091 = vcmp.gt.f32.partialorder %v1460, 0.0
    %vm2092 = vcmp.gt.f32.partialorder %v1638, 0.0
    %vm2093 = vcmp.gt.f32.partialorder %v1816, 0.0
    %vm2094 = vcmp.gt.f32.partialorder %v1994, 0.0
    %vm2095 = vcmp.gt.f32.partialorder %v1462, 0.0
    %vm2096 = vcmp.gt.f32.partialorder %v1640, 0.0
    %vm2097 = vcmp.gt.f32.partialorder %v1818, 0.0
    %vm2098 = vcmp.gt.f32.partialorder %v1996, 0.0
    %vm2099 = vcmp.gt.f32.partialorder %v1465, 0.0
    %vm2100 = vcmp.gt.f32.partialorder %v1643, 0.0
    %vm2101 = vcmp.gt.f32.partialorder %v1821, 0.0
    %vm2102 = vcmp.gt.f32.partialorder %v1999, 0.0
    %vm2103 = vcmp.gt.f32.partialorder %v1467, 0.0
    %vm2104 = vcmp.gt.f32.partialorder %v1645, 0.0
    %vm2105 = vcmp.gt.f32.partialorder %v1823, 0.0
    %vm2106 = vcmp.gt.f32.partialorder %v2001, 0.0
    %vm2107 = vcmp.gt.f32.partialorder %v1470, 0.0
    %vm2108 = vcmp.gt.f32.partialorder %v1648, 0.0
    %vm2109 = vcmp.gt.f32.partialorder %v1826, 0.0
    %vm2110 = vcmp.gt.f32.partialorder %v2004, 0.0
    %vm2111 = vcmp.gt.f32.partialorder %v1472, 0.0
    %vm2112 = vcmp.gt.f32.partialorder %v1650, 0.0
    %vm2113 = vcmp.gt.f32.partialorder %v1828, 0.0
    %vm2114 = vcmp.gt.f32.partialorder %v2006, 0.0
    %vm2115 = vcmp.gt.f32.partialorder %v1475, 0.0
    %vm2116 = vcmp.gt.f32.partialorder %v1653, 0.0
    %vm2117 = vcmp.gt.f32.partialorder %v1831, 0.0
    %vm2118 = vcmp.gt.f32.partialorder %v2009, 0.0
    %vm2119 = vcmp.gt.f32.partialorder %v1477, 0.0
    %vm2120 = vcmp.gt.f32.partialorder %v1655, 0.0
    %vm2121 = vcmp.gt.f32.partialorder %v1833, 0.0
    %vm2122 = vcmp.gt.f32.partialorder %v2011, 0.0
    %vm2123 = vcmp.gt.f32.partialorder %v1480, 0.0
    %vm2124 = vcmp.gt.f32.partialorder %v1658, 0.0
    %vm2125 = vcmp.gt.f32.partialorder %v1836, 0.0
    %vm2126 = vcmp.gt.f32.partialorder %v2014, 0.0
    %vm2127 = vcmp.gt.f32.partialorder %v1482, 0.0
    %vm2128 = vcmp.gt.f32.partialorder %v1660, 0.0
    %vm2129 = vcmp.gt.f32.partialorder %v1838, 0.0
    %vm2130 = vcmp.gt.f32.partialorder %v2016, 0.0
    %vm2131 = vcmp.gt.f32.partialorder %v1485, 0.0
    %vm2132 = vcmp.gt.f32.partialorder %v1663, 0.0
    %vm2133 = vcmp.gt.f32.partialorder %v1841, 0.0
    %vm2134 = vcmp.gt.f32.partialorder %v2019, 0.0
    %vm2135 = vcmp.gt.f32.partialorder %v1487, 0.0
    %vm2136 = vcmp.gt.f32.partialorder %v1665, 0.0
    %vm2137 = vcmp.gt.f32.partialorder %v1843, 0.0
    %vm2138 = vcmp.gt.f32.partialorder %v2021, 0.0
    %vm2139 = vcmp.gt.f32.partialorder %v1490, 0.0
    %vm2140 = vcmp.gt.f32.partialorder %v1668, 0.0
    %vm2141 = vcmp.gt.f32.partialorder %v1846, 0.0
    %vm2142 = vcmp.gt.f32.partialorder %v2024, 0.0
    %vm2143 = vcmp.gt.f32.partialorder %v1492, 0.0
    %vm2144 = vcmp.gt.f32.partialorder %v1670, 0.0
    %vm2145 = vcmp.gt.f32.partialorder %v1848, 0.0
    %vm2146 = vcmp.gt.f32.partialorder %v2026, 0.0
    %vm2147 = vcmp.gt.f32.partialorder %v1495, 0.0
    %vm2148 = vcmp.gt.f32.partialorder %v1673, 0.0
    %vm2149 = vcmp.gt.f32.partialorder %v1851, 0.0
    %vm2150 = vcmp.gt.f32.partialorder %v2029, 0.0
    %vm2151 = vcmp.gt.f32.partialorder %v1497, 0.0
    %vm2152 = vcmp.gt.f32.partialorder %v1675, 0.0
    %vm2153 = vcmp.gt.f32.partialorder %v1853, 0.0
    %vm2154 = vcmp.gt.f32.partialorder %v2031, 0.0
    %vm2155 = vcmp.gt.f32.partialorder %v1500, 0.0
    %vm2156 = vcmp.gt.f32.partialorder %v1678, 0.0
    %vm2157 = vcmp.gt.f32.partialorder %v1856, 0.0
    %vm2158 = vcmp.gt.f32.partialorder %v2034, 0.0
    %vm2159 = vcmp.gt.f32.partialorder %v1502, 0.0
    %vm2160 = vcmp.gt.f32.partialorder %v1680, 0.0
    %vm2161 = vcmp.gt.f32.partialorder %v1858, 0.0
    %vm2162 = vcmp.gt.f32.partialorder %v2036, 0.0
    %vm2163 = vcmp.gt.f32.partialorder %v1505, 0.0
    %vm2164 = vcmp.gt.f32.partialorder %v1683, 0.0
    %vm2165 = vcmp.gt.f32.partialorder %v1861, 0.0
    %vm2166 = vcmp.gt.f32.partialorder %v2039, 0.0
    %vm2167 = vcmp.gt.f32.partialorder %v1507, 0.0
    %vm2168 = vcmp.gt.f32.partialorder %v1685, 0.0
    %vm2169 = vcmp.gt.f32.partialorder %v1863, 0.0
    %vm2170 = vcmp.gt.f32.partialorder %v2041, 0.0
    %v2171 = vmul.f32 %v1430, 0.2
    %v2172 = vmul.f32 %v1608, 0.2
    %v2173 = vmul.f32 %v1786, 0.2
    %v2174 = vmul.f32 %v1964, 0.2
    %v2175 = vmul.f32 %v1432, 0.2
    %v2176 = vmul.f32 %v1610, 0.2
    %v2177 = vmul.f32 %v1788, 0.2
    %v2178 = vmul.f32 %v1966, 0.2
    %v2179 = vmul.f32 %v1435, 0.2
    %v2180 = vmul.f32 %v1613, 0.2
    %v2181 = vmul.f32 %v1791, 0.2
    %v2182 = vmul.f32 %v1969, 0.2
    %v2183 = vmul.f32 %v1437, 0.2
    %v2184 = vmul.f32 %v1615, 0.2
    %v2185 = vmul.f32 %v1793, 0.2
    %v2186 = vmul.f32 %v1971, 0.2
    %v2187 = vmul.f32 %v1440, 0.2
    %v2188 = vmul.f32 %v1618, 0.2
    %v2189 = vmul.f32 %v1796, 0.2
    %v2190 = vmul.f32 %v1974, 0.2
    %v2191 = vmul.f32 %v1442, 0.2
    %v2192 = vmul.f32 %v1620, 0.2
    %v2193 = vmul.f32 %v1798, 0.2
    %v2194 = vmul.f32 %v1976, 0.2
    %v2195 = vmul.f32 %v1445, 0.2
    %v2196 = vmul.f32 %v1623, 0.2
    %v2197 = vmul.f32 %v1801, 0.2
    %v2198 = vmul.f32 %v1979, 0.2
    %v2199 = vmul.f32 %v1447, 0.2
    %v2200 = vmul.f32 %v1625, 0.2
    %v2201 = vmul.f32 %v1803, 0.2
    %v2202 = vmul.f32 %v1981, 0.2
    %v2203 = vmul.f32 %v1450, 0.2
    %v2204 = vmul.f32 %v1628, 0.2
    %v2205 = vmul.f32 %v1806, 0.2
    %v2206 = vmul.f32 %v1984, 0.2
    %v2207 = vmul.f32 %v1452, 0.2
    %v2208 = vmul.f32 %v1630, 0.2
    %v2209 = vmul.f32 %v1808, 0.2
    %v2210 = vmul.f32 %v1986, 0.2
    %v2211 = vmul.f32 %v1455, 0.2
    %v2212 = vmul.f32 %v1633, 0.2
    %v2213 = vmul.f32 %v1811, 0.2
    %v2214 = vmul.f32 %v1989, 0.2
    %v2215 = vmul.f32 %v1457, 0.2
    %v2216 = vmul.f32 %v1635, 0.2
    %v2217 = vmul.f32 %v1813, 0.2
    %v2218 = vmul.f32 %v1991, 0.2
    %v2219 = vmul.f32 %v1460, 0.2
    %v2220 = vmul.f32 %v1638, 0.2
    %v2221 = vmul.f32 %v1816, 0.2
    %v2222 = vmul.f32 %v1994, 0.2
    %v2223 = vmul.f32 %v1462, 0.2
    %v2224 = vmul.f32 %v1640, 0.2
    %v2225 = vmul.f32 %v1818, 0.2
    %v2226 = vmul.f32 %v1996, 0.2
    %v2227 = vmul.f32 %v1465, 0.2
    %v2228 = vmul.f32 %v1643, 0.2
    %v2229 = vmul.f32 %v1821, 0.2
    %v2230 = vmul.f32 %v1999, 0.2
    %v2231 = vmul.f32 %v1467, 0.2
    %v2232 = vmul.f32 %v1645, 0.2
    %v2233 = vmul.f32 %v1823, 0.2
    %v2234 = vmul.f32 %v2001, 0.2
    %v2235 = vmul.f32 %v1470, 0.2
    %v2236 = vmul.f32 %v1648, 0.2
    %v2237 = vmul.f32 %v1826, 0.2
    %v2238 = vmul.f32 %v2004, 0.2
    %v2239 = vmul.f32 %v1472, 0.2
    %v2240 = vmul.f32 %v1650, 0.2
    %v2241 = vmul.f32 %v1828, 0.2
    %v2242 = vmul.f32 %v2006, 0.2
    %v2243 = vmul.f32 %v1475, 0.2
    %v2244 = vmul.f32 %v1653, 0.2
    %v2245 = vmul.f32 %v1831, 0.2
    %v2246 = vmul.f32 %v2009, 0.2
    %v2247 = vmul.f32 %v1477, 0.2
    %v2248 = vmul.f32 %v1655, 0.2
    %v2249 = vmul.f32 %v1833, 0.2
    %v2250 = vmul.f32 %v2011, 0.2
    %v2251 = vmul.f32 %v1480, 0.2
    %v2252 = vmul.f32 %v1658, 0.2
    %v2253 = vmul.f32 %v1836, 0.2
    %v2254 = vmul.f32 %v2014, 0.2
    %v2255 = vmul.f32 %v1482, 0.2
    %v2256 = vmul.f32 %v1660, 0.2
    %v2257 = vmul.f32 %v1838, 0.2
    %v2258 = vmul.f32 %v2016, 0.2
    %v2259 = vmul.f32 %v1485, 0.2
    %v2260 = vmul.f32 %v1663, 0.2
    %v2261 = vmul.f32 %v1841, 0.2
    %v2262 = vmul.f32 %v2019, 0.2
    %v2263 = vmul.f32 %v1487, 0.2
    %v2264 = vmul.f32 %v1665, 0.2
    %v2265 = vmul.f32 %v1843, 0.2
    %v2266 = vmul.f32 %v2021, 0.2
    %v2267 = vmul.f32 %v1490, 0.2
    %v2268 = vmul.f32 %v1668, 0.2
    %v2269 = vmul.f32 %v1846, 0.2
    %v2270 = vmul.f32 %v2024, 0.2
    %v2271 = vmul.f32 %v1492, 0.2
    %v2272 = vmul.f32 %v1670, 0.2
    %v2273 = vmul.f32 %v1848, 0.2
    %v2274 = vmul.f32 %v2026, 0.2
    %v2275 = vmul.f32 %v1495, 0.2
    %v2276 = vmul.f32 %v1673, 0.2
    %v2277 = vmul.f32 %v1851, 0.2
    %v2278 = vmul.f32 %v2029, 0.2
    %v2279 = vmul.f32 %v1497, 0.2
    %v2280 = vmul.f32 %v1675, 0.2
    %v2281 = vmul.f32 %v1853, 0.2
    %v2282 = vmul.f32 %v2031, 0.2
    %v2283 = vmul.f32 %v1500, 0.2
    %v2284 = vmul.f32 %v1678, 0.2
    %v2285 = vmul.f32 %v1856, 0.2
    %v2286 = vmul.f32 %v2034, 0.2
    %v2287 = vmul.f32 %v1502, 0.2
    %v2288 = vmul.f32 %v1680, 0.2
    %v2289 = vmul.f32 %v1858, 0.2
    %v2290 = vmul.f32 %v2036, 0.2
    %v2291 = vmul.f32 %v1505, 0.2
    %v2292 = vmul.f32 %v1683, 0.2
    %v2293 = vmul.f32 %v1861, 0.2
    %v2294 = vmul.f32 %v2039, 0.2
    %v2295 = vmul.f32 %v1507, 0.2
    %v2296 = vmul.f32 %v1685, 0.2
    %v2297 = vmul.f32 %v1863, 0.2
    %v2298 = vmul.f32 %v2041, 0.2
    %v2299 = vsel %vm2043, %v1430, %v2171
    %v2300 = vsel %vm2044, %v1608, %v2172
    %v2301 = vsel %vm2045, %v1786, %v2173
    %v2302 = vsel %vm2046, %v1964, %v2174
    %v2303 = vsel %vm2047, %v1432, %v2175
    %v2304 = vsel %vm2048, %v1610, %v2176
    %v2305 = vsel %vm2049, %v1788, %v2177
    %v2306 = vsel %vm2050, %v1966, %v2178
    %v2307 = vsel %vm2051, %v1435, %v2179
    %v2308 = vsel %vm2052, %v1613, %v2180
    %v2309 = vsel %vm2053, %v1791, %v2181
    %v2310 = vsel %vm2054, %v1969, %v2182
    %v2311 = vsel %vm2055, %v1437, %v2183
    %v2312 = vsel %vm2056, %v1615, %v2184
    %v2313 = vsel %vm2057, %v1793, %v2185
    %v2314 = vsel %vm2058, %v1971, %v2186
    %v2315 = vsel %vm2059, %v1440, %v2187
    %v2316 = vsel %vm2060, %v1618, %v2188
    %v2317 = vsel %vm2061, %v1796, %v2189
    %v2318 = vsel %vm2062, %v1974, %v2190
    %v2319 = vsel %vm2063, %v1442, %v2191
    %v2320 = vsel %vm2064, %v1620, %v2192
    %v2321 = vsel %vm2065, %v1798, %v2193
    %v2322 = vsel %vm2066, %v1976, %v2194
    %v2323 = vsel %vm2067, %v1445, %v2195
    %v2324 = vsel %vm2068, %v1623, %v2196
    %v2325 = vsel %vm2069, %v1801, %v2197
    %v2326 = vsel %vm2070, %v1979, %v2198
    %v2327 = vsel %vm2071, %v1447, %v2199
    %v2328 = vsel %vm2072, %v1625, %v2200
    %v2329 = vsel %vm2073, %v1803, %v2201
    %v2330 = vsel %vm2074, %v1981, %v2202
    %v2331 = vsel %vm2075, %v1450, %v2203
    %v2332 = vsel %vm2076, %v1628, %v2204
    %v2333 = vsel %vm2077, %v1806, %v2205
    %v2334 = vsel %vm2078, %v1984, %v2206
    %v2335 = vsel %vm2079, %v1452, %v2207
    %v2336 = vsel %vm2080, %v1630, %v2208
    %v2337 = vsel %vm2081, %v1808, %v2209
    %v2338 = vsel %vm2082, %v1986, %v2210
    %v2339 = vsel %vm2083, %v1455, %v2211
    %v2340 = vsel %vm2084, %v1633, %v2212
    %v2341 = vsel %vm2085, %v1811, %v2213
    %v2342 = vsel %vm2086, %v1989, %v2214
    %v2343 = vsel %vm2087, %v1457, %v2215
    %v2344 = vsel %vm2088, %v1635, %v2216
    %v2345 = vsel %vm2089, %v1813, %v2217
    %v2346 = vsel %vm2090, %v1991, %v2218
    %v2347 = vsel %vm2091, %v1460, %v2219
    %v2348 = vsel %vm2092, %v1638, %v2220
    %v2349 = vsel %vm2093, %v1816, %v2221
    %v2350 = vsel %vm2094, %v1994, %v2222
    %v2351 = vsel %vm2095, %v1462, %v2223
    %v2352 = vsel %vm2096, %v1640, %v2224
    %v2353 = vsel %vm2097, %v1818, %v2225
    %v2354 = vsel %vm2098, %v1996, %v2226
    %v2355 = vsel %vm2099, %v1465, %v2227
    %v2356 = vsel %vm2100, %v1643, %v2228
    %v2357 = vsel %vm2101, %v1821, %v2229
    %v2358 = vsel %vm2102, %v1999, %v2230
    %v2359 = vsel %vm2103, %v1467, %v2231
    %v2360 = vsel %vm2104, %v1645, %v2232
    %v2361 = vsel %vm2105, %v1823, %v2233
    %v2362 = vsel %vm2106, %v2001, %v2234
    %v2363 = vsel %vm2107, %v1470, %v2235
    %v2364 = vsel %vm2108, %v1648, %v2236
    %v2365 = vsel %vm2109, %v1826, %v2237
    %v2366 = vsel %vm2110, %v2004, %v2238
    %v2367 = vsel %vm2111, %v1472, %v2239
    %v2368 = vsel %vm2112, %v1650, %v2240
    %v2369 = vsel %vm2113, %v1828, %v2241
    %v2370 = vsel %vm2114, %v2006, %v2242
    %v2371 = vsel %vm2115, %v1475, %v2243
    %v2372 = vsel %vm2116, %v1653, %v2244
    %v2373 = vsel %vm2117, %v1831, %v2245
    %v2374 = vsel %vm2118, %v2009, %v2246
    %v2375 = vsel %vm2119, %v1477, %v2247
    %v2376 = vsel %vm2120, %v1655, %v2248
    %v2377 = vsel %vm2121, %v1833, %v2249
    %v2378 = vsel %vm2122, %v2011, %v2250
    %v2379 = vsel %vm2123, %v1480, %v2251
    %v2380 = vsel %vm2124, %v1658, %v2252
    %v2381 = vsel %vm2125, %v1836, %v2253
    %v2382 = vsel %vm2126, %v2014, %v2254
    %v2383 = vsel %vm2127, %v1482, %v2255
    %v2384 = vsel %vm2128, %v1660, %v2256
    %v2385 = vsel %vm2129, %v1838, %v2257
    %v2386 = vsel %vm2130, %v2016, %v2258
    %v2387 = vsel %vm2131, %v1485, %v2259
    %v2388 = vsel %vm2132, %v1663, %v2260
    %v2389 = vsel %vm2133, %v1841, %v2261
    %v2390 = vsel %vm2134, %v2019, %v2262
    %v2391 = vsel %vm2135, %v1487, %v2263
    %v2392 = vsel %vm2136, %v1665, %v2264
    %v2393 = vsel %vm2137, %v1843, %v2265
    %v2394 = vsel %vm2138, %v2021, %v2266
    %v2395 = vsel %vm2139, %v1490, %v2267
    %v2396 = vsel %vm2140, %v1668, %v2268
    %v2397 = vsel %vm2141, %v1846, %v2269
    %v2398 = vsel %vm2142, %v2024, %v2270
    %v2399 = vsel %vm2143, %v1492, %v2271
    %v2400 = vsel %vm2144, %v1670, %v2272
    %v2401 = vsel %vm2145, %v1848, %v2273
    %v2402 = vsel %vm2146, %v2026, %v2274
    %v2403 = vsel %vm2147, %v1495, %v2275
    %v2404 = vsel %vm2148, %v1673, %v2276
    %v2405 = vsel %vm2149, %v1851, %v2277
    %v2406 = vsel %vm2150, %v2029, %v2278
    %v2407 = vsel %vm2151, %v1497, %v2279
    %v2408 = vsel %vm2152, %v1675, %v2280
    %v2409 = vsel %vm2153, %v1853, %v2281
    %v2410 = vsel %vm2154, %v2031, %v2282
    %v2411 = vsel %vm2155, %v1500, %v2283
    %v2412 = vsel %vm2156, %v1678, %v2284
    %v2413 = vsel %vm2157, %v1856, %v2285
    %v2414 = vsel %vm2158, %v2034, %v2286
    %v2415 = vsel %vm2159, %v1502, %v2287
    %v2416 = vsel %vm2160, %v1680, %v2288
    %v2417 = vsel %vm2161, %v1858, %v2289
    %v2418 = vsel %vm2162, %v2036, %v2290
    %v2419 = vsel %vm2163, %v1505, %v2291
    %v2420 = vsel %vm2164, %v1683, %v2292
    %v2421 = vsel %vm2165, %v1861, %v2293
    %v2422 = vsel %vm2166, %v2039, %v2294
    %v2423 = vsel %vm2167, %v1507, %v2295
    %v2424 = vsel %vm2168, %v1685, %v2296
    %v2425 = vsel %vm2169, %v1863, %v2297
    %v2426 = vsel %vm2170, %v2041, %v2298
    %v2427 = vpack.c.bf16 %v2303, %v2299
    %v2428 = vpack.c.bf16 %v2304, %v2300
    %v2429 = vpack.c.bf16 %v2305, %v2301
    %v2430 = vpack.c.bf16 %v2306, %v2302
    %v2431 = vpack.c.bf16 %v2311, %v2307
    %v2432 = vpack.c.bf16 %v2312, %v2308
    %v2433 = vpack.c.bf16 %v2313, %v2309
    %v2434 = vpack.c.bf16 %v2314, %v2310
    %v2435 = vpack.c.bf16 %v2319, %v2315
    %v2436 = vpack.c.bf16 %v2320, %v2316
    %v2437 = vpack.c.bf16 %v2321, %v2317
    %v2438 = vpack.c.bf16 %v2322, %v2318
    %v2439 = vpack.c.bf16 %v2327, %v2323
    %v2440 = vpack.c.bf16 %v2328, %v2324
    %v2441 = vpack.c.bf16 %v2329, %v2325
    %v2442 = vpack.c.bf16 %v2330, %v2326
    %v2443 = vpack.c.bf16 %v2335, %v2331
    %v2444 = vpack.c.bf16 %v2336, %v2332
    %v2445 = vpack.c.bf16 %v2337, %v2333
    %v2446 = vpack.c.bf16 %v2338, %v2334
    %v2447 = vpack.c.bf16 %v2343, %v2339
    %v2448 = vpack.c.bf16 %v2344, %v2340
    %v2449 = vpack.c.bf16 %v2345, %v2341
    %v2450 = vpack.c.bf16 %v2346, %v2342
    %v2451 = vpack.c.bf16 %v2351, %v2347
    %v2452 = vpack.c.bf16 %v2352, %v2348
    %v2453 = vpack.c.bf16 %v2353, %v2349
    %v2454 = vpack.c.bf16 %v2354, %v2350
    %v2455 = vpack.c.bf16 %v2359, %v2355
    %v2456 = vpack.c.bf16 %v2360, %v2356
    %v2457 = vpack.c.bf16 %v2361, %v2357
    %v2458 = vpack.c.bf16 %v2362, %v2358
    %v2459 = vpack.c.bf16 %v2367, %v2363
    %v2460 = vpack.c.bf16 %v2368, %v2364
    %v2461 = vpack.c.bf16 %v2369, %v2365
    %v2462 = vpack.c.bf16 %v2370, %v2366
    %v2463 = vpack.c.bf16 %v2375, %v2371
    %v2464 = vpack.c.bf16 %v2376, %v2372
    %v2465 = vpack.c.bf16 %v2377, %v2373
    %v2466 = vpack.c.bf16 %v2378, %v2374
    %v2467 = vpack.c.bf16 %v2383, %v2379
    %v2468 = vpack.c.bf16 %v2384, %v2380
    %v2469 = vpack.c.bf16 %v2385, %v2381
    %v2470 = vpack.c.bf16 %v2386, %v2382
    %v2471 = vpack.c.bf16 %v2391, %v2387
    %v2472 = vpack.c.bf16 %v2392, %v2388
    %v2473 = vpack.c.bf16 %v2393, %v2389
    %v2474 = vpack.c.bf16 %v2394, %v2390
    %v2475 = vpack.c.bf16 %v2399, %v2395
    %v2476 = vpack.c.bf16 %v2400, %v2396
    %v2477 = vpack.c.bf16 %v2401, %v2397
    %v2478 = vpack.c.bf16 %v2402, %v2398
    %v2479 = vpack.c.bf16 %v2407, %v2403
    %v2480 = vpack.c.bf16 %v2408, %v2404
    %v2481 = vpack.c.bf16 %v2409, %v2405
    %v2482 = vpack.c.bf16 %v2410, %v2406
    %v2483 = vpack.c.bf16 %v2415, %v2411
    %v2484 = vpack.c.bf16 %v2416, %v2412
    %v2485 = vpack.c.bf16 %v2417, %v2413
    %v2486 = vpack.c.bf16 %v2418, %v2414
    %v2487 = vpack.c.bf16 %v2423, %v2419
    %v2488 = vpack.c.bf16 %v2424, %v2420
    %v2489 = vpack.c.bf16 %v2425, %v2421
    %v2490 = vpack.c.bf16 %v2426, %v2422
    %v2491 = vld [vmem:[%s7] sm:$0xff]
    %v2492 = vld [vmem:[%s7 + $0x8] sm:$0xff]
    %v2493 = vld [vmem:[%s7 + $0x10] sm:$0xff]
    %v2494 = vld [vmem:[%s7 + $0x18] sm:$0xff]
    %v2495 = vld [vmem:[%s7 + $0x20] sm:$0xff]
    %v2496 = vld [vmem:[%s7 + $0x28] sm:$0xff]
    %v2497 = vld [vmem:[%s7 + $0x30] sm:$0xff]
    %v2498 = vld [vmem:[%s7 + $0x38] sm:$0xff]
    %v2499 = vld [vmem:[%s7 + $0x40] sm:$0xff]
    %v2500 = vld [vmem:[%s7 + $0x48] sm:$0xff]
    %v2501 = vld [vmem:[%s7 + $0x50] sm:$0xff]
    %v2502 = vld [vmem:[%s7 + $0x58] sm:$0xff]
    %v2503 = vld [vmem:[%s7 + $0x60] sm:$0xff]
    %v2504 = vld [vmem:[%s7 + $0x68] sm:$0xff]
    %v2505 = vld [vmem:[%s7 + $0x70] sm:$0xff]
    %v2506 = vld [vmem:[%s7 + $0x78] sm:$0xff]
    %v2507 = vld [vmem:[%s7 + $0x80] sm:$0xff]
    %v2508 = vld [vmem:[%s7 + $0x88] sm:$0xff]
    %v2509 = vld [vmem:[%s7 + $0x90] sm:$0xff]
    %v2510 = vld [vmem:[%s7 + $0x98] sm:$0xff]
    %v2511 = vld [vmem:[%s7 + $0xa0] sm:$0xff]
    %v2512 = vld [vmem:[%s7 + $0xa8] sm:$0xff]
    %v2513 = vld [vmem:[%s7 + $0xb0] sm:$0xff]
    %v2514 = vld [vmem:[%s7 + $0xb8] sm:$0xff]
    %v2515 = vld [vmem:[%s7 + $0xc0] sm:$0xff]
    %v2516 = vld [vmem:[%s7 + $0xc8] sm:$0xff]
    %v2517 = vld [vmem:[%s7 + $0xd0] sm:$0xff]
    %v2518 = vld [vmem:[%s7 + $0xd8] sm:$0xff]
    %v2519 = vld [vmem:[%s7 + $0xe0] sm:$0xff]
    %v2520 = vld [vmem:[%s7 + $0xe8] sm:$0xff]
    %v2521 = vld [vmem:[%s7 + $0xf0] sm:$0xff]
    %v2522 = vld [vmem:[%s7 + $0xf8] sm:$0xff]
    %v2523 = vld [vmem:[%s7 + $0x100] sm:$0xff]
    %v2524 = vld [vmem:[%s7 + $0x108] sm:$0xff]
    %v2525 = vld [vmem:[%s7 + $0x110] sm:$0xff]
    %v2526 = vld [vmem:[%s7 + $0x118] sm:$0xff]
    %v2527 = vld [vmem:[%s7 + $0x120] sm:$0xff]
    %v2528 = vld [vmem:[%s7 + $0x128] sm:$0xff]
    %v2529 = vld [vmem:[%s7 + $0x130] sm:$0xff]
    %v2530 = vld [vmem:[%s7 + $0x138] sm:$0xff]
    %v2531 = vld [vmem:[%s7 + $0x140] sm:$0xff]
    %v2532 = vld [vmem:[%s7 + $0x148] sm:$0xff]
    %v2533 = vld [vmem:[%s7 + $0x150] sm:$0xff]
    %v2534 = vld [vmem:[%s7 + $0x158] sm:$0xff]
    %v2535 = vld [vmem:[%s7 + $0x160] sm:$0xff]
    %v2536 = vld [vmem:[%s7 + $0x168] sm:$0xff]
    %v2537 = vld [vmem:[%s7 + $0x170] sm:$0xff]
    %v2538 = vld [vmem:[%s7 + $0x178] sm:$0xff]
    %v2539 = vld [vmem:[%s7 + $0x180] sm:$0xff]
    %v2540 = vld [vmem:[%s7 + $0x188] sm:$0xff]
    %v2541 = vld [vmem:[%s7 + $0x190] sm:$0xff]
    %v2542 = vld [vmem:[%s7 + $0x198] sm:$0xff]
    %v2543 = vld [vmem:[%s7 + $0x1a0] sm:$0xff]
    %v2544 = vld [vmem:[%s7 + $0x1a8] sm:$0xff]
    %v2545 = vld [vmem:[%s7 + $0x1b0] sm:$0xff]
    %v2546 = vld [vmem:[%s7 + $0x1b8] sm:$0xff]
    %v2547 = vld [vmem:[%s7 + $0x1c0] sm:$0xff]
    %v2548 = vld [vmem:[%s7 + $0x1c8] sm:$0xff]
    %v2549 = vld [vmem:[%s7 + $0x1d0] sm:$0xff]
    %v2550 = vld [vmem:[%s7 + $0x1d8] sm:$0xff]
    %v2551 = vld [vmem:[%s7 + $0x1e0] sm:$0xff]
    %v2552 = vld [vmem:[%s7 + $0x1e8] sm:$0xff]
    %v2553 = vld [vmem:[%s7 + $0x1f0] sm:$0xff]
    %v2554 = vld [vmem:[%s7 + $0x1f8] sm:$0xff]
    %v2555 = vld [vmem:[%s7 + $0x200] sm:$0xff]
    %v2556 = vld [vmem:[%s7 + $0x208] sm:$0xff]
    %v2557 = vld [vmem:[%s7 + $0x210] sm:$0xff]
    %v2558 = vld [vmem:[%s7 + $0x218] sm:$0xff]
    %v2559 = vld [vmem:[%s7 + $0x220] sm:$0xff]
    %v2560 = vld [vmem:[%s7 + $0x228] sm:$0xff]
    %v2561 = vld [vmem:[%s7 + $0x230] sm:$0xff]
    %v2562 = vld [vmem:[%s7 + $0x238] sm:$0xff]
    %v2563 = vld [vmem:[%s7 + $0x240] sm:$0xff]
    %v2564 = vld [vmem:[%s7 + $0x248] sm:$0xff]
    %v2565 = vld [vmem:[%s7 + $0x250] sm:$0xff]
    %v2566 = vld [vmem:[%s7 + $0x258] sm:$0xff]
    %v2567 = vld [vmem:[%s7 + $0x260] sm:$0xff]
    %v2568 = vld [vmem:[%s7 + $0x268] sm:$0xff]
    %v2569 = vld [vmem:[%s7 + $0x270] sm:$0xff]
    %v2570 = vld [vmem:[%s7 + $0x278] sm:$0xff]
    %v2571 = vld [vmem:[%s7 + $0x280] sm:$0xff]
    %v2572 = vld [vmem:[%s7 + $0x288] sm:$0xff]
    %v2573 = vld [vmem:[%s7 + $0x290] sm:$0xff]
    %v2574 = vld [vmem:[%s7 + $0x298] sm:$0xff]
    %v2575 = vld [vmem:[%s7 + $0x2a0] sm:$0xff]
    %v2576 = vld [vmem:[%s7 + $0x2a8] sm:$0xff]
    %v2577 = vld [vmem:[%s7 + $0x2b0] sm:$0xff]
    %v2578 = vld [vmem:[%s7 + $0x2b8] sm:$0xff]
    %v2579 = vld [vmem:[%s7 + $0x2c0] sm:$0xff]
    %v2580 = vld [vmem:[%s7 + $0x2c8] sm:$0xff]
    %v2581 = vld [vmem:[%s7 + $0x2d0] sm:$0xff]
    %v2582 = vld [vmem:[%s7 + $0x2d8] sm:$0xff]
    %v2583 = vld [vmem:[%s7 + $0x2e0] sm:$0xff]
    %v2584 = vld [vmem:[%s7 + $0x2e8] sm:$0xff]
    %v2585 = vld [vmem:[%s7 + $0x2f0] sm:$0xff]
    %v2586 = vld [vmem:[%s7 + $0x2f8] sm:$0xff]
    %v2587 = vld [vmem:[%s7 + $0x300] sm:$0xff]
    %v2588 = vld [vmem:[%s7 + $0x308] sm:$0xff]
    %v2589 = vld [vmem:[%s7 + $0x310] sm:$0xff]
    %v2590 = vld [vmem:[%s7 + $0x318] sm:$0xff]
    %v2591 = vld [vmem:[%s7 + $0x320] sm:$0xff]
    %v2592 = vld [vmem:[%s7 + $0x328] sm:$0xff]
    %v2593 = vld [vmem:[%s7 + $0x330] sm:$0xff]
    %v2594 = vld [vmem:[%s7 + $0x338] sm:$0xff]
    %v2595 = vld [vmem:[%s7 + $0x340] sm:$0xff]
    %v2596 = vld [vmem:[%s7 + $0x348] sm:$0xff]
    %v2597 = vld [vmem:[%s7 + $0x350] sm:$0xff]
    %v2598 = vld [vmem:[%s7 + $0x358] sm:$0xff]
    %v2599 = vld [vmem:[%s7 + $0x360] sm:$0xff]
    %v2600 = vld [vmem:[%s7 + $0x368] sm:$0xff]
    %v2601 = vld [vmem:[%s7 + $0x370] sm:$0xff]
    %v2602 = vld [vmem:[%s7 + $0x378] sm:$0xff]
    %v2603 = vld [vmem:[%s7 + $0x380] sm:$0xff]
    %v2604 = vld [vmem:[%s7 + $0x388] sm:$0xff]
    %v2605 = vld [vmem:[%s7 + $0x390] sm:$0xff]
    %v2606 = vld [vmem:[%s7 + $0x398] sm:$0xff]
    %v2607 = vld [vmem:[%s7 + $0x3a0] sm:$0xff]
    %v2608 = vld [vmem:[%s7 + $0x3a8] sm:$0xff]
    %v2609 = vld [vmem:[%s7 + $0x3b0] sm:$0xff]
    %v2610 = vld [vmem:[%s7 + $0x3b8] sm:$0xff]
    %v2611 = vld [vmem:[%s7 + $0x3c0] sm:$0xff]
    %v2612 = vld [vmem:[%s7 + $0x3c8] sm:$0xff]
    %v2613 = vld [vmem:[%s7 + $0x3d0] sm:$0xff]
    %v2614 = vld [vmem:[%s7 + $0x3d8] sm:$0xff]
    %v2615 = vld [vmem:[%s7 + $0x3e0] sm:$0xff]
    %v2616 = vld [vmem:[%s7 + $0x3e8] sm:$0xff]
    %v2617 = vld [vmem:[%s7 + $0x3f0] sm:$0xff]
    %v2618 = vld [vmem:[%s7 + $0x3f8] sm:$0xff]
    %v2619 = vld [vmem:[%s7 + $0x400] sm:$0xff]
    %v2620 = vld [vmem:[%s7 + $0x408] sm:$0xff]
    %v2621 = vld [vmem:[%s7 + $0x410] sm:$0xff]
    %v2622 = vld [vmem:[%s7 + $0x418] sm:$0xff]
    %v2623 = vld [vmem:[%s7 + $0x420] sm:$0xff]
    %v2624 = vld [vmem:[%s7 + $0x428] sm:$0xff]
    %v2625 = vld [vmem:[%s7 + $0x430] sm:$0xff]
    %v2626 = vld [vmem:[%s7 + $0x438] sm:$0xff]
    %v2627 = vld [vmem:[%s7 + $0x440] sm:$0xff]
    %v2628 = vld [vmem:[%s7 + $0x448] sm:$0xff]
    %v2629 = vld [vmem:[%s7 + $0x450] sm:$0xff]
    %v2630 = vld [vmem:[%s7 + $0x458] sm:$0xff]
    %v2631 = vld [vmem:[%s7 + $0x460] sm:$0xff]
    %v2632 = vld [vmem:[%s7 + $0x468] sm:$0xff]
    %v2633 = vld [vmem:[%s7 + $0x470] sm:$0xff]
    %v2634 = vld [vmem:[%s7 + $0x478] sm:$0xff]
    %v2635 = vld [vmem:[%s7 + $0x480] sm:$0xff]
    %v2636 = vld [vmem:[%s7 + $0x488] sm:$0xff]
    %v2637 = vld [vmem:[%s7 + $0x490] sm:$0xff]
    %v2638 = vld [vmem:[%s7 + $0x498] sm:$0xff]
    %v2639 = vld [vmem:[%s7 + $0x4a0] sm:$0xff]
    %v2640 = vld [vmem:[%s7 + $0x4a8] sm:$0xff]
    %v2641 = vld [vmem:[%s7 + $0x4b0] sm:$0xff]
    %v2642 = vld [vmem:[%s7 + $0x4b8] sm:$0xff]
    %v2643 = vld [vmem:[%s7 + $0x4c0] sm:$0xff]
    %v2644 = vld [vmem:[%s7 + $0x4c8] sm:$0xff]
    %v2645 = vld [vmem:[%s7 + $0x4d0] sm:$0xff]
    %v2646 = vld [vmem:[%s7 + $0x4d8] sm:$0xff]
    %v2647 = vld [vmem:[%s7 + $0x4e0] sm:$0xff]
    %v2648 = vld [vmem:[%s7 + $0x4e8] sm:$0xff]
    %v2649 = vld [vmem:[%s7 + $0x4f0] sm:$0xff]
    %v2650 = vld [vmem:[%s7 + $0x4f8] sm:$0xff]
    %v2651 = vld [vmem:[%s7 + $0x500] sm:$0xff]
    %v2652 = vld [vmem:[%s7 + $0x508] sm:$0xff]
    %v2653 = vld [vmem:[%s7 + $0x510] sm:$0xff]
    %v2654 = vld [vmem:[%s7 + $0x518] sm:$0xff]
    %v2655 = vld [vmem:[%s7 + $0x520] sm:$0xff]
    %v2656 = vld [vmem:[%s7 + $0x528] sm:$0xff]
    %v2657 = vld [vmem:[%s7 + $0x530] sm:$0xff]
    %v2658 = vld [vmem:[%s7 + $0x538] sm:$0xff]
    %v2659 = vld [vmem:[%s7 + $0x540] sm:$0xff]
    %v2660 = vld [vmem:[%s7 + $0x548] sm:$0xff]
    %v2661 = vld [vmem:[%s7 + $0x550] sm:$0xff]
    %v2662 = vld [vmem:[%s7 + $0x558] sm:$0xff]
    %v2663 = vld [vmem:[%s7 + $0x560] sm:$0xff]
    %v2664 = vld [vmem:[%s7 + $0x568] sm:$0xff]
    %v2665 = vld [vmem:[%s7 + $0x570] sm:$0xff]
    %v2666 = vld [vmem:[%s7 + $0x578] sm:$0xff]
    %v2667 = vld [vmem:[%s7 + $0x580] sm:$0xff]
    %v2668 = vld [vmem:[%s7 + $0x588] sm:$0xff]
    %v2669 = vld [vmem:[%s7 + $0x590] sm:$0xff]
    %v2670 = vld [vmem:[%s7 + $0x598] sm:$0xff]
    %v2671 = vld [vmem:[%s7 + $0x5a0] sm:$0xff]
    %v2672 = vld [vmem:[%s7 + $0x5a8] sm:$0xff]
    %v2673 = vld [vmem:[%s7 + $0x5b0] sm:$0xff]
    %v2674 = vld [vmem:[%s7 + $0x5b8] sm:$0xff]
    %v2675 = vld [vmem:[%s7 + $0x5c0] sm:$0xff]
    %v2676 = vld [vmem:[%s7 + $0x5c8] sm:$0xff]
    %v2677 = vld [vmem:[%s7 + $0x5d0] sm:$0xff]
    %v2678 = vld [vmem:[%s7 + $0x5d8] sm:$0xff]
    %v2679 = vld [vmem:[%s7 + $0x5e0] sm:$0xff]
    %v2680 = vld [vmem:[%s7 + $0x5e8] sm:$0xff]
    %v2681 = vld [vmem:[%s7 + $0x5f0] sm:$0xff]
    %v2682 = vld [vmem:[%s7 + $0x5f8] sm:$0xff]
    %v2683 = vld [vmem:[%s7 + $0x600] sm:$0xff]
    %v2684 = vld [vmem:[%s7 + $0x608] sm:$0xff]
    %v2685 = vld [vmem:[%s7 + $0x610] sm:$0xff]
    %v2686 = vld [vmem:[%s7 + $0x618] sm:$0xff]
    %v2687 = vld [vmem:[%s7 + $0x620] sm:$0xff]
    %v2688 = vld [vmem:[%s7 + $0x628] sm:$0xff]
    %v2689 = vld [vmem:[%s7 + $0x630] sm:$0xff]
    %v2690 = vld [vmem:[%s7 + $0x638] sm:$0xff]
    %v2691 = vld [vmem:[%s7 + $0x640] sm:$0xff]
    %v2692 = vld [vmem:[%s7 + $0x648] sm:$0xff]
    %v2693 = vld [vmem:[%s7 + $0x650] sm:$0xff]
    %v2694 = vld [vmem:[%s7 + $0x658] sm:$0xff]
    %v2695 = vld [vmem:[%s7 + $0x660] sm:$0xff]
    %v2696 = vld [vmem:[%s7 + $0x668] sm:$0xff]
    %v2697 = vld [vmem:[%s7 + $0x670] sm:$0xff]
    %v2698 = vld [vmem:[%s7 + $0x678] sm:$0xff]
    %v2699 = vld [vmem:[%s7 + $0x680] sm:$0xff]
    %v2700 = vld [vmem:[%s7 + $0x688] sm:$0xff]
    %v2701 = vld [vmem:[%s7 + $0x690] sm:$0xff]
    %v2702 = vld [vmem:[%s7 + $0x698] sm:$0xff]
    %v2703 = vld [vmem:[%s7 + $0x6a0] sm:$0xff]
    %v2704 = vld [vmem:[%s7 + $0x6a8] sm:$0xff]
    %v2705 = vld [vmem:[%s7 + $0x6b0] sm:$0xff]
    %v2706 = vld [vmem:[%s7 + $0x6b8] sm:$0xff]
    %v2707 = vld [vmem:[%s7 + $0x6c0] sm:$0xff]
    %v2708 = vld [vmem:[%s7 + $0x6c8] sm:$0xff]
    %v2709 = vld [vmem:[%s7 + $0x6d0] sm:$0xff]
    %v2710 = vld [vmem:[%s7 + $0x6d8] sm:$0xff]
    %v2711 = vld [vmem:[%s7 + $0x6e0] sm:$0xff]
    %v2712 = vld [vmem:[%s7 + $0x6e8] sm:$0xff]
    %v2713 = vld [vmem:[%s7 + $0x6f0] sm:$0xff]
    %v2714 = vld [vmem:[%s7 + $0x6f8] sm:$0xff]
    %v2715 = vld [vmem:[%s7 + $0x700] sm:$0xff]
    %v2716 = vld [vmem:[%s7 + $0x708] sm:$0xff]
    %v2717 = vld [vmem:[%s7 + $0x710] sm:$0xff]
    %v2718 = vld [vmem:[%s7 + $0x718] sm:$0xff]
    %v2719 = vld [vmem:[%s7 + $0x720] sm:$0xff]
    %v2720 = vld [vmem:[%s7 + $0x728] sm:$0xff]
    %v2721 = vld [vmem:[%s7 + $0x730] sm:$0xff]
    %v2722 = vld [vmem:[%s7 + $0x738] sm:$0xff]
    %v2723 = vld [vmem:[%s7 + $0x740] sm:$0xff]
    %v2724 = vld [vmem:[%s7 + $0x748] sm:$0xff]
    %v2725 = vld [vmem:[%s7 + $0x750] sm:$0xff]
    %v2726 = vld [vmem:[%s7 + $0x758] sm:$0xff]
    %v2727 = vld [vmem:[%s7 + $0x760] sm:$0xff]
    %v2728 = vld [vmem:[%s7 + $0x768] sm:$0xff]
    %v2729 = vld [vmem:[%s7 + $0x770] sm:$0xff]
    %v2730 = vld [vmem:[%s7 + $0x778] sm:$0xff]
    %v2731 = vld [vmem:[%s7 + $0x780] sm:$0xff]
    %v2732 = vld [vmem:[%s7 + $0x788] sm:$0xff]
    %v2733 = vld [vmem:[%s7 + $0x790] sm:$0xff]
    %v2734 = vld [vmem:[%s7 + $0x798] sm:$0xff]
    %v2735 = vld [vmem:[%s7 + $0x7a0] sm:$0xff]
    %v2736 = vld [vmem:[%s7 + $0x7a8] sm:$0xff]
    %v2737 = vld [vmem:[%s7 + $0x7b0] sm:$0xff]
    %v2738 = vld [vmem:[%s7 + $0x7b8] sm:$0xff]
    %v2739 = vld [vmem:[%s7 + $0x7c0] sm:$0xff]
    %v2740 = vld [vmem:[%s7 + $0x7c8] sm:$0xff]
    %v2741 = vld [vmem:[%s7 + $0x7d0] sm:$0xff]
    %v2742 = vld [vmem:[%s7 + $0x7d8] sm:$0xff]
    %v2743 = vld [vmem:[%s7 + $0x7e0] sm:$0xff]
    %v2744 = vld [vmem:[%s7 + $0x7e8] sm:$0xff]
    %v2745 = vld [vmem:[%s7 + $0x7f0] sm:$0xff]
    %v2746 = vld [vmem:[%s7 + $0x7f8] sm:$0xff]
    %v2747 = vld [vmem:[%s8] sm:$0xff]
    %v2749 = vperm.slane %v2747, 0
    %v2750 = vperm.slane %v2747, 1
    %v2751 = vperm.slane %v2747, 2
    %v2752 = vperm.slane %v2747, 3
    %v2753 = vperm.slane %v2747, 4
    %v2754 = vperm.slane %v2747, 5
    %v2755 = vperm.slane %v2747, 6
    %v2756 = vperm.slane %v2747, 7
    %v3021 = vunpack.c.l.b16 %v2491
    %v3022 = vunpack.c.h.b16 %v2491
    %v3023 = vunpack.c.l.b16 %v2492
    %v3024 = vunpack.c.h.b16 %v2492
    %v3025 = vunpack.c.l.b16 %v2493
    %v3026 = vunpack.c.h.b16 %v2493
    %v3027 = vunpack.c.l.b16 %v2494
    %v3028 = vunpack.c.h.b16 %v2494
    %v3029 = vunpack.c.l.b16 %v2495
    %v3030 = vunpack.c.h.b16 %v2495
    %v3031 = vunpack.c.l.b16 %v2496
    %v3032 = vunpack.c.h.b16 %v2496
    %v3033 = vunpack.c.l.b16 %v2497
    %v3034 = vunpack.c.h.b16 %v2497
    %v3035 = vunpack.c.l.b16 %v2498
    %v3036 = vunpack.c.h.b16 %v2498
    %v3037 = vunpack.c.l.b16 %v2499
    %v3038 = vunpack.c.h.b16 %v2499
    %v3039 = vunpack.c.l.b16 %v2500
    %v3040 = vunpack.c.h.b16 %v2500
    %v3041 = vunpack.c.l.b16 %v2501
    %v3042 = vunpack.c.h.b16 %v2501
    %v3043 = vunpack.c.l.b16 %v2502
    %v3044 = vunpack.c.h.b16 %v2502
    %v3045 = vunpack.c.l.b16 %v2503
    %v3046 = vunpack.c.h.b16 %v2503
    %v3047 = vunpack.c.l.b16 %v2504
    %v3048 = vunpack.c.h.b16 %v2504
    %v3049 = vunpack.c.l.b16 %v2505
    %v3050 = vunpack.c.h.b16 %v2505
    %v3051 = vunpack.c.l.b16 %v2506
    %v3052 = vunpack.c.h.b16 %v2506
    %v3053 = vunpack.c.l.b16 %v2507
    %v3054 = vunpack.c.h.b16 %v2507
    %v3055 = vunpack.c.l.b16 %v2508
    %v3056 = vunpack.c.h.b16 %v2508
    %v3057 = vunpack.c.l.b16 %v2509
    %v3058 = vunpack.c.h.b16 %v2509
    %v3059 = vunpack.c.l.b16 %v2510
    %v3060 = vunpack.c.h.b16 %v2510
    %v3061 = vunpack.c.l.b16 %v2511
    %v3062 = vunpack.c.h.b16 %v2511
    %v3063 = vunpack.c.l.b16 %v2512
    %v3064 = vunpack.c.h.b16 %v2512
    %v3065 = vunpack.c.l.b16 %v2513
    %v3066 = vunpack.c.h.b16 %v2513
    %v3067 = vunpack.c.l.b16 %v2514
    %v3068 = vunpack.c.h.b16 %v2514
    %v3069 = vunpack.c.l.b16 %v2515
    %v3070 = vunpack.c.h.b16 %v2515
    %v3071 = vunpack.c.l.b16 %v2516
    %v3072 = vunpack.c.h.b16 %v2516
    %v3073 = vunpack.c.l.b16 %v2517
    %v3074 = vunpack.c.h.b16 %v2517
    %v3075 = vunpack.c.l.b16 %v2518
    %v3076 = vunpack.c.h.b16 %v2518
    %v3077 = vunpack.c.l.b16 %v2519
    %v3078 = vunpack.c.h.b16 %v2519
    %v3079 = vunpack.c.l.b16 %v2520
    %v3080 = vunpack.c.h.b16 %v2520
    %v3081 = vunpack.c.l.b16 %v2521
    %v3082 = vunpack.c.h.b16 %v2521
    %v3083 = vunpack.c.l.b16 %v2522
    %v3084 = vunpack.c.h.b16 %v2522
    %v3085 = vunpack.c.l.b16 %v2523
    %v3086 = vunpack.c.h.b16 %v2523
    %v3087 = vunpack.c.l.b16 %v2524
    %v3088 = vunpack.c.h.b16 %v2524
    %v3089 = vunpack.c.l.b16 %v2525
    %v3090 = vunpack.c.h.b16 %v2525
    %v3091 = vunpack.c.l.b16 %v2526
    %v3092 = vunpack.c.h.b16 %v2526
    %v3093 = vunpack.c.l.b16 %v2527
    %v3094 = vunpack.c.h.b16 %v2527
    %v3095 = vunpack.c.l.b16 %v2528
    %v3096 = vunpack.c.h.b16 %v2528
    %v3097 = vunpack.c.l.b16 %v2529
    %v3098 = vunpack.c.h.b16 %v2529
    %v3099 = vunpack.c.l.b16 %v2530
    %v3100 = vunpack.c.h.b16 %v2530
    %v3101 = vunpack.c.l.b16 %v2531
    %v3102 = vunpack.c.h.b16 %v2531
    %v3103 = vunpack.c.l.b16 %v2532
    %v3104 = vunpack.c.h.b16 %v2532
    %v3105 = vunpack.c.l.b16 %v2533
    %v3106 = vunpack.c.h.b16 %v2533
    %v3107 = vunpack.c.l.b16 %v2534
    %v3108 = vunpack.c.h.b16 %v2534
    %v3109 = vunpack.c.l.b16 %v2535
    %v3110 = vunpack.c.h.b16 %v2535
    %v3111 = vunpack.c.l.b16 %v2536
    %v3112 = vunpack.c.h.b16 %v2536
    %v3113 = vunpack.c.l.b16 %v2537
    %v3114 = vunpack.c.h.b16 %v2537
    %v3115 = vunpack.c.l.b16 %v2538
    %v3116 = vunpack.c.h.b16 %v2538
    %v3117 = vunpack.c.l.b16 %v2539
    %v3118 = vunpack.c.h.b16 %v2539
    %v3119 = vunpack.c.l.b16 %v2540
    %v3120 = vunpack.c.h.b16 %v2540
    %v3121 = vunpack.c.l.b16 %v2541
    %v3122 = vunpack.c.h.b16 %v2541
    %v3123 = vunpack.c.l.b16 %v2542
    %v3124 = vunpack.c.h.b16 %v2542
    %v3125 = vunpack.c.l.b16 %v2543
    %v3126 = vunpack.c.h.b16 %v2543
    %v3127 = vunpack.c.l.b16 %v2544
    %v3128 = vunpack.c.h.b16 %v2544
    %v3129 = vunpack.c.l.b16 %v2545
    %v3130 = vunpack.c.h.b16 %v2545
    %v3131 = vunpack.c.l.b16 %v2546
    %v3132 = vunpack.c.h.b16 %v2546
    %v3133 = vunpack.c.l.b16 %v2547
    %v3134 = vunpack.c.h.b16 %v2547
    %v3135 = vunpack.c.l.b16 %v2548
    %v3136 = vunpack.c.h.b16 %v2548
    %v3137 = vunpack.c.l.b16 %v2549
    %v3138 = vunpack.c.h.b16 %v2549
    %v3139 = vunpack.c.l.b16 %v2550
    %v3140 = vunpack.c.h.b16 %v2550
    %v3141 = vunpack.c.l.b16 %v2551
    %v3142 = vunpack.c.h.b16 %v2551
    %v3143 = vunpack.c.l.b16 %v2552
    %v3144 = vunpack.c.h.b16 %v2552
    %v3145 = vunpack.c.l.b16 %v2553
    %v3146 = vunpack.c.h.b16 %v2553
    %v3147 = vunpack.c.l.b16 %v2554
    %v3148 = vunpack.c.h.b16 %v2554
    %v3149 = vunpack.c.l.b16 %v2555
    %v3150 = vunpack.c.h.b16 %v2555
    %v3151 = vunpack.c.l.b16 %v2556
    %v3152 = vunpack.c.h.b16 %v2556
    %v3153 = vunpack.c.l.b16 %v2557
    %v3154 = vunpack.c.h.b16 %v2557
    %v3155 = vunpack.c.l.b16 %v2558
    %v3156 = vunpack.c.h.b16 %v2558
    %v3157 = vunpack.c.l.b16 %v2559
    %v3158 = vunpack.c.h.b16 %v2559
    %v3159 = vunpack.c.l.b16 %v2560
    %v3160 = vunpack.c.h.b16 %v2560
    %v3161 = vunpack.c.l.b16 %v2561
    %v3162 = vunpack.c.h.b16 %v2561
    %v3163 = vunpack.c.l.b16 %v2562
    %v3164 = vunpack.c.h.b16 %v2562
    %v3165 = vunpack.c.l.b16 %v2563
    %v3166 = vunpack.c.h.b16 %v2563
    %v3167 = vunpack.c.l.b16 %v2564
    %v3168 = vunpack.c.h.b16 %v2564
    %v3169 = vunpack.c.l.b16 %v2565
    %v3170 = vunpack.c.h.b16 %v2565
    %v3171 = vunpack.c.l.b16 %v2566
    %v3172 = vunpack.c.h.b16 %v2566
    %v3173 = vunpack.c.l.b16 %v2567
    %v3174 = vunpack.c.h.b16 %v2567
    %v3175 = vunpack.c.l.b16 %v2568
    %v3176 = vunpack.c.h.b16 %v2568
    %v3177 = vunpack.c.l.b16 %v2569
    %v3178 = vunpack.c.h.b16 %v2569
    %v3179 = vunpack.c.l.b16 %v2570
    %v3180 = vunpack.c.h.b16 %v2570
    %v3181 = vunpack.c.l.b16 %v2571
    %v3182 = vunpack.c.h.b16 %v2571
    %v3183 = vunpack.c.l.b16 %v2572
    %v3184 = vunpack.c.h.b16 %v2572
    %v3185 = vunpack.c.l.b16 %v2573
    %v3186 = vunpack.c.h.b16 %v2573
    %v3187 = vunpack.c.l.b16 %v2574
    %v3188 = vunpack.c.h.b16 %v2574
    %v3189 = vunpack.c.l.b16 %v2575
    %v3190 = vunpack.c.h.b16 %v2575
    %v3191 = vunpack.c.l.b16 %v2576
    %v3192 = vunpack.c.h.b16 %v2576
    %v3193 = vunpack.c.l.b16 %v2577
    %v3194 = vunpack.c.h.b16 %v2577
    %v3195 = vunpack.c.l.b16 %v2578
    %v3196 = vunpack.c.h.b16 %v2578
    %v3197 = vunpack.c.l.b16 %v2579
    %v3198 = vunpack.c.h.b16 %v2579
    %v3199 = vunpack.c.l.b16 %v2580
    %v3200 = vunpack.c.h.b16 %v2580
    %v3201 = vunpack.c.l.b16 %v2581
    %v3202 = vunpack.c.h.b16 %v2581
    %v3203 = vunpack.c.l.b16 %v2582
    %v3204 = vunpack.c.h.b16 %v2582
    %v3205 = vunpack.c.l.b16 %v2583
    %v3206 = vunpack.c.h.b16 %v2583
    %v3207 = vunpack.c.l.b16 %v2584
    %v3208 = vunpack.c.h.b16 %v2584
    %v3209 = vunpack.c.l.b16 %v2585
    %v3210 = vunpack.c.h.b16 %v2585
    %v3211 = vunpack.c.l.b16 %v2586
    %v3212 = vunpack.c.h.b16 %v2586
    %v3213 = vunpack.c.l.b16 %v2587
    %v3214 = vunpack.c.h.b16 %v2587
    %v3215 = vunpack.c.l.b16 %v2588
    %v3216 = vunpack.c.h.b16 %v2588
    %v3217 = vunpack.c.l.b16 %v2589
    %v3218 = vunpack.c.h.b16 %v2589
    %v3219 = vunpack.c.l.b16 %v2590
    %v3220 = vunpack.c.h.b16 %v2590
    %v3221 = vunpack.c.l.b16 %v2591
    %v3222 = vunpack.c.h.b16 %v2591
    %v3223 = vunpack.c.l.b16 %v2592
    %v3224 = vunpack.c.h.b16 %v2592
    %v3225 = vunpack.c.l.b16 %v2593
    %v3226 = vunpack.c.h.b16 %v2593
    %v3227 = vunpack.c.l.b16 %v2594
    %v3228 = vunpack.c.h.b16 %v2594
    %v3229 = vunpack.c.l.b16 %v2595
    %v3230 = vunpack.c.h.b16 %v2595
    %v3231 = vunpack.c.l.b16 %v2596
    %v3232 = vunpack.c.h.b16 %v2596
    %v3233 = vunpack.c.l.b16 %v2597
    %v3234 = vunpack.c.h.b16 %v2597
    %v3235 = vunpack.c.l.b16 %v2598
    %v3236 = vunpack.c.h.b16 %v2598
    %v3237 = vunpack.c.l.b16 %v2599
    %v3238 = vunpack.c.h.b16 %v2599
    %v3239 = vunpack.c.l.b16 %v2600
    %v3240 = vunpack.c.h.b16 %v2600
    %v3241 = vunpack.c.l.b16 %v2601
    %v3242 = vunpack.c.h.b16 %v2601
    %v3243 = vunpack.c.l.b16 %v2602
    %v3244 = vunpack.c.h.b16 %v2602
    %v3245 = vunpack.c.l.b16 %v2603
    %v3246 = vunpack.c.h.b16 %v2603
    %v3247 = vunpack.c.l.b16 %v2604
    %v3248 = vunpack.c.h.b16 %v2604
    %v3249 = vunpack.c.l.b16 %v2605
    %v3250 = vunpack.c.h.b16 %v2605
    %v3251 = vunpack.c.l.b16 %v2606
    %v3252 = vunpack.c.h.b16 %v2606
    %v3253 = vunpack.c.l.b16 %v2607
    %v3254 = vunpack.c.h.b16 %v2607
    %v3255 = vunpack.c.l.b16 %v2608
    %v3256 = vunpack.c.h.b16 %v2608
    %v3257 = vunpack.c.l.b16 %v2609
    %v3258 = vunpack.c.h.b16 %v2609
    %v3259 = vunpack.c.l.b16 %v2610
    %v3260 = vunpack.c.h.b16 %v2610
    %v3261 = vunpack.c.l.b16 %v2611
    %v3262 = vunpack.c.h.b16 %v2611
    %v3263 = vunpack.c.l.b16 %v2612
    %v3264 = vunpack.c.h.b16 %v2612
    %v3265 = vunpack.c.l.b16 %v2613
    %v3266 = vunpack.c.h.b16 %v2613
    %v3267 = vunpack.c.l.b16 %v2614
    %v3268 = vunpack.c.h.b16 %v2614
    %v3269 = vunpack.c.l.b16 %v2615
    %v3270 = vunpack.c.h.b16 %v2615
    %v3271 = vunpack.c.l.b16 %v2616
    %v3272 = vunpack.c.h.b16 %v2616
    %v3273 = vunpack.c.l.b16 %v2617
    %v3274 = vunpack.c.h.b16 %v2617
    %v3275 = vunpack.c.l.b16 %v2618
    %v3276 = vunpack.c.h.b16 %v2618
    %v3277 = vunpack.c.l.b16 %v2619
    %v3278 = vunpack.c.h.b16 %v2619
    %v3279 = vunpack.c.l.b16 %v2620
    %v3280 = vunpack.c.h.b16 %v2620
    %v3281 = vunpack.c.l.b16 %v2621
    %v3282 = vunpack.c.h.b16 %v2621
    %v3283 = vunpack.c.l.b16 %v2622
    %v3284 = vunpack.c.h.b16 %v2622
    %v3285 = vunpack.c.l.b16 %v2623
    %v3286 = vunpack.c.h.b16 %v2623
    %v3287 = vunpack.c.l.b16 %v2624
    %v3288 = vunpack.c.h.b16 %v2624
    %v3289 = vunpack.c.l.b16 %v2625
    %v3290 = vunpack.c.h.b16 %v2625
    %v3291 = vunpack.c.l.b16 %v2626
    %v3292 = vunpack.c.h.b16 %v2626
    %v3293 = vunpack.c.l.b16 %v2627
    %v3294 = vunpack.c.h.b16 %v2627
    %v3295 = vunpack.c.l.b16 %v2628
    %v3296 = vunpack.c.h.b16 %v2628
    %v3297 = vunpack.c.l.b16 %v2629
    %v3298 = vunpack.c.h.b16 %v2629
    %v3299 = vunpack.c.l.b16 %v2630
    %v3300 = vunpack.c.h.b16 %v2630
    %v3301 = vunpack.c.l.b16 %v2631
    %v3302 = vunpack.c.h.b16 %v2631
    %v3303 = vunpack.c.l.b16 %v2632
    %v3304 = vunpack.c.h.b16 %v2632
    %v3305 = vunpack.c.l.b16 %v2633
    %v3306 = vunpack.c.h.b16 %v2633
    %v3307 = vunpack.c.l.b16 %v2634
    %v3308 = vunpack.c.h.b16 %v2634
    %v3309 = vunpack.c.l.b16 %v2635
    %v3310 = vunpack.c.h.b16 %v2635
    %v3311 = vunpack.c.l.b16 %v2636
    %v3312 = vunpack.c.h.b16 %v2636
    %v3313 = vunpack.c.l.b16 %v2637
    %v3314 = vunpack.c.h.b16 %v2637
    %v3315 = vunpack.c.l.b16 %v2638
    %v3316 = vunpack.c.h.b16 %v2638
    %v3317 = vunpack.c.l.b16 %v2639
    %v3318 = vunpack.c.h.b16 %v2639
    %v3319 = vunpack.c.l.b16 %v2640
    %v3320 = vunpack.c.h.b16 %v2640
    %v3321 = vunpack.c.l.b16 %v2641
    %v3322 = vunpack.c.h.b16 %v2641
    %v3323 = vunpack.c.l.b16 %v2642
    %v3324 = vunpack.c.h.b16 %v2642
    %v3325 = vunpack.c.l.b16 %v2643
    %v3326 = vunpack.c.h.b16 %v2643
    %v3327 = vunpack.c.l.b16 %v2644
    %v3328 = vunpack.c.h.b16 %v2644
    %v3329 = vunpack.c.l.b16 %v2645
    %v3330 = vunpack.c.h.b16 %v2645
    %v3331 = vunpack.c.l.b16 %v2646
    %v3332 = vunpack.c.h.b16 %v2646
    %v3333 = vunpack.c.l.b16 %v2647
    %v3334 = vunpack.c.h.b16 %v2647
    %v3335 = vunpack.c.l.b16 %v2648
    %v3336 = vunpack.c.h.b16 %v2648
    %v3337 = vunpack.c.l.b16 %v2649
    %v3338 = vunpack.c.h.b16 %v2649
    %v3339 = vunpack.c.l.b16 %v2650
    %v3340 = vunpack.c.h.b16 %v2650
    %v3341 = vunpack.c.l.b16 %v2651
    %v3342 = vunpack.c.h.b16 %v2651
    %v3343 = vunpack.c.l.b16 %v2652
    %v3344 = vunpack.c.h.b16 %v2652
    %v3345 = vunpack.c.l.b16 %v2653
    %v3346 = vunpack.c.h.b16 %v2653
    %v3347 = vunpack.c.l.b16 %v2654
    %v3348 = vunpack.c.h.b16 %v2654
    %v3349 = vunpack.c.l.b16 %v2655
    %v3350 = vunpack.c.h.b16 %v2655
    %v3351 = vunpack.c.l.b16 %v2656
    %v3352 = vunpack.c.h.b16 %v2656
    %v3353 = vunpack.c.l.b16 %v2657
    %v3354 = vunpack.c.h.b16 %v2657
    %v3355 = vunpack.c.l.b16 %v2658
    %v3356 = vunpack.c.h.b16 %v2658
    %v3357 = vunpack.c.l.b16 %v2659
    %v3358 = vunpack.c.h.b16 %v2659
    %v3359 = vunpack.c.l.b16 %v2660
    %v3360 = vunpack.c.h.b16 %v2660
    %v3361 = vunpack.c.l.b16 %v2661
    %v3362 = vunpack.c.h.b16 %v2661
    %v3363 = vunpack.c.l.b16 %v2662
    %v3364 = vunpack.c.h.b16 %v2662
    %v3365 = vunpack.c.l.b16 %v2663
    %v3366 = vunpack.c.h.b16 %v2663
    %v3367 = vunpack.c.l.b16 %v2664
    %v3368 = vunpack.c.h.b16 %v2664
    %v3369 = vunpack.c.l.b16 %v2665
    %v3370 = vunpack.c.h.b16 %v2665
    %v3371 = vunpack.c.l.b16 %v2666
    %v3372 = vunpack.c.h.b16 %v2666
    %v3373 = vunpack.c.l.b16 %v2667
    %v3374 = vunpack.c.h.b16 %v2667
    %v3375 = vunpack.c.l.b16 %v2668
    %v3376 = vunpack.c.h.b16 %v2668
    %v3377 = vunpack.c.l.b16 %v2669
    %v3378 = vunpack.c.h.b16 %v2669
    %v3379 = vunpack.c.l.b16 %v2670
    %v3380 = vunpack.c.h.b16 %v2670
    %v3381 = vunpack.c.l.b16 %v2671
    %v3382 = vunpack.c.h.b16 %v2671
    %v3383 = vunpack.c.l.b16 %v2672
    %v3384 = vunpack.c.h.b16 %v2672
    %v3385 = vunpack.c.l.b16 %v2673
    %v3386 = vunpack.c.h.b16 %v2673
    %v3387 = vunpack.c.l.b16 %v2674
    %v3388 = vunpack.c.h.b16 %v2674
    %v3389 = vunpack.c.l.b16 %v2675
    %v3390 = vunpack.c.h.b16 %v2675
    %v3391 = vunpack.c.l.b16 %v2676
    %v3392 = vunpack.c.h.b16 %v2676
    %v3393 = vunpack.c.l.b16 %v2677
    %v3394 = vunpack.c.h.b16 %v2677
    %v3395 = vunpack.c.l.b16 %v2678
    %v3396 = vunpack.c.h.b16 %v2678
    %v3397 = vunpack.c.l.b16 %v2679
    %v3398 = vunpack.c.h.b16 %v2679
    %v3399 = vunpack.c.l.b16 %v2680
    %v3400 = vunpack.c.h.b16 %v2680
    %v3401 = vunpack.c.l.b16 %v2681
    %v3402 = vunpack.c.h.b16 %v2681
    %v3403 = vunpack.c.l.b16 %v2682
    %v3404 = vunpack.c.h.b16 %v2682
    %v3405 = vunpack.c.l.b16 %v2683
    %v3406 = vunpack.c.h.b16 %v2683
    %v3407 = vunpack.c.l.b16 %v2684
    %v3408 = vunpack.c.h.b16 %v2684
    %v3409 = vunpack.c.l.b16 %v2685
    %v3410 = vunpack.c.h.b16 %v2685
    %v3411 = vunpack.c.l.b16 %v2686
    %v3412 = vunpack.c.h.b16 %v2686
    %v3413 = vunpack.c.l.b16 %v2687
    %v3414 = vunpack.c.h.b16 %v2687
    %v3415 = vunpack.c.l.b16 %v2688
    %v3416 = vunpack.c.h.b16 %v2688
    %v3417 = vunpack.c.l.b16 %v2689
    %v3418 = vunpack.c.h.b16 %v2689
    %v3419 = vunpack.c.l.b16 %v2690
    %v3420 = vunpack.c.h.b16 %v2690
    %v3421 = vunpack.c.l.b16 %v2691
    %v3422 = vunpack.c.h.b16 %v2691
    %v3423 = vunpack.c.l.b16 %v2692
    %v3424 = vunpack.c.h.b16 %v2692
    %v3425 = vunpack.c.l.b16 %v2693
    %v3426 = vunpack.c.h.b16 %v2693
    %v3427 = vunpack.c.l.b16 %v2694
    %v3428 = vunpack.c.h.b16 %v2694
    %v3429 = vunpack.c.l.b16 %v2695
    %v3430 = vunpack.c.h.b16 %v2695
    %v3431 = vunpack.c.l.b16 %v2696
    %v3432 = vunpack.c.h.b16 %v2696
    %v3433 = vunpack.c.l.b16 %v2697
    %v3434 = vunpack.c.h.b16 %v2697
    %v3435 = vunpack.c.l.b16 %v2698
    %v3436 = vunpack.c.h.b16 %v2698
    %v3437 = vunpack.c.l.b16 %v2699
    %v3438 = vunpack.c.h.b16 %v2699
    %v3439 = vunpack.c.l.b16 %v2700
    %v3440 = vunpack.c.h.b16 %v2700
    %v3441 = vunpack.c.l.b16 %v2701
    %v3442 = vunpack.c.h.b16 %v2701
    %v3443 = vunpack.c.l.b16 %v2702
    %v3444 = vunpack.c.h.b16 %v2702
    %v3445 = vunpack.c.l.b16 %v2703
    %v3446 = vunpack.c.h.b16 %v2703
    %v3447 = vunpack.c.l.b16 %v2704
    %v3448 = vunpack.c.h.b16 %v2704
    %v3449 = vunpack.c.l.b16 %v2705
    %v3450 = vunpack.c.h.b16 %v2705
    %v3451 = vunpack.c.l.b16 %v2706
    %v3452 = vunpack.c.h.b16 %v2706
    %v3453 = vunpack.c.l.b16 %v2707
    %v3454 = vunpack.c.h.b16 %v2707
    %v3455 = vunpack.c.l.b16 %v2708
    %v3456 = vunpack.c.h.b16 %v2708
    %v3457 = vunpack.c.l.b16 %v2709
    %v3458 = vunpack.c.h.b16 %v2709
    %v3459 = vunpack.c.l.b16 %v2710
    %v3460 = vunpack.c.h.b16 %v2710
    %v3461 = vunpack.c.l.b16 %v2711
    %v3462 = vunpack.c.h.b16 %v2711
    %v3463 = vunpack.c.l.b16 %v2712
    %v3464 = vunpack.c.h.b16 %v2712
    %v3465 = vunpack.c.l.b16 %v2713
    %v3466 = vunpack.c.h.b16 %v2713
    %v3467 = vunpack.c.l.b16 %v2714
    %v3468 = vunpack.c.h.b16 %v2714
    %v3469 = vunpack.c.l.b16 %v2715
    %v3470 = vunpack.c.h.b16 %v2715
    %v3471 = vunpack.c.l.b16 %v2716
    %v3472 = vunpack.c.h.b16 %v2716
    %v3473 = vunpack.c.l.b16 %v2717
    %v3474 = vunpack.c.h.b16 %v2717
    %v3475 = vunpack.c.l.b16 %v2718
    %v3476 = vunpack.c.h.b16 %v2718
    %v3477 = vunpack.c.l.b16 %v2719
    %v3478 = vunpack.c.h.b16 %v2719
    %v3479 = vunpack.c.l.b16 %v2720
    %v3480 = vunpack.c.h.b16 %v2720
    %v3481 = vunpack.c.l.b16 %v2721
    %v3482 = vunpack.c.h.b16 %v2721
    %v3483 = vunpack.c.l.b16 %v2722
    %v3484 = vunpack.c.h.b16 %v2722
    %v3485 = vunpack.c.l.b16 %v2723
    %v3486 = vunpack.c.h.b16 %v2723
    %v3487 = vunpack.c.l.b16 %v2724
    %v3488 = vunpack.c.h.b16 %v2724
    %v3489 = vunpack.c.l.b16 %v2725
    %v3490 = vunpack.c.h.b16 %v2725
    %v3491 = vunpack.c.l.b16 %v2726
    %v3492 = vunpack.c.h.b16 %v2726
    %v3493 = vunpack.c.l.b16 %v2727
    %v3494 = vunpack.c.h.b16 %v2727
    %v3495 = vunpack.c.l.b16 %v2728
    %v3496 = vunpack.c.h.b16 %v2728
    %v3497 = vunpack.c.l.b16 %v2729
    %v3498 = vunpack.c.h.b16 %v2729
    %v3499 = vunpack.c.l.b16 %v2730
    %v3500 = vunpack.c.h.b16 %v2730
    %v3501 = vunpack.c.l.b16 %v2731
    %v3502 = vunpack.c.h.b16 %v2731
    %v3503 = vunpack.c.l.b16 %v2732
    %v3504 = vunpack.c.h.b16 %v2732
    %v3505 = vunpack.c.l.b16 %v2733
    %v3506 = vunpack.c.h.b16 %v2733
    %v3507 = vunpack.c.l.b16 %v2734
    %v3508 = vunpack.c.h.b16 %v2734
    %v3509 = vunpack.c.l.b16 %v2735
    %v3510 = vunpack.c.h.b16 %v2735
    %v3511 = vunpack.c.l.b16 %v2736
    %v3512 = vunpack.c.h.b16 %v2736
    %v3513 = vunpack.c.l.b16 %v2737
    %v3514 = vunpack.c.h.b16 %v2737
    %v3515 = vunpack.c.l.b16 %v2738
    %v3516 = vunpack.c.h.b16 %v2738
    %v3517 = vunpack.c.l.b16 %v2739
    %v3518 = vunpack.c.h.b16 %v2739
    %v3519 = vunpack.c.l.b16 %v2740
    %v3520 = vunpack.c.h.b16 %v2740
    %v3521 = vunpack.c.l.b16 %v2741
    %v3522 = vunpack.c.h.b16 %v2741
    %v3523 = vunpack.c.l.b16 %v2742
    %v3524 = vunpack.c.h.b16 %v2742
    %v3525 = vunpack.c.l.b16 %v2743
    %v3526 = vunpack.c.h.b16 %v2743
    %v3527 = vunpack.c.l.b16 %v2744
    %v3528 = vunpack.c.h.b16 %v2744
    %v3529 = vunpack.c.l.b16 %v2745
    %v3530 = vunpack.c.h.b16 %v2745
    %v3531 = vunpack.c.l.b16 %v2746
    %v3532 = vunpack.c.h.b16 %v2746
    %v3533 = vpack.c.b16 %v3029, %v3021
    %v3534 = vpack.c.b16 %v3030, %v3022
    %v3535 = vpack.c.b16 %v3031, %v3023
    %v3536 = vpack.c.b16 %v3032, %v3024
    %v3537 = vpack.c.b16 %v3033, %v3025
    %v3538 = vpack.c.b16 %v3034, %v3026
    %v3539 = vpack.c.b16 %v3035, %v3027
    %v3540 = vpack.c.b16 %v3036, %v3028
    %v3541 = vpack.c.b16 %v3045, %v3037
    %v3542 = vpack.c.b16 %v3046, %v3038
    %v3543 = vpack.c.b16 %v3047, %v3039
    %v3544 = vpack.c.b16 %v3048, %v3040
    %v3545 = vpack.c.b16 %v3049, %v3041
    %v3546 = vpack.c.b16 %v3050, %v3042
    %v3547 = vpack.c.b16 %v3051, %v3043
    %v3548 = vpack.c.b16 %v3052, %v3044
    %v3549 = vpack.c.b16 %v3061, %v3053
    %v3550 = vpack.c.b16 %v3062, %v3054
    %v3551 = vpack.c.b16 %v3063, %v3055
    %v3552 = vpack.c.b16 %v3064, %v3056
    %v3553 = vpack.c.b16 %v3065, %v3057
    %v3554 = vpack.c.b16 %v3066, %v3058
    %v3555 = vpack.c.b16 %v3067, %v3059
    %v3556 = vpack.c.b16 %v3068, %v3060
    %v3557 = vpack.c.b16 %v3077, %v3069
    %v3558 = vpack.c.b16 %v3078, %v3070
    %v3559 = vpack.c.b16 %v3079, %v3071
    %v3560 = vpack.c.b16 %v3080, %v3072
    %v3561 = vpack.c.b16 %v3081, %v3073
    %v3562 = vpack.c.b16 %v3082, %v3074
    %v3563 = vpack.c.b16 %v3083, %v3075
    %v3564 = vpack.c.b16 %v3084, %v3076
    %v3565 = vpack.c.b16 %v3093, %v3085
    %v3566 = vpack.c.b16 %v3094, %v3086
    %v3567 = vpack.c.b16 %v3095, %v3087
    %v3568 = vpack.c.b16 %v3096, %v3088
    %v3569 = vpack.c.b16 %v3097, %v3089
    %v3570 = vpack.c.b16 %v3098, %v3090
    %v3571 = vpack.c.b16 %v3099, %v3091
    %v3572 = vpack.c.b16 %v3100, %v3092
    %v3573 = vpack.c.b16 %v3109, %v3101
    %v3574 = vpack.c.b16 %v3110, %v3102
    %v3575 = vpack.c.b16 %v3111, %v3103
    %v3576 = vpack.c.b16 %v3112, %v3104
    %v3577 = vpack.c.b16 %v3113, %v3105
    %v3578 = vpack.c.b16 %v3114, %v3106
    %v3579 = vpack.c.b16 %v3115, %v3107
    %v3580 = vpack.c.b16 %v3116, %v3108
    %v3581 = vpack.c.b16 %v3125, %v3117
    %v3582 = vpack.c.b16 %v3126, %v3118
    %v3583 = vpack.c.b16 %v3127, %v3119
    %v3584 = vpack.c.b16 %v3128, %v3120
    %v3585 = vpack.c.b16 %v3129, %v3121
    %v3586 = vpack.c.b16 %v3130, %v3122
    %v3587 = vpack.c.b16 %v3131, %v3123
    %v3588 = vpack.c.b16 %v3132, %v3124
    %v3589 = vpack.c.b16 %v3141, %v3133
    %v3590 = vpack.c.b16 %v3142, %v3134
    %v3591 = vpack.c.b16 %v3143, %v3135
    %v3592 = vpack.c.b16 %v3144, %v3136
    %v3593 = vpack.c.b16 %v3145, %v3137
    %v3594 = vpack.c.b16 %v3146, %v3138
    %v3595 = vpack.c.b16 %v3147, %v3139
    %v3596 = vpack.c.b16 %v3148, %v3140
    %v3597 = vpack.c.b16 %v3157, %v3149
    %v3598 = vpack.c.b16 %v3158, %v3150
    %v3599 = vpack.c.b16 %v3159, %v3151
    %v3600 = vpack.c.b16 %v3160, %v3152
    %v3601 = vpack.c.b16 %v3161, %v3153
    %v3602 = vpack.c.b16 %v3162, %v3154
    %v3603 = vpack.c.b16 %v3163, %v3155
    %v3604 = vpack.c.b16 %v3164, %v3156
    %v3605 = vpack.c.b16 %v3173, %v3165
    %v3606 = vpack.c.b16 %v3174, %v3166
    %v3607 = vpack.c.b16 %v3175, %v3167
    %v3608 = vpack.c.b16 %v3176, %v3168
    %v3609 = vpack.c.b16 %v3177, %v3169
    %v3610 = vpack.c.b16 %v3178, %v3170
    %v3611 = vpack.c.b16 %v3179, %v3171
    %v3612 = vpack.c.b16 %v3180, %v3172
    %v3613 = vpack.c.b16 %v3189, %v3181
    %v3614 = vpack.c.b16 %v3190, %v3182
    %v3615 = vpack.c.b16 %v3191, %v3183
    %v3616 = vpack.c.b16 %v3192, %v3184
    %v3617 = vpack.c.b16 %v3193, %v3185
    %v3618 = vpack.c.b16 %v3194, %v3186
    %v3619 = vpack.c.b16 %v3195, %v3187
    %v3620 = vpack.c.b16 %v3196, %v3188
    %v3621 = vpack.c.b16 %v3205, %v3197
    %v3622 = vpack.c.b16 %v3206, %v3198
    %v3623 = vpack.c.b16 %v3207, %v3199
    %v3624 = vpack.c.b16 %v3208, %v3200
    %v3625 = vpack.c.b16 %v3209, %v3201
    %v3626 = vpack.c.b16 %v3210, %v3202
    %v3627 = vpack.c.b16 %v3211, %v3203
    %v3628 = vpack.c.b16 %v3212, %v3204
    %v3629 = vpack.c.b16 %v3221, %v3213
    %v3630 = vpack.c.b16 %v3222, %v3214
    %v3631 = vpack.c.b16 %v3223, %v3215
    %v3632 = vpack.c.b16 %v3224, %v3216
    %v3633 = vpack.c.b16 %v3225, %v3217
    %v3634 = vpack.c.b16 %v3226, %v3218
    %v3635 = vpack.c.b16 %v3227, %v3219
    %v3636 = vpack.c.b16 %v3228, %v3220
    %v3637 = vpack.c.b16 %v3237, %v3229
    %v3638 = vpack.c.b16 %v3238, %v3230
    %v3639 = vpack.c.b16 %v3239, %v3231
    %v3640 = vpack.c.b16 %v3240, %v3232
    %v3641 = vpack.c.b16 %v3241, %v3233
    %v3642 = vpack.c.b16 %v3242, %v3234
    %v3643 = vpack.c.b16 %v3243, %v3235
    %v3644 = vpack.c.b16 %v3244, %v3236
    %v3645 = vpack.c.b16 %v3253, %v3245
    %v3646 = vpack.c.b16 %v3254, %v3246
    %v3647 = vpack.c.b16 %v3255, %v3247
    %v3648 = vpack.c.b16 %v3256, %v3248
    %v3649 = vpack.c.b16 %v3257, %v3249
    %v3650 = vpack.c.b16 %v3258, %v3250
    %v3651 = vpack.c.b16 %v3259, %v3251
    %v3652 = vpack.c.b16 %v3260, %v3252
    %v3653 = vpack.c.b16 %v3269, %v3261
    %v3654 = vpack.c.b16 %v3270, %v3262
    %v3655 = vpack.c.b16 %v3271, %v3263
    %v3656 = vpack.c.b16 %v3272, %v3264
    %v3657 = vpack.c.b16 %v3273, %v3265
    %v3658 = vpack.c.b16 %v3274, %v3266
    %v3659 = vpack.c.b16 %v3275, %v3267
    %v3660 = vpack.c.b16 %v3276, %v3268
    %v3661 = vpack.c.b16 %v3285, %v3277
    %v3662 = vpack.c.b16 %v3286, %v3278
    %v3663 = vpack.c.b16 %v3287, %v3279
    %v3664 = vpack.c.b16 %v3288, %v3280
    %v3665 = vpack.c.b16 %v3289, %v3281
    %v3666 = vpack.c.b16 %v3290, %v3282
    %v3667 = vpack.c.b16 %v3291, %v3283
    %v3668 = vpack.c.b16 %v3292, %v3284
    %v3669 = vpack.c.b16 %v3301, %v3293
    %v3670 = vpack.c.b16 %v3302, %v3294
    %v3671 = vpack.c.b16 %v3303, %v3295
    %v3672 = vpack.c.b16 %v3304, %v3296
    %v3673 = vpack.c.b16 %v3305, %v3297
    %v3674 = vpack.c.b16 %v3306, %v3298
    %v3675 = vpack.c.b16 %v3307, %v3299
    %v3676 = vpack.c.b16 %v3308, %v3300
    %v3677 = vpack.c.b16 %v3317, %v3309
    %v3678 = vpack.c.b16 %v3318, %v3310
    %v3679 = vpack.c.b16 %v3319, %v3311
    %v3680 = vpack.c.b16 %v3320, %v3312
    %v3681 = vpack.c.b16 %v3321, %v3313
    %v3682 = vpack.c.b16 %v3322, %v3314
    %v3683 = vpack.c.b16 %v3323, %v3315
    %v3684 = vpack.c.b16 %v3324, %v3316
    %v3685 = vpack.c.b16 %v3333, %v3325
    %v3686 = vpack.c.b16 %v3334, %v3326
    %v3687 = vpack.c.b16 %v3335, %v3327
    %v3688 = vpack.c.b16 %v3336, %v3328
    %v3689 = vpack.c.b16 %v3337, %v3329
    %v3690 = vpack.c.b16 %v3338, %v3330
    %v3691 = vpack.c.b16 %v3339, %v3331
    %v3692 = vpack.c.b16 %v3340, %v3332
    %v3693 = vpack.c.b16 %v3349, %v3341
    %v3694 = vpack.c.b16 %v3350, %v3342
    %v3695 = vpack.c.b16 %v3351, %v3343
    %v3696 = vpack.c.b16 %v3352, %v3344
    %v3697 = vpack.c.b16 %v3353, %v3345
    %v3698 = vpack.c.b16 %v3354, %v3346
    %v3699 = vpack.c.b16 %v3355, %v3347
    %v3700 = vpack.c.b16 %v3356, %v3348
    %v3701 = vpack.c.b16 %v3365, %v3357
    %v3702 = vpack.c.b16 %v3366, %v3358
    %v3703 = vpack.c.b16 %v3367, %v3359
    %v3704 = vpack.c.b16 %v3368, %v3360
    %v3705 = vpack.c.b16 %v3369, %v3361
    %v3706 = vpack.c.b16 %v3370, %v3362
    %v3707 = vpack.c.b16 %v3371, %v3363
    %v3708 = vpack.c.b16 %v3372, %v3364
    %v3709 = vpack.c.b16 %v3381, %v3373
    %v3710 = vpack.c.b16 %v3382, %v3374
    %v3711 = vpack.c.b16 %v3383, %v3375
    %v3712 = vpack.c.b16 %v3384, %v3376
    %v3713 = vpack.c.b16 %v3385, %v3377
    %v3714 = vpack.c.b16 %v3386, %v3378
    %v3715 = vpack.c.b16 %v3387, %v3379
    %v3716 = vpack.c.b16 %v3388, %v3380
    %v3717 = vpack.c.b16 %v3397, %v3389
    %v3718 = vpack.c.b16 %v3398, %v3390
    %v3719 = vpack.c.b16 %v3399, %v3391
    %v3720 = vpack.c.b16 %v3400, %v3392
    %v3721 = vpack.c.b16 %v3401, %v3393
    %v3722 = vpack.c.b16 %v3402, %v3394
    %v3723 = vpack.c.b16 %v3403, %v3395
    %v3724 = vpack.c.b16 %v3404, %v3396
    %v3725 = vpack.c.b16 %v3413, %v3405
    %v3726 = vpack.c.b16 %v3414, %v3406
    %v3727 = vpack.c.b16 %v3415, %v3407
    %v3728 = vpack.c.b16 %v3416, %v3408
    %v3729 = vpack.c.b16 %v3417, %v3409
    %v3730 = vpack.c.b16 %v3418, %v3410
    %v3731 = vpack.c.b16 %v3419, %v3411
    %v3732 = vpack.c.b16 %v3420, %v3412
    %v3733 = vpack.c.b16 %v3429, %v3421
    %v3734 = vpack.c.b16 %v3430, %v3422
    %v3735 = vpack.c.b16 %v3431, %v3423
    %v3736 = vpack.c.b16 %v3432, %v3424
    %v3737 = vpack.c.b16 %v3433, %v3425
    %v3738 = vpack.c.b16 %v3434, %v3426
    %v3739 = vpack.c.b16 %v3435, %v3427
    %v3740 = vpack.c.b16 %v3436, %v3428
    %v3741 = vpack.c.b16 %v3445, %v3437
    %v3742 = vpack.c.b16 %v3446, %v3438
    %v3743 = vpack.c.b16 %v3447, %v3439
    %v3744 = vpack.c.b16 %v3448, %v3440
    %v3745 = vpack.c.b16 %v3449, %v3441
    %v3746 = vpack.c.b16 %v3450, %v3442
    %v3747 = vpack.c.b16 %v3451, %v3443
    %v3748 = vpack.c.b16 %v3452, %v3444
    %v3749 = vpack.c.b16 %v3461, %v3453
    %v3750 = vpack.c.b16 %v3462, %v3454
    %v3751 = vpack.c.b16 %v3463, %v3455
    %v3752 = vpack.c.b16 %v3464, %v3456
    %v3753 = vpack.c.b16 %v3465, %v3457
    %v3754 = vpack.c.b16 %v3466, %v3458
    %v3755 = vpack.c.b16 %v3467, %v3459
    %v3756 = vpack.c.b16 %v3468, %v3460
    %v3757 = vpack.c.b16 %v3477, %v3469
    %v3758 = vpack.c.b16 %v3478, %v3470
    %v3759 = vpack.c.b16 %v3479, %v3471
    %v3760 = vpack.c.b16 %v3480, %v3472
    %v3761 = vpack.c.b16 %v3481, %v3473
    %v3762 = vpack.c.b16 %v3482, %v3474
    %v3763 = vpack.c.b16 %v3483, %v3475
    %v3764 = vpack.c.b16 %v3484, %v3476
    %v3765 = vpack.c.b16 %v3493, %v3485
    %v3766 = vpack.c.b16 %v3494, %v3486
    %v3767 = vpack.c.b16 %v3495, %v3487
    %v3768 = vpack.c.b16 %v3496, %v3488
    %v3769 = vpack.c.b16 %v3497, %v3489
    %v3770 = vpack.c.b16 %v3498, %v3490
    %v3771 = vpack.c.b16 %v3499, %v3491
    %v3772 = vpack.c.b16 %v3500, %v3492
    %v3773 = vpack.c.b16 %v3509, %v3501
    %v3774 = vpack.c.b16 %v3510, %v3502
    %v3775 = vpack.c.b16 %v3511, %v3503
    %v3776 = vpack.c.b16 %v3512, %v3504
    %v3777 = vpack.c.b16 %v3513, %v3505
    %v3778 = vpack.c.b16 %v3514, %v3506
    %v3779 = vpack.c.b16 %v3515, %v3507
    %v3780 = vpack.c.b16 %v3516, %v3508
    %v3781 = vpack.c.b16 %v3525, %v3517
    %v3782 = vpack.c.b16 %v3526, %v3518
    %v3783 = vpack.c.b16 %v3527, %v3519
    %v3784 = vpack.c.b16 %v3528, %v3520
    %v3785 = vpack.c.b16 %v3529, %v3521
    %v3786 = vpack.c.b16 %v3530, %v3522
    %v3787 = vpack.c.b16 %v3531, %v3523
    %v3788 = vpack.c.b16 %v3532, %v3524
    %4045 = vmatpush.bf16.msra.mxu0 %v3589
    %4046 = vmatpush.bf16.msra.mxu0 %v3581
    %4047 = vmatpush.bf16.msra.mxu0 %v3573
    %4048 = vmatpush.bf16.msra.mxu0 %v3565
    %4049 = vmatpush.bf16.msra.mxu0 %v3557
    %4050 = vmatpush.bf16.msra.mxu0 %v3549
    %4051 = vmatpush.bf16.msra.mxu0 %v3541
    %4052 = vmatpush.bf16.msra.mxu0 %v3533
    %4053 = vmatmul.bf16.gmra.mxu0 %v2427
    %v4054 = vpop.f32.mrf.mxu0
    %v4055 = vadd.f32 %v2749, %v4054
    %v4056 = vpop.f32.mrf.mxu0
    %v4057 = vadd.f32 %v2749, %v4056
    %4058 = vmatmul.bf16.gmra.mxu0 %v2431
    %v4059 = vpop.f32.mrf.mxu0
    %v4060 = vadd.f32 %v2749, %v4059
    %v4061 = vpop.f32.mrf.mxu0
    %v4062 = vadd.f32 %v2749, %v4061
    %4063 = vmatmul.bf16.gmra.mxu0 %v2435
    %v4064 = vpop.f32.mrf.mxu0
    %v4065 = vadd.f32 %v2749, %v4064
    %v4066 = vpop.f32.mrf.mxu0
    %v4067 = vadd.f32 %v2749, %v4066
    %4068 = vmatmul.bf16.gmra.mxu0 %v2439
    %v4069 = vpop.f32.mrf.mxu0
    %v4070 = vadd.f32 %v2749, %v4069
    %v4071 = vpop.f32.mrf.mxu0
    %v4072 = vadd.f32 %v2749, %v4071
    %4073 = vmatmul.bf16.gmra.mxu0 %v2443
    %v4074 = vpop.f32.mrf.mxu0
    %v4075 = vadd.f32 %v2749, %v4074
    %v4076 = vpop.f32.mrf.mxu0
    %v4077 = vadd.f32 %v2749, %v4076
    %4078 = vmatmul.bf16.gmra.mxu0 %v2447
    %v4079 = vpop.f32.mrf.mxu0
    %v4080 = vadd.f32 %v2749, %v4079
    %v4081 = vpop.f32.mrf.mxu0
    %v4082 = vadd.f32 %v2749, %v4081
    %4083 = vmatmul.bf16.gmra.mxu0 %v2451
    %v4084 = vpop.f32.mrf.mxu0
    %v4085 = vadd.f32 %v2749, %v4084
    %v4086 = vpop.f32.mrf.mxu0
    %v4087 = vadd.f32 %v2749, %v4086
    %4088 = vmatmul.bf16.gmra.mxu0 %v2455
    %v4089 = vpop.f32.mrf.mxu0
    %v4090 = vadd.f32 %v2749, %v4089
    %v4091 = vpop.f32.mrf.mxu0
    %v4092 = vadd.f32 %v2749, %v4091
    %4093 = vmatmul.bf16.gmra.mxu0 %v2459
    %v4094 = vpop.f32.mrf.mxu0
    %v4095 = vadd.f32 %v2749, %v4094
    %v4096 = vpop.f32.mrf.mxu0
    %v4097 = vadd.f32 %v2749, %v4096
    %4098 = vmatmul.bf16.gmra.mxu0 %v2463
    %v4099 = vpop.f32.mrf.mxu0
    %v4100 = vadd.f32 %v2749, %v4099
    %v4101 = vpop.f32.mrf.mxu0
    %v4102 = vadd.f32 %v2749, %v4101
    %4103 = vmatmul.bf16.gmra.mxu0 %v2467
    %v4104 = vpop.f32.mrf.mxu0
    %v4105 = vadd.f32 %v2749, %v4104
    %v4106 = vpop.f32.mrf.mxu0
    %v4107 = vadd.f32 %v2749, %v4106
    %4108 = vmatmul.bf16.gmra.mxu0 %v2471
    %v4109 = vpop.f32.mrf.mxu0
    %v4110 = vadd.f32 %v2749, %v4109
    %v4111 = vpop.f32.mrf.mxu0
    %v4112 = vadd.f32 %v2749, %v4111
    %4113 = vmatmul.bf16.gmra.mxu0 %v2475
    %v4114 = vpop.f32.mrf.mxu0
    %v4115 = vadd.f32 %v2749, %v4114
    %v4116 = vpop.f32.mrf.mxu0
    %v4117 = vadd.f32 %v2749, %v4116
    %4118 = vmatmul.bf16.gmra.mxu0 %v2479
    %v4119 = vpop.f32.mrf.mxu0
    %v4120 = vadd.f32 %v2749, %v4119
    %v4121 = vpop.f32.mrf.mxu0
    %v4122 = vadd.f32 %v2749, %v4121
    %4123 = vmatmul.bf16.gmra.mxu0 %v2483
    %v4124 = vpop.f32.mrf.mxu0
    %v4125 = vadd.f32 %v2749, %v4124
    %v4126 = vpop.f32.mrf.mxu0
    %v4127 = vadd.f32 %v2749, %v4126
    %4128 = vmatmul.bf16.gmra.mxu0 %v2487
    %v4129 = vpop.f32.mrf.mxu0
    %v4130 = vadd.f32 %v2749, %v4129
    %v4131 = vpop.f32.mrf.mxu0
    %v4132 = vadd.f32 %v2749, %v4131
    %4133 = vdwg.mxu0
    %4134 = vmatpush.bf16.msra.mxu0 %v3653
    %4135 = vmatpush.bf16.msra.mxu0 %v3645
    %4136 = vmatpush.bf16.msra.mxu0 %v3637
    %4137 = vmatpush.bf16.msra.mxu0 %v3629
    %4138 = vmatpush.bf16.msra.mxu0 %v3621
    %4139 = vmatpush.bf16.msra.mxu0 %v3613
    %4140 = vmatpush.bf16.msra.mxu0 %v3605
    %4141 = vmatpush.bf16.msra.mxu0 %v3597
    %4142 = vmatmul.bf16.gmra.mxu0 %v2428
    %v4143 = vpop.f32.mrf.mxu0
    %v4144 = vadd.f32 %v4055, %v4143
    %v4145 = vpop.f32.mrf.mxu0
    %v4146 = vadd.f32 %v4057, %v4145
    %4147 = vmatmul.bf16.gmra.mxu0 %v2432
    %v4148 = vpop.f32.mrf.mxu0
    %v4149 = vadd.f32 %v4060, %v4148
    %v4150 = vpop.f32.mrf.mxu0
    %v4151 = vadd.f32 %v4062, %v4150
    %4152 = vmatmul.bf16.gmra.mxu0 %v2436
    %v4153 = vpop.f32.mrf.mxu0
    %v4154 = vadd.f32 %v4065, %v4153
    %v4155 = vpop.f32.mrf.mxu0
    %v4156 = vadd.f32 %v4067, %v4155
    %4157 = vmatmul.bf16.gmra.mxu0 %v2440
    %v4158 = vpop.f32.mrf.mxu0
    %v4159 = vadd.f32 %v4070, %v4158
    %v4160 = vpop.f32.mrf.mxu0
    %v4161 = vadd.f32 %v4072, %v4160
    %4162 = vmatmul.bf16.gmra.mxu0 %v2444
    %v4163 = vpop.f32.mrf.mxu0
    %v4164 = vadd.f32 %v4075, %v4163
    %v4165 = vpop.f32.mrf.mxu0
    %v4166 = vadd.f32 %v4077, %v4165
    %4167 = vmatmul.bf16.gmra.mxu0 %v2448
    %v4168 = vpop.f32.mrf.mxu0
    %v4169 = vadd.f32 %v4080, %v4168
    %v4170 = vpop.f32.mrf.mxu0
    %v4171 = vadd.f32 %v4082, %v4170
    %4172 = vmatmul.bf16.gmra.mxu0 %v2452
    %v4173 = vpop.f32.mrf.mxu0
    %v4174 = vadd.f32 %v4085, %v4173
    %v4175 = vpop.f32.mrf.mxu0
    %v4176 = vadd.f32 %v4087, %v4175
    %4177 = vmatmul.bf16.gmra.mxu0 %v2456
    %v4178 = vpop.f32.mrf.mxu0
    %v4179 = vadd.f32 %v4090, %v4178
    %v4180 = vpop.f32.mrf.mxu0
    %v4181 = vadd.f32 %v4092, %v4180
    %4182 = vmatmul.bf16.gmra.mxu0 %v2460
    %v4183 = vpop.f32.mrf.mxu0
    %v4184 = vadd.f32 %v4095, %v4183
    %v4185 = vpop.f32.mrf.mxu0
    %v4186 = vadd.f32 %v4097, %v4185
    %4187 = vmatmul.bf16.gmra.mxu0 %v2464
    %v4188 = vpop.f32.mrf.mxu0
    %v4189 = vadd.f32 %v4100, %v4188
    %v4190 = vpop.f32.mrf.mxu0
    %v4191 = vadd.f32 %v4102, %v4190
    %4192 = vmatmul.bf16.gmra.mxu0 %v2468
    %v4193 = vpop.f32.mrf.mxu0
    %v4194 = vadd.f32 %v4105, %v4193
    %v4195 = vpop.f32.mrf.mxu0
    %v4196 = vadd.f32 %v4107, %v4195
    %4197 = vmatmul.bf16.gmra.mxu0 %v2472
    %v4198 = vpop.f32.mrf.mxu0
    %v4199 = vadd.f32 %v4110, %v4198
    %v4200 = vpop.f32.mrf.mxu0
    %v4201 = vadd.f32 %v4112, %v4200
    %4202 = vmatmul.bf16.gmra.mxu0 %v2476
    %v4203 = vpop.f32.mrf.mxu0
    %v4204 = vadd.f32 %v4115, %v4203
    %v4205 = vpop.f32.mrf.mxu0
    %v4206 = vadd.f32 %v4117, %v4205
    %4207 = vmatmul.bf16.gmra.mxu0 %v2480
    %v4208 = vpop.f32.mrf.mxu0
    %v4209 = vadd.f32 %v4120, %v4208
    %v4210 = vpop.f32.mrf.mxu0
    %v4211 = vadd.f32 %v4122, %v4210
    %4212 = vmatmul.bf16.gmra.mxu0 %v2484
    %v4213 = vpop.f32.mrf.mxu0
    %v4214 = vadd.f32 %v4125, %v4213
    %v4215 = vpop.f32.mrf.mxu0
    %v4216 = vadd.f32 %v4127, %v4215
    %4217 = vmatmul.bf16.gmra.mxu0 %v2488
    %v4218 = vpop.f32.mrf.mxu0
    %v4219 = vadd.f32 %v4130, %v4218
    %v4220 = vpop.f32.mrf.mxu0
    %v4221 = vadd.f32 %v4132, %v4220
    %4222 = vdwg.mxu0
    %4223 = vmatpush.bf16.msra.mxu0 %v3717
    %4224 = vmatpush.bf16.msra.mxu0 %v3709
    %4225 = vmatpush.bf16.msra.mxu0 %v3701
    %4226 = vmatpush.bf16.msra.mxu0 %v3693
    %4227 = vmatpush.bf16.msra.mxu0 %v3685
    %4228 = vmatpush.bf16.msra.mxu0 %v3677
    %4229 = vmatpush.bf16.msra.mxu0 %v3669
    %4230 = vmatpush.bf16.msra.mxu0 %v3661
    %4231 = vmatmul.bf16.gmra.mxu0 %v2429
    %v4232 = vpop.f32.mrf.mxu0
    %v4233 = vadd.f32 %v4144, %v4232
    %v4234 = vpop.f32.mrf.mxu0
    %v4235 = vadd.f32 %v4146, %v4234
    %4236 = vmatmul.bf16.gmra.mxu0 %v2433
    %v4237 = vpop.f32.mrf.mxu0
    %v4238 = vadd.f32 %v4149, %v4237
    %v4239 = vpop.f32.mrf.mxu0
    %v4240 = vadd.f32 %v4151, %v4239
    %4241 = vmatmul.bf16.gmra.mxu0 %v2437
    %v4242 = vpop.f32.mrf.mxu0
    %v4243 = vadd.f32 %v4154, %v4242
    %v4244 = vpop.f32.mrf.mxu0
    %v4245 = vadd.f32 %v4156, %v4244
    %4246 = vmatmul.bf16.gmra.mxu0 %v2441
    %v4247 = vpop.f32.mrf.mxu0
    %v4248 = vadd.f32 %v4159, %v4247
    %v4249 = vpop.f32.mrf.mxu0
    %v4250 = vadd.f32 %v4161, %v4249
    %4251 = vmatmul.bf16.gmra.mxu0 %v2445
    %v4252 = vpop.f32.mrf.mxu0
    %v4253 = vadd.f32 %v4164, %v4252
    %v4254 = vpop.f32.mrf.mxu0
    %v4255 = vadd.f32 %v4166, %v4254
    %4256 = vmatmul.bf16.gmra.mxu0 %v2449
    %v4257 = vpop.f32.mrf.mxu0
    %v4258 = vadd.f32 %v4169, %v4257
    %v4259 = vpop.f32.mrf.mxu0
    %v4260 = vadd.f32 %v4171, %v4259
    %4261 = vmatmul.bf16.gmra.mxu0 %v2453
    %v4262 = vpop.f32.mrf.mxu0
    %v4263 = vadd.f32 %v4174, %v4262
    %v4264 = vpop.f32.mrf.mxu0
    %v4265 = vadd.f32 %v4176, %v4264
    %4266 = vmatmul.bf16.gmra.mxu0 %v2457
    %v4267 = vpop.f32.mrf.mxu0
    %v4268 = vadd.f32 %v4179, %v4267
    %v4269 = vpop.f32.mrf.mxu0
    %v4270 = vadd.f32 %v4181, %v4269
    %4271 = vmatmul.bf16.gmra.mxu0 %v2461
    %v4272 = vpop.f32.mrf.mxu0
    %v4273 = vadd.f32 %v4184, %v4272
    %v4274 = vpop.f32.mrf.mxu0
    %v4275 = vadd.f32 %v4186, %v4274
    %4276 = vmatmul.bf16.gmra.mxu0 %v2465
    %v4277 = vpop.f32.mrf.mxu0
    %v4278 = vadd.f32 %v4189, %v4277
    %v4279 = vpop.f32.mrf.mxu0
    %v4280 = vadd.f32 %v4191, %v4279
    %4281 = vmatmul.bf16.gmra.mxu0 %v2469
    %v4282 = vpop.f32.mrf.mxu0
    %v4283 = vadd.f32 %v4194, %v4282
    %v4284 = vpop.f32.mrf.mxu0
    %v4285 = vadd.f32 %v4196, %v4284
    %4286 = vmatmul.bf16.gmra.mxu0 %v2473
    %v4287 = vpop.f32.mrf.mxu0
    %v4288 = vadd.f32 %v4199, %v4287
    %v4289 = vpop.f32.mrf.mxu0
    %v4290 = vadd.f32 %v4201, %v4289
    %4291 = vmatmul.bf16.gmra.mxu0 %v2477
    %v4292 = vpop.f32.mrf.mxu0
    %v4293 = vadd.f32 %v4204, %v4292
    %v4294 = vpop.f32.mrf.mxu0
    %v4295 = vadd.f32 %v4206, %v4294
    %4296 = vmatmul.bf16.gmra.mxu0 %v2481
    %v4297 = vpop.f32.mrf.mxu0
    %v4298 = vadd.f32 %v4209, %v4297
    %v4299 = vpop.f32.mrf.mxu0
    %v4300 = vadd.f32 %v4211, %v4299
    %4301 = vmatmul.bf16.gmra.mxu0 %v2485
    %v4302 = vpop.f32.mrf.mxu0
    %v4303 = vadd.f32 %v4214, %v4302
    %v4304 = vpop.f32.mrf.mxu0
    %v4305 = vadd.f32 %v4216, %v4304
    %4306 = vmatmul.bf16.gmra.mxu0 %v2489
    %v4307 = vpop.f32.mrf.mxu0
    %v4308 = vadd.f32 %v4219, %v4307
    %v4309 = vpop.f32.mrf.mxu0
    %v4310 = vadd.f32 %v4221, %v4309
    %4311 = vdwg.mxu0
    %4312 = vmatpush.bf16.msra.mxu0 %v3781
    %4313 = vmatpush.bf16.msra.mxu0 %v3773
    %4314 = vmatpush.bf16.msra.mxu0 %v3765
    %4315 = vmatpush.bf16.msra.mxu0 %v3757
    %4316 = vmatpush.bf16.msra.mxu0 %v3749
    %4317 = vmatpush.bf16.msra.mxu0 %v3741
    %4318 = vmatpush.bf16.msra.mxu0 %v3733
    %4319 = vmatpush.bf16.msra.mxu0 %v3725
    %4320 = vmatmul.bf16.gmra.mxu0 %v2430
    %v4321 = vpop.f32.mrf.mxu0
    %v4322 = vadd.f32 %v4233, %v4321
    %v4323 = vpop.f32.mrf.mxu0
    %v4324 = vadd.f32 %v4235, %v4323
    %4325 = vmatmul.bf16.gmra.mxu0 %v2434
    %v4326 = vpop.f32.mrf.mxu0
    %v4327 = vadd.f32 %v4238, %v4326
    %v4328 = vpop.f32.mrf.mxu0
    %v4329 = vadd.f32 %v4240, %v4328
    %4330 = vmatmul.bf16.gmra.mxu0 %v2438
    %v4331 = vpop.f32.mrf.mxu0
    %v4332 = vadd.f32 %v4243, %v4331
    %v4333 = vpop.f32.mrf.mxu0
    %v4334 = vadd.f32 %v4245, %v4333
    %4335 = vmatmul.bf16.gmra.mxu0 %v2442
    %v4336 = vpop.f32.mrf.mxu0
    %v4337 = vadd.f32 %v4248, %v4336
    %v4338 = vpop.f32.mrf.mxu0
    %v4339 = vadd.f32 %v4250, %v4338
    %4340 = vmatmul.bf16.gmra.mxu0 %v2446
    %v4341 = vpop.f32.mrf.mxu0
    %v4342 = vadd.f32 %v4253, %v4341
    %v4343 = vpop.f32.mrf.mxu0
    %v4344 = vadd.f32 %v4255, %v4343
    %4345 = vmatmul.bf16.gmra.mxu0 %v2450
    %v4346 = vpop.f32.mrf.mxu0
    %v4347 = vadd.f32 %v4258, %v4346
    %v4348 = vpop.f32.mrf.mxu0
    %v4349 = vadd.f32 %v4260, %v4348
    %4350 = vmatmul.bf16.gmra.mxu0 %v2454
    %v4351 = vpop.f32.mrf.mxu0
    %v4352 = vadd.f32 %v4263, %v4351
    %v4353 = vpop.f32.mrf.mxu0
    %v4354 = vadd.f32 %v4265, %v4353
    %4355 = vmatmul.bf16.gmra.mxu0 %v2458
    %v4356 = vpop.f32.mrf.mxu0
    %v4357 = vadd.f32 %v4268, %v4356
    %v4358 = vpop.f32.mrf.mxu0
    %v4359 = vadd.f32 %v4270, %v4358
    %4360 = vmatmul.bf16.gmra.mxu0 %v2462
    %v4361 = vpop.f32.mrf.mxu0
    %v4362 = vadd.f32 %v4273, %v4361
    %v4363 = vpop.f32.mrf.mxu0
    %v4364 = vadd.f32 %v4275, %v4363
    %4365 = vmatmul.bf16.gmra.mxu0 %v2466
    %v4366 = vpop.f32.mrf.mxu0
    %v4367 = vadd.f32 %v4278, %v4366
    %v4368 = vpop.f32.mrf.mxu0
    %v4369 = vadd.f32 %v4280, %v4368
    %4370 = vmatmul.bf16.gmra.mxu0 %v2470
    %v4371 = vpop.f32.mrf.mxu0
    %v4372 = vadd.f32 %v4283, %v4371
    %v4373 = vpop.f32.mrf.mxu0
    %v4374 = vadd.f32 %v4285, %v4373
    %4375 = vmatmul.bf16.gmra.mxu0 %v2474
    %v4376 = vpop.f32.mrf.mxu0
    %v4377 = vadd.f32 %v4288, %v4376
    %v4378 = vpop.f32.mrf.mxu0
    %v4379 = vadd.f32 %v4290, %v4378
    %4380 = vmatmul.bf16.gmra.mxu0 %v2478
    %v4381 = vpop.f32.mrf.mxu0
    %v4382 = vadd.f32 %v4293, %v4381
    %v4383 = vpop.f32.mrf.mxu0
    %v4384 = vadd.f32 %v4295, %v4383
    %4385 = vmatmul.bf16.gmra.mxu0 %v2482
    %v4386 = vpop.f32.mrf.mxu0
    %v4387 = vadd.f32 %v4298, %v4386
    %v4388 = vpop.f32.mrf.mxu0
    %v4389 = vadd.f32 %v4300, %v4388
    %4390 = vmatmul.bf16.gmra.mxu0 %v2486
    %v4391 = vpop.f32.mrf.mxu0
    %v4392 = vadd.f32 %v4303, %v4391
    %v4393 = vpop.f32.mrf.mxu0
    %v4394 = vadd.f32 %v4305, %v4393
    %4395 = vmatmul.bf16.gmra.mxu0 %v2490
    %v4396 = vpop.f32.mrf.mxu0
    %v4397 = vadd.f32 %v4308, %v4396
    %v4398 = vpop.f32.mrf.mxu0
    %v4399 = vadd.f32 %v4310, %v4398
    %4400 = vdwg.mxu0
    %4401 = vmatpush.bf16.msra.mxu0 %v3590
    %4402 = vmatpush.bf16.msra.mxu0 %v3582
    %4403 = vmatpush.bf16.msra.mxu0 %v3574
    %4404 = vmatpush.bf16.msra.mxu0 %v3566
    %4405 = vmatpush.bf16.msra.mxu0 %v3558
    %4406 = vmatpush.bf16.msra.mxu0 %v3550
    %4407 = vmatpush.bf16.msra.mxu0 %v3542
    %4408 = vmatpush.bf16.msra.mxu0 %v3534
    %4409 = vmatmul.bf16.gmra.mxu0 %v2427
    %v4410 = vpop.f32.mrf.mxu0
    %v4411 = vadd.f32 %v2750, %v4410
    %v4412 = vpop.f32.mrf.mxu0
    %v4413 = vadd.f32 %v2750, %v4412
    %4414 = vmatmul.bf16.gmra.mxu0 %v2431
    %v4415 = vpop.f32.mrf.mxu0
    %v4416 = vadd.f32 %v2750, %v4415
    %v4417 = vpop.f32.mrf.mxu0
    %v4418 = vadd.f32 %v2750, %v4417
    %4419 = vmatmul.bf16.gmra.mxu0 %v2435
    %v4420 = vpop.f32.mrf.mxu0
    %v4421 = vadd.f32 %v2750, %v4420
    %v4422 = vpop.f32.mrf.mxu0
    %v4423 = vadd.f32 %v2750, %v4422
    %4424 = vmatmul.bf16.gmra.mxu0 %v2439
    %v4425 = vpop.f32.mrf.mxu0
    %v4426 = vadd.f32 %v2750, %v4425
    %v4427 = vpop.f32.mrf.mxu0
    %v4428 = vadd.f32 %v2750, %v4427
    %4429 = vmatmul.bf16.gmra.mxu0 %v2443
    %v4430 = vpop.f32.mrf.mxu0
    %v4431 = vadd.f32 %v2750, %v4430
    %v4432 = vpop.f32.mrf.mxu0
    %v4433 = vadd.f32 %v2750, %v4432
    %4434 = vmatmul.bf16.gmra.mxu0 %v2447
    %v4435 = vpop.f32.mrf.mxu0
    %v4436 = vadd.f32 %v2750, %v4435
    %v4437 = vpop.f32.mrf.mxu0
    %v4438 = vadd.f32 %v2750, %v4437
    %4439 = vmatmul.bf16.gmra.mxu0 %v2451
    %v4440 = vpop.f32.mrf.mxu0
    %v4441 = vadd.f32 %v2750, %v4440
    %v4442 = vpop.f32.mrf.mxu0
    %v4443 = vadd.f32 %v2750, %v4442
    %4444 = vmatmul.bf16.gmra.mxu0 %v2455
    %v4445 = vpop.f32.mrf.mxu0
    %v4446 = vadd.f32 %v2750, %v4445
    %v4447 = vpop.f32.mrf.mxu0
    %v4448 = vadd.f32 %v2750, %v4447
    %4449 = vmatmul.bf16.gmra.mxu0 %v2459
    %v4450 = vpop.f32.mrf.mxu0
    %v4451 = vadd.f32 %v2750, %v4450
    %v4452 = vpop.f32.mrf.mxu0
    %v4453 = vadd.f32 %v2750, %v4452
    %4454 = vmatmul.bf16.gmra.mxu0 %v2463
    %v4455 = vpop.f32.mrf.mxu0
    %v4456 = vadd.f32 %v2750, %v4455
    %v4457 = vpop.f32.mrf.mxu0
    %v4458 = vadd.f32 %v2750, %v4457
    %4459 = vmatmul.bf16.gmra.mxu0 %v2467
    %v4460 = vpop.f32.mrf.mxu0
    %v4461 = vadd.f32 %v2750, %v4460
    %v4462 = vpop.f32.mrf.mxu0
    %v4463 = vadd.f32 %v2750, %v4462
    %4464 = vmatmul.bf16.gmra.mxu0 %v2471
    %v4465 = vpop.f32.mrf.mxu0
    %v4466 = vadd.f32 %v2750, %v4465
    %v4467 = vpop.f32.mrf.mxu0
    %v4468 = vadd.f32 %v2750, %v4467
    %4469 = vmatmul.bf16.gmra.mxu0 %v2475
    %v4470 = vpop.f32.mrf.mxu0
    %v4471 = vadd.f32 %v2750, %v4470
    %v4472 = vpop.f32.mrf.mxu0
    %v4473 = vadd.f32 %v2750, %v4472
    %4474 = vmatmul.bf16.gmra.mxu0 %v2479
    %v4475 = vpop.f32.mrf.mxu0
    %v4476 = vadd.f32 %v2750, %v4475
    %v4477 = vpop.f32.mrf.mxu0
    %v4478 = vadd.f32 %v2750, %v4477
    %4479 = vmatmul.bf16.gmra.mxu0 %v2483
    %v4480 = vpop.f32.mrf.mxu0
    %v4481 = vadd.f32 %v2750, %v4480
    %v4482 = vpop.f32.mrf.mxu0
    %v4483 = vadd.f32 %v2750, %v4482
    %4484 = vmatmul.bf16.gmra.mxu0 %v2487
    %v4485 = vpop.f32.mrf.mxu0
    %v4486 = vadd.f32 %v2750, %v4485
    %v4487 = vpop.f32.mrf.mxu0
    %v4488 = vadd.f32 %v2750, %v4487
    %4489 = vdwg.mxu0
    %4490 = vmatpush.bf16.msra.mxu0 %v3654
    %4491 = vmatpush.bf16.msra.mxu0 %v3646
    %4492 = vmatpush.bf16.msra.mxu0 %v3638
    %4493 = vmatpush.bf16.msra.mxu0 %v3630
    %4494 = vmatpush.bf16.msra.mxu0 %v3622
    %4495 = vmatpush.bf16.msra.mxu0 %v3614
    %4496 = vmatpush.bf16.msra.mxu0 %v3606
    %4497 = vmatpush.bf16.msra.mxu0 %v3598
    %4498 = vmatmul.bf16.gmra.mxu0 %v2428
    %v4499 = vpop.f32.mrf.mxu0
    %v4500 = vadd.f32 %v4411, %v4499
    %v4501 = vpop.f32.mrf.mxu0
    %v4502 = vadd.f32 %v4413, %v4501
    %4503 = vmatmul.bf16.gmra.mxu0 %v2432
    %v4504 = vpop.f32.mrf.mxu0
    %v4505 = vadd.f32 %v4416, %v4504
    %v4506 = vpop.f32.mrf.mxu0
    %v4507 = vadd.f32 %v4418, %v4506
    %4508 = vmatmul.bf16.gmra.mxu0 %v2436
    %v4509 = vpop.f32.mrf.mxu0
    %v4510 = vadd.f32 %v4421, %v4509
    %v4511 = vpop.f32.mrf.mxu0
    %v4512 = vadd.f32 %v4423, %v4511
    %4513 = vmatmul.bf16.gmra.mxu0 %v2440
    %v4514 = vpop.f32.mrf.mxu0
    %v4515 = vadd.f32 %v4426, %v4514
    %v4516 = vpop.f32.mrf.mxu0
    %v4517 = vadd.f32 %v4428, %v4516
    %4518 = vmatmul.bf16.gmra.mxu0 %v2444
    %v4519 = vpop.f32.mrf.mxu0
    %v4520 = vadd.f32 %v4431, %v4519
    %v4521 = vpop.f32.mrf.mxu0
    %v4522 = vadd.f32 %v4433, %v4521
    %4523 = vmatmul.bf16.gmra.mxu0 %v2448
    %v4524 = vpop.f32.mrf.mxu0
    %v4525 = vadd.f32 %v4436, %v4524
    %v4526 = vpop.f32.mrf.mxu0
    %v4527 = vadd.f32 %v4438, %v4526
    %4528 = vmatmul.bf16.gmra.mxu0 %v2452
    %v4529 = vpop.f32.mrf.mxu0
    %v4530 = vadd.f32 %v4441, %v4529
    %v4531 = vpop.f32.mrf.mxu0
    %v4532 = vadd.f32 %v4443, %v4531
    %4533 = vmatmul.bf16.gmra.mxu0 %v2456
    %v4534 = vpop.f32.mrf.mxu0
    %v4535 = vadd.f32 %v4446, %v4534
    %v4536 = vpop.f32.mrf.mxu0
    %v4537 = vadd.f32 %v4448, %v4536
    %4538 = vmatmul.bf16.gmra.mxu0 %v2460
    %v4539 = vpop.f32.mrf.mxu0
    %v4540 = vadd.f32 %v4451, %v4539
    %v4541 = vpop.f32.mrf.mxu0
    %v4542 = vadd.f32 %v4453, %v4541
    %4543 = vmatmul.bf16.gmra.mxu0 %v2464
    %v4544 = vpop.f32.mrf.mxu0
    %v4545 = vadd.f32 %v4456, %v4544
    %v4546 = vpop.f32.mrf.mxu0
    %v4547 = vadd.f32 %v4458, %v4546
    %4548 = vmatmul.bf16.gmra.mxu0 %v2468
    %v4549 = vpop.f32.mrf.mxu0
    %v4550 = vadd.f32 %v4461, %v4549
    %v4551 = vpop.f32.mrf.mxu0
    %v4552 = vadd.f32 %v4463, %v4551
    %4553 = vmatmul.bf16.gmra.mxu0 %v2472
    %v4554 = vpop.f32.mrf.mxu0
    %v4555 = vadd.f32 %v4466, %v4554
    %v4556 = vpop.f32.mrf.mxu0
    %v4557 = vadd.f32 %v4468, %v4556
    %4558 = vmatmul.bf16.gmra.mxu0 %v2476
    %v4559 = vpop.f32.mrf.mxu0
    %v4560 = vadd.f32 %v4471, %v4559
    %v4561 = vpop.f32.mrf.mxu0
    %v4562 = vadd.f32 %v4473, %v4561
    %4563 = vmatmul.bf16.gmra.mxu0 %v2480
    %v4564 = vpop.f32.mrf.mxu0
    %v4565 = vadd.f32 %v4476, %v4564
    %v4566 = vpop.f32.mrf.mxu0
    %v4567 = vadd.f32 %v4478, %v4566
    %4568 = vmatmul.bf16.gmra.mxu0 %v2484
    %v4569 = vpop.f32.mrf.mxu0
    %v4570 = vadd.f32 %v4481, %v4569
    %v4571 = vpop.f32.mrf.mxu0
    %v4572 = vadd.f32 %v4483, %v4571
    %4573 = vmatmul.bf16.gmra.mxu0 %v2488
    %v4574 = vpop.f32.mrf.mxu0
    %v4575 = vadd.f32 %v4486, %v4574
    %v4576 = vpop.f32.mrf.mxu0
    %v4577 = vadd.f32 %v4488, %v4576
    %4578 = vdwg.mxu0
    %4579 = vmatpush.bf16.msra.mxu0 %v3718
    %4580 = vmatpush.bf16.msra.mxu0 %v3710
    %4581 = vmatpush.bf16.msra.mxu0 %v3702
    %4582 = vmatpush.bf16.msra.mxu0 %v3694
    %4583 = vmatpush.bf16.msra.mxu0 %v3686
    %4584 = vmatpush.bf16.msra.mxu0 %v3678
    %4585 = vmatpush.bf16.msra.mxu0 %v3670
    %4586 = vmatpush.bf16.msra.mxu0 %v3662
    %4587 = vmatmul.bf16.gmra.mxu0 %v2429
    %v4588 = vpop.f32.mrf.mxu0
    %v4589 = vadd.f32 %v4500, %v4588
    %v4590 = vpop.f32.mrf.mxu0
    %v4591 = vadd.f32 %v4502, %v4590
    %4592 = vmatmul.bf16.gmra.mxu0 %v2433
    %v4593 = vpop.f32.mrf.mxu0
    %v4594 = vadd.f32 %v4505, %v4593
    %v4595 = vpop.f32.mrf.mxu0
    %v4596 = vadd.f32 %v4507, %v4595
    %4597 = vmatmul.bf16.gmra.mxu0 %v2437
    %v4598 = vpop.f32.mrf.mxu0
    %v4599 = vadd.f32 %v4510, %v4598
    %v4600 = vpop.f32.mrf.mxu0
    %v4601 = vadd.f32 %v4512, %v4600
    %4602 = vmatmul.bf16.gmra.mxu0 %v2441
    %v4603 = vpop.f32.mrf.mxu0
    %v4604 = vadd.f32 %v4515, %v4603
    %v4605 = vpop.f32.mrf.mxu0
    %v4606 = vadd.f32 %v4517, %v4605
    %4607 = vmatmul.bf16.gmra.mxu0 %v2445
    %v4608 = vpop.f32.mrf.mxu0
    %v4609 = vadd.f32 %v4520, %v4608
    %v4610 = vpop.f32.mrf.mxu0
    %v4611 = vadd.f32 %v4522, %v4610
    %4612 = vmatmul.bf16.gmra.mxu0 %v2449
    %v4613 = vpop.f32.mrf.mxu0
    %v4614 = vadd.f32 %v4525, %v4613
    %v4615 = vpop.f32.mrf.mxu0
    %v4616 = vadd.f32 %v4527, %v4615
    %4617 = vmatmul.bf16.gmra.mxu0 %v2453
    %v4618 = vpop.f32.mrf.mxu0
    %v4619 = vadd.f32 %v4530, %v4618
    %v4620 = vpop.f32.mrf.mxu0
    %v4621 = vadd.f32 %v4532, %v4620
    %4622 = vmatmul.bf16.gmra.mxu0 %v2457
    %v4623 = vpop.f32.mrf.mxu0
    %v4624 = vadd.f32 %v4535, %v4623
    %v4625 = vpop.f32.mrf.mxu0
    %v4626 = vadd.f32 %v4537, %v4625
    %4627 = vmatmul.bf16.gmra.mxu0 %v2461
    %v4628 = vpop.f32.mrf.mxu0
    %v4629 = vadd.f32 %v4540, %v4628
    %v4630 = vpop.f32.mrf.mxu0
    %v4631 = vadd.f32 %v4542, %v4630
    %4632 = vmatmul.bf16.gmra.mxu0 %v2465
    %v4633 = vpop.f32.mrf.mxu0
    %v4634 = vadd.f32 %v4545, %v4633
    %v4635 = vpop.f32.mrf.mxu0
    %v4636 = vadd.f32 %v4547, %v4635
    %4637 = vmatmul.bf16.gmra.mxu0 %v2469
    %v4638 = vpop.f32.mrf.mxu0
    %v4639 = vadd.f32 %v4550, %v4638
    %v4640 = vpop.f32.mrf.mxu0
    %v4641 = vadd.f32 %v4552, %v4640
    %4642 = vmatmul.bf16.gmra.mxu0 %v2473
    %v4643 = vpop.f32.mrf.mxu0
    %v4644 = vadd.f32 %v4555, %v4643
    %v4645 = vpop.f32.mrf.mxu0
    %v4646 = vadd.f32 %v4557, %v4645
    %4647 = vmatmul.bf16.gmra.mxu0 %v2477
    %v4648 = vpop.f32.mrf.mxu0
    %v4649 = vadd.f32 %v4560, %v4648
    %v4650 = vpop.f32.mrf.mxu0
    %v4651 = vadd.f32 %v4562, %v4650
    %4652 = vmatmul.bf16.gmra.mxu0 %v2481
    %v4653 = vpop.f32.mrf.mxu0
    %v4654 = vadd.f32 %v4565, %v4653
    %v4655 = vpop.f32.mrf.mxu0
    %v4656 = vadd.f32 %v4567, %v4655
    %4657 = vmatmul.bf16.gmra.mxu0 %v2485
    %v4658 = vpop.f32.mrf.mxu0
    %v4659 = vadd.f32 %v4570, %v4658
    %v4660 = vpop.f32.mrf.mxu0
    %v4661 = vadd.f32 %v4572, %v4660
    %4662 = vmatmul.bf16.gmra.mxu0 %v2489
    %v4663 = vpop.f32.mrf.mxu0
    %v4664 = vadd.f32 %v4575, %v4663
    %v4665 = vpop.f32.mrf.mxu0
    %v4666 = vadd.f32 %v4577, %v4665
    %4667 = vdwg.mxu0
    %4668 = vmatpush.bf16.msra.mxu0 %v3782
    %4669 = vmatpush.bf16.msra.mxu0 %v3774
    %4670 = vmatpush.bf16.msra.mxu0 %v3766
    %4671 = vmatpush.bf16.msra.mxu0 %v3758
    %4672 = vmatpush.bf16.msra.mxu0 %v3750
    %4673 = vmatpush.bf16.msra.mxu0 %v3742
    %4674 = vmatpush.bf16.msra.mxu0 %v3734
    %4675 = vmatpush.bf16.msra.mxu0 %v3726
    %4676 = vmatmul.bf16.gmra.mxu0 %v2430
    %v4677 = vpop.f32.mrf.mxu0
    %v4678 = vadd.f32 %v4589, %v4677
    %v4679 = vpop.f32.mrf.mxu0
    %v4680 = vadd.f32 %v4591, %v4679
    %4681 = vmatmul.bf16.gmra.mxu0 %v2434
    %v4682 = vpop.f32.mrf.mxu0
    %v4683 = vadd.f32 %v4594, %v4682
    %v4684 = vpop.f32.mrf.mxu0
    %v4685 = vadd.f32 %v4596, %v4684
    %4686 = vmatmul.bf16.gmra.mxu0 %v2438
    %v4687 = vpop.f32.mrf.mxu0
    %v4688 = vadd.f32 %v4599, %v4687
    %v4689 = vpop.f32.mrf.mxu0
    %v4690 = vadd.f32 %v4601, %v4689
    %4691 = vmatmul.bf16.gmra.mxu0 %v2442
    %v4692 = vpop.f32.mrf.mxu0
    %v4693 = vadd.f32 %v4604, %v4692
    %v4694 = vpop.f32.mrf.mxu0
    %v4695 = vadd.f32 %v4606, %v4694
    %4696 = vmatmul.bf16.gmra.mxu0 %v2446
    %v4697 = vpop.f32.mrf.mxu0
    %v4698 = vadd.f32 %v4609, %v4697
    %v4699 = vpop.f32.mrf.mxu0
    %v4700 = vadd.f32 %v4611, %v4699
    %4701 = vmatmul.bf16.gmra.mxu0 %v2450
    %v4702 = vpop.f32.mrf.mxu0
    %v4703 = vadd.f32 %v4614, %v4702
    %v4704 = vpop.f32.mrf.mxu0
    %v4705 = vadd.f32 %v4616, %v4704
    %4706 = vmatmul.bf16.gmra.mxu0 %v2454
    %v4707 = vpop.f32.mrf.mxu0
    %v4708 = vadd.f32 %v4619, %v4707
    %v4709 = vpop.f32.mrf.mxu0
    %v4710 = vadd.f32 %v4621, %v4709
    %4711 = vmatmul.bf16.gmra.mxu0 %v2458
    %v4712 = vpop.f32.mrf.mxu0
    %v4713 = vadd.f32 %v4624, %v4712
    %v4714 = vpop.f32.mrf.mxu0
    %v4715 = vadd.f32 %v4626, %v4714
    %4716 = vmatmul.bf16.gmra.mxu0 %v2462
    %v4717 = vpop.f32.mrf.mxu0
    %v4718 = vadd.f32 %v4629, %v4717
    %v4719 = vpop.f32.mrf.mxu0
    %v4720 = vadd.f32 %v4631, %v4719
    %4721 = vmatmul.bf16.gmra.mxu0 %v2466
    %v4722 = vpop.f32.mrf.mxu0
    %v4723 = vadd.f32 %v4634, %v4722
    %v4724 = vpop.f32.mrf.mxu0
    %v4725 = vadd.f32 %v4636, %v4724
    %4726 = vmatmul.bf16.gmra.mxu0 %v2470
    %v4727 = vpop.f32.mrf.mxu0
    %v4728 = vadd.f32 %v4639, %v4727
    %v4729 = vpop.f32.mrf.mxu0
    %v4730 = vadd.f32 %v4641, %v4729
    %4731 = vmatmul.bf16.gmra.mxu0 %v2474
    %v4732 = vpop.f32.mrf.mxu0
    %v4733 = vadd.f32 %v4644, %v4732
    %v4734 = vpop.f32.mrf.mxu0
    %v4735 = vadd.f32 %v4646, %v4734
    %4736 = vmatmul.bf16.gmra.mxu0 %v2478
    %v4737 = vpop.f32.mrf.mxu0
    %v4738 = vadd.f32 %v4649, %v4737
    %v4739 = vpop.f32.mrf.mxu0
    %v4740 = vadd.f32 %v4651, %v4739
    %4741 = vmatmul.bf16.gmra.mxu0 %v2482
    %v4742 = vpop.f32.mrf.mxu0
    %v4743 = vadd.f32 %v4654, %v4742
    %v4744 = vpop.f32.mrf.mxu0
    %v4745 = vadd.f32 %v4656, %v4744
    %4746 = vmatmul.bf16.gmra.mxu0 %v2486
    %v4747 = vpop.f32.mrf.mxu0
    %v4748 = vadd.f32 %v4659, %v4747
    %v4749 = vpop.f32.mrf.mxu0
    %v4750 = vadd.f32 %v4661, %v4749
    %4751 = vmatmul.bf16.gmra.mxu0 %v2490
    %v4752 = vpop.f32.mrf.mxu0
    %v4753 = vadd.f32 %v4664, %v4752
    %v4754 = vpop.f32.mrf.mxu0
    %v4755 = vadd.f32 %v4666, %v4754
    %4756 = vdwg.mxu0
    %4757 = vmatpush.bf16.msra.mxu0 %v3591
    %4758 = vmatpush.bf16.msra.mxu0 %v3583
    %4759 = vmatpush.bf16.msra.mxu0 %v3575
    %4760 = vmatpush.bf16.msra.mxu0 %v3567
    %4761 = vmatpush.bf16.msra.mxu0 %v3559
    %4762 = vmatpush.bf16.msra.mxu0 %v3551
    %4763 = vmatpush.bf16.msra.mxu0 %v3543
    %4764 = vmatpush.bf16.msra.mxu0 %v3535
    %4765 = vmatmul.bf16.gmra.mxu0 %v2427
    %v4766 = vpop.f32.mrf.mxu0
    %v4767 = vadd.f32 %v2751, %v4766
    %v4768 = vpop.f32.mrf.mxu0
    %v4769 = vadd.f32 %v2751, %v4768
    %4770 = vmatmul.bf16.gmra.mxu0 %v2431
    %v4771 = vpop.f32.mrf.mxu0
    %v4772 = vadd.f32 %v2751, %v4771
    %v4773 = vpop.f32.mrf.mxu0
    %v4774 = vadd.f32 %v2751, %v4773
    %4775 = vmatmul.bf16.gmra.mxu0 %v2435
    %v4776 = vpop.f32.mrf.mxu0
    %v4777 = vadd.f32 %v2751, %v4776
    %v4778 = vpop.f32.mrf.mxu0
    %v4779 = vadd.f32 %v2751, %v4778
    %4780 = vmatmul.bf16.gmra.mxu0 %v2439
    %v4781 = vpop.f32.mrf.mxu0
    %v4782 = vadd.f32 %v2751, %v4781
    %v4783 = vpop.f32.mrf.mxu0
    %v4784 = vadd.f32 %v2751, %v4783
    %4785 = vmatmul.bf16.gmra.mxu0 %v2443
    %v4786 = vpop.f32.mrf.mxu0
    %v4787 = vadd.f32 %v2751, %v4786
    %v4788 = vpop.f32.mrf.mxu0
    %v4789 = vadd.f32 %v2751, %v4788
    %4790 = vmatmul.bf16.gmra.mxu0 %v2447
    %v4791 = vpop.f32.mrf.mxu0
    %v4792 = vadd.f32 %v2751, %v4791
    %v4793 = vpop.f32.mrf.mxu0
    %v4794 = vadd.f32 %v2751, %v4793
    %4795 = vmatmul.bf16.gmra.mxu0 %v2451
    %v4796 = vpop.f32.mrf.mxu0
    %v4797 = vadd.f32 %v2751, %v4796
    %v4798 = vpop.f32.mrf.mxu0
    %v4799 = vadd.f32 %v2751, %v4798
    %4800 = vmatmul.bf16.gmra.mxu0 %v2455
    %v4801 = vpop.f32.mrf.mxu0
    %v4802 = vadd.f32 %v2751, %v4801
    %v4803 = vpop.f32.mrf.mxu0
    %v4804 = vadd.f32 %v2751, %v4803
    %4805 = vmatmul.bf16.gmra.mxu0 %v2459
    %v4806 = vpop.f32.mrf.mxu0
    %v4807 = vadd.f32 %v2751, %v4806
    %v4808 = vpop.f32.mrf.mxu0
    %v4809 = vadd.f32 %v2751, %v4808
    %4810 = vmatmul.bf16.gmra.mxu0 %v2463
    %v4811 = vpop.f32.mrf.mxu0
    %v4812 = vadd.f32 %v2751, %v4811
    %v4813 = vpop.f32.mrf.mxu0
    %v4814 = vadd.f32 %v2751, %v4813
    %4815 = vmatmul.bf16.gmra.mxu0 %v2467
    %v4816 = vpop.f32.mrf.mxu0
    %v4817 = vadd.f32 %v2751, %v4816
    %v4818 = vpop.f32.mrf.mxu0
    %v4819 = vadd.f32 %v2751, %v4818
    %4820 = vmatmul.bf16.gmra.mxu0 %v2471
    %v4821 = vpop.f32.mrf.mxu0
    %v4822 = vadd.f32 %v2751, %v4821
    %v4823 = vpop.f32.mrf.mxu0
    %v4824 = vadd.f32 %v2751, %v4823
    %4825 = vmatmul.bf16.gmra.mxu0 %v2475
    %v4826 = vpop.f32.mrf.mxu0
    %v4827 = vadd.f32 %v2751, %v4826
    %v4828 = vpop.f32.mrf.mxu0
    %v4829 = vadd.f32 %v2751, %v4828
    %4830 = vmatmul.bf16.gmra.mxu0 %v2479
    %v4831 = vpop.f32.mrf.mxu0
    %v4832 = vadd.f32 %v2751, %v4831
    %v4833 = vpop.f32.mrf.mxu0
    %v4834 = vadd.f32 %v2751, %v4833
    %4835 = vmatmul.bf16.gmra.mxu0 %v2483
    %v4836 = vpop.f32.mrf.mxu0
    %v4837 = vadd.f32 %v2751, %v4836
    %v4838 = vpop.f32.mrf.mxu0
    %v4839 = vadd.f32 %v2751, %v4838
    %4840 = vmatmul.bf16.gmra.mxu0 %v2487
    %v4841 = vpop.f32.mrf.mxu0
    %v4842 = vadd.f32 %v2751, %v4841
    %v4843 = vpop.f32.mrf.mxu0
    %v4844 = vadd.f32 %v2751, %v4843
    %4845 = vdwg.mxu0
    %4846 = vmatpush.bf16.msra.mxu0 %v3655
    %4847 = vmatpush.bf16.msra.mxu0 %v3647
    %4848 = vmatpush.bf16.msra.mxu0 %v3639
    %4849 = vmatpush.bf16.msra.mxu0 %v3631
    %4850 = vmatpush.bf16.msra.mxu0 %v3623
    %4851 = vmatpush.bf16.msra.mxu0 %v3615
    %4852 = vmatpush.bf16.msra.mxu0 %v3607
    %4853 = vmatpush.bf16.msra.mxu0 %v3599
    %4854 = vmatmul.bf16.gmra.mxu0 %v2428
    %v4855 = vpop.f32.mrf.mxu0
    %v4856 = vadd.f32 %v4767, %v4855
    %v4857 = vpop.f32.mrf.mxu0
    %v4858 = vadd.f32 %v4769, %v4857
    %4859 = vmatmul.bf16.gmra.mxu0 %v2432
    %v4860 = vpop.f32.mrf.mxu0
    %v4861 = vadd.f32 %v4772, %v4860
    %v4862 = vpop.f32.mrf.mxu0
    %v4863 = vadd.f32 %v4774, %v4862
    %4864 = vmatmul.bf16.gmra.mxu0 %v2436
    %v4865 = vpop.f32.mrf.mxu0
    %v4866 = vadd.f32 %v4777, %v4865
    %v4867 = vpop.f32.mrf.mxu0
    %v4868 = vadd.f32 %v4779, %v4867
    %4869 = vmatmul.bf16.gmra.mxu0 %v2440
    %v4870 = vpop.f32.mrf.mxu0
    %v4871 = vadd.f32 %v4782, %v4870
    %v4872 = vpop.f32.mrf.mxu0
    %v4873 = vadd.f32 %v4784, %v4872
    %4874 = vmatmul.bf16.gmra.mxu0 %v2444
    %v4875 = vpop.f32.mrf.mxu0
    %v4876 = vadd.f32 %v4787, %v4875
    %v4877 = vpop.f32.mrf.mxu0
    %v4878 = vadd.f32 %v4789, %v4877
    %4879 = vmatmul.bf16.gmra.mxu0 %v2448
    %v4880 = vpop.f32.mrf.mxu0
    %v4881 = vadd.f32 %v4792, %v4880
    %v4882 = vpop.f32.mrf.mxu0
    %v4883 = vadd.f32 %v4794, %v4882
    %4884 = vmatmul.bf16.gmra.mxu0 %v2452
    %v4885 = vpop.f32.mrf.mxu0
    %v4886 = vadd.f32 %v4797, %v4885
    %v4887 = vpop.f32.mrf.mxu0
    %v4888 = vadd.f32 %v4799, %v4887
    %4889 = vmatmul.bf16.gmra.mxu0 %v2456
    %v4890 = vpop.f32.mrf.mxu0
    %v4891 = vadd.f32 %v4802, %v4890
    %v4892 = vpop.f32.mrf.mxu0
    %v4893 = vadd.f32 %v4804, %v4892
    %4894 = vmatmul.bf16.gmra.mxu0 %v2460
    %v4895 = vpop.f32.mrf.mxu0
    %v4896 = vadd.f32 %v4807, %v4895
    %v4897 = vpop.f32.mrf.mxu0
    %v4898 = vadd.f32 %v4809, %v4897
    %4899 = vmatmul.bf16.gmra.mxu0 %v2464
    %v4900 = vpop.f32.mrf.mxu0
    %v4901 = vadd.f32 %v4812, %v4900
    %v4902 = vpop.f32.mrf.mxu0
    %v4903 = vadd.f32 %v4814, %v4902
    %4904 = vmatmul.bf16.gmra.mxu0 %v2468
    %v4905 = vpop.f32.mrf.mxu0
    %v4906 = vadd.f32 %v4817, %v4905
    %v4907 = vpop.f32.mrf.mxu0
    %v4908 = vadd.f32 %v4819, %v4907
    %4909 = vmatmul.bf16.gmra.mxu0 %v2472
    %v4910 = vpop.f32.mrf.mxu0
    %v4911 = vadd.f32 %v4822, %v4910
    %v4912 = vpop.f32.mrf.mxu0
    %v4913 = vadd.f32 %v4824, %v4912
    %4914 = vmatmul.bf16.gmra.mxu0 %v2476
    %v4915 = vpop.f32.mrf.mxu0
    %v4916 = vadd.f32 %v4827, %v4915
    %v4917 = vpop.f32.mrf.mxu0
    %v4918 = vadd.f32 %v4829, %v4917
    %4919 = vmatmul.bf16.gmra.mxu0 %v2480
    %v4920 = vpop.f32.mrf.mxu0
    %v4921 = vadd.f32 %v4832, %v4920
    %v4922 = vpop.f32.mrf.mxu0
    %v4923 = vadd.f32 %v4834, %v4922
    %4924 = vmatmul.bf16.gmra.mxu0 %v2484
    %v4925 = vpop.f32.mrf.mxu0
    %v4926 = vadd.f32 %v4837, %v4925
    %v4927 = vpop.f32.mrf.mxu0
    %v4928 = vadd.f32 %v4839, %v4927
    %4929 = vmatmul.bf16.gmra.mxu0 %v2488
    %v4930 = vpop.f32.mrf.mxu0
    %v4931 = vadd.f32 %v4842, %v4930
    %v4932 = vpop.f32.mrf.mxu0
    %v4933 = vadd.f32 %v4844, %v4932
    %4934 = vdwg.mxu0
    %4935 = vmatpush.bf16.msra.mxu0 %v3719
    %4936 = vmatpush.bf16.msra.mxu0 %v3711
    %4937 = vmatpush.bf16.msra.mxu0 %v3703
    %4938 = vmatpush.bf16.msra.mxu0 %v3695
    %4939 = vmatpush.bf16.msra.mxu0 %v3687
    %4940 = vmatpush.bf16.msra.mxu0 %v3679
    %4941 = vmatpush.bf16.msra.mxu0 %v3671
    %4942 = vmatpush.bf16.msra.mxu0 %v3663
    %4943 = vmatmul.bf16.gmra.mxu0 %v2429
    %v4944 = vpop.f32.mrf.mxu0
    %v4945 = vadd.f32 %v4856, %v4944
    %v4946 = vpop.f32.mrf.mxu0
    %v4947 = vadd.f32 %v4858, %v4946
    %4948 = vmatmul.bf16.gmra.mxu0 %v2433
    %v4949 = vpop.f32.mrf.mxu0
    %v4950 = vadd.f32 %v4861, %v4949
    %v4951 = vpop.f32.mrf.mxu0
    %v4952 = vadd.f32 %v4863, %v4951
    %4953 = vmatmul.bf16.gmra.mxu0 %v2437
    %v4954 = vpop.f32.mrf.mxu0
    %v4955 = vadd.f32 %v4866, %v4954
    %v4956 = vpop.f32.mrf.mxu0
    %v4957 = vadd.f32 %v4868, %v4956
    %4958 = vmatmul.bf16.gmra.mxu0 %v2441
    %v4959 = vpop.f32.mrf.mxu0
    %v4960 = vadd.f32 %v4871, %v4959
    %v4961 = vpop.f32.mrf.mxu0
    %v4962 = vadd.f32 %v4873, %v4961
    %4963 = vmatmul.bf16.gmra.mxu0 %v2445
    %v4964 = vpop.f32.mrf.mxu0
    %v4965 = vadd.f32 %v4876, %v4964
    %v4966 = vpop.f32.mrf.mxu0
    %v4967 = vadd.f32 %v4878, %v4966
    %4968 = vmatmul.bf16.gmra.mxu0 %v2449
    %v4969 = vpop.f32.mrf.mxu0
    %v4970 = vadd.f32 %v4881, %v4969
    %v4971 = vpop.f32.mrf.mxu0
    %v4972 = vadd.f32 %v4883, %v4971
    %4973 = vmatmul.bf16.gmra.mxu0 %v2453
    %v4974 = vpop.f32.mrf.mxu0
    %v4975 = vadd.f32 %v4886, %v4974
    %v4976 = vpop.f32.mrf.mxu0
    %v4977 = vadd.f32 %v4888, %v4976
    %4978 = vmatmul.bf16.gmra.mxu0 %v2457
    %v4979 = vpop.f32.mrf.mxu0
    %v4980 = vadd.f32 %v4891, %v4979
    %v4981 = vpop.f32.mrf.mxu0
    %v4982 = vadd.f32 %v4893, %v4981
    %4983 = vmatmul.bf16.gmra.mxu0 %v2461
    %v4984 = vpop.f32.mrf.mxu0
    %v4985 = vadd.f32 %v4896, %v4984
    %v4986 = vpop.f32.mrf.mxu0
    %v4987 = vadd.f32 %v4898, %v4986
    %4988 = vmatmul.bf16.gmra.mxu0 %v2465
    %v4989 = vpop.f32.mrf.mxu0
    %v4990 = vadd.f32 %v4901, %v4989
    %v4991 = vpop.f32.mrf.mxu0
    %v4992 = vadd.f32 %v4903, %v4991
    %4993 = vmatmul.bf16.gmra.mxu0 %v2469
    %v4994 = vpop.f32.mrf.mxu0
    %v4995 = vadd.f32 %v4906, %v4994
    %v4996 = vpop.f32.mrf.mxu0
    %v4997 = vadd.f32 %v4908, %v4996
    %4998 = vmatmul.bf16.gmra.mxu0 %v2473
    %v4999 = vpop.f32.mrf.mxu0
    %v5000 = vadd.f32 %v4911, %v4999
    %v5001 = vpop.f32.mrf.mxu0
    %v5002 = vadd.f32 %v4913, %v5001
    %5003 = vmatmul.bf16.gmra.mxu0 %v2477
    %v5004 = vpop.f32.mrf.mxu0
    %v5005 = vadd.f32 %v4916, %v5004
    %v5006 = vpop.f32.mrf.mxu0
    %v5007 = vadd.f32 %v4918, %v5006
    %5008 = vmatmul.bf16.gmra.mxu0 %v2481
    %v5009 = vpop.f32.mrf.mxu0
    %v5010 = vadd.f32 %v4921, %v5009
    %v5011 = vpop.f32.mrf.mxu0
    %v5012 = vadd.f32 %v4923, %v5011
    %5013 = vmatmul.bf16.gmra.mxu0 %v2485
    %v5014 = vpop.f32.mrf.mxu0
    %v5015 = vadd.f32 %v4926, %v5014
    %v5016 = vpop.f32.mrf.mxu0
    %v5017 = vadd.f32 %v4928, %v5016
    %5018 = vmatmul.bf16.gmra.mxu0 %v2489
    %v5019 = vpop.f32.mrf.mxu0
    %v5020 = vadd.f32 %v4931, %v5019
    %v5021 = vpop.f32.mrf.mxu0
    %v5022 = vadd.f32 %v4933, %v5021
    %5023 = vdwg.mxu0
    %5024 = vmatpush.bf16.msra.mxu0 %v3783
    %5025 = vmatpush.bf16.msra.mxu0 %v3775
    %5026 = vmatpush.bf16.msra.mxu0 %v3767
    %5027 = vmatpush.bf16.msra.mxu0 %v3759
    %5028 = vmatpush.bf16.msra.mxu0 %v3751
    %5029 = vmatpush.bf16.msra.mxu0 %v3743
    %5030 = vmatpush.bf16.msra.mxu0 %v3735
    %5031 = vmatpush.bf16.msra.mxu0 %v3727
    %5032 = vmatmul.bf16.gmra.mxu0 %v2430
    %v5033 = vpop.f32.mrf.mxu0
    %v5034 = vadd.f32 %v4945, %v5033
    %v5035 = vpop.f32.mrf.mxu0
    %v5036 = vadd.f32 %v4947, %v5035
    %5037 = vmatmul.bf16.gmra.mxu0 %v2434
    %v5038 = vpop.f32.mrf.mxu0
    %v5039 = vadd.f32 %v4950, %v5038
    %v5040 = vpop.f32.mrf.mxu0
    %v5041 = vadd.f32 %v4952, %v5040
    %5042 = vmatmul.bf16.gmra.mxu0 %v2438
    %v5043 = vpop.f32.mrf.mxu0
    %v5044 = vadd.f32 %v4955, %v5043
    %v5045 = vpop.f32.mrf.mxu0
    %v5046 = vadd.f32 %v4957, %v5045
    %5047 = vmatmul.bf16.gmra.mxu0 %v2442
    %v5048 = vpop.f32.mrf.mxu0
    %v5049 = vadd.f32 %v4960, %v5048
    %v5050 = vpop.f32.mrf.mxu0
    %v5051 = vadd.f32 %v4962, %v5050
    %5052 = vmatmul.bf16.gmra.mxu0 %v2446
    %v5053 = vpop.f32.mrf.mxu0
    %v5054 = vadd.f32 %v4965, %v5053
    %v5055 = vpop.f32.mrf.mxu0
    %v5056 = vadd.f32 %v4967, %v5055
    %5057 = vmatmul.bf16.gmra.mxu0 %v2450
    %v5058 = vpop.f32.mrf.mxu0
    %v5059 = vadd.f32 %v4970, %v5058
    %v5060 = vpop.f32.mrf.mxu0
    %v5061 = vadd.f32 %v4972, %v5060
    %5062 = vmatmul.bf16.gmra.mxu0 %v2454
    %v5063 = vpop.f32.mrf.mxu0
    %v5064 = vadd.f32 %v4975, %v5063
    %v5065 = vpop.f32.mrf.mxu0
    %v5066 = vadd.f32 %v4977, %v5065
    %5067 = vmatmul.bf16.gmra.mxu0 %v2458
    %v5068 = vpop.f32.mrf.mxu0
    %v5069 = vadd.f32 %v4980, %v5068
    %v5070 = vpop.f32.mrf.mxu0
    %v5071 = vadd.f32 %v4982, %v5070
    %5072 = vmatmul.bf16.gmra.mxu0 %v2462
    %v5073 = vpop.f32.mrf.mxu0
    %v5074 = vadd.f32 %v4985, %v5073
    %v5075 = vpop.f32.mrf.mxu0
    %v5076 = vadd.f32 %v4987, %v5075
    %5077 = vmatmul.bf16.gmra.mxu0 %v2466
    %v5078 = vpop.f32.mrf.mxu0
    %v5079 = vadd.f32 %v4990, %v5078
    %v5080 = vpop.f32.mrf.mxu0
    %v5081 = vadd.f32 %v4992, %v5080
    %5082 = vmatmul.bf16.gmra.mxu0 %v2470
    %v5083 = vpop.f32.mrf.mxu0
    %v5084 = vadd.f32 %v4995, %v5083
    %v5085 = vpop.f32.mrf.mxu0
    %v5086 = vadd.f32 %v4997, %v5085
    %5087 = vmatmul.bf16.gmra.mxu0 %v2474
    %v5088 = vpop.f32.mrf.mxu0
    %v5089 = vadd.f32 %v5000, %v5088
    %v5090 = vpop.f32.mrf.mxu0
    %v5091 = vadd.f32 %v5002, %v5090
    %5092 = vmatmul.bf16.gmra.mxu0 %v2478
    %v5093 = vpop.f32.mrf.mxu0
    %v5094 = vadd.f32 %v5005, %v5093
    %v5095 = vpop.f32.mrf.mxu0
    %v5096 = vadd.f32 %v5007, %v5095
    %5097 = vmatmul.bf16.gmra.mxu0 %v2482
    %v5098 = vpop.f32.mrf.mxu0
    %v5099 = vadd.f32 %v5010, %v5098
    %v5100 = vpop.f32.mrf.mxu0
    %v5101 = vadd.f32 %v5012, %v5100
    %5102 = vmatmul.bf16.gmra.mxu0 %v2486
    %v5103 = vpop.f32.mrf.mxu0
    %v5104 = vadd.f32 %v5015, %v5103
    %v5105 = vpop.f32.mrf.mxu0
    %v5106 = vadd.f32 %v5017, %v5105
    %5107 = vmatmul.bf16.gmra.mxu0 %v2490
    %v5108 = vpop.f32.mrf.mxu0
    %v5109 = vadd.f32 %v5020, %v5108
    %v5110 = vpop.f32.mrf.mxu0
    %v5111 = vadd.f32 %v5022, %v5110
    %5112 = vdwg.mxu0
    %5113 = vmatpush.bf16.msra.mxu0 %v3592
    %5114 = vmatpush.bf16.msra.mxu0 %v3584
    %5115 = vmatpush.bf16.msra.mxu0 %v3576
    %5116 = vmatpush.bf16.msra.mxu0 %v3568
    %5117 = vmatpush.bf16.msra.mxu0 %v3560
    %5118 = vmatpush.bf16.msra.mxu0 %v3552
    %5119 = vmatpush.bf16.msra.mxu0 %v3544
    %5120 = vmatpush.bf16.msra.mxu0 %v3536
    %5121 = vmatmul.bf16.gmra.mxu0 %v2427
    %v5122 = vpop.f32.mrf.mxu0
    %v5123 = vadd.f32 %v2752, %v5122
    %v5124 = vpop.f32.mrf.mxu0
    %v5125 = vadd.f32 %v2752, %v5124
    %5126 = vmatmul.bf16.gmra.mxu0 %v2431
    %v5127 = vpop.f32.mrf.mxu0
    %v5128 = vadd.f32 %v2752, %v5127
    %v5129 = vpop.f32.mrf.mxu0
    %v5130 = vadd.f32 %v2752, %v5129
    %5131 = vmatmul.bf16.gmra.mxu0 %v2435
    %v5132 = vpop.f32.mrf.mxu0
    %v5133 = vadd.f32 %v2752, %v5132
    %v5134 = vpop.f32.mrf.mxu0
    %v5135 = vadd.f32 %v2752, %v5134
    %5136 = vmatmul.bf16.gmra.mxu0 %v2439
    %v5137 = vpop.f32.mrf.mxu0
    %v5138 = vadd.f32 %v2752, %v5137
    %v5139 = vpop.f32.mrf.mxu0
    %v5140 = vadd.f32 %v2752, %v5139
    %5141 = vmatmul.bf16.gmra.mxu0 %v2443
    %v5142 = vpop.f32.mrf.mxu0
    %v5143 = vadd.f32 %v2752, %v5142
    %v5144 = vpop.f32.mrf.mxu0
    %v5145 = vadd.f32 %v2752, %v5144
    %5146 = vmatmul.bf16.gmra.mxu0 %v2447
    %v5147 = vpop.f32.mrf.mxu0
    %v5148 = vadd.f32 %v2752, %v5147
    %v5149 = vpop.f32.mrf.mxu0
    %v5150 = vadd.f32 %v2752, %v5149
    %5151 = vmatmul.bf16.gmra.mxu0 %v2451
    %v5152 = vpop.f32.mrf.mxu0
    %v5153 = vadd.f32 %v2752, %v5152
    %v5154 = vpop.f32.mrf.mxu0
    %v5155 = vadd.f32 %v2752, %v5154
    %5156 = vmatmul.bf16.gmra.mxu0 %v2455
    %v5157 = vpop.f32.mrf.mxu0
    %v5158 = vadd.f32 %v2752, %v5157
    %v5159 = vpop.f32.mrf.mxu0
    %v5160 = vadd.f32 %v2752, %v5159
    %5161 = vmatmul.bf16.gmra.mxu0 %v2459
    %v5162 = vpop.f32.mrf.mxu0
    %v5163 = vadd.f32 %v2752, %v5162
    %v5164 = vpop.f32.mrf.mxu0
    %v5165 = vadd.f32 %v2752, %v5164
    %5166 = vmatmul.bf16.gmra.mxu0 %v2463
    %v5167 = vpop.f32.mrf.mxu0
    %v5168 = vadd.f32 %v2752, %v5167
    %v5169 = vpop.f32.mrf.mxu0
    %v5170 = vadd.f32 %v2752, %v5169
    %5171 = vmatmul.bf16.gmra.mxu0 %v2467
    %v5172 = vpop.f32.mrf.mxu0
    %v5173 = vadd.f32 %v2752, %v5172
    %v5174 = vpop.f32.mrf.mxu0
    %v5175 = vadd.f32 %v2752, %v5174
    %5176 = vmatmul.bf16.gmra.mxu0 %v2471
    %v5177 = vpop.f32.mrf.mxu0
    %v5178 = vadd.f32 %v2752, %v5177
    %v5179 = vpop.f32.mrf.mxu0
    %v5180 = vadd.f32 %v2752, %v5179
    %5181 = vmatmul.bf16.gmra.mxu0 %v2475
    %v5182 = vpop.f32.mrf.mxu0
    %v5183 = vadd.f32 %v2752, %v5182
    %v5184 = vpop.f32.mrf.mxu0
    %v5185 = vadd.f32 %v2752, %v5184
    %5186 = vmatmul.bf16.gmra.mxu0 %v2479
    %v5187 = vpop.f32.mrf.mxu0
    %v5188 = vadd.f32 %v2752, %v5187
    %v5189 = vpop.f32.mrf.mxu0
    %v5190 = vadd.f32 %v2752, %v5189
    %5191 = vmatmul.bf16.gmra.mxu0 %v2483
    %v5192 = vpop.f32.mrf.mxu0
    %v5193 = vadd.f32 %v2752, %v5192
    %v5194 = vpop.f32.mrf.mxu0
    %v5195 = vadd.f32 %v2752, %v5194
    %5196 = vmatmul.bf16.gmra.mxu0 %v2487
    %v5197 = vpop.f32.mrf.mxu0
    %v5198 = vadd.f32 %v2752, %v5197
    %v5199 = vpop.f32.mrf.mxu0
    %v5200 = vadd.f32 %v2752, %v5199
    %5201 = vdwg.mxu0
    %5202 = vmatpush.bf16.msra.mxu0 %v3656
    %5203 = vmatpush.bf16.msra.mxu0 %v3648
    %5204 = vmatpush.bf16.msra.mxu0 %v3640
    %5205 = vmatpush.bf16.msra.mxu0 %v3632
    %5206 = vmatpush.bf16.msra.mxu0 %v3624
    %5207 = vmatpush.bf16.msra.mxu0 %v3616
    %5208 = vmatpush.bf16.msra.mxu0 %v3608
    %5209 = vmatpush.bf16.msra.mxu0 %v3600
    %5210 = vmatmul.bf16.gmra.mxu0 %v2428
    %v5211 = vpop.f32.mrf.mxu0
    %v5212 = vadd.f32 %v5123, %v5211
    %v5213 = vpop.f32.mrf.mxu0
    %v5214 = vadd.f32 %v5125, %v5213
    %5215 = vmatmul.bf16.gmra.mxu0 %v2432
    %v5216 = vpop.f32.mrf.mxu0
    %v5217 = vadd.f32 %v5128, %v5216
    %v5218 = vpop.f32.mrf.mxu0
    %v5219 = vadd.f32 %v5130, %v5218
    %5220 = vmatmul.bf16.gmra.mxu0 %v2436
    %v5221 = vpop.f32.mrf.mxu0
    %v5222 = vadd.f32 %v5133, %v5221
    %v5223 = vpop.f32.mrf.mxu0
    %v5224 = vadd.f32 %v5135, %v5223
    %5225 = vmatmul.bf16.gmra.mxu0 %v2440
    %v5226 = vpop.f32.mrf.mxu0
    %v5227 = vadd.f32 %v5138, %v5226
    %v5228 = vpop.f32.mrf.mxu0
    %v5229 = vadd.f32 %v5140, %v5228
    %5230 = vmatmul.bf16.gmra.mxu0 %v2444
    %v5231 = vpop.f32.mrf.mxu0
    %v5232 = vadd.f32 %v5143, %v5231
    %v5233 = vpop.f32.mrf.mxu0
    %v5234 = vadd.f32 %v5145, %v5233
    %5235 = vmatmul.bf16.gmra.mxu0 %v2448
    %v5236 = vpop.f32.mrf.mxu0
    %v5237 = vadd.f32 %v5148, %v5236
    %v5238 = vpop.f32.mrf.mxu0
    %v5239 = vadd.f32 %v5150, %v5238
    %5240 = vmatmul.bf16.gmra.mxu0 %v2452
    %v5241 = vpop.f32.mrf.mxu0
    %v5242 = vadd.f32 %v5153, %v5241
    %v5243 = vpop.f32.mrf.mxu0
    %v5244 = vadd.f32 %v5155, %v5243
    %5245 = vmatmul.bf16.gmra.mxu0 %v2456
    %v5246 = vpop.f32.mrf.mxu0
    %v5247 = vadd.f32 %v5158, %v5246
    %v5248 = vpop.f32.mrf.mxu0
    %v5249 = vadd.f32 %v5160, %v5248
    %5250 = vmatmul.bf16.gmra.mxu0 %v2460
    %v5251 = vpop.f32.mrf.mxu0
    %v5252 = vadd.f32 %v5163, %v5251
    %v5253 = vpop.f32.mrf.mxu0
    %v5254 = vadd.f32 %v5165, %v5253
    %5255 = vmatmul.bf16.gmra.mxu0 %v2464
    %v5256 = vpop.f32.mrf.mxu0
    %v5257 = vadd.f32 %v5168, %v5256
    %v5258 = vpop.f32.mrf.mxu0
    %v5259 = vadd.f32 %v5170, %v5258
    %5260 = vmatmul.bf16.gmra.mxu0 %v2468
    %v5261 = vpop.f32.mrf.mxu0
    %v5262 = vadd.f32 %v5173, %v5261
    %v5263 = vpop.f32.mrf.mxu0
    %v5264 = vadd.f32 %v5175, %v5263
    %5265 = vmatmul.bf16.gmra.mxu0 %v2472
    %v5266 = vpop.f32.mrf.mxu0
    %v5267 = vadd.f32 %v5178, %v5266
    %v5268 = vpop.f32.mrf.mxu0
    %v5269 = vadd.f32 %v5180, %v5268
    %5270 = vmatmul.bf16.gmra.mxu0 %v2476
    %v5271 = vpop.f32.mrf.mxu0
    %v5272 = vadd.f32 %v5183, %v5271
    %v5273 = vpop.f32.mrf.mxu0
    %v5274 = vadd.f32 %v5185, %v5273
    %5275 = vmatmul.bf16.gmra.mxu0 %v2480
    %v5276 = vpop.f32.mrf.mxu0
    %v5277 = vadd.f32 %v5188, %v5276
    %v5278 = vpop.f32.mrf.mxu0
    %v5279 = vadd.f32 %v5190, %v5278
    %5280 = vmatmul.bf16.gmra.mxu0 %v2484
    %v5281 = vpop.f32.mrf.mxu0
    %v5282 = vadd.f32 %v5193, %v5281
    %v5283 = vpop.f32.mrf.mxu0
    %v5284 = vadd.f32 %v5195, %v5283
    %5285 = vmatmul.bf16.gmra.mxu0 %v2488
    %v5286 = vpop.f32.mrf.mxu0
    %v5287 = vadd.f32 %v5198, %v5286
    %v5288 = vpop.f32.mrf.mxu0
    %v5289 = vadd.f32 %v5200, %v5288
    %5290 = vdwg.mxu0
    %5291 = vmatpush.bf16.msra.mxu0 %v3720
    %5292 = vmatpush.bf16.msra.mxu0 %v3712
    %5293 = vmatpush.bf16.msra.mxu0 %v3704
    %5294 = vmatpush.bf16.msra.mxu0 %v3696
    %5295 = vmatpush.bf16.msra.mxu0 %v3688
    %5296 = vmatpush.bf16.msra.mxu0 %v3680
    %5297 = vmatpush.bf16.msra.mxu0 %v3672
    %5298 = vmatpush.bf16.msra.mxu0 %v3664
    %5299 = vmatmul.bf16.gmra.mxu0 %v2429
    %v5300 = vpop.f32.mrf.mxu0
    %v5301 = vadd.f32 %v5212, %v5300
    %v5302 = vpop.f32.mrf.mxu0
    %v5303 = vadd.f32 %v5214, %v5302
    %5304 = vmatmul.bf16.gmra.mxu0 %v2433
    %v5305 = vpop.f32.mrf.mxu0
    %v5306 = vadd.f32 %v5217, %v5305
    %v5307 = vpop.f32.mrf.mxu0
    %v5308 = vadd.f32 %v5219, %v5307
    %5309 = vmatmul.bf16.gmra.mxu0 %v2437
    %v5310 = vpop.f32.mrf.mxu0
    %v5311 = vadd.f32 %v5222, %v5310
    %v5312 = vpop.f32.mrf.mxu0
    %v5313 = vadd.f32 %v5224, %v5312
    %5314 = vmatmul.bf16.gmra.mxu0 %v2441
    %v5315 = vpop.f32.mrf.mxu0
    %v5316 = vadd.f32 %v5227, %v5315
    %v5317 = vpop.f32.mrf.mxu0
    %v5318 = vadd.f32 %v5229, %v5317
    %5319 = vmatmul.bf16.gmra.mxu0 %v2445
    %v5320 = vpop.f32.mrf.mxu0
    %v5321 = vadd.f32 %v5232, %v5320
    %v5322 = vpop.f32.mrf.mxu0
    %v5323 = vadd.f32 %v5234, %v5322
    %5324 = vmatmul.bf16.gmra.mxu0 %v2449
    %v5325 = vpop.f32.mrf.mxu0
    %v5326 = vadd.f32 %v5237, %v5325
    %v5327 = vpop.f32.mrf.mxu0
    %v5328 = vadd.f32 %v5239, %v5327
    %5329 = vmatmul.bf16.gmra.mxu0 %v2453
    %v5330 = vpop.f32.mrf.mxu0
    %v5331 = vadd.f32 %v5242, %v5330
    %v5332 = vpop.f32.mrf.mxu0
    %v5333 = vadd.f32 %v5244, %v5332
    %5334 = vmatmul.bf16.gmra.mxu0 %v2457
    %v5335 = vpop.f32.mrf.mxu0
    %v5336 = vadd.f32 %v5247, %v5335
    %v5337 = vpop.f32.mrf.mxu0
    %v5338 = vadd.f32 %v5249, %v5337
    %5339 = vmatmul.bf16.gmra.mxu0 %v2461
    %v5340 = vpop.f32.mrf.mxu0
    %v5341 = vadd.f32 %v5252, %v5340
    %v5342 = vpop.f32.mrf.mxu0
    %v5343 = vadd.f32 %v5254, %v5342
    %5344 = vmatmul.bf16.gmra.mxu0 %v2465
    %v5345 = vpop.f32.mrf.mxu0
    %v5346 = vadd.f32 %v5257, %v5345
    %v5347 = vpop.f32.mrf.mxu0
    %v5348 = vadd.f32 %v5259, %v5347
    %5349 = vmatmul.bf16.gmra.mxu0 %v2469
    %v5350 = vpop.f32.mrf.mxu0
    %v5351 = vadd.f32 %v5262, %v5350
    %v5352 = vpop.f32.mrf.mxu0
    %v5353 = vadd.f32 %v5264, %v5352
    %5354 = vmatmul.bf16.gmra.mxu0 %v2473
    %v5355 = vpop.f32.mrf.mxu0
    %v5356 = vadd.f32 %v5267, %v5355
    %v5357 = vpop.f32.mrf.mxu0
    %v5358 = vadd.f32 %v5269, %v5357
    %5359 = vmatmul.bf16.gmra.mxu0 %v2477
    %v5360 = vpop.f32.mrf.mxu0
    %v5361 = vadd.f32 %v5272, %v5360
    %v5362 = vpop.f32.mrf.mxu0
    %v5363 = vadd.f32 %v5274, %v5362
    %5364 = vmatmul.bf16.gmra.mxu0 %v2481
    %v5365 = vpop.f32.mrf.mxu0
    %v5366 = vadd.f32 %v5277, %v5365
    %v5367 = vpop.f32.mrf.mxu0
    %v5368 = vadd.f32 %v5279, %v5367
    %5369 = vmatmul.bf16.gmra.mxu0 %v2485
    %v5370 = vpop.f32.mrf.mxu0
    %v5371 = vadd.f32 %v5282, %v5370
    %v5372 = vpop.f32.mrf.mxu0
    %v5373 = vadd.f32 %v5284, %v5372
    %5374 = vmatmul.bf16.gmra.mxu0 %v2489
    %v5375 = vpop.f32.mrf.mxu0
    %v5376 = vadd.f32 %v5287, %v5375
    %v5377 = vpop.f32.mrf.mxu0
    %v5378 = vadd.f32 %v5289, %v5377
    %5379 = vdwg.mxu0
    %5380 = vmatpush.bf16.msra.mxu0 %v3784
    %5381 = vmatpush.bf16.msra.mxu0 %v3776
    %5382 = vmatpush.bf16.msra.mxu0 %v3768
    %5383 = vmatpush.bf16.msra.mxu0 %v3760
    %5384 = vmatpush.bf16.msra.mxu0 %v3752
    %5385 = vmatpush.bf16.msra.mxu0 %v3744
    %5386 = vmatpush.bf16.msra.mxu0 %v3736
    %5387 = vmatpush.bf16.msra.mxu0 %v3728
    %5388 = vmatmul.bf16.gmra.mxu0 %v2430
    %v5389 = vpop.f32.mrf.mxu0
    %v5390 = vadd.f32 %v5301, %v5389
    %v5391 = vpop.f32.mrf.mxu0
    %v5392 = vadd.f32 %v5303, %v5391
    %5393 = vmatmul.bf16.gmra.mxu0 %v2434
    %v5394 = vpop.f32.mrf.mxu0
    %v5395 = vadd.f32 %v5306, %v5394
    %v5396 = vpop.f32.mrf.mxu0
    %v5397 = vadd.f32 %v5308, %v5396
    %5398 = vmatmul.bf16.gmra.mxu0 %v2438
    %v5399 = vpop.f32.mrf.mxu0
    %v5400 = vadd.f32 %v5311, %v5399
    %v5401 = vpop.f32.mrf.mxu0
    %v5402 = vadd.f32 %v5313, %v5401
    %5403 = vmatmul.bf16.gmra.mxu0 %v2442
    %v5404 = vpop.f32.mrf.mxu0
    %v5405 = vadd.f32 %v5316, %v5404
    %v5406 = vpop.f32.mrf.mxu0
    %v5407 = vadd.f32 %v5318, %v5406
    %5408 = vmatmul.bf16.gmra.mxu0 %v2446
    %v5409 = vpop.f32.mrf.mxu0
    %v5410 = vadd.f32 %v5321, %v5409
    %v5411 = vpop.f32.mrf.mxu0
    %v5412 = vadd.f32 %v5323, %v5411
    %5413 = vmatmul.bf16.gmra.mxu0 %v2450
    %v5414 = vpop.f32.mrf.mxu0
    %v5415 = vadd.f32 %v5326, %v5414
    %v5416 = vpop.f32.mrf.mxu0
    %v5417 = vadd.f32 %v5328, %v5416
    %5418 = vmatmul.bf16.gmra.mxu0 %v2454
    %v5419 = vpop.f32.mrf.mxu0
    %v5420 = vadd.f32 %v5331, %v5419
    %v5421 = vpop.f32.mrf.mxu0
    %v5422 = vadd.f32 %v5333, %v5421
    %5423 = vmatmul.bf16.gmra.mxu0 %v2458
    %v5424 = vpop.f32.mrf.mxu0
    %v5425 = vadd.f32 %v5336, %v5424
    %v5426 = vpop.f32.mrf.mxu0
    %v5427 = vadd.f32 %v5338, %v5426
    %5428 = vmatmul.bf16.gmra.mxu0 %v2462
    %v5429 = vpop.f32.mrf.mxu0
    %v5430 = vadd.f32 %v5341, %v5429
    %v5431 = vpop.f32.mrf.mxu0
    %v5432 = vadd.f32 %v5343, %v5431
    %5433 = vmatmul.bf16.gmra.mxu0 %v2466
    %v5434 = vpop.f32.mrf.mxu0
    %v5435 = vadd.f32 %v5346, %v5434
    %v5436 = vpop.f32.mrf.mxu0
    %v5437 = vadd.f32 %v5348, %v5436
    %5438 = vmatmul.bf16.gmra.mxu0 %v2470
    %v5439 = vpop.f32.mrf.mxu0
    %v5440 = vadd.f32 %v5351, %v5439
    %v5441 = vpop.f32.mrf.mxu0
    %v5442 = vadd.f32 %v5353, %v5441
    %5443 = vmatmul.bf16.gmra.mxu0 %v2474
    %v5444 = vpop.f32.mrf.mxu0
    %v5445 = vadd.f32 %v5356, %v5444
    %v5446 = vpop.f32.mrf.mxu0
    %v5447 = vadd.f32 %v5358, %v5446
    %5448 = vmatmul.bf16.gmra.mxu0 %v2478
    %v5449 = vpop.f32.mrf.mxu0
    %v5450 = vadd.f32 %v5361, %v5449
    %v5451 = vpop.f32.mrf.mxu0
    %v5452 = vadd.f32 %v5363, %v5451
    %5453 = vmatmul.bf16.gmra.mxu0 %v2482
    %v5454 = vpop.f32.mrf.mxu0
    %v5455 = vadd.f32 %v5366, %v5454
    %v5456 = vpop.f32.mrf.mxu0
    %v5457 = vadd.f32 %v5368, %v5456
    %5458 = vmatmul.bf16.gmra.mxu0 %v2486
    %v5459 = vpop.f32.mrf.mxu0
    %v5460 = vadd.f32 %v5371, %v5459
    %v5461 = vpop.f32.mrf.mxu0
    %v5462 = vadd.f32 %v5373, %v5461
    %5463 = vmatmul.bf16.gmra.mxu0 %v2490
    %v5464 = vpop.f32.mrf.mxu0
    %v5465 = vadd.f32 %v5376, %v5464
    %v5466 = vpop.f32.mrf.mxu0
    %v5467 = vadd.f32 %v5378, %v5466
    %5468 = vdwg.mxu0
    %5469 = vmatpush.bf16.msra.mxu0 %v3593
    %5470 = vmatpush.bf16.msra.mxu0 %v3585
    %5471 = vmatpush.bf16.msra.mxu0 %v3577
    %5472 = vmatpush.bf16.msra.mxu0 %v3569
    %5473 = vmatpush.bf16.msra.mxu0 %v3561
    %5474 = vmatpush.bf16.msra.mxu0 %v3553
    %5475 = vmatpush.bf16.msra.mxu0 %v3545
    %5476 = vmatpush.bf16.msra.mxu0 %v3537
    %5477 = vmatmul.bf16.gmra.mxu0 %v2427
    %v5478 = vpop.f32.mrf.mxu0
    %v5479 = vadd.f32 %v2753, %v5478
    %v5480 = vpop.f32.mrf.mxu0
    %v5481 = vadd.f32 %v2753, %v5480
    %5482 = vmatmul.bf16.gmra.mxu0 %v2431
    %v5483 = vpop.f32.mrf.mxu0
    %v5484 = vadd.f32 %v2753, %v5483
    %v5485 = vpop.f32.mrf.mxu0
    %v5486 = vadd.f32 %v2753, %v5485
    %5487 = vmatmul.bf16.gmra.mxu0 %v2435
    %v5488 = vpop.f32.mrf.mxu0
    %v5489 = vadd.f32 %v2753, %v5488
    %v5490 = vpop.f32.mrf.mxu0
    %v5491 = vadd.f32 %v2753, %v5490
    %5492 = vmatmul.bf16.gmra.mxu0 %v2439
    %v5493 = vpop.f32.mrf.mxu0
    %v5494 = vadd.f32 %v2753, %v5493
    %v5495 = vpop.f32.mrf.mxu0
    %v5496 = vadd.f32 %v2753, %v5495
    %5497 = vmatmul.bf16.gmra.mxu0 %v2443
    %v5498 = vpop.f32.mrf.mxu0
    %v5499 = vadd.f32 %v2753, %v5498
    %v5500 = vpop.f32.mrf.mxu0
    %v5501 = vadd.f32 %v2753, %v5500
    %5502 = vmatmul.bf16.gmra.mxu0 %v2447
    %v5503 = vpop.f32.mrf.mxu0
    %v5504 = vadd.f32 %v2753, %v5503
    %v5505 = vpop.f32.mrf.mxu0
    %v5506 = vadd.f32 %v2753, %v5505
    %5507 = vmatmul.bf16.gmra.mxu0 %v2451
    %v5508 = vpop.f32.mrf.mxu0
    %v5509 = vadd.f32 %v2753, %v5508
    %v5510 = vpop.f32.mrf.mxu0
    %v5511 = vadd.f32 %v2753, %v5510
    %5512 = vmatmul.bf16.gmra.mxu0 %v2455
    %v5513 = vpop.f32.mrf.mxu0
    %v5514 = vadd.f32 %v2753, %v5513
    %v5515 = vpop.f32.mrf.mxu0
    %v5516 = vadd.f32 %v2753, %v5515
    %5517 = vmatmul.bf16.gmra.mxu0 %v2459
    %v5518 = vpop.f32.mrf.mxu0
    %v5519 = vadd.f32 %v2753, %v5518
    %v5520 = vpop.f32.mrf.mxu0
    %v5521 = vadd.f32 %v2753, %v5520
    %5522 = vmatmul.bf16.gmra.mxu0 %v2463
    %v5523 = vpop.f32.mrf.mxu0
    %v5524 = vadd.f32 %v2753, %v5523
    %v5525 = vpop.f32.mrf.mxu0
    %v5526 = vadd.f32 %v2753, %v5525
    %5527 = vmatmul.bf16.gmra.mxu0 %v2467
    %v5528 = vpop.f32.mrf.mxu0
    %v5529 = vadd.f32 %v2753, %v5528
    %v5530 = vpop.f32.mrf.mxu0
    %v5531 = vadd.f32 %v2753, %v5530
    %5532 = vmatmul.bf16.gmra.mxu0 %v2471
    %v5533 = vpop.f32.mrf.mxu0
    %v5534 = vadd.f32 %v2753, %v5533
    %v5535 = vpop.f32.mrf.mxu0
    %v5536 = vadd.f32 %v2753, %v5535
    %5537 = vmatmul.bf16.gmra.mxu0 %v2475
    %v5538 = vpop.f32.mrf.mxu0
    %v5539 = vadd.f32 %v2753, %v5538
    %v5540 = vpop.f32.mrf.mxu0
    %v5541 = vadd.f32 %v2753, %v5540
    %5542 = vmatmul.bf16.gmra.mxu0 %v2479
    %v5543 = vpop.f32.mrf.mxu0
    %v5544 = vadd.f32 %v2753, %v5543
    %v5545 = vpop.f32.mrf.mxu0
    %v5546 = vadd.f32 %v2753, %v5545
    %5547 = vmatmul.bf16.gmra.mxu0 %v2483
    %v5548 = vpop.f32.mrf.mxu0
    %v5549 = vadd.f32 %v2753, %v5548
    %v5550 = vpop.f32.mrf.mxu0
    %v5551 = vadd.f32 %v2753, %v5550
    %5552 = vmatmul.bf16.gmra.mxu0 %v2487
    %v5553 = vpop.f32.mrf.mxu0
    %v5554 = vadd.f32 %v2753, %v5553
    %v5555 = vpop.f32.mrf.mxu0
    %v5556 = vadd.f32 %v2753, %v5555
    %5557 = vdwg.mxu0
    %5558 = vmatpush.bf16.msra.mxu0 %v3657
    %5559 = vmatpush.bf16.msra.mxu0 %v3649
    %5560 = vmatpush.bf16.msra.mxu0 %v3641
    %5561 = vmatpush.bf16.msra.mxu0 %v3633
    %5562 = vmatpush.bf16.msra.mxu0 %v3625
    %5563 = vmatpush.bf16.msra.mxu0 %v3617
    %5564 = vmatpush.bf16.msra.mxu0 %v3609
    %5565 = vmatpush.bf16.msra.mxu0 %v3601
    %5566 = vmatmul.bf16.gmra.mxu0 %v2428
    %v5567 = vpop.f32.mrf.mxu0
    %v5568 = vadd.f32 %v5479, %v5567
    %v5569 = vpop.f32.mrf.mxu0
    %v5570 = vadd.f32 %v5481, %v5569
    %5571 = vmatmul.bf16.gmra.mxu0 %v2432
    %v5572 = vpop.f32.mrf.mxu0
    %v5573 = vadd.f32 %v5484, %v5572
    %v5574 = vpop.f32.mrf.mxu0
    %v5575 = vadd.f32 %v5486, %v5574
    %5576 = vmatmul.bf16.gmra.mxu0 %v2436
    %v5577 = vpop.f32.mrf.mxu0
    %v5578 = vadd.f32 %v5489, %v5577
    %v5579 = vpop.f32.mrf.mxu0
    %v5580 = vadd.f32 %v5491, %v5579
    %5581 = vmatmul.bf16.gmra.mxu0 %v2440
    %v5582 = vpop.f32.mrf.mxu0
    %v5583 = vadd.f32 %v5494, %v5582
    %v5584 = vpop.f32.mrf.mxu0
    %v5585 = vadd.f32 %v5496, %v5584
    %5586 = vmatmul.bf16.gmra.mxu0 %v2444
    %v5587 = vpop.f32.mrf.mxu0
    %v5588 = vadd.f32 %v5499, %v5587
    %v5589 = vpop.f32.mrf.mxu0
    %v5590 = vadd.f32 %v5501, %v5589
    %5591 = vmatmul.bf16.gmra.mxu0 %v2448
    %v5592 = vpop.f32.mrf.mxu0
    %v5593 = vadd.f32 %v5504, %v5592
    %v5594 = vpop.f32.mrf.mxu0
    %v5595 = vadd.f32 %v5506, %v5594
    %5596 = vmatmul.bf16.gmra.mxu0 %v2452
    %v5597 = vpop.f32.mrf.mxu0
    %v5598 = vadd.f32 %v5509, %v5597
    %v5599 = vpop.f32.mrf.mxu0
    %v5600 = vadd.f32 %v5511, %v5599
    %5601 = vmatmul.bf16.gmra.mxu0 %v2456
    %v5602 = vpop.f32.mrf.mxu0
    %v5603 = vadd.f32 %v5514, %v5602
    %v5604 = vpop.f32.mrf.mxu0
    %v5605 = vadd.f32 %v5516, %v5604
    %5606 = vmatmul.bf16.gmra.mxu0 %v2460
    %v5607 = vpop.f32.mrf.mxu0
    %v5608 = vadd.f32 %v5519, %v5607
    %v5609 = vpop.f32.mrf.mxu0
    %v5610 = vadd.f32 %v5521, %v5609
    %5611 = vmatmul.bf16.gmra.mxu0 %v2464
    %v5612 = vpop.f32.mrf.mxu0
    %v5613 = vadd.f32 %v5524, %v5612
    %v5614 = vpop.f32.mrf.mxu0
    %v5615 = vadd.f32 %v5526, %v5614
    %5616 = vmatmul.bf16.gmra.mxu0 %v2468
    %v5617 = vpop.f32.mrf.mxu0
    %v5618 = vadd.f32 %v5529, %v5617
    %v5619 = vpop.f32.mrf.mxu0
    %v5620 = vadd.f32 %v5531, %v5619
    %5621 = vmatmul.bf16.gmra.mxu0 %v2472
    %v5622 = vpop.f32.mrf.mxu0
    %v5623 = vadd.f32 %v5534, %v5622
    %v5624 = vpop.f32.mrf.mxu0
    %v5625 = vadd.f32 %v5536, %v5624
    %5626 = vmatmul.bf16.gmra.mxu0 %v2476
    %v5627 = vpop.f32.mrf.mxu0
    %v5628 = vadd.f32 %v5539, %v5627
    %v5629 = vpop.f32.mrf.mxu0
    %v5630 = vadd.f32 %v5541, %v5629
    %5631 = vmatmul.bf16.gmra.mxu0 %v2480
    %v5632 = vpop.f32.mrf.mxu0
    %v5633 = vadd.f32 %v5544, %v5632
    %v5634 = vpop.f32.mrf.mxu0
    %v5635 = vadd.f32 %v5546, %v5634
    %5636 = vmatmul.bf16.gmra.mxu0 %v2484
    %v5637 = vpop.f32.mrf.mxu0
    %v5638 = vadd.f32 %v5549, %v5637
    %v5639 = vpop.f32.mrf.mxu0
    %v5640 = vadd.f32 %v5551, %v5639
    %5641 = vmatmul.bf16.gmra.mxu0 %v2488
    %v5642 = vpop.f32.mrf.mxu0
    %v5643 = vadd.f32 %v5554, %v5642
    %v5644 = vpop.f32.mrf.mxu0
    %v5645 = vadd.f32 %v5556, %v5644
    %5646 = vdwg.mxu0
    %5647 = vmatpush.bf16.msra.mxu0 %v3721
    %5648 = vmatpush.bf16.msra.mxu0 %v3713
    %5649 = vmatpush.bf16.msra.mxu0 %v3705
    %5650 = vmatpush.bf16.msra.mxu0 %v3697
    %5651 = vmatpush.bf16.msra.mxu0 %v3689
    %5652 = vmatpush.bf16.msra.mxu0 %v3681
    %5653 = vmatpush.bf16.msra.mxu0 %v3673
    %5654 = vmatpush.bf16.msra.mxu0 %v3665
    %5655 = vmatmul.bf16.gmra.mxu0 %v2429
    %v5656 = vpop.f32.mrf.mxu0
    %v5657 = vadd.f32 %v5568, %v5656
    %v5658 = vpop.f32.mrf.mxu0
    %v5659 = vadd.f32 %v5570, %v5658
    %5660 = vmatmul.bf16.gmra.mxu0 %v2433
    %v5661 = vpop.f32.mrf.mxu0
    %v5662 = vadd.f32 %v5573, %v5661
    %v5663 = vpop.f32.mrf.mxu0
    %v5664 = vadd.f32 %v5575, %v5663
    %5665 = vmatmul.bf16.gmra.mxu0 %v2437
    %v5666 = vpop.f32.mrf.mxu0
    %v5667 = vadd.f32 %v5578, %v5666
    %v5668 = vpop.f32.mrf.mxu0
    %v5669 = vadd.f32 %v5580, %v5668
    %5670 = vmatmul.bf16.gmra.mxu0 %v2441
    %v5671 = vpop.f32.mrf.mxu0
    %v5672 = vadd.f32 %v5583, %v5671
    %v5673 = vpop.f32.mrf.mxu0
    %v5674 = vadd.f32 %v5585, %v5673
    %5675 = vmatmul.bf16.gmra.mxu0 %v2445
    %v5676 = vpop.f32.mrf.mxu0
    %v5677 = vadd.f32 %v5588, %v5676
    %v5678 = vpop.f32.mrf.mxu0
    %v5679 = vadd.f32 %v5590, %v5678
    %5680 = vmatmul.bf16.gmra.mxu0 %v2449
    %v5681 = vpop.f32.mrf.mxu0
    %v5682 = vadd.f32 %v5593, %v5681
    %v5683 = vpop.f32.mrf.mxu0
    %v5684 = vadd.f32 %v5595, %v5683
    %5685 = vmatmul.bf16.gmra.mxu0 %v2453
    %v5686 = vpop.f32.mrf.mxu0
    %v5687 = vadd.f32 %v5598, %v5686
    %v5688 = vpop.f32.mrf.mxu0
    %v5689 = vadd.f32 %v5600, %v5688
    %5690 = vmatmul.bf16.gmra.mxu0 %v2457
    %v5691 = vpop.f32.mrf.mxu0
    %v5692 = vadd.f32 %v5603, %v5691
    %v5693 = vpop.f32.mrf.mxu0
    %v5694 = vadd.f32 %v5605, %v5693
    %5695 = vmatmul.bf16.gmra.mxu0 %v2461
    %v5696 = vpop.f32.mrf.mxu0
    %v5697 = vadd.f32 %v5608, %v5696
    %v5698 = vpop.f32.mrf.mxu0
    %v5699 = vadd.f32 %v5610, %v5698
    %5700 = vmatmul.bf16.gmra.mxu0 %v2465
    %v5701 = vpop.f32.mrf.mxu0
    %v5702 = vadd.f32 %v5613, %v5701
    %v5703 = vpop.f32.mrf.mxu0
    %v5704 = vadd.f32 %v5615, %v5703
    %5705 = vmatmul.bf16.gmra.mxu0 %v2469
    %v5706 = vpop.f32.mrf.mxu0
    %v5707 = vadd.f32 %v5618, %v5706
    %v5708 = vpop.f32.mrf.mxu0
    %v5709 = vadd.f32 %v5620, %v5708
    %5710 = vmatmul.bf16.gmra.mxu0 %v2473
    %v5711 = vpop.f32.mrf.mxu0
    %v5712 = vadd.f32 %v5623, %v5711
    %v5713 = vpop.f32.mrf.mxu0
    %v5714 = vadd.f32 %v5625, %v5713
    %5715 = vmatmul.bf16.gmra.mxu0 %v2477
    %v5716 = vpop.f32.mrf.mxu0
    %v5717 = vadd.f32 %v5628, %v5716
    %v5718 = vpop.f32.mrf.mxu0
    %v5719 = vadd.f32 %v5630, %v5718
    %5720 = vmatmul.bf16.gmra.mxu0 %v2481
    %v5721 = vpop.f32.mrf.mxu0
    %v5722 = vadd.f32 %v5633, %v5721
    %v5723 = vpop.f32.mrf.mxu0
    %v5724 = vadd.f32 %v5635, %v5723
    %5725 = vmatmul.bf16.gmra.mxu0 %v2485
    %v5726 = vpop.f32.mrf.mxu0
    %v5727 = vadd.f32 %v5638, %v5726
    %v5728 = vpop.f32.mrf.mxu0
    %v5729 = vadd.f32 %v5640, %v5728
    %5730 = vmatmul.bf16.gmra.mxu0 %v2489
    %v5731 = vpop.f32.mrf.mxu0
    %v5732 = vadd.f32 %v5643, %v5731
    %v5733 = vpop.f32.mrf.mxu0
    %v5734 = vadd.f32 %v5645, %v5733
    %5735 = vdwg.mxu0
    %5736 = vmatpush.bf16.msra.mxu0 %v3785
    %5737 = vmatpush.bf16.msra.mxu0 %v3777
    %5738 = vmatpush.bf16.msra.mxu0 %v3769
    %5739 = vmatpush.bf16.msra.mxu0 %v3761
    %5740 = vmatpush.bf16.msra.mxu0 %v3753
    %5741 = vmatpush.bf16.msra.mxu0 %v3745
    %5742 = vmatpush.bf16.msra.mxu0 %v3737
    %5743 = vmatpush.bf16.msra.mxu0 %v3729
    %5744 = vmatmul.bf16.gmra.mxu0 %v2430
    %v5745 = vpop.f32.mrf.mxu0
    %v5746 = vadd.f32 %v5657, %v5745
    %v5747 = vpop.f32.mrf.mxu0
    %v5748 = vadd.f32 %v5659, %v5747
    %5749 = vmatmul.bf16.gmra.mxu0 %v2434
    %v5750 = vpop.f32.mrf.mxu0
    %v5751 = vadd.f32 %v5662, %v5750
    %v5752 = vpop.f32.mrf.mxu0
    %v5753 = vadd.f32 %v5664, %v5752
    %5754 = vmatmul.bf16.gmra.mxu0 %v2438
    %v5755 = vpop.f32.mrf.mxu0
    %v5756 = vadd.f32 %v5667, %v5755
    %v5757 = vpop.f32.mrf.mxu0
    %v5758 = vadd.f32 %v5669, %v5757
    %5759 = vmatmul.bf16.gmra.mxu0 %v2442
    %v5760 = vpop.f32.mrf.mxu0
    %v5761 = vadd.f32 %v5672, %v5760
    %v5762 = vpop.f32.mrf.mxu0
    %v5763 = vadd.f32 %v5674, %v5762
    %5764 = vmatmul.bf16.gmra.mxu0 %v2446
    %v5765 = vpop.f32.mrf.mxu0
    %v5766 = vadd.f32 %v5677, %v5765
    %v5767 = vpop.f32.mrf.mxu0
    %v5768 = vadd.f32 %v5679, %v5767
    %5769 = vmatmul.bf16.gmra.mxu0 %v2450
    %v5770 = vpop.f32.mrf.mxu0
    %v5771 = vadd.f32 %v5682, %v5770
    %v5772 = vpop.f32.mrf.mxu0
    %v5773 = vadd.f32 %v5684, %v5772
    %5774 = vmatmul.bf16.gmra.mxu0 %v2454
    %v5775 = vpop.f32.mrf.mxu0
    %v5776 = vadd.f32 %v5687, %v5775
    %v5777 = vpop.f32.mrf.mxu0
    %v5778 = vadd.f32 %v5689, %v5777
    %5779 = vmatmul.bf16.gmra.mxu0 %v2458
    %v5780 = vpop.f32.mrf.mxu0
    %v5781 = vadd.f32 %v5692, %v5780
    %v5782 = vpop.f32.mrf.mxu0
    %v5783 = vadd.f32 %v5694, %v5782
    %5784 = vmatmul.bf16.gmra.mxu0 %v2462
    %v5785 = vpop.f32.mrf.mxu0
    %v5786 = vadd.f32 %v5697, %v5785
    %v5787 = vpop.f32.mrf.mxu0
    %v5788 = vadd.f32 %v5699, %v5787
    %5789 = vmatmul.bf16.gmra.mxu0 %v2466
    %v5790 = vpop.f32.mrf.mxu0
    %v5791 = vadd.f32 %v5702, %v5790
    %v5792 = vpop.f32.mrf.mxu0
    %v5793 = vadd.f32 %v5704, %v5792
    %5794 = vmatmul.bf16.gmra.mxu0 %v2470
    %v5795 = vpop.f32.mrf.mxu0
    %v5796 = vadd.f32 %v5707, %v5795
    %v5797 = vpop.f32.mrf.mxu0
    %v5798 = vadd.f32 %v5709, %v5797
    %5799 = vmatmul.bf16.gmra.mxu0 %v2474
    %v5800 = vpop.f32.mrf.mxu0
    %v5801 = vadd.f32 %v5712, %v5800
    %v5802 = vpop.f32.mrf.mxu0
    %v5803 = vadd.f32 %v5714, %v5802
    %5804 = vmatmul.bf16.gmra.mxu0 %v2478
    %v5805 = vpop.f32.mrf.mxu0
    %v5806 = vadd.f32 %v5717, %v5805
    %v5807 = vpop.f32.mrf.mxu0
    %v5808 = vadd.f32 %v5719, %v5807
    %5809 = vmatmul.bf16.gmra.mxu0 %v2482
    %v5810 = vpop.f32.mrf.mxu0
    %v5811 = vadd.f32 %v5722, %v5810
    %v5812 = vpop.f32.mrf.mxu0
    %v5813 = vadd.f32 %v5724, %v5812
    %5814 = vmatmul.bf16.gmra.mxu0 %v2486
    %v5815 = vpop.f32.mrf.mxu0
    %v5816 = vadd.f32 %v5727, %v5815
    %v5817 = vpop.f32.mrf.mxu0
    %v5818 = vadd.f32 %v5729, %v5817
    %5819 = vmatmul.bf16.gmra.mxu0 %v2490
    %v5820 = vpop.f32.mrf.mxu0
    %v5821 = vadd.f32 %v5732, %v5820
    %v5822 = vpop.f32.mrf.mxu0
    %v5823 = vadd.f32 %v5734, %v5822
    %5824 = vdwg.mxu0
    %5825 = vmatpush.bf16.msra.mxu0 %v3594
    %5826 = vmatpush.bf16.msra.mxu0 %v3586
    %5827 = vmatpush.bf16.msra.mxu0 %v3578
    %5828 = vmatpush.bf16.msra.mxu0 %v3570
    %5829 = vmatpush.bf16.msra.mxu0 %v3562
    %5830 = vmatpush.bf16.msra.mxu0 %v3554
    %5831 = vmatpush.bf16.msra.mxu0 %v3546
    %5832 = vmatpush.bf16.msra.mxu0 %v3538
    %5833 = vmatmul.bf16.gmra.mxu0 %v2427
    %v5834 = vpop.f32.mrf.mxu0
    %v5835 = vadd.f32 %v2754, %v5834
    %v5836 = vpop.f32.mrf.mxu0
    %v5837 = vadd.f32 %v2754, %v5836
    %5838 = vmatmul.bf16.gmra.mxu0 %v2431
    %v5839 = vpop.f32.mrf.mxu0
    %v5840 = vadd.f32 %v2754, %v5839
    %v5841 = vpop.f32.mrf.mxu0
    %v5842 = vadd.f32 %v2754, %v5841
    %5843 = vmatmul.bf16.gmra.mxu0 %v2435
    %v5844 = vpop.f32.mrf.mxu0
    %v5845 = vadd.f32 %v2754, %v5844
    %v5846 = vpop.f32.mrf.mxu0
    %v5847 = vadd.f32 %v2754, %v5846
    %5848 = vmatmul.bf16.gmra.mxu0 %v2439
    %v5849 = vpop.f32.mrf.mxu0
    %v5850 = vadd.f32 %v2754, %v5849
    %v5851 = vpop.f32.mrf.mxu0
    %v5852 = vadd.f32 %v2754, %v5851
    %5853 = vmatmul.bf16.gmra.mxu0 %v2443
    %v5854 = vpop.f32.mrf.mxu0
    %v5855 = vadd.f32 %v2754, %v5854
    %v5856 = vpop.f32.mrf.mxu0
    %v5857 = vadd.f32 %v2754, %v5856
    %5858 = vmatmul.bf16.gmra.mxu0 %v2447
    %v5859 = vpop.f32.mrf.mxu0
    %v5860 = vadd.f32 %v2754, %v5859
    %v5861 = vpop.f32.mrf.mxu0
    %v5862 = vadd.f32 %v2754, %v5861
    %5863 = vmatmul.bf16.gmra.mxu0 %v2451
    %v5864 = vpop.f32.mrf.mxu0
    %v5865 = vadd.f32 %v2754, %v5864
    %v5866 = vpop.f32.mrf.mxu0
    %v5867 = vadd.f32 %v2754, %v5866
    %5868 = vmatmul.bf16.gmra.mxu0 %v2455
    %v5869 = vpop.f32.mrf.mxu0
    %v5870 = vadd.f32 %v2754, %v5869
    %v5871 = vpop.f32.mrf.mxu0
    %v5872 = vadd.f32 %v2754, %v5871
    %5873 = vmatmul.bf16.gmra.mxu0 %v2459
    %v5874 = vpop.f32.mrf.mxu0
    %v5875 = vadd.f32 %v2754, %v5874
    %v5876 = vpop.f32.mrf.mxu0
    %v5877 = vadd.f32 %v2754, %v5876
    %5878 = vmatmul.bf16.gmra.mxu0 %v2463
    %v5879 = vpop.f32.mrf.mxu0
    %v5880 = vadd.f32 %v2754, %v5879
    %v5881 = vpop.f32.mrf.mxu0
    %v5882 = vadd.f32 %v2754, %v5881
    %5883 = vmatmul.bf16.gmra.mxu0 %v2467
    %v5884 = vpop.f32.mrf.mxu0
    %v5885 = vadd.f32 %v2754, %v5884
    %v5886 = vpop.f32.mrf.mxu0
    %v5887 = vadd.f32 %v2754, %v5886
    %5888 = vmatmul.bf16.gmra.mxu0 %v2471
    %v5889 = vpop.f32.mrf.mxu0
    %v5890 = vadd.f32 %v2754, %v5889
    %v5891 = vpop.f32.mrf.mxu0
    %v5892 = vadd.f32 %v2754, %v5891
    %5893 = vmatmul.bf16.gmra.mxu0 %v2475
    %v5894 = vpop.f32.mrf.mxu0
    %v5895 = vadd.f32 %v2754, %v5894
    %v5896 = vpop.f32.mrf.mxu0
    %v5897 = vadd.f32 %v2754, %v5896
    %5898 = vmatmul.bf16.gmra.mxu0 %v2479
    %v5899 = vpop.f32.mrf.mxu0
    %v5900 = vadd.f32 %v2754, %v5899
    %v5901 = vpop.f32.mrf.mxu0
    %v5902 = vadd.f32 %v2754, %v5901
    %5903 = vmatmul.bf16.gmra.mxu0 %v2483
    %v5904 = vpop.f32.mrf.mxu0
    %v5905 = vadd.f32 %v2754, %v5904
    %v5906 = vpop.f32.mrf.mxu0
    %v5907 = vadd.f32 %v2754, %v5906
    %5908 = vmatmul.bf16.gmra.mxu0 %v2487
    %v5909 = vpop.f32.mrf.mxu0
    %v5910 = vadd.f32 %v2754, %v5909
    %v5911 = vpop.f32.mrf.mxu0
    %v5912 = vadd.f32 %v2754, %v5911
    %5913 = vdwg.mxu0
    %5914 = vmatpush.bf16.msra.mxu0 %v3658
    %5915 = vmatpush.bf16.msra.mxu0 %v3650
    %5916 = vmatpush.bf16.msra.mxu0 %v3642
    %5917 = vmatpush.bf16.msra.mxu0 %v3634
    %5918 = vmatpush.bf16.msra.mxu0 %v3626
    %5919 = vmatpush.bf16.msra.mxu0 %v3618
    %5920 = vmatpush.bf16.msra.mxu0 %v3610
    %5921 = vmatpush.bf16.msra.mxu0 %v3602
    %5922 = vmatmul.bf16.gmra.mxu0 %v2428
    %v5923 = vpop.f32.mrf.mxu0
    %v5924 = vadd.f32 %v5835, %v5923
    %v5925 = vpop.f32.mrf.mxu0
    %v5926 = vadd.f32 %v5837, %v5925
    %5927 = vmatmul.bf16.gmra.mxu0 %v2432
    %v5928 = vpop.f32.mrf.mxu0
    %v5929 = vadd.f32 %v5840, %v5928
    %v5930 = vpop.f32.mrf.mxu0
    %v5931 = vadd.f32 %v5842, %v5930
    %5932 = vmatmul.bf16.gmra.mxu0 %v2436
    %v5933 = vpop.f32.mrf.mxu0
    %v5934 = vadd.f32 %v5845, %v5933
    %v5935 = vpop.f32.mrf.mxu0
    %v5936 = vadd.f32 %v5847, %v5935
    %5937 = vmatmul.bf16.gmra.mxu0 %v2440
    %v5938 = vpop.f32.mrf.mxu0
    %v5939 = vadd.f32 %v5850, %v5938
    %v5940 = vpop.f32.mrf.mxu0
    %v5941 = vadd.f32 %v5852, %v5940
    %5942 = vmatmul.bf16.gmra.mxu0 %v2444
    %v5943 = vpop.f32.mrf.mxu0
    %v5944 = vadd.f32 %v5855, %v5943
    %v5945 = vpop.f32.mrf.mxu0
    %v5946 = vadd.f32 %v5857, %v5945
    %5947 = vmatmul.bf16.gmra.mxu0 %v2448
    %v5948 = vpop.f32.mrf.mxu0
    %v5949 = vadd.f32 %v5860, %v5948
    %v5950 = vpop.f32.mrf.mxu0
    %v5951 = vadd.f32 %v5862, %v5950
    %5952 = vmatmul.bf16.gmra.mxu0 %v2452
    %v5953 = vpop.f32.mrf.mxu0
    %v5954 = vadd.f32 %v5865, %v5953
    %v5955 = vpop.f32.mrf.mxu0
    %v5956 = vadd.f32 %v5867, %v5955
    %5957 = vmatmul.bf16.gmra.mxu0 %v2456
    %v5958 = vpop.f32.mrf.mxu0
    %v5959 = vadd.f32 %v5870, %v5958
    %v5960 = vpop.f32.mrf.mxu0
    %v5961 = vadd.f32 %v5872, %v5960
    %5962 = vmatmul.bf16.gmra.mxu0 %v2460
    %v5963 = vpop.f32.mrf.mxu0
    %v5964 = vadd.f32 %v5875, %v5963
    %v5965 = vpop.f32.mrf.mxu0
    %v5966 = vadd.f32 %v5877, %v5965
    %5967 = vmatmul.bf16.gmra.mxu0 %v2464
    %v5968 = vpop.f32.mrf.mxu0
    %v5969 = vadd.f32 %v5880, %v5968
    %v5970 = vpop.f32.mrf.mxu0
    %v5971 = vadd.f32 %v5882, %v5970
    %5972 = vmatmul.bf16.gmra.mxu0 %v2468
    %v5973 = vpop.f32.mrf.mxu0
    %v5974 = vadd.f32 %v5885, %v5973
    %v5975 = vpop.f32.mrf.mxu0
    %v5976 = vadd.f32 %v5887, %v5975
    %5977 = vmatmul.bf16.gmra.mxu0 %v2472
    %v5978 = vpop.f32.mrf.mxu0
    %v5979 = vadd.f32 %v5890, %v5978
    %v5980 = vpop.f32.mrf.mxu0
    %v5981 = vadd.f32 %v5892, %v5980
    %5982 = vmatmul.bf16.gmra.mxu0 %v2476
    %v5983 = vpop.f32.mrf.mxu0
    %v5984 = vadd.f32 %v5895, %v5983
    %v5985 = vpop.f32.mrf.mxu0
    %v5986 = vadd.f32 %v5897, %v5985
    %5987 = vmatmul.bf16.gmra.mxu0 %v2480
    %v5988 = vpop.f32.mrf.mxu0
    %v5989 = vadd.f32 %v5900, %v5988
    %v5990 = vpop.f32.mrf.mxu0
    %v5991 = vadd.f32 %v5902, %v5990
    %5992 = vmatmul.bf16.gmra.mxu0 %v2484
    %v5993 = vpop.f32.mrf.mxu0
    %v5994 = vadd.f32 %v5905, %v5993
    %v5995 = vpop.f32.mrf.mxu0
    %v5996 = vadd.f32 %v5907, %v5995
    %5997 = vmatmul.bf16.gmra.mxu0 %v2488
    %v5998 = vpop.f32.mrf.mxu0
    %v5999 = vadd.f32 %v5910, %v5998
    %v6000 = vpop.f32.mrf.mxu0
    %v6001 = vadd.f32 %v5912, %v6000
    %6002 = vdwg.mxu0
    %6003 = vmatpush.bf16.msra.mxu0 %v3722
    %6004 = vmatpush.bf16.msra.mxu0 %v3714
    %6005 = vmatpush.bf16.msra.mxu0 %v3706
    %6006 = vmatpush.bf16.msra.mxu0 %v3698
    %6007 = vmatpush.bf16.msra.mxu0 %v3690
    %6008 = vmatpush.bf16.msra.mxu0 %v3682
    %6009 = vmatpush.bf16.msra.mxu0 %v3674
    %6010 = vmatpush.bf16.msra.mxu0 %v3666
    %6011 = vmatmul.bf16.gmra.mxu0 %v2429
    %v6012 = vpop.f32.mrf.mxu0
    %v6013 = vadd.f32 %v5924, %v6012
    %v6014 = vpop.f32.mrf.mxu0
    %v6015 = vadd.f32 %v5926, %v6014
    %6016 = vmatmul.bf16.gmra.mxu0 %v2433
    %v6017 = vpop.f32.mrf.mxu0
    %v6018 = vadd.f32 %v5929, %v6017
    %v6019 = vpop.f32.mrf.mxu0
    %v6020 = vadd.f32 %v5931, %v6019
    %6021 = vmatmul.bf16.gmra.mxu0 %v2437
    %v6022 = vpop.f32.mrf.mxu0
    %v6023 = vadd.f32 %v5934, %v6022
    %v6024 = vpop.f32.mrf.mxu0
    %v6025 = vadd.f32 %v5936, %v6024
    %6026 = vmatmul.bf16.gmra.mxu0 %v2441
    %v6027 = vpop.f32.mrf.mxu0
    %v6028 = vadd.f32 %v5939, %v6027
    %v6029 = vpop.f32.mrf.mxu0
    %v6030 = vadd.f32 %v5941, %v6029
    %6031 = vmatmul.bf16.gmra.mxu0 %v2445
    %v6032 = vpop.f32.mrf.mxu0
    %v6033 = vadd.f32 %v5944, %v6032
    %v6034 = vpop.f32.mrf.mxu0
    %v6035 = vadd.f32 %v5946, %v6034
    %6036 = vmatmul.bf16.gmra.mxu0 %v2449
    %v6037 = vpop.f32.mrf.mxu0
    %v6038 = vadd.f32 %v5949, %v6037
    %v6039 = vpop.f32.mrf.mxu0
    %v6040 = vadd.f32 %v5951, %v6039
    %6041 = vmatmul.bf16.gmra.mxu0 %v2453
    %v6042 = vpop.f32.mrf.mxu0
    %v6043 = vadd.f32 %v5954, %v6042
    %v6044 = vpop.f32.mrf.mxu0
    %v6045 = vadd.f32 %v5956, %v6044
    %6046 = vmatmul.bf16.gmra.mxu0 %v2457
    %v6047 = vpop.f32.mrf.mxu0
    %v6048 = vadd.f32 %v5959, %v6047
    %v6049 = vpop.f32.mrf.mxu0
    %v6050 = vadd.f32 %v5961, %v6049
    %6051 = vmatmul.bf16.gmra.mxu0 %v2461
    %v6052 = vpop.f32.mrf.mxu0
    %v6053 = vadd.f32 %v5964, %v6052
    %v6054 = vpop.f32.mrf.mxu0
    %v6055 = vadd.f32 %v5966, %v6054
    %6056 = vmatmul.bf16.gmra.mxu0 %v2465
    %v6057 = vpop.f32.mrf.mxu0
    %v6058 = vadd.f32 %v5969, %v6057
    %v6059 = vpop.f32.mrf.mxu0
    %v6060 = vadd.f32 %v5971, %v6059
    %6061 = vmatmul.bf16.gmra.mxu0 %v2469
    %v6062 = vpop.f32.mrf.mxu0
    %v6063 = vadd.f32 %v5974, %v6062
    %v6064 = vpop.f32.mrf.mxu0
    %v6065 = vadd.f32 %v5976, %v6064
    %6066 = vmatmul.bf16.gmra.mxu0 %v2473
    %v6067 = vpop.f32.mrf.mxu0
    %v6068 = vadd.f32 %v5979, %v6067
    %v6069 = vpop.f32.mrf.mxu0
    %v6070 = vadd.f32 %v5981, %v6069
    %6071 = vmatmul.bf16.gmra.mxu0 %v2477
    %v6072 = vpop.f32.mrf.mxu0
    %v6073 = vadd.f32 %v5984, %v6072
    %v6074 = vpop.f32.mrf.mxu0
    %v6075 = vadd.f32 %v5986, %v6074
    %6076 = vmatmul.bf16.gmra.mxu0 %v2481
    %v6077 = vpop.f32.mrf.mxu0
    %v6078 = vadd.f32 %v5989, %v6077
    %v6079 = vpop.f32.mrf.mxu0
    %v6080 = vadd.f32 %v5991, %v6079
    %6081 = vmatmul.bf16.gmra.mxu0 %v2485
    %v6082 = vpop.f32.mrf.mxu0
    %v6083 = vadd.f32 %v5994, %v6082
    %v6084 = vpop.f32.mrf.mxu0
    %v6085 = vadd.f32 %v5996, %v6084
    %6086 = vmatmul.bf16.gmra.mxu0 %v2489
    %v6087 = vpop.f32.mrf.mxu0
    %v6088 = vadd.f32 %v5999, %v6087
    %v6089 = vpop.f32.mrf.mxu0
    %v6090 = vadd.f32 %v6001, %v6089
    %6091 = vdwg.mxu0
    %6092 = vmatpush.bf16.msra.mxu0 %v3786
    %6093 = vmatpush.bf16.msra.mxu0 %v3778
    %6094 = vmatpush.bf16.msra.mxu0 %v3770
    %6095 = vmatpush.bf16.msra.mxu0 %v3762
    %6096 = vmatpush.bf16.msra.mxu0 %v3754
    %6097 = vmatpush.bf16.msra.mxu0 %v3746
    %6098 = vmatpush.bf16.msra.mxu0 %v3738
    %6099 = vmatpush.bf16.msra.mxu0 %v3730
    %6100 = vmatmul.bf16.gmra.mxu0 %v2430
    %v6101 = vpop.f32.mrf.mxu0
    %v6102 = vadd.f32 %v6013, %v6101
    %v6103 = vpop.f32.mrf.mxu0
    %v6104 = vadd.f32 %v6015, %v6103
    %6105 = vmatmul.bf16.gmra.mxu0 %v2434
    %v6106 = vpop.f32.mrf.mxu0
    %v6107 = vadd.f32 %v6018, %v6106
    %v6108 = vpop.f32.mrf.mxu0
    %v6109 = vadd.f32 %v6020, %v6108
    %6110 = vmatmul.bf16.gmra.mxu0 %v2438
    %v6111 = vpop.f32.mrf.mxu0
    %v6112 = vadd.f32 %v6023, %v6111
    %v6113 = vpop.f32.mrf.mxu0
    %v6114 = vadd.f32 %v6025, %v6113
    %6115 = vmatmul.bf16.gmra.mxu0 %v2442
    %v6116 = vpop.f32.mrf.mxu0
    %v6117 = vadd.f32 %v6028, %v6116
    %v6118 = vpop.f32.mrf.mxu0
    %v6119 = vadd.f32 %v6030, %v6118
    %6120 = vmatmul.bf16.gmra.mxu0 %v2446
    %v6121 = vpop.f32.mrf.mxu0
    %v6122 = vadd.f32 %v6033, %v6121
    %v6123 = vpop.f32.mrf.mxu0
    %v6124 = vadd.f32 %v6035, %v6123
    %6125 = vmatmul.bf16.gmra.mxu0 %v2450
    %v6126 = vpop.f32.mrf.mxu0
    %v6127 = vadd.f32 %v6038, %v6126
    %v6128 = vpop.f32.mrf.mxu0
    %v6129 = vadd.f32 %v6040, %v6128
    %6130 = vmatmul.bf16.gmra.mxu0 %v2454
    %v6131 = vpop.f32.mrf.mxu0
    %v6132 = vadd.f32 %v6043, %v6131
    %v6133 = vpop.f32.mrf.mxu0
    %v6134 = vadd.f32 %v6045, %v6133
    %6135 = vmatmul.bf16.gmra.mxu0 %v2458
    %v6136 = vpop.f32.mrf.mxu0
    %v6137 = vadd.f32 %v6048, %v6136
    %v6138 = vpop.f32.mrf.mxu0
    %v6139 = vadd.f32 %v6050, %v6138
    %6140 = vmatmul.bf16.gmra.mxu0 %v2462
    %v6141 = vpop.f32.mrf.mxu0
    %v6142 = vadd.f32 %v6053, %v6141
    %v6143 = vpop.f32.mrf.mxu0
    %v6144 = vadd.f32 %v6055, %v6143
    %6145 = vmatmul.bf16.gmra.mxu0 %v2466
    %v6146 = vpop.f32.mrf.mxu0
    %v6147 = vadd.f32 %v6058, %v6146
    %v6148 = vpop.f32.mrf.mxu0
    %v6149 = vadd.f32 %v6060, %v6148
    %6150 = vmatmul.bf16.gmra.mxu0 %v2470
    %v6151 = vpop.f32.mrf.mxu0
    %v6152 = vadd.f32 %v6063, %v6151
    %v6153 = vpop.f32.mrf.mxu0
    %v6154 = vadd.f32 %v6065, %v6153
    %6155 = vmatmul.bf16.gmra.mxu0 %v2474
    %v6156 = vpop.f32.mrf.mxu0
    %v6157 = vadd.f32 %v6068, %v6156
    %v6158 = vpop.f32.mrf.mxu0
    %v6159 = vadd.f32 %v6070, %v6158
    %6160 = vmatmul.bf16.gmra.mxu0 %v2478
    %v6161 = vpop.f32.mrf.mxu0
    %v6162 = vadd.f32 %v6073, %v6161
    %v6163 = vpop.f32.mrf.mxu0
    %v6164 = vadd.f32 %v6075, %v6163
    %6165 = vmatmul.bf16.gmra.mxu0 %v2482
    %v6166 = vpop.f32.mrf.mxu0
    %v6167 = vadd.f32 %v6078, %v6166
    %v6168 = vpop.f32.mrf.mxu0
    %v6169 = vadd.f32 %v6080, %v6168
    %6170 = vmatmul.bf16.gmra.mxu0 %v2486
    %v6171 = vpop.f32.mrf.mxu0
    %v6172 = vadd.f32 %v6083, %v6171
    %v6173 = vpop.f32.mrf.mxu0
    %v6174 = vadd.f32 %v6085, %v6173
    %6175 = vmatmul.bf16.gmra.mxu0 %v2490
    %v6176 = vpop.f32.mrf.mxu0
    %v6177 = vadd.f32 %v6088, %v6176
    %v6178 = vpop.f32.mrf.mxu0
    %v6179 = vadd.f32 %v6090, %v6178
    %6180 = vdwg.mxu0
    %6181 = vmatpush.bf16.msra.mxu0 %v3595
    %6182 = vmatpush.bf16.msra.mxu0 %v3587
    %6183 = vmatpush.bf16.msra.mxu0 %v3579
    %6184 = vmatpush.bf16.msra.mxu0 %v3571
    %6185 = vmatpush.bf16.msra.mxu0 %v3563
    %6186 = vmatpush.bf16.msra.mxu0 %v3555
    %6187 = vmatpush.bf16.msra.mxu0 %v3547
    %6188 = vmatpush.bf16.msra.mxu0 %v3539
    %6189 = vmatmul.bf16.gmra.mxu0 %v2427
    %v6190 = vpop.f32.mrf.mxu0
    %v6191 = vadd.f32 %v2755, %v6190
    %v6192 = vpop.f32.mrf.mxu0
    %v6193 = vadd.f32 %v2755, %v6192
    %6194 = vmatmul.bf16.gmra.mxu0 %v2431
    %v6195 = vpop.f32.mrf.mxu0
    %v6196 = vadd.f32 %v2755, %v6195
    %v6197 = vpop.f32.mrf.mxu0
    %v6198 = vadd.f32 %v2755, %v6197
    %6199 = vmatmul.bf16.gmra.mxu0 %v2435
    %v6200 = vpop.f32.mrf.mxu0
    %v6201 = vadd.f32 %v2755, %v6200
    %v6202 = vpop.f32.mrf.mxu0
    %v6203 = vadd.f32 %v2755, %v6202
    %6204 = vmatmul.bf16.gmra.mxu0 %v2439
    %v6205 = vpop.f32.mrf.mxu0
    %v6206 = vadd.f32 %v2755, %v6205
    %v6207 = vpop.f32.mrf.mxu0
    %v6208 = vadd.f32 %v2755, %v6207
    %6209 = vmatmul.bf16.gmra.mxu0 %v2443
    %v6210 = vpop.f32.mrf.mxu0
    %v6211 = vadd.f32 %v2755, %v6210
    %v6212 = vpop.f32.mrf.mxu0
    %v6213 = vadd.f32 %v2755, %v6212
    %6214 = vmatmul.bf16.gmra.mxu0 %v2447
    %v6215 = vpop.f32.mrf.mxu0
    %v6216 = vadd.f32 %v2755, %v6215
    %v6217 = vpop.f32.mrf.mxu0
    %v6218 = vadd.f32 %v2755, %v6217
    %6219 = vmatmul.bf16.gmra.mxu0 %v2451
    %v6220 = vpop.f32.mrf.mxu0
    %v6221 = vadd.f32 %v2755, %v6220
    %v6222 = vpop.f32.mrf.mxu0
    %v6223 = vadd.f32 %v2755, %v6222
    %6224 = vmatmul.bf16.gmra.mxu0 %v2455
    %v6225 = vpop.f32.mrf.mxu0
    %v6226 = vadd.f32 %v2755, %v6225
    %v6227 = vpop.f32.mrf.mxu0
    %v6228 = vadd.f32 %v2755, %v6227
    %6229 = vmatmul.bf16.gmra.mxu0 %v2459
    %v6230 = vpop.f32.mrf.mxu0
    %v6231 = vadd.f32 %v2755, %v6230
    %v6232 = vpop.f32.mrf.mxu0
    %v6233 = vadd.f32 %v2755, %v6232
    %6234 = vmatmul.bf16.gmra.mxu0 %v2463
    %v6235 = vpop.f32.mrf.mxu0
    %v6236 = vadd.f32 %v2755, %v6235
    %v6237 = vpop.f32.mrf.mxu0
    %v6238 = vadd.f32 %v2755, %v6237
    %6239 = vmatmul.bf16.gmra.mxu0 %v2467
    %v6240 = vpop.f32.mrf.mxu0
    %v6241 = vadd.f32 %v2755, %v6240
    %v6242 = vpop.f32.mrf.mxu0
    %v6243 = vadd.f32 %v2755, %v6242
    %6244 = vmatmul.bf16.gmra.mxu0 %v2471
    %v6245 = vpop.f32.mrf.mxu0
    %v6246 = vadd.f32 %v2755, %v6245
    %v6247 = vpop.f32.mrf.mxu0
    %v6248 = vadd.f32 %v2755, %v6247
    %6249 = vmatmul.bf16.gmra.mxu0 %v2475
    %v6250 = vpop.f32.mrf.mxu0
    %v6251 = vadd.f32 %v2755, %v6250
    %v6252 = vpop.f32.mrf.mxu0
    %v6253 = vadd.f32 %v2755, %v6252
    %6254 = vmatmul.bf16.gmra.mxu0 %v2479
    %v6255 = vpop.f32.mrf.mxu0
    %v6256 = vadd.f32 %v2755, %v6255
    %v6257 = vpop.f32.mrf.mxu0
    %v6258 = vadd.f32 %v2755, %v6257
    %6259 = vmatmul.bf16.gmra.mxu0 %v2483
    %v6260 = vpop.f32.mrf.mxu0
    %v6261 = vadd.f32 %v2755, %v6260
    %v6262 = vpop.f32.mrf.mxu0
    %v6263 = vadd.f32 %v2755, %v6262
    %6264 = vmatmul.bf16.gmra.mxu0 %v2487
    %v6265 = vpop.f32.mrf.mxu0
    %v6266 = vadd.f32 %v2755, %v6265
    %v6267 = vpop.f32.mrf.mxu0
    %v6268 = vadd.f32 %v2755, %v6267
    %6269 = vdwg.mxu0
    %6270 = vmatpush.bf16.msra.mxu0 %v3659
    %6271 = vmatpush.bf16.msra.mxu0 %v3651
    %6272 = vmatpush.bf16.msra.mxu0 %v3643
    %6273 = vmatpush.bf16.msra.mxu0 %v3635
    %6274 = vmatpush.bf16.msra.mxu0 %v3627
    %6275 = vmatpush.bf16.msra.mxu0 %v3619
    %6276 = vmatpush.bf16.msra.mxu0 %v3611
    %6277 = vmatpush.bf16.msra.mxu0 %v3603
    %6278 = vmatmul.bf16.gmra.mxu0 %v2428
    %v6279 = vpop.f32.mrf.mxu0
    %v6280 = vadd.f32 %v6191, %v6279
    %v6281 = vpop.f32.mrf.mxu0
    %v6282 = vadd.f32 %v6193, %v6281
    %6283 = vmatmul.bf16.gmra.mxu0 %v2432
    %v6284 = vpop.f32.mrf.mxu0
    %v6285 = vadd.f32 %v6196, %v6284
    %v6286 = vpop.f32.mrf.mxu0
    %v6287 = vadd.f32 %v6198, %v6286
    %6288 = vmatmul.bf16.gmra.mxu0 %v2436
    %v6289 = vpop.f32.mrf.mxu0
    %v6290 = vadd.f32 %v6201, %v6289
    %v6291 = vpop.f32.mrf.mxu0
    %v6292 = vadd.f32 %v6203, %v6291
    %6293 = vmatmul.bf16.gmra.mxu0 %v2440
    %v6294 = vpop.f32.mrf.mxu0
    %v6295 = vadd.f32 %v6206, %v6294
    %v6296 = vpop.f32.mrf.mxu0
    %v6297 = vadd.f32 %v6208, %v6296
    %6298 = vmatmul.bf16.gmra.mxu0 %v2444
    %v6299 = vpop.f32.mrf.mxu0
    %v6300 = vadd.f32 %v6211, %v6299
    %v6301 = vpop.f32.mrf.mxu0
    %v6302 = vadd.f32 %v6213, %v6301
    %6303 = vmatmul.bf16.gmra.mxu0 %v2448
    %v6304 = vpop.f32.mrf.mxu0
    %v6305 = vadd.f32 %v6216, %v6304
    %v6306 = vpop.f32.mrf.mxu0
    %v6307 = vadd.f32 %v6218, %v6306
    %6308 = vmatmul.bf16.gmra.mxu0 %v2452
    %v6309 = vpop.f32.mrf.mxu0
    %v6310 = vadd.f32 %v6221, %v6309
    %v6311 = vpop.f32.mrf.mxu0
    %v6312 = vadd.f32 %v6223, %v6311
    %6313 = vmatmul.bf16.gmra.mxu0 %v2456
    %v6314 = vpop.f32.mrf.mxu0
    %v6315 = vadd.f32 %v6226, %v6314
    %v6316 = vpop.f32.mrf.mxu0
    %v6317 = vadd.f32 %v6228, %v6316
    %6318 = vmatmul.bf16.gmra.mxu0 %v2460
    %v6319 = vpop.f32.mrf.mxu0
    %v6320 = vadd.f32 %v6231, %v6319
    %v6321 = vpop.f32.mrf.mxu0
    %v6322 = vadd.f32 %v6233, %v6321
    %6323 = vmatmul.bf16.gmra.mxu0 %v2464
    %v6324 = vpop.f32.mrf.mxu0
    %v6325 = vadd.f32 %v6236, %v6324
    %v6326 = vpop.f32.mrf.mxu0
    %v6327 = vadd.f32 %v6238, %v6326
    %6328 = vmatmul.bf16.gmra.mxu0 %v2468
    %v6329 = vpop.f32.mrf.mxu0
    %v6330 = vadd.f32 %v6241, %v6329
    %v6331 = vpop.f32.mrf.mxu0
    %v6332 = vadd.f32 %v6243, %v6331
    %6333 = vmatmul.bf16.gmra.mxu0 %v2472
    %v6334 = vpop.f32.mrf.mxu0
    %v6335 = vadd.f32 %v6246, %v6334
    %v6336 = vpop.f32.mrf.mxu0
    %v6337 = vadd.f32 %v6248, %v6336
    %6338 = vmatmul.bf16.gmra.mxu0 %v2476
    %v6339 = vpop.f32.mrf.mxu0
    %v6340 = vadd.f32 %v6251, %v6339
    %v6341 = vpop.f32.mrf.mxu0
    %v6342 = vadd.f32 %v6253, %v6341
    %6343 = vmatmul.bf16.gmra.mxu0 %v2480
    %v6344 = vpop.f32.mrf.mxu0
    %v6345 = vadd.f32 %v6256, %v6344
    %v6346 = vpop.f32.mrf.mxu0
    %v6347 = vadd.f32 %v6258, %v6346
    %6348 = vmatmul.bf16.gmra.mxu0 %v2484
    %v6349 = vpop.f32.mrf.mxu0
    %v6350 = vadd.f32 %v6261, %v6349
    %v6351 = vpop.f32.mrf.mxu0
    %v6352 = vadd.f32 %v6263, %v6351
    %6353 = vmatmul.bf16.gmra.mxu0 %v2488
    %v6354 = vpop.f32.mrf.mxu0
    %v6355 = vadd.f32 %v6266, %v6354
    %v6356 = vpop.f32.mrf.mxu0
    %v6357 = vadd.f32 %v6268, %v6356
    %6358 = vdwg.mxu0
    %6359 = vmatpush.bf16.msra.mxu0 %v3723
    %6360 = vmatpush.bf16.msra.mxu0 %v3715
    %6361 = vmatpush.bf16.msra.mxu0 %v3707
    %6362 = vmatpush.bf16.msra.mxu0 %v3699
    %6363 = vmatpush.bf16.msra.mxu0 %v3691
    %6364 = vmatpush.bf16.msra.mxu0 %v3683
    %6365 = vmatpush.bf16.msra.mxu0 %v3675
    %6366 = vmatpush.bf16.msra.mxu0 %v3667
    %6367 = vmatmul.bf16.gmra.mxu0 %v2429
    %v6368 = vpop.f32.mrf.mxu0
    %v6369 = vadd.f32 %v6280, %v6368
    %v6370 = vpop.f32.mrf.mxu0
    %v6371 = vadd.f32 %v6282, %v6370
    %6372 = vmatmul.bf16.gmra.mxu0 %v2433
    %v6373 = vpop.f32.mrf.mxu0
    %v6374 = vadd.f32 %v6285, %v6373
    %v6375 = vpop.f32.mrf.mxu0
    %v6376 = vadd.f32 %v6287, %v6375
    %6377 = vmatmul.bf16.gmra.mxu0 %v2437
    %v6378 = vpop.f32.mrf.mxu0
    %v6379 = vadd.f32 %v6290, %v6378
    %v6380 = vpop.f32.mrf.mxu0
    %v6381 = vadd.f32 %v6292, %v6380
    %6382 = vmatmul.bf16.gmra.mxu0 %v2441
    %v6383 = vpop.f32.mrf.mxu0
    %v6384 = vadd.f32 %v6295, %v6383
    %v6385 = vpop.f32.mrf.mxu0
    %v6386 = vadd.f32 %v6297, %v6385
    %6387 = vmatmul.bf16.gmra.mxu0 %v2445
    %v6388 = vpop.f32.mrf.mxu0
    %v6389 = vadd.f32 %v6300, %v6388
    %v6390 = vpop.f32.mrf.mxu0
    %v6391 = vadd.f32 %v6302, %v6390
    %6392 = vmatmul.bf16.gmra.mxu0 %v2449
    %v6393 = vpop.f32.mrf.mxu0
    %v6394 = vadd.f32 %v6305, %v6393
    %v6395 = vpop.f32.mrf.mxu0
    %v6396 = vadd.f32 %v6307, %v6395
    %6397 = vmatmul.bf16.gmra.mxu0 %v2453
    %v6398 = vpop.f32.mrf.mxu0
    %v6399 = vadd.f32 %v6310, %v6398
    %v6400 = vpop.f32.mrf.mxu0
    %v6401 = vadd.f32 %v6312, %v6400
    %6402 = vmatmul.bf16.gmra.mxu0 %v2457
    %v6403 = vpop.f32.mrf.mxu0
    %v6404 = vadd.f32 %v6315, %v6403
    %v6405 = vpop.f32.mrf.mxu0
    %v6406 = vadd.f32 %v6317, %v6405
    %6407 = vmatmul.bf16.gmra.mxu0 %v2461
    %v6408 = vpop.f32.mrf.mxu0
    %v6409 = vadd.f32 %v6320, %v6408
    %v6410 = vpop.f32.mrf.mxu0
    %v6411 = vadd.f32 %v6322, %v6410
    %6412 = vmatmul.bf16.gmra.mxu0 %v2465
    %v6413 = vpop.f32.mrf.mxu0
    %v6414 = vadd.f32 %v6325, %v6413
    %v6415 = vpop.f32.mrf.mxu0
    %v6416 = vadd.f32 %v6327, %v6415
    %6417 = vmatmul.bf16.gmra.mxu0 %v2469
    %v6418 = vpop.f32.mrf.mxu0
    %v6419 = vadd.f32 %v6330, %v6418
    %v6420 = vpop.f32.mrf.mxu0
    %v6421 = vadd.f32 %v6332, %v6420
    %6422 = vmatmul.bf16.gmra.mxu0 %v2473
    %v6423 = vpop.f32.mrf.mxu0
    %v6424 = vadd.f32 %v6335, %v6423
    %v6425 = vpop.f32.mrf.mxu0
    %v6426 = vadd.f32 %v6337, %v6425
    %6427 = vmatmul.bf16.gmra.mxu0 %v2477
    %v6428 = vpop.f32.mrf.mxu0
    %v6429 = vadd.f32 %v6340, %v6428
    %v6430 = vpop.f32.mrf.mxu0
    %v6431 = vadd.f32 %v6342, %v6430
    %6432 = vmatmul.bf16.gmra.mxu0 %v2481
    %v6433 = vpop.f32.mrf.mxu0
    %v6434 = vadd.f32 %v6345, %v6433
    %v6435 = vpop.f32.mrf.mxu0
    %v6436 = vadd.f32 %v6347, %v6435
    %6437 = vmatmul.bf16.gmra.mxu0 %v2485
    %v6438 = vpop.f32.mrf.mxu0
    %v6439 = vadd.f32 %v6350, %v6438
    %v6440 = vpop.f32.mrf.mxu0
    %v6441 = vadd.f32 %v6352, %v6440
    %6442 = vmatmul.bf16.gmra.mxu0 %v2489
    %v6443 = vpop.f32.mrf.mxu0
    %v6444 = vadd.f32 %v6355, %v6443
    %v6445 = vpop.f32.mrf.mxu0
    %v6446 = vadd.f32 %v6357, %v6445
    %6447 = vdwg.mxu0
    %6448 = vmatpush.bf16.msra.mxu0 %v3787
    %6449 = vmatpush.bf16.msra.mxu0 %v3779
    %6450 = vmatpush.bf16.msra.mxu0 %v3771
    %6451 = vmatpush.bf16.msra.mxu0 %v3763
    %6452 = vmatpush.bf16.msra.mxu0 %v3755
    %6453 = vmatpush.bf16.msra.mxu0 %v3747
    %6454 = vmatpush.bf16.msra.mxu0 %v3739
    %6455 = vmatpush.bf16.msra.mxu0 %v3731
    %6456 = vmatmul.bf16.gmra.mxu0 %v2430
    %v6457 = vpop.f32.mrf.mxu0
    %v6458 = vadd.f32 %v6369, %v6457
    %v6459 = vpop.f32.mrf.mxu0
    %v6460 = vadd.f32 %v6371, %v6459
    %6461 = vmatmul.bf16.gmra.mxu0 %v2434
    %v6462 = vpop.f32.mrf.mxu0
    %v6463 = vadd.f32 %v6374, %v6462
    %v6464 = vpop.f32.mrf.mxu0
    %v6465 = vadd.f32 %v6376, %v6464
    %6466 = vmatmul.bf16.gmra.mxu0 %v2438
    %v6467 = vpop.f32.mrf.mxu0
    %v6468 = vadd.f32 %v6379, %v6467
    %v6469 = vpop.f32.mrf.mxu0
    %v6470 = vadd.f32 %v6381, %v6469
    %6471 = vmatmul.bf16.gmra.mxu0 %v2442
    %v6472 = vpop.f32.mrf.mxu0
    %v6473 = vadd.f32 %v6384, %v6472
    %v6474 = vpop.f32.mrf.mxu0
    %v6475 = vadd.f32 %v6386, %v6474
    %6476 = vmatmul.bf16.gmra.mxu0 %v2446
    %v6477 = vpop.f32.mrf.mxu0
    %v6478 = vadd.f32 %v6389, %v6477
    %v6479 = vpop.f32.mrf.mxu0
    %v6480 = vadd.f32 %v6391, %v6479
    %6481 = vmatmul.bf16.gmra.mxu0 %v2450
    %v6482 = vpop.f32.mrf.mxu0
    %v6483 = vadd.f32 %v6394, %v6482
    %v6484 = vpop.f32.mrf.mxu0
    %v6485 = vadd.f32 %v6396, %v6484
    %6486 = vmatmul.bf16.gmra.mxu0 %v2454
    %v6487 = vpop.f32.mrf.mxu0
    %v6488 = vadd.f32 %v6399, %v6487
    %v6489 = vpop.f32.mrf.mxu0
    %v6490 = vadd.f32 %v6401, %v6489
    %6491 = vmatmul.bf16.gmra.mxu0 %v2458
    %v6492 = vpop.f32.mrf.mxu0
    %v6493 = vadd.f32 %v6404, %v6492
    %v6494 = vpop.f32.mrf.mxu0
    %v6495 = vadd.f32 %v6406, %v6494
    %6496 = vmatmul.bf16.gmra.mxu0 %v2462
    %v6497 = vpop.f32.mrf.mxu0
    %v6498 = vadd.f32 %v6409, %v6497
    %v6499 = vpop.f32.mrf.mxu0
    %v6500 = vadd.f32 %v6411, %v6499
    %6501 = vmatmul.bf16.gmra.mxu0 %v2466
    %v6502 = vpop.f32.mrf.mxu0
    %v6503 = vadd.f32 %v6414, %v6502
    %v6504 = vpop.f32.mrf.mxu0
    %v6505 = vadd.f32 %v6416, %v6504
    %6506 = vmatmul.bf16.gmra.mxu0 %v2470
    %v6507 = vpop.f32.mrf.mxu0
    %v6508 = vadd.f32 %v6419, %v6507
    %v6509 = vpop.f32.mrf.mxu0
    %v6510 = vadd.f32 %v6421, %v6509
    %6511 = vmatmul.bf16.gmra.mxu0 %v2474
    %v6512 = vpop.f32.mrf.mxu0
    %v6513 = vadd.f32 %v6424, %v6512
    %v6514 = vpop.f32.mrf.mxu0
    %v6515 = vadd.f32 %v6426, %v6514
    %6516 = vmatmul.bf16.gmra.mxu0 %v2478
    %v6517 = vpop.f32.mrf.mxu0
    %v6518 = vadd.f32 %v6429, %v6517
    %v6519 = vpop.f32.mrf.mxu0
    %v6520 = vadd.f32 %v6431, %v6519
    %6521 = vmatmul.bf16.gmra.mxu0 %v2482
    %v6522 = vpop.f32.mrf.mxu0
    %v6523 = vadd.f32 %v6434, %v6522
    %v6524 = vpop.f32.mrf.mxu0
    %v6525 = vadd.f32 %v6436, %v6524
    %6526 = vmatmul.bf16.gmra.mxu0 %v2486
    %v6527 = vpop.f32.mrf.mxu0
    %v6528 = vadd.f32 %v6439, %v6527
    %v6529 = vpop.f32.mrf.mxu0
    %v6530 = vadd.f32 %v6441, %v6529
    %6531 = vmatmul.bf16.gmra.mxu0 %v2490
    %v6532 = vpop.f32.mrf.mxu0
    %v6533 = vadd.f32 %v6444, %v6532
    %v6534 = vpop.f32.mrf.mxu0
    %v6535 = vadd.f32 %v6446, %v6534
    %6536 = vdwg.mxu0
    %6537 = vmatpush.bf16.msra.mxu0 %v3596
    %6538 = vmatpush.bf16.msra.mxu0 %v3588
    %6539 = vmatpush.bf16.msra.mxu0 %v3580
    %6540 = vmatpush.bf16.msra.mxu0 %v3572
    %6541 = vmatpush.bf16.msra.mxu0 %v3564
    %6542 = vmatpush.bf16.msra.mxu0 %v3556
    %6543 = vmatpush.bf16.msra.mxu0 %v3548
    %6544 = vmatpush.bf16.msra.mxu0 %v3540
    %6545 = vmatmul.bf16.gmra.mxu0 %v2427
    %v6546 = vpop.f32.mrf.mxu0
    %v6547 = vadd.f32 %v2756, %v6546
    %v6548 = vpop.f32.mrf.mxu0
    %v6549 = vadd.f32 %v2756, %v6548
    %6550 = vmatmul.bf16.gmra.mxu0 %v2431
    %v6551 = vpop.f32.mrf.mxu0
    %v6552 = vadd.f32 %v2756, %v6551
    %v6553 = vpop.f32.mrf.mxu0
    %v6554 = vadd.f32 %v2756, %v6553
    %6555 = vmatmul.bf16.gmra.mxu0 %v2435
    %v6556 = vpop.f32.mrf.mxu0
    %v6557 = vadd.f32 %v2756, %v6556
    %v6558 = vpop.f32.mrf.mxu0
    %v6559 = vadd.f32 %v2756, %v6558
    %6560 = vmatmul.bf16.gmra.mxu0 %v2439
    %v6561 = vpop.f32.mrf.mxu0
    %v6562 = vadd.f32 %v2756, %v6561
    %v6563 = vpop.f32.mrf.mxu0
    %v6564 = vadd.f32 %v2756, %v6563
    %6565 = vmatmul.bf16.gmra.mxu0 %v2443
    %v6566 = vpop.f32.mrf.mxu0
    %v6567 = vadd.f32 %v2756, %v6566
    %v6568 = vpop.f32.mrf.mxu0
    %v6569 = vadd.f32 %v2756, %v6568
    %6570 = vmatmul.bf16.gmra.mxu0 %v2447
    %v6571 = vpop.f32.mrf.mxu0
    %v6572 = vadd.f32 %v2756, %v6571
    %v6573 = vpop.f32.mrf.mxu0
    %v6574 = vadd.f32 %v2756, %v6573
    %6575 = vmatmul.bf16.gmra.mxu0 %v2451
    %v6576 = vpop.f32.mrf.mxu0
    %v6577 = vadd.f32 %v2756, %v6576
    %v6578 = vpop.f32.mrf.mxu0
    %v6579 = vadd.f32 %v2756, %v6578
    %6580 = vmatmul.bf16.gmra.mxu0 %v2455
    %v6581 = vpop.f32.mrf.mxu0
    %v6582 = vadd.f32 %v2756, %v6581
    %v6583 = vpop.f32.mrf.mxu0
    %v6584 = vadd.f32 %v2756, %v6583
    %6585 = vmatmul.bf16.gmra.mxu0 %v2459
    %v6586 = vpop.f32.mrf.mxu0
    %v6587 = vadd.f32 %v2756, %v6586
    %v6588 = vpop.f32.mrf.mxu0
    %v6589 = vadd.f32 %v2756, %v6588
    %6590 = vmatmul.bf16.gmra.mxu0 %v2463
    %v6591 = vpop.f32.mrf.mxu0
    %v6592 = vadd.f32 %v2756, %v6591
    %v6593 = vpop.f32.mrf.mxu0
    %v6594 = vadd.f32 %v2756, %v6593
    %6595 = vmatmul.bf16.gmra.mxu0 %v2467
    %v6596 = vpop.f32.mrf.mxu0
    %v6597 = vadd.f32 %v2756, %v6596
    %v6598 = vpop.f32.mrf.mxu0
    %v6599 = vadd.f32 %v2756, %v6598
    %6600 = vmatmul.bf16.gmra.mxu0 %v2471
    %v6601 = vpop.f32.mrf.mxu0
    %v6602 = vadd.f32 %v2756, %v6601
    %v6603 = vpop.f32.mrf.mxu0
    %v6604 = vadd.f32 %v2756, %v6603
    %6605 = vmatmul.bf16.gmra.mxu0 %v2475
    %v6606 = vpop.f32.mrf.mxu0
    %v6607 = vadd.f32 %v2756, %v6606
    %v6608 = vpop.f32.mrf.mxu0
    %v6609 = vadd.f32 %v2756, %v6608
    %6610 = vmatmul.bf16.gmra.mxu0 %v2479
    %v6611 = vpop.f32.mrf.mxu0
    %v6612 = vadd.f32 %v2756, %v6611
    %v6613 = vpop.f32.mrf.mxu0
    %v6614 = vadd.f32 %v2756, %v6613
    %6615 = vmatmul.bf16.gmra.mxu0 %v2483
    %v6616 = vpop.f32.mrf.mxu0
    %v6617 = vadd.f32 %v2756, %v6616
    %v6618 = vpop.f32.mrf.mxu0
    %v6619 = vadd.f32 %v2756, %v6618
    %6620 = vmatmul.bf16.gmra.mxu0 %v2487
    %v6621 = vpop.f32.mrf.mxu0
    %v6622 = vadd.f32 %v2756, %v6621
    %v6623 = vpop.f32.mrf.mxu0
    %v6624 = vadd.f32 %v2756, %v6623
    %6625 = vdwg.mxu0
    %6626 = vmatpush.bf16.msra.mxu0 %v3660
    %6627 = vmatpush.bf16.msra.mxu0 %v3652
    %6628 = vmatpush.bf16.msra.mxu0 %v3644
    %6629 = vmatpush.bf16.msra.mxu0 %v3636
    %6630 = vmatpush.bf16.msra.mxu0 %v3628
    %6631 = vmatpush.bf16.msra.mxu0 %v3620
    %6632 = vmatpush.bf16.msra.mxu0 %v3612
    %6633 = vmatpush.bf16.msra.mxu0 %v3604
    %6634 = vmatmul.bf16.gmra.mxu0 %v2428
    %v6635 = vpop.f32.mrf.mxu0
    %v6636 = vadd.f32 %v6547, %v6635
    %v6637 = vpop.f32.mrf.mxu0
    %v6638 = vadd.f32 %v6549, %v6637
    %6639 = vmatmul.bf16.gmra.mxu0 %v2432
    %v6640 = vpop.f32.mrf.mxu0
    %v6641 = vadd.f32 %v6552, %v6640
    %v6642 = vpop.f32.mrf.mxu0
    %v6643 = vadd.f32 %v6554, %v6642
    %6644 = vmatmul.bf16.gmra.mxu0 %v2436
    %v6645 = vpop.f32.mrf.mxu0
    %v6646 = vadd.f32 %v6557, %v6645
    %v6647 = vpop.f32.mrf.mxu0
    %v6648 = vadd.f32 %v6559, %v6647
    %6649 = vmatmul.bf16.gmra.mxu0 %v2440
    %v6650 = vpop.f32.mrf.mxu0
    %v6651 = vadd.f32 %v6562, %v6650
    %v6652 = vpop.f32.mrf.mxu0
    %v6653 = vadd.f32 %v6564, %v6652
    %6654 = vmatmul.bf16.gmra.mxu0 %v2444
    %v6655 = vpop.f32.mrf.mxu0
    %v6656 = vadd.f32 %v6567, %v6655
    %v6657 = vpop.f32.mrf.mxu0
    %v6658 = vadd.f32 %v6569, %v6657
    %6659 = vmatmul.bf16.gmra.mxu0 %v2448
    %v6660 = vpop.f32.mrf.mxu0
    %v6661 = vadd.f32 %v6572, %v6660
    %v6662 = vpop.f32.mrf.mxu0
    %v6663 = vadd.f32 %v6574, %v6662
    %6664 = vmatmul.bf16.gmra.mxu0 %v2452
    %v6665 = vpop.f32.mrf.mxu0
    %v6666 = vadd.f32 %v6577, %v6665
    %v6667 = vpop.f32.mrf.mxu0
    %v6668 = vadd.f32 %v6579, %v6667
    %6669 = vmatmul.bf16.gmra.mxu0 %v2456
    %v6670 = vpop.f32.mrf.mxu0
    %v6671 = vadd.f32 %v6582, %v6670
    %v6672 = vpop.f32.mrf.mxu0
    %v6673 = vadd.f32 %v6584, %v6672
    %6674 = vmatmul.bf16.gmra.mxu0 %v2460
    %v6675 = vpop.f32.mrf.mxu0
    %v6676 = vadd.f32 %v6587, %v6675
    %v6677 = vpop.f32.mrf.mxu0
    %v6678 = vadd.f32 %v6589, %v6677
    %6679 = vmatmul.bf16.gmra.mxu0 %v2464
    %v6680 = vpop.f32.mrf.mxu0
    %v6681 = vadd.f32 %v6592, %v6680
    %v6682 = vpop.f32.mrf.mxu0
    %v6683 = vadd.f32 %v6594, %v6682
    %6684 = vmatmul.bf16.gmra.mxu0 %v2468
    %v6685 = vpop.f32.mrf.mxu0
    %v6686 = vadd.f32 %v6597, %v6685
    %v6687 = vpop.f32.mrf.mxu0
    %v6688 = vadd.f32 %v6599, %v6687
    %6689 = vmatmul.bf16.gmra.mxu0 %v2472
    %v6690 = vpop.f32.mrf.mxu0
    %v6691 = vadd.f32 %v6602, %v6690
    %v6692 = vpop.f32.mrf.mxu0
    %v6693 = vadd.f32 %v6604, %v6692
    %6694 = vmatmul.bf16.gmra.mxu0 %v2476
    %v6695 = vpop.f32.mrf.mxu0
    %v6696 = vadd.f32 %v6607, %v6695
    %v6697 = vpop.f32.mrf.mxu0
    %v6698 = vadd.f32 %v6609, %v6697
    %6699 = vmatmul.bf16.gmra.mxu0 %v2480
    %v6700 = vpop.f32.mrf.mxu0
    %v6701 = vadd.f32 %v6612, %v6700
    %v6702 = vpop.f32.mrf.mxu0
    %v6703 = vadd.f32 %v6614, %v6702
    %6704 = vmatmul.bf16.gmra.mxu0 %v2484
    %v6705 = vpop.f32.mrf.mxu0
    %v6706 = vadd.f32 %v6617, %v6705
    %v6707 = vpop.f32.mrf.mxu0
    %v6708 = vadd.f32 %v6619, %v6707
    %6709 = vmatmul.bf16.gmra.mxu0 %v2488
    %v6710 = vpop.f32.mrf.mxu0
    %v6711 = vadd.f32 %v6622, %v6710
    %v6712 = vpop.f32.mrf.mxu0
    %v6713 = vadd.f32 %v6624, %v6712
    %6714 = vdwg.mxu0
    %6715 = vmatpush.bf16.msra.mxu0 %v3724
    %6716 = vmatpush.bf16.msra.mxu0 %v3716
    %6717 = vmatpush.bf16.msra.mxu0 %v3708
    %6718 = vmatpush.bf16.msra.mxu0 %v3700
    %6719 = vmatpush.bf16.msra.mxu0 %v3692
    %6720 = vmatpush.bf16.msra.mxu0 %v3684
    %6721 = vmatpush.bf16.msra.mxu0 %v3676
    %6722 = vmatpush.bf16.msra.mxu0 %v3668
    %6723 = vmatmul.bf16.gmra.mxu0 %v2429
    %v6724 = vpop.f32.mrf.mxu0
    %v6725 = vadd.f32 %v6636, %v6724
    %v6726 = vpop.f32.mrf.mxu0
    %v6727 = vadd.f32 %v6638, %v6726
    %6728 = vmatmul.bf16.gmra.mxu0 %v2433
    %v6729 = vpop.f32.mrf.mxu0
    %v6730 = vadd.f32 %v6641, %v6729
    %v6731 = vpop.f32.mrf.mxu0
    %v6732 = vadd.f32 %v6643, %v6731
    %6733 = vmatmul.bf16.gmra.mxu0 %v2437
    %v6734 = vpop.f32.mrf.mxu0
    %v6735 = vadd.f32 %v6646, %v6734
    %v6736 = vpop.f32.mrf.mxu0
    %v6737 = vadd.f32 %v6648, %v6736
    %6738 = vmatmul.bf16.gmra.mxu0 %v2441
    %v6739 = vpop.f32.mrf.mxu0
    %v6740 = vadd.f32 %v6651, %v6739
    %v6741 = vpop.f32.mrf.mxu0
    %v6742 = vadd.f32 %v6653, %v6741
    %6743 = vmatmul.bf16.gmra.mxu0 %v2445
    %v6744 = vpop.f32.mrf.mxu0
    %v6745 = vadd.f32 %v6656, %v6744
    %v6746 = vpop.f32.mrf.mxu0
    %v6747 = vadd.f32 %v6658, %v6746
    %6748 = vmatmul.bf16.gmra.mxu0 %v2449
    %v6749 = vpop.f32.mrf.mxu0
    %v6750 = vadd.f32 %v6661, %v6749
    %v6751 = vpop.f32.mrf.mxu0
    %v6752 = vadd.f32 %v6663, %v6751
    %6753 = vmatmul.bf16.gmra.mxu0 %v2453
    %v6754 = vpop.f32.mrf.mxu0
    %v6755 = vadd.f32 %v6666, %v6754
    %v6756 = vpop.f32.mrf.mxu0
    %v6757 = vadd.f32 %v6668, %v6756
    %6758 = vmatmul.bf16.gmra.mxu0 %v2457
    %v6759 = vpop.f32.mrf.mxu0
    %v6760 = vadd.f32 %v6671, %v6759
    %v6761 = vpop.f32.mrf.mxu0
    %v6762 = vadd.f32 %v6673, %v6761
    %6763 = vmatmul.bf16.gmra.mxu0 %v2461
    %v6764 = vpop.f32.mrf.mxu0
    %v6765 = vadd.f32 %v6676, %v6764
    %v6766 = vpop.f32.mrf.mxu0
    %v6767 = vadd.f32 %v6678, %v6766
    %6768 = vmatmul.bf16.gmra.mxu0 %v2465
    %v6769 = vpop.f32.mrf.mxu0
    %v6770 = vadd.f32 %v6681, %v6769
    %v6771 = vpop.f32.mrf.mxu0
    %v6772 = vadd.f32 %v6683, %v6771
    %6773 = vmatmul.bf16.gmra.mxu0 %v2469
    %v6774 = vpop.f32.mrf.mxu0
    %v6775 = vadd.f32 %v6686, %v6774
    %v6776 = vpop.f32.mrf.mxu0
    %v6777 = vadd.f32 %v6688, %v6776
    %6778 = vmatmul.bf16.gmra.mxu0 %v2473
    %v6779 = vpop.f32.mrf.mxu0
    %v6780 = vadd.f32 %v6691, %v6779
    %v6781 = vpop.f32.mrf.mxu0
    %v6782 = vadd.f32 %v6693, %v6781
    %6783 = vmatmul.bf16.gmra.mxu0 %v2477
    %v6784 = vpop.f32.mrf.mxu0
    %v6785 = vadd.f32 %v6696, %v6784
    %v6786 = vpop.f32.mrf.mxu0
    %v6787 = vadd.f32 %v6698, %v6786
    %6788 = vmatmul.bf16.gmra.mxu0 %v2481
    %v6789 = vpop.f32.mrf.mxu0
    %v6790 = vadd.f32 %v6701, %v6789
    %v6791 = vpop.f32.mrf.mxu0
    %v6792 = vadd.f32 %v6703, %v6791
    %6793 = vmatmul.bf16.gmra.mxu0 %v2485
    %v6794 = vpop.f32.mrf.mxu0
    %v6795 = vadd.f32 %v6706, %v6794
    %v6796 = vpop.f32.mrf.mxu0
    %v6797 = vadd.f32 %v6708, %v6796
    %6798 = vmatmul.bf16.gmra.mxu0 %v2489
    %v6799 = vpop.f32.mrf.mxu0
    %v6800 = vadd.f32 %v6711, %v6799
    %v6801 = vpop.f32.mrf.mxu0
    %v6802 = vadd.f32 %v6713, %v6801
    %6803 = vdwg.mxu0
    %6804 = vmatpush.bf16.msra.mxu0 %v3788
    %6805 = vmatpush.bf16.msra.mxu0 %v3780
    %6806 = vmatpush.bf16.msra.mxu0 %v3772
    %6807 = vmatpush.bf16.msra.mxu0 %v3764
    %6808 = vmatpush.bf16.msra.mxu0 %v3756
    %6809 = vmatpush.bf16.msra.mxu0 %v3748
    %6810 = vmatpush.bf16.msra.mxu0 %v3740
    %6811 = vmatpush.bf16.msra.mxu0 %v3732
    %6812 = vmatmul.bf16.gmra.mxu0 %v2430
    %v6813 = vpop.f32.mrf.mxu0
    %v6814 = vadd.f32 %v6725, %v6813
    %v6815 = vpop.f32.mrf.mxu0
    %v6816 = vadd.f32 %v6727, %v6815
    %6817 = vmatmul.bf16.gmra.mxu0 %v2434
    %v6818 = vpop.f32.mrf.mxu0
    %v6819 = vadd.f32 %v6730, %v6818
    %v6820 = vpop.f32.mrf.mxu0
    %v6821 = vadd.f32 %v6732, %v6820
    %6822 = vmatmul.bf16.gmra.mxu0 %v2438
    %v6823 = vpop.f32.mrf.mxu0
    %v6824 = vadd.f32 %v6735, %v6823
    %v6825 = vpop.f32.mrf.mxu0
    %v6826 = vadd.f32 %v6737, %v6825
    %6827 = vmatmul.bf16.gmra.mxu0 %v2442
    %v6828 = vpop.f32.mrf.mxu0
    %v6829 = vadd.f32 %v6740, %v6828
    %v6830 = vpop.f32.mrf.mxu0
    %v6831 = vadd.f32 %v6742, %v6830
    %6832 = vmatmul.bf16.gmra.mxu0 %v2446
    %v6833 = vpop.f32.mrf.mxu0
    %v6834 = vadd.f32 %v6745, %v6833
    %v6835 = vpop.f32.mrf.mxu0
    %v6836 = vadd.f32 %v6747, %v6835
    %6837 = vmatmul.bf16.gmra.mxu0 %v2450
    %v6838 = vpop.f32.mrf.mxu0
    %v6839 = vadd.f32 %v6750, %v6838
    %v6840 = vpop.f32.mrf.mxu0
    %v6841 = vadd.f32 %v6752, %v6840
    %6842 = vmatmul.bf16.gmra.mxu0 %v2454
    %v6843 = vpop.f32.mrf.mxu0
    %v6844 = vadd.f32 %v6755, %v6843
    %v6845 = vpop.f32.mrf.mxu0
    %v6846 = vadd.f32 %v6757, %v6845
    %6847 = vmatmul.bf16.gmra.mxu0 %v2458
    %v6848 = vpop.f32.mrf.mxu0
    %v6849 = vadd.f32 %v6760, %v6848
    %v6850 = vpop.f32.mrf.mxu0
    %v6851 = vadd.f32 %v6762, %v6850
    %6852 = vmatmul.bf16.gmra.mxu0 %v2462
    %v6853 = vpop.f32.mrf.mxu0
    %v6854 = vadd.f32 %v6765, %v6853
    %v6855 = vpop.f32.mrf.mxu0
    %v6856 = vadd.f32 %v6767, %v6855
    %6857 = vmatmul.bf16.gmra.mxu0 %v2466
    %v6858 = vpop.f32.mrf.mxu0
    %v6859 = vadd.f32 %v6770, %v6858
    %v6860 = vpop.f32.mrf.mxu0
    %v6861 = vadd.f32 %v6772, %v6860
    %6862 = vmatmul.bf16.gmra.mxu0 %v2470
    %v6863 = vpop.f32.mrf.mxu0
    %v6864 = vadd.f32 %v6775, %v6863
    %v6865 = vpop.f32.mrf.mxu0
    %v6866 = vadd.f32 %v6777, %v6865
    %6867 = vmatmul.bf16.gmra.mxu0 %v2474
    %v6868 = vpop.f32.mrf.mxu0
    %v6869 = vadd.f32 %v6780, %v6868
    %v6870 = vpop.f32.mrf.mxu0
    %v6871 = vadd.f32 %v6782, %v6870
    %6872 = vmatmul.bf16.gmra.mxu0 %v2478
    %v6873 = vpop.f32.mrf.mxu0
    %v6874 = vadd.f32 %v6785, %v6873
    %v6875 = vpop.f32.mrf.mxu0
    %v6876 = vadd.f32 %v6787, %v6875
    %6877 = vmatmul.bf16.gmra.mxu0 %v2482
    %v6878 = vpop.f32.mrf.mxu0
    %v6879 = vadd.f32 %v6790, %v6878
    %v6880 = vpop.f32.mrf.mxu0
    %v6881 = vadd.f32 %v6792, %v6880
    %6882 = vmatmul.bf16.gmra.mxu0 %v2486
    %v6883 = vpop.f32.mrf.mxu0
    %v6884 = vadd.f32 %v6795, %v6883
    %v6885 = vpop.f32.mrf.mxu0
    %v6886 = vadd.f32 %v6797, %v6885
    %6887 = vmatmul.bf16.gmra.mxu0 %v2490
    %v6888 = vpop.f32.mrf.mxu0
    %v6889 = vadd.f32 %v6800, %v6888
    %v6890 = vpop.f32.mrf.mxu0
    %v6891 = vadd.f32 %v6802, %v6890
    %6892 = vdwg.mxu0
    %vm6893 = vcmp.gt.f32.partialorder %v4322, 0.0
    %vm6894 = vcmp.gt.f32.partialorder %v4678, 0.0
    %vm6895 = vcmp.gt.f32.partialorder %v5034, 0.0
    %vm6896 = vcmp.gt.f32.partialorder %v5390, 0.0
    %vm6897 = vcmp.gt.f32.partialorder %v5746, 0.0
    %vm6898 = vcmp.gt.f32.partialorder %v6102, 0.0
    %vm6899 = vcmp.gt.f32.partialorder %v6458, 0.0
    %vm6900 = vcmp.gt.f32.partialorder %v6814, 0.0
    %vm6901 = vcmp.gt.f32.partialorder %v4324, 0.0
    %vm6902 = vcmp.gt.f32.partialorder %v4680, 0.0
    %vm6903 = vcmp.gt.f32.partialorder %v5036, 0.0
    %vm6904 = vcmp.gt.f32.partialorder %v5392, 0.0
    %vm6905 = vcmp.gt.f32.partialorder %v5748, 0.0
    %vm6906 = vcmp.gt.f32.partialorder %v6104, 0.0
    %vm6907 = vcmp.gt.f32.partialorder %v6460, 0.0
    %vm6908 = vcmp.gt.f32.partialorder %v6816, 0.0
    %vm6909 = vcmp.gt.f32.partialorder %v4327, 0.0
    %vm6910 = vcmp.gt.f32.partialorder %v4683, 0.0
    %vm6911 = vcmp.gt.f32.partialorder %v5039, 0.0
    %vm6912 = vcmp.gt.f32.partialorder %v5395, 0.0
    %vm6913 = vcmp.gt.f32.partialorder %v5751, 0.0
    %vm6914 = vcmp.gt.f32.partialorder %v6107, 0.0
    %vm6915 = vcmp.gt.f32.partialorder %v6463, 0.0
    %vm6916 = vcmp.gt.f32.partialorder %v6819, 0.0
    %vm6917 = vcmp.gt.f32.partialorder %v4329, 0.0
    %vm6918 = vcmp.gt.f32.partialorder %v4685, 0.0
    %vm6919 = vcmp.gt.f32.partialorder %v5041, 0.0
    %vm6920 = vcmp.gt.f32.partialorder %v5397, 0.0
    %vm6921 = vcmp.gt.f32.partialorder %v5753, 0.0
    %vm6922 = vcmp.gt.f32.partialorder %v6109, 0.0
    %vm6923 = vcmp.gt.f32.partialorder %v6465, 0.0
    %vm6924 = vcmp.gt.f32.partialorder %v6821, 0.0
    %vm6925 = vcmp.gt.f32.partialorder %v4332, 0.0
    %vm6926 = vcmp.gt.f32.partialorder %v4688, 0.0
    %vm6927 = vcmp.gt.f32.partialorder %v5044, 0.0
    %vm6928 = vcmp.gt.f32.partialorder %v5400, 0.0
    %vm6929 = vcmp.gt.f32.partialorder %v5756, 0.0
    %vm6930 = vcmp.gt.f32.partialorder %v6112, 0.0
    %vm6931 = vcmp.gt.f32.partialorder %v6468, 0.0
    %vm6932 = vcmp.gt.f32.partialorder %v6824, 0.0
    %vm6933 = vcmp.gt.f32.partialorder %v4334, 0.0
    %vm6934 = vcmp.gt.f32.partialorder %v4690, 0.0
    %vm6935 = vcmp.gt.f32.partialorder %v5046, 0.0
    %vm6936 = vcmp.gt.f32.partialorder %v5402, 0.0
    %vm6937 = vcmp.gt.f32.partialorder %v5758, 0.0
    %vm6938 = vcmp.gt.f32.partialorder %v6114, 0.0
    %vm6939 = vcmp.gt.f32.partialorder %v6470, 0.0
    %vm6940 = vcmp.gt.f32.partialorder %v6826, 0.0
    %vm6941 = vcmp.gt.f32.partialorder %v4337, 0.0
    %vm6942 = vcmp.gt.f32.partialorder %v4693, 0.0
    %vm6943 = vcmp.gt.f32.partialorder %v5049, 0.0
    %vm6944 = vcmp.gt.f32.partialorder %v5405, 0.0
    %vm6945 = vcmp.gt.f32.partialorder %v5761, 0.0
    %vm6946 = vcmp.gt.f32.partialorder %v6117, 0.0
    %vm6947 = vcmp.gt.f32.partialorder %v6473, 0.0
    %vm6948 = vcmp.gt.f32.partialorder %v6829, 0.0
    %vm6949 = vcmp.gt.f32.partialorder %v4339, 0.0
    %vm6950 = vcmp.gt.f32.partialorder %v4695, 0.0
    %vm6951 = vcmp.gt.f32.partialorder %v5051, 0.0
    %vm6952 = vcmp.gt.f32.partialorder %v5407, 0.0
    %vm6953 = vcmp.gt.f32.partialorder %v5763, 0.0
    %vm6954 = vcmp.gt.f32.partialorder %v6119, 0.0
    %vm6955 = vcmp.gt.f32.partialorder %v6475, 0.0
    %vm6956 = vcmp.gt.f32.partialorder %v6831, 0.0
    %vm6957 = vcmp.gt.f32.partialorder %v4342, 0.0
    %vm6958 = vcmp.gt.f32.partialorder %v4698, 0.0
    %vm6959 = vcmp.gt.f32.partialorder %v5054, 0.0
    %vm6960 = vcmp.gt.f32.partialorder %v5410, 0.0
    %vm6961 = vcmp.gt.f32.partialorder %v5766, 0.0
    %vm6962 = vcmp.gt.f32.partialorder %v6122, 0.0
    %vm6963 = vcmp.gt.f32.partialorder %v6478, 0.0
    %vm6964 = vcmp.gt.f32.partialorder %v6834, 0.0
    %vm6965 = vcmp.gt.f32.partialorder %v4344, 0.0
    %vm6966 = vcmp.gt.f32.partialorder %v4700, 0.0
    %vm6967 = vcmp.gt.f32.partialorder %v5056, 0.0
    %vm6968 = vcmp.gt.f32.partialorder %v5412, 0.0
    %vm6969 = vcmp.gt.f32.partialorder %v5768, 0.0
    %vm6970 = vcmp.gt.f32.partialorder %v6124, 0.0
    %vm6971 = vcmp.gt.f32.partialorder %v6480, 0.0
    %vm6972 = vcmp.gt.f32.partialorder %v6836, 0.0
    %vm6973 = vcmp.gt.f32.partialorder %v4347, 0.0
    %vm6974 = vcmp.gt.f32.partialorder %v4703, 0.0
    %vm6975 = vcmp.gt.f32.partialorder %v5059, 0.0
    %vm6976 = vcmp.gt.f32.partialorder %v5415, 0.0
    %vm6977 = vcmp.gt.f32.partialorder %v5771, 0.0
    %vm6978 = vcmp.gt.f32.partialorder %v6127, 0.0
    %vm6979 = vcmp.gt.f32.partialorder %v6483, 0.0
    %vm6980 = vcmp.gt.f32.partialorder %v6839, 0.0
    %vm6981 = vcmp.gt.f32.partialorder %v4349, 0.0
    %vm6982 = vcmp.gt.f32.partialorder %v4705, 0.0
    %vm6983 = vcmp.gt.f32.partialorder %v5061, 0.0
    %vm6984 = vcmp.gt.f32.partialorder %v5417, 0.0
    %vm6985 = vcmp.gt.f32.partialorder %v5773, 0.0
    %vm6986 = vcmp.gt.f32.partialorder %v6129, 0.0
    %vm6987 = vcmp.gt.f32.partialorder %v6485, 0.0
    %vm6988 = vcmp.gt.f32.partialorder %v6841, 0.0
    %vm6989 = vcmp.gt.f32.partialorder %v4352, 0.0
    %vm6990 = vcmp.gt.f32.partialorder %v4708, 0.0
    %vm6991 = vcmp.gt.f32.partialorder %v5064, 0.0
    %vm6992 = vcmp.gt.f32.partialorder %v5420, 0.0
    %vm6993 = vcmp.gt.f32.partialorder %v5776, 0.0
    %vm6994 = vcmp.gt.f32.partialorder %v6132, 0.0
    %vm6995 = vcmp.gt.f32.partialorder %v6488, 0.0
    %vm6996 = vcmp.gt.f32.partialorder %v6844, 0.0
    %vm6997 = vcmp.gt.f32.partialorder %v4354, 0.0
    %vm6998 = vcmp.gt.f32.partialorder %v4710, 0.0
    %vm6999 = vcmp.gt.f32.partialorder %v5066, 0.0
    %vm7000 = vcmp.gt.f32.partialorder %v5422, 0.0
    %vm7001 = vcmp.gt.f32.partialorder %v5778, 0.0
    %vm7002 = vcmp.gt.f32.partialorder %v6134, 0.0
    %vm7003 = vcmp.gt.f32.partialorder %v6490, 0.0
    %vm7004 = vcmp.gt.f32.partialorder %v6846, 0.0
    %vm7005 = vcmp.gt.f32.partialorder %v4357, 0.0
    %vm7006 = vcmp.gt.f32.partialorder %v4713, 0.0
    %vm7007 = vcmp.gt.f32.partialorder %v5069, 0.0
    %vm7008 = vcmp.gt.f32.partialorder %v5425, 0.0
    %vm7009 = vcmp.gt.f32.partialorder %v5781, 0.0
    %vm7010 = vcmp.gt.f32.partialorder %v6137, 0.0
    %vm7011 = vcmp.gt.f32.partialorder %v6493, 0.0
    %vm7012 = vcmp.gt.f32.partialorder %v6849, 0.0
    %vm7013 = vcmp.gt.f32.partialorder %v4359, 0.0
    %vm7014 = vcmp.gt.f32.partialorder %v4715, 0.0
    %vm7015 = vcmp.gt.f32.partialorder %v5071, 0.0
    %vm7016 = vcmp.gt.f32.partialorder %v5427, 0.0
    %vm7017 = vcmp.gt.f32.partialorder %v5783, 0.0
    %vm7018 = vcmp.gt.f32.partialorder %v6139, 0.0
    %vm7019 = vcmp.gt.f32.partialorder %v6495, 0.0
    %vm7020 = vcmp.gt.f32.partialorder %v6851, 0.0
    %vm7021 = vcmp.gt.f32.partialorder %v4362, 0.0
    %vm7022 = vcmp.gt.f32.partialorder %v4718, 0.0
    %vm7023 = vcmp.gt.f32.partialorder %v5074, 0.0
    %vm7024 = vcmp.gt.f32.partialorder %v5430, 0.0
    %vm7025 = vcmp.gt.f32.partialorder %v5786, 0.0
    %vm7026 = vcmp.gt.f32.partialorder %v6142, 0.0
    %vm7027 = vcmp.gt.f32.partialorder %v6498, 0.0
    %vm7028 = vcmp.gt.f32.partialorder %v6854, 0.0
    %vm7029 = vcmp.gt.f32.partialorder %v4364, 0.0
    %vm7030 = vcmp.gt.f32.partialorder %v4720, 0.0
    %vm7031 = vcmp.gt.f32.partialorder %v5076, 0.0
    %vm7032 = vcmp.gt.f32.partialorder %v5432, 0.0
    %vm7033 = vcmp.gt.f32.partialorder %v5788, 0.0
    %vm7034 = vcmp.gt.f32.partialorder %v6144, 0.0
    %vm7035 = vcmp.gt.f32.partialorder %v6500, 0.0
    %vm7036 = vcmp.gt.f32.partialorder %v6856, 0.0
    %vm7037 = vcmp.gt.f32.partialorder %v4367, 0.0
    %vm7038 = vcmp.gt.f32.partialorder %v4723, 0.0
    %vm7039 = vcmp.gt.f32.partialorder %v5079, 0.0
    %vm7040 = vcmp.gt.f32.partialorder %v5435, 0.0
    %vm7041 = vcmp.gt.f32.partialorder %v5791, 0.0
    %vm7042 = vcmp.gt.f32.partialorder %v6147, 0.0
    %vm7043 = vcmp.gt.f32.partialorder %v6503, 0.0
    %vm7044 = vcmp.gt.f32.partialorder %v6859, 0.0
    %vm7045 = vcmp.gt.f32.partialorder %v4369, 0.0
    %vm7046 = vcmp.gt.f32.partialorder %v4725, 0.0
    %vm7047 = vcmp.gt.f32.partialorder %v5081, 0.0
    %vm7048 = vcmp.gt.f32.partialorder %v5437, 0.0
    %vm7049 = vcmp.gt.f32.partialorder %v5793, 0.0
    %vm7050 = vcmp.gt.f32.partialorder %v6149, 0.0
    %vm7051 = vcmp.gt.f32.partialorder %v6505, 0.0
    %vm7052 = vcmp.gt.f32.partialorder %v6861, 0.0
    %vm7053 = vcmp.gt.f32.partialorder %v4372, 0.0
    %vm7054 = vcmp.gt.f32.partialorder %v4728, 0.0
    %vm7055 = vcmp.gt.f32.partialorder %v5084, 0.0
    %vm7056 = vcmp.gt.f32.partialorder %v5440, 0.0
    %vm7057 = vcmp.gt.f32.partialorder %v5796, 0.0
    %vm7058 = vcmp.gt.f32.partialorder %v6152, 0.0
    %vm7059 = vcmp.gt.f32.partialorder %v6508, 0.0
    %vm7060 = vcmp.gt.f32.partialorder %v6864, 0.0
    %vm7061 = vcmp.gt.f32.partialorder %v4374, 0.0
    %vm7062 = vcmp.gt.f32.partialorder %v4730, 0.0
    %vm7063 = vcmp.gt.f32.partialorder %v5086, 0.0
    %vm7064 = vcmp.gt.f32.partialorder %v5442, 0.0
    %vm7065 = vcmp.gt.f32.partialorder %v5798, 0.0
    %vm7066 = vcmp.gt.f32.partialorder %v6154, 0.0
    %vm7067 = vcmp.gt.f32.partialorder %v6510, 0.0
    %vm7068 = vcmp.gt.f32.partialorder %v6866, 0.0
    %vm7069 = vcmp.gt.f32.partialorder %v4377, 0.0
    %vm7070 = vcmp.gt.f32.partialorder %v4733, 0.0
    %vm7071 = vcmp.gt.f32.partialorder %v5089, 0.0
    %vm7072 = vcmp.gt.f32.partialorder %v5445, 0.0
    %vm7073 = vcmp.gt.f32.partialorder %v5801, 0.0
    %vm7074 = vcmp.gt.f32.partialorder %v6157, 0.0
    %vm7075 = vcmp.gt.f32.partialorder %v6513, 0.0
    %vm7076 = vcmp.gt.f32.partialorder %v6869, 0.0
    %vm7077 = vcmp.gt.f32.partialorder %v4379, 0.0
    %vm7078 = vcmp.gt.f32.partialorder %v4735, 0.0
    %vm7079 = vcmp.gt.f32.partialorder %v5091, 0.0
    %vm7080 = vcmp.gt.f32.partialorder %v5447, 0.0
    %vm7081 = vcmp.gt.f32.partialorder %v5803, 0.0
    %vm7082 = vcmp.gt.f32.partialorder %v6159, 0.0
    %vm7083 = vcmp.gt.f32.partialorder %v6515, 0.0
    %vm7084 = vcmp.gt.f32.partialorder %v6871, 0.0
    %vm7085 = vcmp.gt.f32.partialorder %v4382, 0.0
    %vm7086 = vcmp.gt.f32.partialorder %v4738, 0.0
    %vm7087 = vcmp.gt.f32.partialorder %v5094, 0.0
    %vm7088 = vcmp.gt.f32.partialorder %v5450, 0.0
    %vm7089 = vcmp.gt.f32.partialorder %v5806, 0.0
    %vm7090 = vcmp.gt.f32.partialorder %v6162, 0.0
    %vm7091 = vcmp.gt.f32.partialorder %v6518, 0.0
    %vm7092 = vcmp.gt.f32.partialorder %v6874, 0.0
    %vm7093 = vcmp.gt.f32.partialorder %v4384, 0.0
    %vm7094 = vcmp.gt.f32.partialorder %v4740, 0.0
    %vm7095 = vcmp.gt.f32.partialorder %v5096, 0.0
    %vm7096 = vcmp.gt.f32.partialorder %v5452, 0.0
    %vm7097 = vcmp.gt.f32.partialorder %v5808, 0.0
    %vm7098 = vcmp.gt.f32.partialorder %v6164, 0.0
    %vm7099 = vcmp.gt.f32.partialorder %v6520, 0.0
    %vm7100 = vcmp.gt.f32.partialorder %v6876, 0.0
    %vm7101 = vcmp.gt.f32.partialorder %v4387, 0.0
    %vm7102 = vcmp.gt.f32.partialorder %v4743, 0.0
    %vm7103 = vcmp.gt.f32.partialorder %v5099, 0.0
    %vm7104 = vcmp.gt.f32.partialorder %v5455, 0.0
    %vm7105 = vcmp.gt.f32.partialorder %v5811, 0.0
    %vm7106 = vcmp.gt.f32.partialorder %v6167, 0.0
    %vm7107 = vcmp.gt.f32.partialorder %v6523, 0.0
    %vm7108 = vcmp.gt.f32.partialorder %v6879, 0.0
    %vm7109 = vcmp.gt.f32.partialorder %v4389, 0.0
    %vm7110 = vcmp.gt.f32.partialorder %v4745, 0.0
    %vm7111 = vcmp.gt.f32.partialorder %v5101, 0.0
    %vm7112 = vcmp.gt.f32.partialorder %v5457, 0.0
    %vm7113 = vcmp.gt.f32.partialorder %v5813, 0.0
    %vm7114 = vcmp.gt.f32.partialorder %v6169, 0.0
    %vm7115 = vcmp.gt.f32.partialorder %v6525, 0.0
    %vm7116 = vcmp.gt.f32.partialorder %v6881, 0.0
    %vm7117 = vcmp.gt.f32.partialorder %v4392, 0.0
    %vm7118 = vcmp.gt.f32.partialorder %v4748, 0.0
    %vm7119 = vcmp.gt.f32.partialorder %v5104, 0.0
    %vm7120 = vcmp.gt.f32.partialorder %v5460, 0.0
    %vm7121 = vcmp.gt.f32.partialorder %v5816, 0.0
    %vm7122 = vcmp.gt.f32.partialorder %v6172, 0.0
    %vm7123 = vcmp.gt.f32.partialorder %v6528, 0.0
    %vm7124 = vcmp.gt.f32.partialorder %v6884, 0.0
    %vm7125 = vcmp.gt.f32.partialorder %v4394, 0.0
    %vm7126 = vcmp.gt.f32.partialorder %v4750, 0.0
    %vm7127 = vcmp.gt.f32.partialorder %v5106, 0.0
    %vm7128 = vcmp.gt.f32.partialorder %v5462, 0.0
    %vm7129 = vcmp.gt.f32.partialorder %v5818, 0.0
    %vm7130 = vcmp.gt.f32.partialorder %v6174, 0.0
    %vm7131 = vcmp.gt.f32.partialorder %v6530, 0.0
    %vm7132 = vcmp.gt.f32.partialorder %v6886, 0.0
    %vm7133 = vcmp.gt.f32.partialorder %v4397, 0.0
    %vm7134 = vcmp.gt.f32.partialorder %v4753, 0.0
    %vm7135 = vcmp.gt.f32.partialorder %v5109, 0.0
    %vm7136 = vcmp.gt.f32.partialorder %v5465, 0.0
    %vm7137 = vcmp.gt.f32.partialorder %v5821, 0.0
    %vm7138 = vcmp.gt.f32.partialorder %v6177, 0.0
    %vm7139 = vcmp.gt.f32.partialorder %v6533, 0.0
    %vm7140 = vcmp.gt.f32.partialorder %v6889, 0.0
    %vm7141 = vcmp.gt.f32.partialorder %v4399, 0.0
    %vm7142 = vcmp.gt.f32.partialorder %v4755, 0.0
    %vm7143 = vcmp.gt.f32.partialorder %v5111, 0.0
    %vm7144 = vcmp.gt.f32.partialorder %v5467, 0.0
    %vm7145 = vcmp.gt.f32.partialorder %v5823, 0.0
    %vm7146 = vcmp.gt.f32.partialorder %v6179, 0.0
    %vm7147 = vcmp.gt.f32.partialorder %v6535, 0.0
    %vm7148 = vcmp.gt.f32.partialorder %v6891, 0.0
    %v7149 = vmul.f32 %v4322, 0.2
    %v7150 = vmul.f32 %v4678, 0.2
    %v7151 = vmul.f32 %v5034, 0.2
    %v7152 = vmul.f32 %v5390, 0.2
    %v7153 = vmul.f32 %v5746, 0.2
    %v7154 = vmul.f32 %v6102, 0.2
    %v7155 = vmul.f32 %v6458, 0.2
    %v7156 = vmul.f32 %v6814, 0.2
    %v7157 = vmul.f32 %v4324, 0.2
    %v7158 = vmul.f32 %v4680, 0.2
    %v7159 = vmul.f32 %v5036, 0.2
    %v7160 = vmul.f32 %v5392, 0.2
    %v7161 = vmul.f32 %v5748, 0.2
    %v7162 = vmul.f32 %v6104, 0.2
    %v7163 = vmul.f32 %v6460, 0.2
    %v7164 = vmul.f32 %v6816, 0.2
    %v7165 = vmul.f32 %v4327, 0.2
    %v7166 = vmul.f32 %v4683, 0.2
    %v7167 = vmul.f32 %v5039, 0.2
    %v7168 = vmul.f32 %v5395, 0.2
    %v7169 = vmul.f32 %v5751, 0.2
    %v7170 = vmul.f32 %v6107, 0.2
    %v7171 = vmul.f32 %v6463, 0.2
    %v7172 = vmul.f32 %v6819, 0.2
    %v7173 = vmul.f32 %v4329, 0.2
    %v7174 = vmul.f32 %v4685, 0.2
    %v7175 = vmul.f32 %v5041, 0.2
    %v7176 = vmul.f32 %v5397, 0.2
    %v7177 = vmul.f32 %v5753, 0.2
    %v7178 = vmul.f32 %v6109, 0.2
    %v7179 = vmul.f32 %v6465, 0.2
    %v7180 = vmul.f32 %v6821, 0.2
    %v7181 = vmul.f32 %v4332, 0.2
    %v7182 = vmul.f32 %v4688, 0.2
    %v7183 = vmul.f32 %v5044, 0.2
    %v7184 = vmul.f32 %v5400, 0.2
    %v7185 = vmul.f32 %v5756, 0.2
    %v7186 = vmul.f32 %v6112, 0.2
    %v7187 = vmul.f32 %v6468, 0.2
    %v7188 = vmul.f32 %v6824, 0.2
    %v7189 = vmul.f32 %v4334, 0.2
    %v7190 = vmul.f32 %v4690, 0.2
    %v7191 = vmul.f32 %v5046, 0.2
    %v7192 = vmul.f32 %v5402, 0.2
    %v7193 = vmul.f32 %v5758, 0.2
    %v7194 = vmul.f32 %v6114, 0.2
    %v7195 = vmul.f32 %v6470, 0.2
    %v7196 = vmul.f32 %v6826, 0.2
    %v7197 = vmul.f32 %v4337, 0.2
    %v7198 = vmul.f32 %v4693, 0.2
    %v7199 = vmul.f32 %v5049, 0.2
    %v7200 = vmul.f32 %v5405, 0.2
    %v7201 = vmul.f32 %v5761, 0.2
    %v7202 = vmul.f32 %v6117, 0.2
    %v7203 = vmul.f32 %v6473, 0.2
    %v7204 = vmul.f32 %v6829, 0.2
    %v7205 = vmul.f32 %v4339, 0.2
    %v7206 = vmul.f32 %v4695, 0.2
    %v7207 = vmul.f32 %v5051, 0.2
    %v7208 = vmul.f32 %v5407, 0.2
    %v7209 = vmul.f32 %v5763, 0.2
    %v7210 = vmul.f32 %v6119, 0.2
    %v7211 = vmul.f32 %v6475, 0.2
    %v7212 = vmul.f32 %v6831, 0.2
    %v7213 = vmul.f32 %v4342, 0.2
    %v7214 = vmul.f32 %v4698, 0.2
    %v7215 = vmul.f32 %v5054, 0.2
    %v7216 = vmul.f32 %v5410, 0.2
    %v7217 = vmul.f32 %v5766, 0.2
    %v7218 = vmul.f32 %v6122, 0.2
    %v7219 = vmul.f32 %v6478, 0.2
    %v7220 = vmul.f32 %v6834, 0.2
    %v7221 = vmul.f32 %v4344, 0.2
    %v7222 = vmul.f32 %v4700, 0.2
    %v7223 = vmul.f32 %v5056, 0.2
    %v7224 = vmul.f32 %v5412, 0.2
    %v7225 = vmul.f32 %v5768, 0.2
    %v7226 = vmul.f32 %v6124, 0.2
    %v7227 = vmul.f32 %v6480, 0.2
    %v7228 = vmul.f32 %v6836, 0.2
    %v7229 = vmul.f32 %v4347, 0.2
    %v7230 = vmul.f32 %v4703, 0.2
    %v7231 = vmul.f32 %v5059, 0.2
    %v7232 = vmul.f32 %v5415, 0.2
    %v7233 = vmul.f32 %v5771, 0.2
    %v7234 = vmul.f32 %v6127, 0.2
    %v7235 = vmul.f32 %v6483, 0.2
    %v7236 = vmul.f32 %v6839, 0.2
    %v7237 = vmul.f32 %v4349, 0.2
    %v7238 = vmul.f32 %v4705, 0.2
    %v7239 = vmul.f32 %v5061, 0.2
    %v7240 = vmul.f32 %v5417, 0.2
    %v7241 = vmul.f32 %v5773, 0.2
    %v7242 = vmul.f32 %v6129, 0.2
    %v7243 = vmul.f32 %v6485, 0.2
    %v7244 = vmul.f32 %v6841, 0.2
    %v7245 = vmul.f32 %v4352, 0.2
    %v7246 = vmul.f32 %v4708, 0.2
    %v7247 = vmul.f32 %v5064, 0.2
    %v7248 = vmul.f32 %v5420, 0.2
    %v7249 = vmul.f32 %v5776, 0.2
    %v7250 = vmul.f32 %v6132, 0.2
    %v7251 = vmul.f32 %v6488, 0.2
    %v7252 = vmul.f32 %v6844, 0.2
    %v7253 = vmul.f32 %v4354, 0.2
    %v7254 = vmul.f32 %v4710, 0.2
    %v7255 = vmul.f32 %v5066, 0.2
    %v7256 = vmul.f32 %v5422, 0.2
    %v7257 = vmul.f32 %v5778, 0.2
    %v7258 = vmul.f32 %v6134, 0.2
    %v7259 = vmul.f32 %v6490, 0.2
    %v7260 = vmul.f32 %v6846, 0.2
    %v7261 = vmul.f32 %v4357, 0.2
    %v7262 = vmul.f32 %v4713, 0.2
    %v7263 = vmul.f32 %v5069, 0.2
    %v7264 = vmul.f32 %v5425, 0.2
    %v7265 = vmul.f32 %v5781, 0.2
    %v7266 = vmul.f32 %v6137, 0.2
    %v7267 = vmul.f32 %v6493, 0.2
    %v7268 = vmul.f32 %v6849, 0.2
    %v7269 = vmul.f32 %v4359, 0.2
    %v7270 = vmul.f32 %v4715, 0.2
    %v7271 = vmul.f32 %v5071, 0.2
    %v7272 = vmul.f32 %v5427, 0.2
    %v7273 = vmul.f32 %v5783, 0.2
    %v7274 = vmul.f32 %v6139, 0.2
    %v7275 = vmul.f32 %v6495, 0.2
    %v7276 = vmul.f32 %v6851, 0.2
    %v7277 = vmul.f32 %v4362, 0.2
    %v7278 = vmul.f32 %v4718, 0.2
    %v7279 = vmul.f32 %v5074, 0.2
    %v7280 = vmul.f32 %v5430, 0.2
    %v7281 = vmul.f32 %v5786, 0.2
    %v7282 = vmul.f32 %v6142, 0.2
    %v7283 = vmul.f32 %v6498, 0.2
    %v7284 = vmul.f32 %v6854, 0.2
    %v7285 = vmul.f32 %v4364, 0.2
    %v7286 = vmul.f32 %v4720, 0.2
    %v7287 = vmul.f32 %v5076, 0.2
    %v7288 = vmul.f32 %v5432, 0.2
    %v7289 = vmul.f32 %v5788, 0.2
    %v7290 = vmul.f32 %v6144, 0.2
    %v7291 = vmul.f32 %v6500, 0.2
    %v7292 = vmul.f32 %v6856, 0.2
    %v7293 = vmul.f32 %v4367, 0.2
    %v7294 = vmul.f32 %v4723, 0.2
    %v7295 = vmul.f32 %v5079, 0.2
    %v7296 = vmul.f32 %v5435, 0.2
    %v7297 = vmul.f32 %v5791, 0.2
    %v7298 = vmul.f32 %v6147, 0.2
    %v7299 = vmul.f32 %v6503, 0.2
    %v7300 = vmul.f32 %v6859, 0.2
    %v7301 = vmul.f32 %v4369, 0.2
    %v7302 = vmul.f32 %v4725, 0.2
    %v7303 = vmul.f32 %v5081, 0.2
    %v7304 = vmul.f32 %v5437, 0.2
    %v7305 = vmul.f32 %v5793, 0.2
    %v7306 = vmul.f32 %v6149, 0.2
    %v7307 = vmul.f32 %v6505, 0.2
    %v7308 = vmul.f32 %v6861, 0.2
    %v7309 = vmul.f32 %v4372, 0.2
    %v7310 = vmul.f32 %v4728, 0.2
    %v7311 = vmul.f32 %v5084, 0.2
    %v7312 = vmul.f32 %v5440, 0.2
    %v7313 = vmul.f32 %v5796, 0.2
    %v7314 = vmul.f32 %v6152, 0.2
    %v7315 = vmul.f32 %v6508, 0.2
    %v7316 = vmul.f32 %v6864, 0.2
    %v7317 = vmul.f32 %v4374, 0.2
    %v7318 = vmul.f32 %v4730, 0.2
    %v7319 = vmul.f32 %v5086, 0.2
    %v7320 = vmul.f32 %v5442, 0.2
    %v7321 = vmul.f32 %v5798, 0.2
    %v7322 = vmul.f32 %v6154, 0.2
    %v7323 = vmul.f32 %v6510, 0.2
    %v7324 = vmul.f32 %v6866, 0.2
    %v7325 = vmul.f32 %v4377, 0.2
    %v7326 = vmul.f32 %v4733, 0.2
    %v7327 = vmul.f32 %v5089, 0.2
    %v7328 = vmul.f32 %v5445, 0.2
    %v7329 = vmul.f32 %v5801, 0.2
    %v7330 = vmul.f32 %v6157, 0.2
    %v7331 = vmul.f32 %v6513, 0.2
    %v7332 = vmul.f32 %v6869, 0.2
    %v7333 = vmul.f32 %v4379, 0.2
    %v7334 = vmul.f32 %v4735, 0.2
    %v7335 = vmul.f32 %v5091, 0.2
    %v7336 = vmul.f32 %v5447, 0.2
    %v7337 = vmul.f32 %v5803, 0.2
    %v7338 = vmul.f32 %v6159, 0.2
    %v7339 = vmul.f32 %v6515, 0.2
    %v7340 = vmul.f32 %v6871, 0.2
    %v7341 = vmul.f32 %v4382, 0.2
    %v7342 = vmul.f32 %v4738, 0.2
    %v7343 = vmul.f32 %v5094, 0.2
    %v7344 = vmul.f32 %v5450, 0.2
    %v7345 = vmul.f32 %v5806, 0.2
    %v7346 = vmul.f32 %v6162, 0.2
    %v7347 = vmul.f32 %v6518, 0.2
    %v7348 = vmul.f32 %v6874, 0.2
    %v7349 = vmul.f32 %v4384, 0.2
    %v7350 = vmul.f32 %v4740, 0.2
    %v7351 = vmul.f32 %v5096, 0.2
    %v7352 = vmul.f32 %v5452, 0.2
    %v7353 = vmul.f32 %v5808, 0.2
    %v7354 = vmul.f32 %v6164, 0.2
    %v7355 = vmul.f32 %v6520, 0.2
    %v7356 = vmul.f32 %v6876, 0.2
    %v7357 = vmul.f32 %v4387, 0.2
    %v7358 = vmul.f32 %v4743, 0.2
    %v7359 = vmul.f32 %v5099, 0.2
    %v7360 = vmul.f32 %v5455, 0.2
    %v7361 = vmul.f32 %v5811, 0.2
    %v7362 = vmul.f32 %v6167, 0.2
    %v7363 = vmul.f32 %v6523, 0.2
    %v7364 = vmul.f32 %v6879, 0.2
    %v7365 = vmul.f32 %v4389, 0.2
    %v7366 = vmul.f32 %v4745, 0.2
    %v7367 = vmul.f32 %v5101, 0.2
    %v7368 = vmul.f32 %v5457, 0.2
    %v7369 = vmul.f32 %v5813, 0.2
    %v7370 = vmul.f32 %v6169, 0.2
    %v7371 = vmul.f32 %v6525, 0.2
    %v7372 = vmul.f32 %v6881, 0.2
    %v7373 = vmul.f32 %v4392, 0.2
    %v7374 = vmul.f32 %v4748, 0.2
    %v7375 = vmul.f32 %v5104, 0.2
    %v7376 = vmul.f32 %v5460, 0.2
    %v7377 = vmul.f32 %v5816, 0.2
    %v7378 = vmul.f32 %v6172, 0.2
    %v7379 = vmul.f32 %v6528, 0.2
    %v7380 = vmul.f32 %v6884, 0.2
    %v7381 = vmul.f32 %v4394, 0.2
    %v7382 = vmul.f32 %v4750, 0.2
    %v7383 = vmul.f32 %v5106, 0.2
    %v7384 = vmul.f32 %v5462, 0.2
    %v7385 = vmul.f32 %v5818, 0.2
    %v7386 = vmul.f32 %v6174, 0.2
    %v7387 = vmul.f32 %v6530, 0.2
    %v7388 = vmul.f32 %v6886, 0.2
    %v7389 = vmul.f32 %v4397, 0.2
    %v7390 = vmul.f32 %v4753, 0.2
    %v7391 = vmul.f32 %v5109, 0.2
    %v7392 = vmul.f32 %v5465, 0.2
    %v7393 = vmul.f32 %v5821, 0.2
    %v7394 = vmul.f32 %v6177, 0.2
    %v7395 = vmul.f32 %v6533, 0.2
    %v7396 = vmul.f32 %v6889, 0.2
    %v7397 = vmul.f32 %v4399, 0.2
    %v7398 = vmul.f32 %v4755, 0.2
    %v7399 = vmul.f32 %v5111, 0.2
    %v7400 = vmul.f32 %v5467, 0.2
    %v7401 = vmul.f32 %v5823, 0.2
    %v7402 = vmul.f32 %v6179, 0.2
    %v7403 = vmul.f32 %v6535, 0.2
    %v7404 = vmul.f32 %v6891, 0.2
    %v7405 = vsel %vm6893, %v4322, %v7149
    %v7406 = vsel %vm6894, %v4678, %v7150
    %v7407 = vsel %vm6895, %v5034, %v7151
    %v7408 = vsel %vm6896, %v5390, %v7152
    %v7409 = vsel %vm6897, %v5746, %v7153
    %v7410 = vsel %vm6898, %v6102, %v7154
    %v7411 = vsel %vm6899, %v6458, %v7155
    %v7412 = vsel %vm6900, %v6814, %v7156
    %v7413 = vsel %vm6901, %v4324, %v7157
    %v7414 = vsel %vm6902, %v4680, %v7158
    %v7415 = vsel %vm6903, %v5036, %v7159
    %v7416 = vsel %vm6904, %v5392, %v7160
    %v7417 = vsel %vm6905, %v5748, %v7161
    %v7418 = vsel %vm6906, %v6104, %v7162
    %v7419 = vsel %vm6907, %v6460, %v7163
    %v7420 = vsel %vm6908, %v6816, %v7164
    %v7421 = vsel %vm6909, %v4327, %v7165
    %v7422 = vsel %vm6910, %v4683, %v7166
    %v7423 = vsel %vm6911, %v5039, %v7167
    %v7424 = vsel %vm6912, %v5395, %v7168
    %v7425 = vsel %vm6913, %v5751, %v7169
    %v7426 = vsel %vm6914, %v6107, %v7170
    %v7427 = vsel %vm6915, %v6463, %v7171
    %v7428 = vsel %vm6916, %v6819, %v7172
    %v7429 = vsel %vm6917, %v4329, %v7173
    %v7430 = vsel %vm6918, %v4685, %v7174
    %v7431 = vsel %vm6919, %v5041, %v7175
    %v7432 = vsel %vm6920, %v5397, %v7176
    %v7433 = vsel %vm6921, %v5753, %v7177
    %v7434 = vsel %vm6922, %v6109, %v7178
    %v7435 = vsel %vm6923, %v6465, %v7179
    %v7436 = vsel %vm6924, %v6821, %v7180
    %v7437 = vsel %vm6925, %v4332, %v7181
    %v7438 = vsel %vm6926, %v4688, %v7182
    %v7439 = vsel %vm6927, %v5044, %v7183
    %v7440 = vsel %vm6928, %v5400, %v7184
    %v7441 = vsel %vm6929, %v5756, %v7185
    %v7442 = vsel %vm6930, %v6112, %v7186
    %v7443 = vsel %vm6931, %v6468, %v7187
    %v7444 = vsel %vm6932, %v6824, %v7188
    %v7445 = vsel %vm6933, %v4334, %v7189
    %v7446 = vsel %vm6934, %v4690, %v7190
    %v7447 = vsel %vm6935, %v5046, %v7191
    %v7448 = vsel %vm6936, %v5402, %v7192
    %v7449 = vsel %vm6937, %v5758, %v7193
    %v7450 = vsel %vm6938, %v6114, %v7194
    %v7451 = vsel %vm6939, %v6470, %v7195
    %v7452 = vsel %vm6940, %v6826, %v7196
    %v7453 = vsel %vm6941, %v4337, %v7197
    %v7454 = vsel %vm6942, %v4693, %v7198
    %v7455 = vsel %vm6943, %v5049, %v7199
    %v7456 = vsel %vm6944, %v5405, %v7200
    %v7457 = vsel %vm6945, %v5761, %v7201
    %v7458 = vsel %vm6946, %v6117, %v7202
    %v7459 = vsel %vm6947, %v6473, %v7203
    %v7460 = vsel %vm6948, %v6829, %v7204
    %v7461 = vsel %vm6949, %v4339, %v7205
    %v7462 = vsel %vm6950, %v4695, %v7206
    %v7463 = vsel %vm6951, %v5051, %v7207
    %v7464 = vsel %vm6952, %v5407, %v7208
    %v7465 = vsel %vm6953, %v5763, %v7209
    %v7466 = vsel %vm6954, %v6119, %v7210
    %v7467 = vsel %vm6955, %v6475, %v7211
    %v7468 = vsel %vm6956, %v6831, %v7212
    %v7469 = vsel %vm6957, %v4342, %v7213
    %v7470 = vsel %vm6958, %v4698, %v7214
    %v7471 = vsel %vm6959, %v5054, %v7215
    %v7472 = vsel %vm6960, %v5410, %v7216
    %v7473 = vsel %vm6961, %v5766, %v7217
    %v7474 = vsel %vm6962, %v6122, %v7218
    %v7475 = vsel %vm6963, %v6478, %v7219
    %v7476 = vsel %vm6964, %v6834, %v7220
    %v7477 = vsel %vm6965, %v4344, %v7221
    %v7478 = vsel %vm6966, %v4700, %v7222
    %v7479 = vsel %vm6967, %v5056, %v7223
    %v7480 = vsel %vm6968, %v5412, %v7224
    %v7481 = vsel %vm6969, %v5768, %v7225
    %v7482 = vsel %vm6970, %v6124, %v7226
    %v7483 = vsel %vm6971, %v6480, %v7227
    %v7484 = vsel %vm6972, %v6836, %v7228
    %v7485 = vsel %vm6973, %v4347, %v7229
    %v7486 = vsel %vm6974, %v4703, %v7230
    %v7487 = vsel %vm6975, %v5059, %v7231
    %v7488 = vsel %vm6976, %v5415, %v7232
    %v7489 = vsel %vm6977, %v5771, %v7233
    %v7490 = vsel %vm6978, %v6127, %v7234
    %v7491 = vsel %vm6979, %v6483, %v7235
    %v7492 = vsel %vm6980, %v6839, %v7236
    %v7493 = vsel %vm6981, %v4349, %v7237
    %v7494 = vsel %vm6982, %v4705, %v7238
    %v7495 = vsel %vm6983, %v5061, %v7239
    %v7496 = vsel %vm6984, %v5417, %v7240
    %v7497 = vsel %vm6985, %v5773, %v7241
    %v7498 = vsel %vm6986, %v6129, %v7242
    %v7499 = vsel %vm6987, %v6485, %v7243
    %v7500 = vsel %vm6988, %v6841, %v7244
    %v7501 = vsel %vm6989, %v4352, %v7245
    %v7502 = vsel %vm6990, %v4708, %v7246
    %v7503 = vsel %vm6991, %v5064, %v7247
    %v7504 = vsel %vm6992, %v5420, %v7248
    %v7505 = vsel %vm6993, %v5776, %v7249
    %v7506 = vsel %vm6994, %v6132, %v7250
    %v7507 = vsel %vm6995, %v6488, %v7251
    %v7508 = vsel %vm6996, %v6844, %v7252
    %v7509 = vsel %vm6997, %v4354, %v7253
    %v7510 = vsel %vm6998, %v4710, %v7254
    %v7511 = vsel %vm6999, %v5066, %v7255
    %v7512 = vsel %vm7000, %v5422, %v7256
    %v7513 = vsel %vm7001, %v5778, %v7257
    %v7514 = vsel %vm7002, %v6134, %v7258
    %v7515 = vsel %vm7003, %v6490, %v7259
    %v7516 = vsel %vm7004, %v6846, %v7260
    %v7517 = vsel %vm7005, %v4357, %v7261
    %v7518 = vsel %vm7006, %v4713, %v7262
    %v7519 = vsel %vm7007, %v5069, %v7263
    %v7520 = vsel %vm7008, %v5425, %v7264
    %v7521 = vsel %vm7009, %v5781, %v7265
    %v7522 = vsel %vm7010, %v6137, %v7266
    %v7523 = vsel %vm7011, %v6493, %v7267
    %v7524 = vsel %vm7012, %v6849, %v7268
    %v7525 = vsel %vm7013, %v4359, %v7269
    %v7526 = vsel %vm7014, %v4715, %v7270
    %v7527 = vsel %vm7015, %v5071, %v7271
    %v7528 = vsel %vm7016, %v5427, %v7272
    %v7529 = vsel %vm7017, %v5783, %v7273
    %v7530 = vsel %vm7018, %v6139, %v7274
    %v7531 = vsel %vm7019, %v6495, %v7275
    %v7532 = vsel %vm7020, %v6851, %v7276
    %v7533 = vsel %vm7021, %v4362, %v7277
    %v7534 = vsel %vm7022, %v4718, %v7278
    %v7535 = vsel %vm7023, %v5074, %v7279
    %v7536 = vsel %vm7024, %v5430, %v7280
    %v7537 = vsel %vm7025, %v5786, %v7281
    %v7538 = vsel %vm7026, %v6142, %v7282
    %v7539 = vsel %vm7027, %v6498, %v7283
    %v7540 = vsel %vm7028, %v6854, %v7284
    %v7541 = vsel %vm7029, %v4364, %v7285
    %v7542 = vsel %vm7030, %v4720, %v7286
    %v7543 = vsel %vm7031, %v5076, %v7287
    %v7544 = vsel %vm7032, %v5432, %v7288
    %v7545 = vsel %vm7033, %v5788, %v7289
    %v7546 = vsel %vm7034, %v6144, %v7290
    %v7547 = vsel %vm7035, %v6500, %v7291
    %v7548 = vsel %vm7036, %v6856, %v7292
    %v7549 = vsel %vm7037, %v4367, %v7293
    %v7550 = vsel %vm7038, %v4723, %v7294
    %v7551 = vsel %vm7039, %v5079, %v7295
    %v7552 = vsel %vm7040, %v5435, %v7296
    %v7553 = vsel %vm7041, %v5791, %v7297
    %v7554 = vsel %vm7042, %v6147, %v7298
    %v7555 = vsel %vm7043, %v6503, %v7299
    %v7556 = vsel %vm7044, %v6859, %v7300
    %v7557 = vsel %vm7045, %v4369, %v7301
    %v7558 = vsel %vm7046, %v4725, %v7302
    %v7559 = vsel %vm7047, %v5081, %v7303
    %v7560 = vsel %vm7048, %v5437, %v7304
    %v7561 = vsel %vm7049, %v5793, %v7305
    %v7562 = vsel %vm7050, %v6149, %v7306
    %v7563 = vsel %vm7051, %v6505, %v7307
    %v7564 = vsel %vm7052, %v6861, %v7308
    %v7565 = vsel %vm7053, %v4372, %v7309
    %v7566 = vsel %vm7054, %v4728, %v7310
    %v7567 = vsel %vm7055, %v5084, %v7311
    %v7568 = vsel %vm7056, %v5440, %v7312
    %v7569 = vsel %vm7057, %v5796, %v7313
    %v7570 = vsel %vm7058, %v6152, %v7314
    %v7571 = vsel %vm7059, %v6508, %v7315
    %v7572 = vsel %vm7060, %v6864, %v7316
    %v7573 = vsel %vm7061, %v4374, %v7317
    %v7574 = vsel %vm7062, %v4730, %v7318
    %v7575 = vsel %vm7063, %v5086, %v7319
    %v7576 = vsel %vm7064, %v5442, %v7320
    %v7577 = vsel %vm7065, %v5798, %v7321
    %v7578 = vsel %vm7066, %v6154, %v7322
    %v7579 = vsel %vm7067, %v6510, %v7323
    %v7580 = vsel %vm7068, %v6866, %v7324
    %v7581 = vsel %vm7069, %v4377, %v7325
    %v7582 = vsel %vm7070, %v4733, %v7326
    %v7583 = vsel %vm7071, %v5089, %v7327
    %v7584 = vsel %vm7072, %v5445, %v7328
    %v7585 = vsel %vm7073, %v5801, %v7329
    %v7586 = vsel %vm7074, %v6157, %v7330
    %v7587 = vsel %vm7075, %v6513, %v7331
    %v7588 = vsel %vm7076, %v6869, %v7332
    %v7589 = vsel %vm7077, %v4379, %v7333
    %v7590 = vsel %vm7078, %v4735, %v7334
    %v7591 = vsel %vm7079, %v5091, %v7335
    %v7592 = vsel %vm7080, %v5447, %v7336
    %v7593 = vsel %vm7081, %v5803, %v7337
    %v7594 = vsel %vm7082, %v6159, %v7338
    %v7595 = vsel %vm7083, %v6515, %v7339
    %v7596 = vsel %vm7084, %v6871, %v7340
    %v7597 = vsel %vm7085, %v4382, %v7341
    %v7598 = vsel %vm7086, %v4738, %v7342
    %v7599 = vsel %vm7087, %v5094, %v7343
    %v7600 = vsel %vm7088, %v5450, %v7344
    %v7601 = vsel %vm7089, %v5806, %v7345
    %v7602 = vsel %vm7090, %v6162, %v7346
    %v7603 = vsel %vm7091, %v6518, %v7347
    %v7604 = vsel %vm7092, %v6874, %v7348
    %v7605 = vsel %vm7093, %v4384, %v7349
    %v7606 = vsel %vm7094, %v4740, %v7350
    %v7607 = vsel %vm7095, %v5096, %v7351
    %v7608 = vsel %vm7096, %v5452, %v7352
    %v7609 = vsel %vm7097, %v5808, %v7353
    %v7610 = vsel %vm7098, %v6164, %v7354
    %v7611 = vsel %vm7099, %v6520, %v7355
    %v7612 = vsel %vm7100, %v6876, %v7356
    %v7613 = vsel %vm7101, %v4387, %v7357
    %v7614 = vsel %vm7102, %v4743, %v7358
    %v7615 = vsel %vm7103, %v5099, %v7359
    %v7616 = vsel %vm7104, %v5455, %v7360
    %v7617 = vsel %vm7105, %v5811, %v7361
    %v7618 = vsel %vm7106, %v6167, %v7362
    %v7619 = vsel %vm7107, %v6523, %v7363
    %v7620 = vsel %vm7108, %v6879, %v7364
    %v7621 = vsel %vm7109, %v4389, %v7365
    %v7622 = vsel %vm7110, %v4745, %v7366
    %v7623 = vsel %vm7111, %v5101, %v7367
    %v7624 = vsel %vm7112, %v5457, %v7368
    %v7625 = vsel %vm7113, %v5813, %v7369
    %v7626 = vsel %vm7114, %v6169, %v7370
    %v7627 = vsel %vm7115, %v6525, %v7371
    %v7628 = vsel %vm7116, %v6881, %v7372
    %v7629 = vsel %vm7117, %v4392, %v7373
    %v7630 = vsel %vm7118, %v4748, %v7374
    %v7631 = vsel %vm7119, %v5104, %v7375
    %v7632 = vsel %vm7120, %v5460, %v7376
    %v7633 = vsel %vm7121, %v5816, %v7377
    %v7634 = vsel %vm7122, %v6172, %v7378
    %v7635 = vsel %vm7123, %v6528, %v7379
    %v7636 = vsel %vm7124, %v6884, %v7380
    %v7637 = vsel %vm7125, %v4394, %v7381
    %v7638 = vsel %vm7126, %v4750, %v7382
    %v7639 = vsel %vm7127, %v5106, %v7383
    %v7640 = vsel %vm7128, %v5462, %v7384
    %v7641 = vsel %vm7129, %v5818, %v7385
    %v7642 = vsel %vm7130, %v6174, %v7386
    %v7643 = vsel %vm7131, %v6530, %v7387
    %v7644 = vsel %vm7132, %v6886, %v7388
    %v7645 = vsel %vm7133, %v4397, %v7389
    %v7646 = vsel %vm7134, %v4753, %v7390
    %v7647 = vsel %vm7135, %v5109, %v7391
    %v7648 = vsel %vm7136, %v5465, %v7392
    %v7649 = vsel %vm7137, %v5821, %v7393
    %v7650 = vsel %vm7138, %v6177, %v7394
    %v7651 = vsel %vm7139, %v6533, %v7395
    %v7652 = vsel %vm7140, %v6889, %v7396
    %v7653 = vsel %vm7141, %v4399, %v7397
    %v7654 = vsel %vm7142, %v4755, %v7398
    %v7655 = vsel %vm7143, %v5111, %v7399
    %v7656 = vsel %vm7144, %v5467, %v7400
    %v7657 = vsel %vm7145, %v5823, %v7401
    %v7658 = vsel %vm7146, %v6179, %v7402
    %v7659 = vsel %vm7147, %v6535, %v7403
    %v7660 = vsel %vm7148, %v6891, %v7404
    %v7661 = vpack.c.bf16 %v7413, %v7405
    %v7662 = vpack.c.bf16 %v7414, %v7406
    %v7663 = vpack.c.bf16 %v7415, %v7407
    %v7664 = vpack.c.bf16 %v7416, %v7408
    %v7665 = vpack.c.bf16 %v7417, %v7409
    %v7666 = vpack.c.bf16 %v7418, %v7410
    %v7667 = vpack.c.bf16 %v7419, %v7411
    %v7668 = vpack.c.bf16 %v7420, %v7412
    %v7669 = vpack.c.bf16 %v7429, %v7421
    %v7670 = vpack.c.bf16 %v7430, %v7422
    %v7671 = vpack.c.bf16 %v7431, %v7423
    %v7672 = vpack.c.bf16 %v7432, %v7424
    %v7673 = vpack.c.bf16 %v7433, %v7425
    %v7674 = vpack.c.bf16 %v7434, %v7426
    %v7675 = vpack.c.bf16 %v7435, %v7427
    %v7676 = vpack.c.bf16 %v7436, %v7428
    %v7677 = vpack.c.bf16 %v7445, %v7437
    %v7678 = vpack.c.bf16 %v7446, %v7438
    %v7679 = vpack.c.bf16 %v7447, %v7439
    %v7680 = vpack.c.bf16 %v7448, %v7440
    %v7681 = vpack.c.bf16 %v7449, %v7441
    %v7682 = vpack.c.bf16 %v7450, %v7442
    %v7683 = vpack.c.bf16 %v7451, %v7443
    %v7684 = vpack.c.bf16 %v7452, %v7444
    %v7685 = vpack.c.bf16 %v7461, %v7453
    %v7686 = vpack.c.bf16 %v7462, %v7454
    %v7687 = vpack.c.bf16 %v7463, %v7455
    %v7688 = vpack.c.bf16 %v7464, %v7456
    %v7689 = vpack.c.bf16 %v7465, %v7457
    %v7690 = vpack.c.bf16 %v7466, %v7458
    %v7691 = vpack.c.bf16 %v7467, %v7459
    %v7692 = vpack.c.bf16 %v7468, %v7460
    %v7693 = vpack.c.bf16 %v7477, %v7469
    %v7694 = vpack.c.bf16 %v7478, %v7470
    %v7695 = vpack.c.bf16 %v7479, %v7471
    %v7696 = vpack.c.bf16 %v7480, %v7472
    %v7697 = vpack.c.bf16 %v7481, %v7473
    %v7698 = vpack.c.bf16 %v7482, %v7474
    %v7699 = vpack.c.bf16 %v7483, %v7475
    %v7700 = vpack.c.bf16 %v7484, %v7476
    %v7701 = vpack.c.bf16 %v7493, %v7485
    %v7702 = vpack.c.bf16 %v7494, %v7486
    %v7703 = vpack.c.bf16 %v7495, %v7487
    %v7704 = vpack.c.bf16 %v7496, %v7488
    %v7705 = vpack.c.bf16 %v7497, %v7489
    %v7706 = vpack.c.bf16 %v7498, %v7490
    %v7707 = vpack.c.bf16 %v7499, %v7491
    %v7708 = vpack.c.bf16 %v7500, %v7492
    %v7709 = vpack.c.bf16 %v7509, %v7501
    %v7710 = vpack.c.bf16 %v7510, %v7502
    %v7711 = vpack.c.bf16 %v7511, %v7503
    %v7712 = vpack.c.bf16 %v7512, %v7504
    %v7713 = vpack.c.bf16 %v7513, %v7505
    %v7714 = vpack.c.bf16 %v7514, %v7506
    %v7715 = vpack.c.bf16 %v7515, %v7507
    %v7716 = vpack.c.bf16 %v7516, %v7508
    %v7717 = vpack.c.bf16 %v7525, %v7517
    %v7718 = vpack.c.bf16 %v7526, %v7518
    %v7719 = vpack.c.bf16 %v7527, %v7519
    %v7720 = vpack.c.bf16 %v7528, %v7520
    %v7721 = vpack.c.bf16 %v7529, %v7521
    %v7722 = vpack.c.bf16 %v7530, %v7522
    %v7723 = vpack.c.bf16 %v7531, %v7523
    %v7724 = vpack.c.bf16 %v7532, %v7524
    %v7725 = vpack.c.bf16 %v7541, %v7533
    %v7726 = vpack.c.bf16 %v7542, %v7534
    %v7727 = vpack.c.bf16 %v7543, %v7535
    %v7728 = vpack.c.bf16 %v7544, %v7536
    %v7729 = vpack.c.bf16 %v7545, %v7537
    %v7730 = vpack.c.bf16 %v7546, %v7538
    %v7731 = vpack.c.bf16 %v7547, %v7539
    %v7732 = vpack.c.bf16 %v7548, %v7540
    %v7733 = vpack.c.bf16 %v7557, %v7549
    %v7734 = vpack.c.bf16 %v7558, %v7550
    %v7735 = vpack.c.bf16 %v7559, %v7551
    %v7736 = vpack.c.bf16 %v7560, %v7552
    %v7737 = vpack.c.bf16 %v7561, %v7553
    %v7738 = vpack.c.bf16 %v7562, %v7554
    %v7739 = vpack.c.bf16 %v7563, %v7555
    %v7740 = vpack.c.bf16 %v7564, %v7556
    %v7741 = vpack.c.bf16 %v7573, %v7565
    %v7742 = vpack.c.bf16 %v7574, %v7566
    %v7743 = vpack.c.bf16 %v7575, %v7567
    %v7744 = vpack.c.bf16 %v7576, %v7568
    %v7745 = vpack.c.bf16 %v7577, %v7569
    %v7746 = vpack.c.bf16 %v7578, %v7570
    %v7747 = vpack.c.bf16 %v7579, %v7571
    %v7748 = vpack.c.bf16 %v7580, %v7572
    %v7749 = vpack.c.bf16 %v7589, %v7581
    %v7750 = vpack.c.bf16 %v7590, %v7582
    %v7751 = vpack.c.bf16 %v7591, %v7583
    %v7752 = vpack.c.bf16 %v7592, %v7584
    %v7753 = vpack.c.bf16 %v7593, %v7585
    %v7754 = vpack.c.bf16 %v7594, %v7586
    %v7755 = vpack.c.bf16 %v7595, %v7587
    %v7756 = vpack.c.bf16 %v7596, %v7588
    %v7757 = vpack.c.bf16 %v7605, %v7597
    %v7758 = vpack.c.bf16 %v7606, %v7598
    %v7759 = vpack.c.bf16 %v7607, %v7599
    %v7760 = vpack.c.bf16 %v7608, %v7600
    %v7761 = vpack.c.bf16 %v7609, %v7601
    %v7762 = vpack.c.bf16 %v7610, %v7602
    %v7763 = vpack.c.bf16 %v7611, %v7603
    %v7764 = vpack.c.bf16 %v7612, %v7604
    %v7765 = vpack.c.bf16 %v7621, %v7613
    %v7766 = vpack.c.bf16 %v7622, %v7614
    %v7767 = vpack.c.bf16 %v7623, %v7615
    %v7768 = vpack.c.bf16 %v7624, %v7616
    %v7769 = vpack.c.bf16 %v7625, %v7617
    %v7770 = vpack.c.bf16 %v7626, %v7618
    %v7771 = vpack.c.bf16 %v7627, %v7619
    %v7772 = vpack.c.bf16 %v7628, %v7620
    %v7773 = vpack.c.bf16 %v7637, %v7629
    %v7774 = vpack.c.bf16 %v7638, %v7630
    %v7775 = vpack.c.bf16 %v7639, %v7631
    %v7776 = vpack.c.bf16 %v7640, %v7632
    %v7777 = vpack.c.bf16 %v7641, %v7633
    %v7778 = vpack.c.bf16 %v7642, %v7634
    %v7779 = vpack.c.bf16 %v7643, %v7635
    %v7780 = vpack.c.bf16 %v7644, %v7636
    %v7781 = vpack.c.bf16 %v7653, %v7645
    %v7782 = vpack.c.bf16 %v7654, %v7646
    %v7783 = vpack.c.bf16 %v7655, %v7647
    %v7784 = vpack.c.bf16 %v7656, %v7648
    %v7785 = vpack.c.bf16 %v7657, %v7649
    %v7786 = vpack.c.bf16 %v7658, %v7650
    %v7787 = vpack.c.bf16 %v7659, %v7651
    %v7788 = vpack.c.bf16 %v7660, %v7652
    %v7789 = vld [vmem:[#allocation4] sm:$0xff]
    %v7790 = vld [vmem:[#allocation4 + $0x8] sm:$0xff]
    %v7791 = vld [vmem:[#allocation4 + $0x10] sm:$0xff]
    %v7792 = vld [vmem:[#allocation4 + $0x18] sm:$0xff]
    %v7793 = vld [vmem:[#allocation4 + $0x20] sm:$0xff]
    %v7794 = vld [vmem:[#allocation4 + $0x28] sm:$0xff]
    %v7795 = vld [vmem:[#allocation4 + $0x30] sm:$0xff]
    %v7796 = vld [vmem:[#allocation4 + $0x38] sm:$0xff]
    %v7797 = vld [vmem:[#allocation4 + $0x40] sm:$0xff]
    %v7798 = vld [vmem:[#allocation4 + $0x48] sm:$0xff]
    %v7799 = vld [vmem:[#allocation4 + $0x50] sm:$0xff]
    %v7800 = vld [vmem:[#allocation4 + $0x58] sm:$0xff]
    %v7801 = vld [vmem:[#allocation4 + $0x60] sm:$0xff]
    %v7802 = vld [vmem:[#allocation4 + $0x68] sm:$0xff]
    %v7803 = vld [vmem:[#allocation4 + $0x70] sm:$0xff]
    %v7804 = vld [vmem:[#allocation4 + $0x78] sm:$0xff]
    %v7805 = vld [vmem:[#allocation4 + $0x80] sm:$0xff]
    %v7806 = vld [vmem:[#allocation4 + $0x88] sm:$0xff]
    %v7807 = vld [vmem:[#allocation4 + $0x90] sm:$0xff]
    %v7808 = vld [vmem:[#allocation4 + $0x98] sm:$0xff]
    %v7809 = vld [vmem:[#allocation4 + $0xa0] sm:$0xff]
    %v7810 = vld [vmem:[#allocation4 + $0xa8] sm:$0xff]
    %v7811 = vld [vmem:[#allocation4 + $0xb0] sm:$0xff]
    %v7812 = vld [vmem:[#allocation4 + $0xb8] sm:$0xff]
    %v7813 = vld [vmem:[#allocation4 + $0xc0] sm:$0xff]
    %v7814 = vld [vmem:[#allocation4 + $0xc8] sm:$0xff]
    %v7815 = vld [vmem:[#allocation4 + $0xd0] sm:$0xff]
    %v7816 = vld [vmem:[#allocation4 + $0xd8] sm:$0xff]
    %v7817 = vld [vmem:[#allocation4 + $0xe0] sm:$0xff]
    %v7818 = vld [vmem:[#allocation4 + $0xe8] sm:$0xff]
    %v7819 = vld [vmem:[#allocation4 + $0xf0] sm:$0xff]
    %v7820 = vld [vmem:[#allocation4 + $0xf8] sm:$0xff]
    %v7821 = vld [vmem:[#allocation4 + $0x100] sm:$0xff]
    %v7822 = vld [vmem:[#allocation4 + $0x108] sm:$0xff]
    %v7823 = vld [vmem:[#allocation4 + $0x110] sm:$0xff]
    %v7824 = vld [vmem:[#allocation4 + $0x118] sm:$0xff]
    %v7825 = vld [vmem:[#allocation4 + $0x120] sm:$0xff]
    %v7826 = vld [vmem:[#allocation4 + $0x128] sm:$0xff]
    %v7827 = vld [vmem:[#allocation4 + $0x130] sm:$0xff]
    %v7828 = vld [vmem:[#allocation4 + $0x138] sm:$0xff]
    %v7829 = vld [vmem:[#allocation4 + $0x140] sm:$0xff]
    %v7830 = vld [vmem:[#allocation4 + $0x148] sm:$0xff]
    %v7831 = vld [vmem:[#allocation4 + $0x150] sm:$0xff]
    %v7832 = vld [vmem:[#allocation4 + $0x158] sm:$0xff]
    %v7833 = vld [vmem:[#allocation4 + $0x160] sm:$0xff]
    %v7834 = vld [vmem:[#allocation4 + $0x168] sm:$0xff]
    %v7835 = vld [vmem:[#allocation4 + $0x170] sm:$0xff]
    %v7836 = vld [vmem:[#allocation4 + $0x178] sm:$0xff]
    %v7837 = vld [vmem:[#allocation4 + $0x180] sm:$0xff]
    %v7838 = vld [vmem:[#allocation4 + $0x188] sm:$0xff]
    %v7839 = vld [vmem:[#allocation4 + $0x190] sm:$0xff]
    %v7840 = vld [vmem:[#allocation4 + $0x198] sm:$0xff]
    %v7841 = vld [vmem:[#allocation4 + $0x1a0] sm:$0xff]
    %v7842 = vld [vmem:[#allocation4 + $0x1a8] sm:$0xff]
    %v7843 = vld [vmem:[#allocation4 + $0x1b0] sm:$0xff]
    %v7844 = vld [vmem:[#allocation4 + $0x1b8] sm:$0xff]
    %v7845 = vld [vmem:[#allocation4 + $0x1c0] sm:$0xff]
    %v7846 = vld [vmem:[#allocation4 + $0x1c8] sm:$0xff]
    %v7847 = vld [vmem:[#allocation4 + $0x1d0] sm:$0xff]
    %v7848 = vld [vmem:[#allocation4 + $0x1d8] sm:$0xff]
    %v7849 = vld [vmem:[#allocation4 + $0x1e0] sm:$0xff]
    %v7850 = vld [vmem:[#allocation4 + $0x1e8] sm:$0xff]
    %v7851 = vld [vmem:[#allocation4 + $0x1f0] sm:$0xff]
    %v7852 = vld [vmem:[#allocation4 + $0x1f8] sm:$0xff]
    %v7853 = vld [vmem:[#allocation4 + $0x200] sm:$0xff]
    %v7854 = vld [vmem:[#allocation4 + $0x208] sm:$0xff]
    %v7855 = vld [vmem:[#allocation4 + $0x210] sm:$0xff]
    %v7856 = vld [vmem:[#allocation4 + $0x218] sm:$0xff]
    %v7857 = vld [vmem:[#allocation4 + $0x220] sm:$0xff]
    %v7858 = vld [vmem:[#allocation4 + $0x228] sm:$0xff]
    %v7859 = vld [vmem:[#allocation4 + $0x230] sm:$0xff]
    %v7860 = vld [vmem:[#allocation4 + $0x238] sm:$0xff]
    %v7861 = vld [vmem:[#allocation4 + $0x240] sm:$0xff]
    %v7862 = vld [vmem:[#allocation4 + $0x248] sm:$0xff]
    %v7863 = vld [vmem:[#allocation4 + $0x250] sm:$0xff]
    %v7864 = vld [vmem:[#allocation4 + $0x258] sm:$0xff]
    %v7865 = vld [vmem:[#allocation4 + $0x260] sm:$0xff]
    %v7866 = vld [vmem:[#allocation4 + $0x268] sm:$0xff]
    %v7867 = vld [vmem:[#allocation4 + $0x270] sm:$0xff]
    %v7868 = vld [vmem:[#allocation4 + $0x278] sm:$0xff]
    %v7869 = vld [vmem:[#allocation4 + $0x280] sm:$0xff]
    %v7870 = vld [vmem:[#allocation4 + $0x288] sm:$0xff]
    %v7871 = vld [vmem:[#allocation4 + $0x290] sm:$0xff]
    %v7872 = vld [vmem:[#allocation4 + $0x298] sm:$0xff]
    %v7873 = vld [vmem:[#allocation4 + $0x2a0] sm:$0xff]
    %v7874 = vld [vmem:[#allocation4 + $0x2a8] sm:$0xff]
    %v7875 = vld [vmem:[#allocation4 + $0x2b0] sm:$0xff]
    %v7876 = vld [vmem:[#allocation4 + $0x2b8] sm:$0xff]
    %v7877 = vld [vmem:[#allocation4 + $0x2c0] sm:$0xff]
    %v7878 = vld [vmem:[#allocation4 + $0x2c8] sm:$0xff]
    %v7879 = vld [vmem:[#allocation4 + $0x2d0] sm:$0xff]
    %v7880 = vld [vmem:[#allocation4 + $0x2d8] sm:$0xff]
    %v7881 = vld [vmem:[#allocation4 + $0x2e0] sm:$0xff]
    %v7882 = vld [vmem:[#allocation4 + $0x2e8] sm:$0xff]
    %v7883 = vld [vmem:[#allocation4 + $0x2f0] sm:$0xff]
    %v7884 = vld [vmem:[#allocation4 + $0x2f8] sm:$0xff]
    %v7885 = vld [vmem:[#allocation4 + $0x300] sm:$0xff]
    %v7886 = vld [vmem:[#allocation4 + $0x308] sm:$0xff]
    %v7887 = vld [vmem:[#allocation4 + $0x310] sm:$0xff]
    %v7888 = vld [vmem:[#allocation4 + $0x318] sm:$0xff]
    %v7889 = vld [vmem:[#allocation4 + $0x320] sm:$0xff]
    %v7890 = vld [vmem:[#allocation4 + $0x328] sm:$0xff]
    %v7891 = vld [vmem:[#allocation4 + $0x330] sm:$0xff]
    %v7892 = vld [vmem:[#allocation4 + $0x338] sm:$0xff]
    %v7893 = vld [vmem:[#allocation4 + $0x340] sm:$0xff]
    %v7894 = vld [vmem:[#allocation4 + $0x348] sm:$0xff]
    %v7895 = vld [vmem:[#allocation4 + $0x350] sm:$0xff]
    %v7896 = vld [vmem:[#allocation4 + $0x358] sm:$0xff]
    %v7897 = vld [vmem:[#allocation4 + $0x360] sm:$0xff]
    %v7898 = vld [vmem:[#allocation4 + $0x368] sm:$0xff]
    %v7899 = vld [vmem:[#allocation4 + $0x370] sm:$0xff]
    %v7900 = vld [vmem:[#allocation4 + $0x378] sm:$0xff]
    %v7901 = vld [vmem:[#allocation4 + $0x380] sm:$0xff]
    %v7902 = vld [vmem:[#allocation4 + $0x388] sm:$0xff]
    %v7903 = vld [vmem:[#allocation4 + $0x390] sm:$0xff]
    %v7904 = vld [vmem:[#allocation4 + $0x398] sm:$0xff]
    %v7905 = vld [vmem:[#allocation4 + $0x3a0] sm:$0xff]
    %v7906 = vld [vmem:[#allocation4 + $0x3a8] sm:$0xff]
    %v7907 = vld [vmem:[#allocation4 + $0x3b0] sm:$0xff]
    %v7908 = vld [vmem:[#allocation4 + $0x3b8] sm:$0xff]
    %v7909 = vld [vmem:[#allocation4 + $0x3c0] sm:$0xff]
    %v7910 = vld [vmem:[#allocation4 + $0x3c8] sm:$0xff]
    %v7911 = vld [vmem:[#allocation4 + $0x3d0] sm:$0xff]
    %v7912 = vld [vmem:[#allocation4 + $0x3d8] sm:$0xff]
    %v7913 = vld [vmem:[#allocation4 + $0x3e0] sm:$0xff]
    %v7914 = vld [vmem:[#allocation4 + $0x3e8] sm:$0xff]
    %v7915 = vld [vmem:[#allocation4 + $0x3f0] sm:$0xff]
    %v7916 = vld [vmem:[#allocation4 + $0x3f8] sm:$0xff]
    %v7917 = vld [vmem:[%s10] sm:$0x3]
    %v7919 = vperm.slane %v7917, 0
    %v7920 = vperm.slane %v7917, 1
    %v8051 = vunpack.c.l.b16 %v7789
    %v8052 = vunpack.c.h.b16 %v7789
    %v8053 = vunpack.c.l.b16 %v7790
    %v8054 = vunpack.c.h.b16 %v7790
    %v8055 = vunpack.c.l.b16 %v7791
    %v8056 = vunpack.c.h.b16 %v7791
    %v8057 = vunpack.c.l.b16 %v7792
    %v8058 = vunpack.c.h.b16 %v7792
    %v8059 = vunpack.c.l.b16 %v7793
    %v8060 = vunpack.c.h.b16 %v7793
    %v8061 = vunpack.c.l.b16 %v7794
    %v8062 = vunpack.c.h.b16 %v7794
    %v8063 = vunpack.c.l.b16 %v7795
    %v8064 = vunpack.c.h.b16 %v7795
    %v8065 = vunpack.c.l.b16 %v7796
    %v8066 = vunpack.c.h.b16 %v7796
    %v8067 = vunpack.c.l.b16 %v7797
    %v8068 = vunpack.c.h.b16 %v7797
    %v8069 = vunpack.c.l.b16 %v7798
    %v8070 = vunpack.c.h.b16 %v7798
    %v8071 = vunpack.c.l.b16 %v7799
    %v8072 = vunpack.c.h.b16 %v7799
    %v8073 = vunpack.c.l.b16 %v7800
    %v8074 = vunpack.c.h.b16 %v7800
    %v8075 = vunpack.c.l.b16 %v7801
    %v8076 = vunpack.c.h.b16 %v7801
    %v8077 = vunpack.c.l.b16 %v7802
    %v8078 = vunpack.c.h.b16 %v7802
    %v8079 = vunpack.c.l.b16 %v7803
    %v8080 = vunpack.c.h.b16 %v7803
    %v8081 = vunpack.c.l.b16 %v7804
    %v8082 = vunpack.c.h.b16 %v7804
    %v8083 = vunpack.c.l.b16 %v7805
    %v8084 = vunpack.c.h.b16 %v7805
    %v8085 = vunpack.c.l.b16 %v7806
    %v8086 = vunpack.c.h.b16 %v7806
    %v8087 = vunpack.c.l.b16 %v7807
    %v8088 = vunpack.c.h.b16 %v7807
    %v8089 = vunpack.c.l.b16 %v7808
    %v8090 = vunpack.c.h.b16 %v7808
    %v8091 = vunpack.c.l.b16 %v7809
    %v8092 = vunpack.c.h.b16 %v7809
    %v8093 = vunpack.c.l.b16 %v7810
    %v8094 = vunpack.c.h.b16 %v7810
    %v8095 = vunpack.c.l.b16 %v7811
    %v8096 = vunpack.c.h.b16 %v7811
    %v8097 = vunpack.c.l.b16 %v7812
    %v8098 = vunpack.c.h.b16 %v7812
    %v8099 = vunpack.c.l.b16 %v7813
    %v8100 = vunpack.c.h.b16 %v7813
    %v8101 = vunpack.c.l.b16 %v7814
    %v8102 = vunpack.c.h.b16 %v7814
    %v8103 = vunpack.c.l.b16 %v7815
    %v8104 = vunpack.c.h.b16 %v7815
    %v8105 = vunpack.c.l.b16 %v7816
    %v8106 = vunpack.c.h.b16 %v7816
    %v8107 = vunpack.c.l.b16 %v7817
    %v8108 = vunpack.c.h.b16 %v7817
    %v8109 = vunpack.c.l.b16 %v7818
    %v8110 = vunpack.c.h.b16 %v7818
    %v8111 = vunpack.c.l.b16 %v7819
    %v8112 = vunpack.c.h.b16 %v7819
    %v8113 = vunpack.c.l.b16 %v7820
    %v8114 = vunpack.c.h.b16 %v7820
    %v8115 = vunpack.c.l.b16 %v7821
    %v8116 = vunpack.c.h.b16 %v7821
    %v8117 = vunpack.c.l.b16 %v7822
    %v8118 = vunpack.c.h.b16 %v7822
    %v8119 = vunpack.c.l.b16 %v7823
    %v8120 = vunpack.c.h.b16 %v7823
    %v8121 = vunpack.c.l.b16 %v7824
    %v8122 = vunpack.c.h.b16 %v7824
    %v8123 = vunpack.c.l.b16 %v7825
    %v8124 = vunpack.c.h.b16 %v7825
    %v8125 = vunpack.c.l.b16 %v7826
    %v8126 = vunpack.c.h.b16 %v7826
    %v8127 = vunpack.c.l.b16 %v7827
    %v8128 = vunpack.c.h.b16 %v7827
    %v8129 = vunpack.c.l.b16 %v7828
    %v8130 = vunpack.c.h.b16 %v7828
    %v8131 = vunpack.c.l.b16 %v7829
    %v8132 = vunpack.c.h.b16 %v7829
    %v8133 = vunpack.c.l.b16 %v7830
    %v8134 = vunpack.c.h.b16 %v7830
    %v8135 = vunpack.c.l.b16 %v7831
    %v8136 = vunpack.c.h.b16 %v7831
    %v8137 = vunpack.c.l.b16 %v7832
    %v8138 = vunpack.c.h.b16 %v7832
    %v8139 = vunpack.c.l.b16 %v7833
    %v8140 = vunpack.c.h.b16 %v7833
    %v8141 = vunpack.c.l.b16 %v7834
    %v8142 = vunpack.c.h.b16 %v7834
    %v8143 = vunpack.c.l.b16 %v7835
    %v8144 = vunpack.c.h.b16 %v7835
    %v8145 = vunpack.c.l.b16 %v7836
    %v8146 = vunpack.c.h.b16 %v7836
    %v8147 = vunpack.c.l.b16 %v7837
    %v8148 = vunpack.c.h.b16 %v7837
    %v8149 = vunpack.c.l.b16 %v7838
    %v8150 = vunpack.c.h.b16 %v7838
    %v8151 = vunpack.c.l.b16 %v7839
    %v8152 = vunpack.c.h.b16 %v7839
    %v8153 = vunpack.c.l.b16 %v7840
    %v8154 = vunpack.c.h.b16 %v7840
    %v8155 = vunpack.c.l.b16 %v7841
    %v8156 = vunpack.c.h.b16 %v7841
    %v8157 = vunpack.c.l.b16 %v7842
    %v8158 = vunpack.c.h.b16 %v7842
    %v8159 = vunpack.c.l.b16 %v7843
    %v8160 = vunpack.c.h.b16 %v7843
    %v8161 = vunpack.c.l.b16 %v7844
    %v8162 = vunpack.c.h.b16 %v7844
    %v8163 = vunpack.c.l.b16 %v7845
    %v8164 = vunpack.c.h.b16 %v7845
    %v8165 = vunpack.c.l.b16 %v7846
    %v8166 = vunpack.c.h.b16 %v7846
    %v8167 = vunpack.c.l.b16 %v7847
    %v8168 = vunpack.c.h.b16 %v7847
    %v8169 = vunpack.c.l.b16 %v7848
    %v8170 = vunpack.c.h.b16 %v7848
    %v8171 = vunpack.c.l.b16 %v7849
    %v8172 = vunpack.c.h.b16 %v7849
    %v8173 = vunpack.c.l.b16 %v7850
    %v8174 = vunpack.c.h.b16 %v7850
    %v8175 = vunpack.c.l.b16 %v7851
    %v8176 = vunpack.c.h.b16 %v7851
    %v8177 = vunpack.c.l.b16 %v7852
    %v8178 = vunpack.c.h.b16 %v7852
    %v8179 = vunpack.c.l.b16 %v7853
    %v8180 = vunpack.c.h.b16 %v7853
    %v8181 = vunpack.c.l.b16 %v7854
    %v8182 = vunpack.c.h.b16 %v7854
    %v8183 = vunpack.c.l.b16 %v7855
    %v8184 = vunpack.c.h.b16 %v7855
    %v8185 = vunpack.c.l.b16 %v7856
    %v8186 = vunpack.c.h.b16 %v7856
    %v8187 = vunpack.c.l.b16 %v7857
    %v8188 = vunpack.c.h.b16 %v7857
    %v8189 = vunpack.c.l.b16 %v7858
    %v8190 = vunpack.c.h.b16 %v7858
    %v8191 = vunpack.c.l.b16 %v7859
    %v8192 = vunpack.c.h.b16 %v7859
    %v8193 = vunpack.c.l.b16 %v7860
    %v8194 = vunpack.c.h.b16 %v7860
    %v8195 = vunpack.c.l.b16 %v7861
    %v8196 = vunpack.c.h.b16 %v7861
    %v8197 = vunpack.c.l.b16 %v7862
    %v8198 = vunpack.c.h.b16 %v7862
    %v8199 = vunpack.c.l.b16 %v7863
    %v8200 = vunpack.c.h.b16 %v7863
    %v8201 = vunpack.c.l.b16 %v7864
    %v8202 = vunpack.c.h.b16 %v7864
    %v8203 = vunpack.c.l.b16 %v7865
    %v8204 = vunpack.c.h.b16 %v7865
    %v8205 = vunpack.c.l.b16 %v7866
    %v8206 = vunpack.c.h.b16 %v7866
    %v8207 = vunpack.c.l.b16 %v7867
    %v8208 = vunpack.c.h.b16 %v7867
    %v8209 = vunpack.c.l.b16 %v7868
    %v8210 = vunpack.c.h.b16 %v7868
    %v8211 = vunpack.c.l.b16 %v7869
    %v8212 = vunpack.c.h.b16 %v7869
    %v8213 = vunpack.c.l.b16 %v7870
    %v8214 = vunpack.c.h.b16 %v7870
    %v8215 = vunpack.c.l.b16 %v7871
    %v8216 = vunpack.c.h.b16 %v7871
    %v8217 = vunpack.c.l.b16 %v7872
    %v8218 = vunpack.c.h.b16 %v7872
    %v8219 = vunpack.c.l.b16 %v7873
    %v8220 = vunpack.c.h.b16 %v7873
    %v8221 = vunpack.c.l.b16 %v7874
    %v8222 = vunpack.c.h.b16 %v7874
    %v8223 = vunpack.c.l.b16 %v7875
    %v8224 = vunpack.c.h.b16 %v7875
    %v8225 = vunpack.c.l.b16 %v7876
    %v8226 = vunpack.c.h.b16 %v7876
    %v8227 = vunpack.c.l.b16 %v7877
    %v8228 = vunpack.c.h.b16 %v7877
    %v8229 = vunpack.c.l.b16 %v7878
    %v8230 = vunpack.c.h.b16 %v7878
    %v8231 = vunpack.c.l.b16 %v7879
    %v8232 = vunpack.c.h.b16 %v7879
    %v8233 = vunpack.c.l.b16 %v7880
    %v8234 = vunpack.c.h.b16 %v7880
    %v8235 = vunpack.c.l.b16 %v7881
    %v8236 = vunpack.c.h.b16 %v7881
    %v8237 = vunpack.c.l.b16 %v7882
    %v8238 = vunpack.c.h.b16 %v7882
    %v8239 = vunpack.c.l.b16 %v7883
    %v8240 = vunpack.c.h.b16 %v7883
    %v8241 = vunpack.c.l.b16 %v7884
    %v8242 = vunpack.c.h.b16 %v7884
    %v8243 = vunpack.c.l.b16 %v7885
    %v8244 = vunpack.c.h.b16 %v7885
    %v8245 = vunpack.c.l.b16 %v7886
    %v8246 = vunpack.c.h.b16 %v7886
    %v8247 = vunpack.c.l.b16 %v7887
    %v8248 = vunpack.c.h.b16 %v7887
    %v8249 = vunpack.c.l.b16 %v7888
    %v8250 = vunpack.c.h.b16 %v7888
    %v8251 = vunpack.c.l.b16 %v7889
    %v8252 = vunpack.c.h.b16 %v7889
    %v8253 = vunpack.c.l.b16 %v7890
    %v8254 = vunpack.c.h.b16 %v7890
    %v8255 = vunpack.c.l.b16 %v7891
    %v8256 = vunpack.c.h.b16 %v7891
    %v8257 = vunpack.c.l.b16 %v7892
    %v8258 = vunpack.c.h.b16 %v7892
    %v8259 = vunpack.c.l.b16 %v7893
    %v8260 = vunpack.c.h.b16 %v7893
    %v8261 = vunpack.c.l.b16 %v7894
    %v8262 = vunpack.c.h.b16 %v7894
    %v8263 = vunpack.c.l.b16 %v7895
    %v8264 = vunpack.c.h.b16 %v7895
    %v8265 = vunpack.c.l.b16 %v7896
    %v8266 = vunpack.c.h.b16 %v7896
    %v8267 = vunpack.c.l.b16 %v7897
    %v8268 = vunpack.c.h.b16 %v7897
    %v8269 = vunpack.c.l.b16 %v7898
    %v8270 = vunpack.c.h.b16 %v7898
    %v8271 = vunpack.c.l.b16 %v7899
    %v8272 = vunpack.c.h.b16 %v7899
    %v8273 = vunpack.c.l.b16 %v7900
    %v8274 = vunpack.c.h.b16 %v7900
    %v8275 = vunpack.c.l.b16 %v7901
    %v8276 = vunpack.c.h.b16 %v7901
    %v8277 = vunpack.c.l.b16 %v7902
    %v8278 = vunpack.c.h.b16 %v7902
    %v8279 = vunpack.c.l.b16 %v7903
    %v8280 = vunpack.c.h.b16 %v7903
    %v8281 = vunpack.c.l.b16 %v7904
    %v8282 = vunpack.c.h.b16 %v7904
    %v8283 = vunpack.c.l.b16 %v7905
    %v8284 = vunpack.c.h.b16 %v7905
    %v8285 = vunpack.c.l.b16 %v7906
    %v8286 = vunpack.c.h.b16 %v7906
    %v8287 = vunpack.c.l.b16 %v7907
    %v8288 = vunpack.c.h.b16 %v7907
    %v8289 = vunpack.c.l.b16 %v7908
    %v8290 = vunpack.c.h.b16 %v7908
    %v8291 = vunpack.c.l.b16 %v7909
    %v8292 = vunpack.c.h.b16 %v7909
    %v8293 = vunpack.c.l.b16 %v7910
    %v8294 = vunpack.c.h.b16 %v7910
    %v8295 = vunpack.c.l.b16 %v7911
    %v8296 = vunpack.c.h.b16 %v7911
    %v8297 = vunpack.c.l.b16 %v7912
    %v8298 = vunpack.c.h.b16 %v7912
    %v8299 = vunpack.c.l.b16 %v7913
    %v8300 = vunpack.c.h.b16 %v7913
    %v8301 = vunpack.c.l.b16 %v7914
    %v8302 = vunpack.c.h.b16 %v7914
    %v8303 = vunpack.c.l.b16 %v7915
    %v8304 = vunpack.c.h.b16 %v7915
    %v8305 = vunpack.c.l.b16 %v7916
    %v8306 = vunpack.c.h.b16 %v7916
    %v8307 = vpack.c.b16 %v8053, %v8051
    %v8308 = vpack.c.b16 %v8054, %v8052
    %v8309 = vpack.c.b16 %v8057, %v8055
    %v8310 = vpack.c.b16 %v8058, %v8056
    %v8311 = vpack.c.b16 %v8061, %v8059
    %v8312 = vpack.c.b16 %v8062, %v8060
    %v8313 = vpack.c.b16 %v8065, %v8063
    %v8314 = vpack.c.b16 %v8066, %v8064
    %v8315 = vpack.c.b16 %v8069, %v8067
    %v8316 = vpack.c.b16 %v8070, %v8068
    %v8317 = vpack.c.b16 %v8073, %v8071
    %v8318 = vpack.c.b16 %v8074, %v8072
    %v8319 = vpack.c.b16 %v8077, %v8075
    %v8320 = vpack.c.b16 %v8078, %v8076
    %v8321 = vpack.c.b16 %v8081, %v8079
    %v8322 = vpack.c.b16 %v8082, %v8080
    %v8323 = vpack.c.b16 %v8085, %v8083
    %v8324 = vpack.c.b16 %v8086, %v8084
    %v8325 = vpack.c.b16 %v8089, %v8087
    %v8326 = vpack.c.b16 %v8090, %v8088
    %v8327 = vpack.c.b16 %v8093, %v8091
    %v8328 = vpack.c.b16 %v8094, %v8092
    %v8329 = vpack.c.b16 %v8097, %v8095
    %v8330 = vpack.c.b16 %v8098, %v8096
    %v8331 = vpack.c.b16 %v8101, %v8099
    %v8332 = vpack.c.b16 %v8102, %v8100
    %v8333 = vpack.c.b16 %v8105, %v8103
    %v8334 = vpack.c.b16 %v8106, %v8104
    %v8335 = vpack.c.b16 %v8109, %v8107
    %v8336 = vpack.c.b16 %v8110, %v8108
    %v8337 = vpack.c.b16 %v8113, %v8111
    %v8338 = vpack.c.b16 %v8114, %v8112
    %v8339 = vpack.c.b16 %v8117, %v8115
    %v8340 = vpack.c.b16 %v8118, %v8116
    %v8341 = vpack.c.b16 %v8121, %v8119
    %v8342 = vpack.c.b16 %v8122, %v8120
    %v8343 = vpack.c.b16 %v8125, %v8123
    %v8344 = vpack.c.b16 %v8126, %v8124
    %v8345 = vpack.c.b16 %v8129, %v8127
    %v8346 = vpack.c.b16 %v8130, %v8128
    %v8347 = vpack.c.b16 %v8133, %v8131
    %v8348 = vpack.c.b16 %v8134, %v8132
    %v8349 = vpack.c.b16 %v8137, %v8135
    %v8350 = vpack.c.b16 %v8138, %v8136
    %v8351 = vpack.c.b16 %v8141, %v8139
    %v8352 = vpack.c.b16 %v8142, %v8140
    %v8353 = vpack.c.b16 %v8145, %v8143
    %v8354 = vpack.c.b16 %v8146, %v8144
    %v8355 = vpack.c.b16 %v8149, %v8147
    %v8356 = vpack.c.b16 %v8150, %v8148
    %v8357 = vpack.c.b16 %v8153, %v8151
    %v8358 = vpack.c.b16 %v8154, %v8152
    %v8359 = vpack.c.b16 %v8157, %v8155
    %v8360 = vpack.c.b16 %v8158, %v8156
    %v8361 = vpack.c.b16 %v8161, %v8159
    %v8362 = vpack.c.b16 %v8162, %v8160
    %v8363 = vpack.c.b16 %v8165, %v8163
    %v8364 = vpack.c.b16 %v8166, %v8164
    %v8365 = vpack.c.b16 %v8169, %v8167
    %v8366 = vpack.c.b16 %v8170, %v8168
    %v8367 = vpack.c.b16 %v8173, %v8171
    %v8368 = vpack.c.b16 %v8174, %v8172
    %v8369 = vpack.c.b16 %v8177, %v8175
    %v8370 = vpack.c.b16 %v8178, %v8176
    %v8371 = vpack.c.b16 %v8181, %v8179
    %v8372 = vpack.c.b16 %v8182, %v8180
    %v8373 = vpack.c.b16 %v8185, %v8183
    %v8374 = vpack.c.b16 %v8186, %v8184
    %v8375 = vpack.c.b16 %v8189, %v8187
    %v8376 = vpack.c.b16 %v8190, %v8188
    %v8377 = vpack.c.b16 %v8193, %v8191
    %v8378 = vpack.c.b16 %v8194, %v8192
    %v8379 = vpack.c.b16 %v8197, %v8195
    %v8380 = vpack.c.b16 %v8198, %v8196
    %v8381 = vpack.c.b16 %v8201, %v8199
    %v8382 = vpack.c.b16 %v8202, %v8200
    %v8383 = vpack.c.b16 %v8205, %v8203
    %v8384 = vpack.c.b16 %v8206, %v8204
    %v8385 = vpack.c.b16 %v8209, %v8207
    %v8386 = vpack.c.b16 %v8210, %v8208
    %v8387 = vpack.c.b16 %v8213, %v8211
    %v8388 = vpack.c.b16 %v8214, %v8212
    %v8389 = vpack.c.b16 %v8217, %v8215
    %v8390 = vpack.c.b16 %v8218, %v8216
    %v8391 = vpack.c.b16 %v8221, %v8219
    %v8392 = vpack.c.b16 %v8222, %v8220
    %v8393 = vpack.c.b16 %v8225, %v8223
    %v8394 = vpack.c.b16 %v8226, %v8224
    %v8395 = vpack.c.b16 %v8229, %v8227
    %v8396 = vpack.c.b16 %v8230, %v8228
    %v8397 = vpack.c.b16 %v8233, %v8231
    %v8398 = vpack.c.b16 %v8234, %v8232
    %v8399 = vpack.c.b16 %v8237, %v8235
    %v8400 = vpack.c.b16 %v8238, %v8236
    %v8401 = vpack.c.b16 %v8241, %v8239
    %v8402 = vpack.c.b16 %v8242, %v8240
    %v8403 = vpack.c.b16 %v8245, %v8243
    %v8404 = vpack.c.b16 %v8246, %v8244
    %v8405 = vpack.c.b16 %v8249, %v8247
    %v8406 = vpack.c.b16 %v8250, %v8248
    %v8407 = vpack.c.b16 %v8253, %v8251
    %v8408 = vpack.c.b16 %v8254, %v8252
    %v8409 = vpack.c.b16 %v8257, %v8255
    %v8410 = vpack.c.b16 %v8258, %v8256
    %v8411 = vpack.c.b16 %v8261, %v8259
    %v8412 = vpack.c.b16 %v8262, %v8260
    %v8413 = vpack.c.b16 %v8265, %v8263
    %v8414 = vpack.c.b16 %v8266, %v8264
    %v8415 = vpack.c.b16 %v8269, %v8267
    %v8416 = vpack.c.b16 %v8270, %v8268
    %v8417 = vpack.c.b16 %v8273, %v8271
    %v8418 = vpack.c.b16 %v8274, %v8272
    %v8419 = vpack.c.b16 %v8277, %v8275
    %v8420 = vpack.c.b16 %v8278, %v8276
    %v8421 = vpack.c.b16 %v8281, %v8279
    %v8422 = vpack.c.b16 %v8282, %v8280
    %v8423 = vpack.c.b16 %v8285, %v8283
    %v8424 = vpack.c.b16 %v8286, %v8284
    %v8425 = vpack.c.b16 %v8289, %v8287
    %v8426 = vpack.c.b16 %v8290, %v8288
    %v8427 = vpack.c.b16 %v8293, %v8291
    %v8428 = vpack.c.b16 %v8294, %v8292
    %v8429 = vpack.c.b16 %v8297, %v8295
    %v8430 = vpack.c.b16 %v8298, %v8296
    %v8431 = vpack.c.b16 %v8301, %v8299
    %v8432 = vpack.c.b16 %v8302, %v8300
    %v8433 = vpack.c.b16 %v8305, %v8303
    %v8434 = vpack.c.b16 %v8306, %v8304
    %8563 = vmatpush.bf16.msra.mxu0 %v8321
    %8564 = vmatpush.bf16.msra.mxu0 %v8319
    %8565 = vmatpush.bf16.msra.mxu0 %v8317
    %8566 = vmatpush.bf16.msra.mxu0 %v8315
    %8567 = vmatpush.bf16.msra.mxu0 %v8313
    %8568 = vmatpush.bf16.msra.mxu0 %v8311
    %8569 = vmatpush.bf16.msra.mxu0 %v8309
    %8570 = vmatpush.bf16.msra.mxu0 %v8307
    %8571 = vmatmul.bf16.gmra.mxu0 %v7661
    %v8572 = vpop.f32.mrf.mxu0
    %v8573 = vadd.f32 %v7919, %v8572
    %v8574 = vpop.f32.mrf.mxu0
    %v8575 = vadd.f32 %v7919, %v8574
    %8576 = vmatmul.bf16.gmra.mxu0 %v7669
    %v8577 = vpop.f32.mrf.mxu0
    %v8578 = vadd.f32 %v7919, %v8577
    %v8579 = vpop.f32.mrf.mxu0
    %v8580 = vadd.f32 %v7919, %v8579
    %8581 = vmatmul.bf16.gmra.mxu0 %v7677
    %v8582 = vpop.f32.mrf.mxu0
    %v8583 = vadd.f32 %v7919, %v8582
    %v8584 = vpop.f32.mrf.mxu0
    %v8585 = vadd.f32 %v7919, %v8584
    %8586 = vmatmul.bf16.gmra.mxu0 %v7685
    %v8587 = vpop.f32.mrf.mxu0
    %v8588 = vadd.f32 %v7919, %v8587
    %v8589 = vpop.f32.mrf.mxu0
    %v8590 = vadd.f32 %v7919, %v8589
    %8591 = vmatmul.bf16.gmra.mxu0 %v7693
    %v8592 = vpop.f32.mrf.mxu0
    %v8593 = vadd.f32 %v7919, %v8592
    %v8594 = vpop.f32.mrf.mxu0
    %v8595 = vadd.f32 %v7919, %v8594
    %8596 = vmatmul.bf16.gmra.mxu0 %v7701
    %v8597 = vpop.f32.mrf.mxu0
    %v8598 = vadd.f32 %v7919, %v8597
    %v8599 = vpop.f32.mrf.mxu0
    %v8600 = vadd.f32 %v7919, %v8599
    %8601 = vmatmul.bf16.gmra.mxu0 %v7709
    %v8602 = vpop.f32.mrf.mxu0
    %v8603 = vadd.f32 %v7919, %v8602
    %v8604 = vpop.f32.mrf.mxu0
    %v8605 = vadd.f32 %v7919, %v8604
    %8606 = vmatmul.bf16.gmra.mxu0 %v7717
    %v8607 = vpop.f32.mrf.mxu0
    %v8608 = vadd.f32 %v7919, %v8607
    %v8609 = vpop.f32.mrf.mxu0
    %v8610 = vadd.f32 %v7919, %v8609
    %8611 = vmatmul.bf16.gmra.mxu0 %v7725
    %v8612 = vpop.f32.mrf.mxu0
    %v8613 = vadd.f32 %v7919, %v8612
    %v8614 = vpop.f32.mrf.mxu0
    %v8615 = vadd.f32 %v7919, %v8614
    %8616 = vmatmul.bf16.gmra.mxu0 %v7733
    %v8617 = vpop.f32.mrf.mxu0
    %v8618 = vadd.f32 %v7919, %v8617
    %v8619 = vpop.f32.mrf.mxu0
    %v8620 = vadd.f32 %v7919, %v8619
    %8621 = vmatmul.bf16.gmra.mxu0 %v7741
    %v8622 = vpop.f32.mrf.mxu0
    %v8623 = vadd.f32 %v7919, %v8622
    %v8624 = vpop.f32.mrf.mxu0
    %v8625 = vadd.f32 %v7919, %v8624
    %8626 = vmatmul.bf16.gmra.mxu0 %v7749
    %v8627 = vpop.f32.mrf.mxu0
    %v8628 = vadd.f32 %v7919, %v8627
    %v8629 = vpop.f32.mrf.mxu0
    %v8630 = vadd.f32 %v7919, %v8629
    %8631 = vmatmul.bf16.gmra.mxu0 %v7757
    %v8632 = vpop.f32.mrf.mxu0
    %v8633 = vadd.f32 %v7919, %v8632
    %v8634 = vpop.f32.mrf.mxu0
    %v8635 = vadd.f32 %v7919, %v8634
    %8636 = vmatmul.bf16.gmra.mxu0 %v7765
    %v8637 = vpop.f32.mrf.mxu0
    %v8638 = vadd.f32 %v7919, %v8637
    %v8639 = vpop.f32.mrf.mxu0
    %v8640 = vadd.f32 %v7919, %v8639
    %8641 = vmatmul.bf16.gmra.mxu0 %v7773
    %v8642 = vpop.f32.mrf.mxu0
    %v8643 = vadd.f32 %v7919, %v8642
    %v8644 = vpop.f32.mrf.mxu0
    %v8645 = vadd.f32 %v7919, %v8644
    %8646 = vmatmul.bf16.gmra.mxu0 %v7781
    %v8647 = vpop.f32.mrf.mxu0
    %v8648 = vadd.f32 %v7919, %v8647
    %v8649 = vpop.f32.mrf.mxu0
    %v8650 = vadd.f32 %v7919, %v8649
    %8651 = vdwg.mxu0
    %8652 = vmatpush.bf16.msra.mxu0 %v8337
    %8653 = vmatpush.bf16.msra.mxu0 %v8335
    %8654 = vmatpush.bf16.msra.mxu0 %v8333
    %8655 = vmatpush.bf16.msra.mxu0 %v8331
    %8656 = vmatpush.bf16.msra.mxu0 %v8329
    %8657 = vmatpush.bf16.msra.mxu0 %v8327
    %8658 = vmatpush.bf16.msra.mxu0 %v8325
    %8659 = vmatpush.bf16.msra.mxu0 %v8323
    %8660 = vmatmul.bf16.gmra.mxu0 %v7662
    %v8661 = vpop.f32.mrf.mxu0
    %v8662 = vadd.f32 %v8573, %v8661
    %v8663 = vpop.f32.mrf.mxu0
    %v8664 = vadd.f32 %v8575, %v8663
    %8665 = vmatmul.bf16.gmra.mxu0 %v7670
    %v8666 = vpop.f32.mrf.mxu0
    %v8667 = vadd.f32 %v8578, %v8666
    %v8668 = vpop.f32.mrf.mxu0
    %v8669 = vadd.f32 %v8580, %v8668
    %8670 = vmatmul.bf16.gmra.mxu0 %v7678
    %v8671 = vpop.f32.mrf.mxu0
    %v8672 = vadd.f32 %v8583, %v8671
    %v8673 = vpop.f32.mrf.mxu0
    %v8674 = vadd.f32 %v8585, %v8673
    %8675 = vmatmul.bf16.gmra.mxu0 %v7686
    %v8676 = vpop.f32.mrf.mxu0
    %v8677 = vadd.f32 %v8588, %v8676
    %v8678 = vpop.f32.mrf.mxu0
    %v8679 = vadd.f32 %v8590, %v8678
    %8680 = vmatmul.bf16.gmra.mxu0 %v7694
    %v8681 = vpop.f32.mrf.mxu0
    %v8682 = vadd.f32 %v8593, %v8681
    %v8683 = vpop.f32.mrf.mxu0
    %v8684 = vadd.f32 %v8595, %v8683
    %8685 = vmatmul.bf16.gmra.mxu0 %v7702
    %v8686 = vpop.f32.mrf.mxu0
    %v8687 = vadd.f32 %v8598, %v8686
    %v8688 = vpop.f32.mrf.mxu0
    %v8689 = vadd.f32 %v8600, %v8688
    %8690 = vmatmul.bf16.gmra.mxu0 %v7710
    %v8691 = vpop.f32.mrf.mxu0
    %v8692 = vadd.f32 %v8603, %v8691
    %v8693 = vpop.f32.mrf.mxu0
    %v8694 = vadd.f32 %v8605, %v8693
    %8695 = vmatmul.bf16.gmra.mxu0 %v7718
    %v8696 = vpop.f32.mrf.mxu0
    %v8697 = vadd.f32 %v8608, %v8696
    %v8698 = vpop.f32.mrf.mxu0
    %v8699 = vadd.f32 %v8610, %v8698
    %8700 = vmatmul.bf16.gmra.mxu0 %v7726
    %v8701 = vpop.f32.mrf.mxu0
    %v8702 = vadd.f32 %v8613, %v8701
    %v8703 = vpop.f32.mrf.mxu0
    %v8704 = vadd.f32 %v8615, %v8703
    %8705 = vmatmul.bf16.gmra.mxu0 %v7734
    %v8706 = vpop.f32.mrf.mxu0
    %v8707 = vadd.f32 %v8618, %v8706
    %v8708 = vpop.f32.mrf.mxu0
    %v8709 = vadd.f32 %v8620, %v8708
    %8710 = vmatmul.bf16.gmra.mxu0 %v7742
    %v8711 = vpop.f32.mrf.mxu0
    %v8712 = vadd.f32 %v8623, %v8711
    %v8713 = vpop.f32.mrf.mxu0
    %v8714 = vadd.f32 %v8625, %v8713
    %8715 = vmatmul.bf16.gmra.mxu0 %v7750
    %v8716 = vpop.f32.mrf.mxu0
    %v8717 = vadd.f32 %v8628, %v8716
    %v8718 = vpop.f32.mrf.mxu0
    %v8719 = vadd.f32 %v8630, %v8718
    %8720 = vmatmul.bf16.gmra.mxu0 %v7758
    %v8721 = vpop.f32.mrf.mxu0
    %v8722 = vadd.f32 %v8633, %v8721
    %v8723 = vpop.f32.mrf.mxu0
    %v8724 = vadd.f32 %v8635, %v8723
    %8725 = vmatmul.bf16.gmra.mxu0 %v7766
    %v8726 = vpop.f32.mrf.mxu0
    %v8727 = vadd.f32 %v8638, %v8726
    %v8728 = vpop.f32.mrf.mxu0
    %v8729 = vadd.f32 %v8640, %v8728
    %8730 = vmatmul.bf16.gmra.mxu0 %v7774
    %v8731 = vpop.f32.mrf.mxu0
    %v8732 = vadd.f32 %v8643, %v8731
    %v8733 = vpop.f32.mrf.mxu0
    %v8734 = vadd.f32 %v8645, %v8733
    %8735 = vmatmul.bf16.gmra.mxu0 %v7782
    %v8736 = vpop.f32.mrf.mxu0
    %v8737 = vadd.f32 %v8648, %v8736
    %v8738 = vpop.f32.mrf.mxu0
    %v8739 = vadd.f32 %v8650, %v8738
    %8740 = vdwg.mxu0
    %8741 = vmatpush.bf16.msra.mxu0 %v8353
    %8742 = vmatpush.bf16.msra.mxu0 %v8351
    %8743 = vmatpush.bf16.msra.mxu0 %v8349
    %8744 = vmatpush.bf16.msra.mxu0 %v8347
    %8745 = vmatpush.bf16.msra.mxu0 %v8345
    %8746 = vmatpush.bf16.msra.mxu0 %v8343
    %8747 = vmatpush.bf16.msra.mxu0 %v8341
    %8748 = vmatpush.bf16.msra.mxu0 %v8339
    %8749 = vmatmul.bf16.gmra.mxu0 %v7663
    %v8750 = vpop.f32.mrf.mxu0
    %v8751 = vadd.f32 %v8662, %v8750
    %v8752 = vpop.f32.mrf.mxu0
    %v8753 = vadd.f32 %v8664, %v8752
    %8754 = vmatmul.bf16.gmra.mxu0 %v7671
    %v8755 = vpop.f32.mrf.mxu0
    %v8756 = vadd.f32 %v8667, %v8755
    %v8757 = vpop.f32.mrf.mxu0
    %v8758 = vadd.f32 %v8669, %v8757
    %8759 = vmatmul.bf16.gmra.mxu0 %v7679
    %v8760 = vpop.f32.mrf.mxu0
    %v8761 = vadd.f32 %v8672, %v8760
    %v8762 = vpop.f32.mrf.mxu0
    %v8763 = vadd.f32 %v8674, %v8762
    %8764 = vmatmul.bf16.gmra.mxu0 %v7687
    %v8765 = vpop.f32.mrf.mxu0
    %v8766 = vadd.f32 %v8677, %v8765
    %v8767 = vpop.f32.mrf.mxu0
    %v8768 = vadd.f32 %v8679, %v8767
    %8769 = vmatmul.bf16.gmra.mxu0 %v7695
    %v8770 = vpop.f32.mrf.mxu0
    %v8771 = vadd.f32 %v8682, %v8770
    %v8772 = vpop.f32.mrf.mxu0
    %v8773 = vadd.f32 %v8684, %v8772
    %8774 = vmatmul.bf16.gmra.mxu0 %v7703
    %v8775 = vpop.f32.mrf.mxu0
    %v8776 = vadd.f32 %v8687, %v8775
    %v8777 = vpop.f32.mrf.mxu0
    %v8778 = vadd.f32 %v8689, %v8777
    %8779 = vmatmul.bf16.gmra.mxu0 %v7711
    %v8780 = vpop.f32.mrf.mxu0
    %v8781 = vadd.f32 %v8692, %v8780
    %v8782 = vpop.f32.mrf.mxu0
    %v8783 = vadd.f32 %v8694, %v8782
    %8784 = vmatmul.bf16.gmra.mxu0 %v7719
    %v8785 = vpop.f32.mrf.mxu0
    %v8786 = vadd.f32 %v8697, %v8785
    %v8787 = vpop.f32.mrf.mxu0
    %v8788 = vadd.f32 %v8699, %v8787
    %8789 = vmatmul.bf16.gmra.mxu0 %v7727
    %v8790 = vpop.f32.mrf.mxu0
    %v8791 = vadd.f32 %v8702, %v8790
    %v8792 = vpop.f32.mrf.mxu0
    %v8793 = vadd.f32 %v8704, %v8792
    %8794 = vmatmul.bf16.gmra.mxu0 %v7735
    %v8795 = vpop.f32.mrf.mxu0
    %v8796 = vadd.f32 %v8707, %v8795
    %v8797 = vpop.f32.mrf.mxu0
    %v8798 = vadd.f32 %v8709, %v8797
    %8799 = vmatmul.bf16.gmra.mxu0 %v7743
    %v8800 = vpop.f32.mrf.mxu0
    %v8801 = vadd.f32 %v8712, %v8800
    %v8802 = vpop.f32.mrf.mxu0
    %v8803 = vadd.f32 %v8714, %v8802
    %8804 = vmatmul.bf16.gmra.mxu0 %v7751
    %v8805 = vpop.f32.mrf.mxu0
    %v8806 = vadd.f32 %v8717, %v8805
    %v8807 = vpop.f32.mrf.mxu0
    %v8808 = vadd.f32 %v8719, %v8807
    %8809 = vmatmul.bf16.gmra.mxu0 %v7759
    %v8810 = vpop.f32.mrf.mxu0
    %v8811 = vadd.f32 %v8722, %v8810
    %v8812 = vpop.f32.mrf.mxu0
    %v8813 = vadd.f32 %v8724, %v8812
    %8814 = vmatmul.bf16.gmra.mxu0 %v7767
    %v8815 = vpop.f32.mrf.mxu0
    %v8816 = vadd.f32 %v8727, %v8815
    %v8817 = vpop.f32.mrf.mxu0
    %v8818 = vadd.f32 %v8729, %v8817
    %8819 = vmatmul.bf16.gmra.mxu0 %v7775
    %v8820 = vpop.f32.mrf.mxu0
    %v8821 = vadd.f32 %v8732, %v8820
    %v8822 = vpop.f32.mrf.mxu0
    %v8823 = vadd.f32 %v8734, %v8822
    %8824 = vmatmul.bf16.gmra.mxu0 %v7783
    %v8825 = vpop.f32.mrf.mxu0
    %v8826 = vadd.f32 %v8737, %v8825
    %v8827 = vpop.f32.mrf.mxu0
    %v8828 = vadd.f32 %v8739, %v8827
    %8829 = vdwg.mxu0
    %8830 = vmatpush.bf16.msra.mxu0 %v8369
    %8831 = vmatpush.bf16.msra.mxu0 %v8367
    %8832 = vmatpush.bf16.msra.mxu0 %v8365
    %8833 = vmatpush.bf16.msra.mxu0 %v8363
    %8834 = vmatpush.bf16.msra.mxu0 %v8361
    %8835 = vmatpush.bf16.msra.mxu0 %v8359
    %8836 = vmatpush.bf16.msra.mxu0 %v8357
    %8837 = vmatpush.bf16.msra.mxu0 %v8355
    %8838 = vmatmul.bf16.gmra.mxu0 %v7664
    %v8839 = vpop.f32.mrf.mxu0
    %v8840 = vadd.f32 %v8751, %v8839
    %v8841 = vpop.f32.mrf.mxu0
    %v8842 = vadd.f32 %v8753, %v8841
    %8843 = vmatmul.bf16.gmra.mxu0 %v7672
    %v8844 = vpop.f32.mrf.mxu0
    %v8845 = vadd.f32 %v8756, %v8844
    %v8846 = vpop.f32.mrf.mxu0
    %v8847 = vadd.f32 %v8758, %v8846
    %8848 = vmatmul.bf16.gmra.mxu0 %v7680
    %v8849 = vpop.f32.mrf.mxu0
    %v8850 = vadd.f32 %v8761, %v8849
    %v8851 = vpop.f32.mrf.mxu0
    %v8852 = vadd.f32 %v8763, %v8851
    %8853 = vmatmul.bf16.gmra.mxu0 %v7688
    %v8854 = vpop.f32.mrf.mxu0
    %v8855 = vadd.f32 %v8766, %v8854
    %v8856 = vpop.f32.mrf.mxu0
    %v8857 = vadd.f32 %v8768, %v8856
    %8858 = vmatmul.bf16.gmra.mxu0 %v7696
    %v8859 = vpop.f32.mrf.mxu0
    %v8860 = vadd.f32 %v8771, %v8859
    %v8861 = vpop.f32.mrf.mxu0
    %v8862 = vadd.f32 %v8773, %v8861
    %8863 = vmatmul.bf16.gmra.mxu0 %v7704
    %v8864 = vpop.f32.mrf.mxu0
    %v8865 = vadd.f32 %v8776, %v8864
    %v8866 = vpop.f32.mrf.mxu0
    %v8867 = vadd.f32 %v8778, %v8866
    %8868 = vmatmul.bf16.gmra.mxu0 %v7712
    %v8869 = vpop.f32.mrf.mxu0
    %v8870 = vadd.f32 %v8781, %v8869
    %v8871 = vpop.f32.mrf.mxu0
    %v8872 = vadd.f32 %v8783, %v8871
    %8873 = vmatmul.bf16.gmra.mxu0 %v7720
    %v8874 = vpop.f32.mrf.mxu0
    %v8875 = vadd.f32 %v8786, %v8874
    %v8876 = vpop.f32.mrf.mxu0
    %v8877 = vadd.f32 %v8788, %v8876
    %8878 = vmatmul.bf16.gmra.mxu0 %v7728
    %v8879 = vpop.f32.mrf.mxu0
    %v8880 = vadd.f32 %v8791, %v8879
    %v8881 = vpop.f32.mrf.mxu0
    %v8882 = vadd.f32 %v8793, %v8881
    %8883 = vmatmul.bf16.gmra.mxu0 %v7736
    %v8884 = vpop.f32.mrf.mxu0
    %v8885 = vadd.f32 %v8796, %v8884
    %v8886 = vpop.f32.mrf.mxu0
    %v8887 = vadd.f32 %v8798, %v8886
    %8888 = vmatmul.bf16.gmra.mxu0 %v7744
    %v8889 = vpop.f32.mrf.mxu0
    %v8890 = vadd.f32 %v8801, %v8889
    %v8891 = vpop.f32.mrf.mxu0
    %v8892 = vadd.f32 %v8803, %v8891
    %8893 = vmatmul.bf16.gmra.mxu0 %v7752
    %v8894 = vpop.f32.mrf.mxu0
    %v8895 = vadd.f32 %v8806, %v8894
    %v8896 = vpop.f32.mrf.mxu0
    %v8897 = vadd.f32 %v8808, %v8896
    %8898 = vmatmul.bf16.gmra.mxu0 %v7760
    %v8899 = vpop.f32.mrf.mxu0
    %v8900 = vadd.f32 %v8811, %v8899
    %v8901 = vpop.f32.mrf.mxu0
    %v8902 = vadd.f32 %v8813, %v8901
    %8903 = vmatmul.bf16.gmra.mxu0 %v7768
    %v8904 = vpop.f32.mrf.mxu0
    %v8905 = vadd.f32 %v8816, %v8904
    %v8906 = vpop.f32.mrf.mxu0
    %v8907 = vadd.f32 %v8818, %v8906
    %8908 = vmatmul.bf16.gmra.mxu0 %v7776
    %v8909 = vpop.f32.mrf.mxu0
    %v8910 = vadd.f32 %v8821, %v8909
    %v8911 = vpop.f32.mrf.mxu0
    %v8912 = vadd.f32 %v8823, %v8911
    %8913 = vmatmul.bf16.gmra.mxu0 %v7784
    %v8914 = vpop.f32.mrf.mxu0
    %v8915 = vadd.f32 %v8826, %v8914
    %v8916 = vpop.f32.mrf.mxu0
    %v8917 = vadd.f32 %v8828, %v8916
    %8918 = vdwg.mxu0
    %8919 = vmatpush.bf16.msra.mxu0 %v8385
    %8920 = vmatpush.bf16.msra.mxu0 %v8383
    %8921 = vmatpush.bf16.msra.mxu0 %v8381
    %8922 = vmatpush.bf16.msra.mxu0 %v8379
    %8923 = vmatpush.bf16.msra.mxu0 %v8377
    %8924 = vmatpush.bf16.msra.mxu0 %v8375
    %8925 = vmatpush.bf16.msra.mxu0 %v8373
    %8926 = vmatpush.bf16.msra.mxu0 %v8371
    %8927 = vmatmul.bf16.gmra.mxu0 %v7665
    %v8928 = vpop.f32.mrf.mxu0
    %v8929 = vadd.f32 %v8840, %v8928
    %v8930 = vpop.f32.mrf.mxu0
    %v8931 = vadd.f32 %v8842, %v8930
    %8932 = vmatmul.bf16.gmra.mxu0 %v7673
    %v8933 = vpop.f32.mrf.mxu0
    %v8934 = vadd.f32 %v8845, %v8933
    %v8935 = vpop.f32.mrf.mxu0
    %v8936 = vadd.f32 %v8847, %v8935
    %8937 = vmatmul.bf16.gmra.mxu0 %v7681
    %v8938 = vpop.f32.mrf.mxu0
    %v8939 = vadd.f32 %v8850, %v8938
    %v8940 = vpop.f32.mrf.mxu0
    %v8941 = vadd.f32 %v8852, %v8940
    %8942 = vmatmul.bf16.gmra.mxu0 %v7689
    %v8943 = vpop.f32.mrf.mxu0
    %v8944 = vadd.f32 %v8855, %v8943
    %v8945 = vpop.f32.mrf.mxu0
    %v8946 = vadd.f32 %v8857, %v8945
    %8947 = vmatmul.bf16.gmra.mxu0 %v7697
    %v8948 = vpop.f32.mrf.mxu0
    %v8949 = vadd.f32 %v8860, %v8948
    %v8950 = vpop.f32.mrf.mxu0
    %v8951 = vadd.f32 %v8862, %v8950
    %8952 = vmatmul.bf16.gmra.mxu0 %v7705
    %v8953 = vpop.f32.mrf.mxu0
    %v8954 = vadd.f32 %v8865, %v8953
    %v8955 = vpop.f32.mrf.mxu0
    %v8956 = vadd.f32 %v8867, %v8955
    %8957 = vmatmul.bf16.gmra.mxu0 %v7713
    %v8958 = vpop.f32.mrf.mxu0
    %v8959 = vadd.f32 %v8870, %v8958
    %v8960 = vpop.f32.mrf.mxu0
    %v8961 = vadd.f32 %v8872, %v8960
    %8962 = vmatmul.bf16.gmra.mxu0 %v7721
    %v8963 = vpop.f32.mrf.mxu0
    %v8964 = vadd.f32 %v8875, %v8963
    %v8965 = vpop.f32.mrf.mxu0
    %v8966 = vadd.f32 %v8877, %v8965
    %8967 = vmatmul.bf16.gmra.mxu0 %v7729
    %v8968 = vpop.f32.mrf.mxu0
    %v8969 = vadd.f32 %v8880, %v8968
    %v8970 = vpop.f32.mrf.mxu0
    %v8971 = vadd.f32 %v8882, %v8970
    %8972 = vmatmul.bf16.gmra.mxu0 %v7737
    %v8973 = vpop.f32.mrf.mxu0
    %v8974 = vadd.f32 %v8885, %v8973
    %v8975 = vpop.f32.mrf.mxu0
    %v8976 = vadd.f32 %v8887, %v8975
    %8977 = vmatmul.bf16.gmra.mxu0 %v7745
    %v8978 = vpop.f32.mrf.mxu0
    %v8979 = vadd.f32 %v8890, %v8978
    %v8980 = vpop.f32.mrf.mxu0
    %v8981 = vadd.f32 %v8892, %v8980
    %8982 = vmatmul.bf16.gmra.mxu0 %v7753
    %v8983 = vpop.f32.mrf.mxu0
    %v8984 = vadd.f32 %v8895, %v8983
    %v8985 = vpop.f32.mrf.mxu0
    %v8986 = vadd.f32 %v8897, %v8985
    %8987 = vmatmul.bf16.gmra.mxu0 %v7761
    %v8988 = vpop.f32.mrf.mxu0
    %v8989 = vadd.f32 %v8900, %v8988
    %v8990 = vpop.f32.mrf.mxu0
    %v8991 = vadd.f32 %v8902, %v8990
    %8992 = vmatmul.bf16.gmra.mxu0 %v7769
    %v8993 = vpop.f32.mrf.mxu0
    %v8994 = vadd.f32 %v8905, %v8993
    %v8995 = vpop.f32.mrf.mxu0
    %v8996 = vadd.f32 %v8907, %v8995
    %8997 = vmatmul.bf16.gmra.mxu0 %v7777
    %v8998 = vpop.f32.mrf.mxu0
    %v8999 = vadd.f32 %v8910, %v8998
    %v9000 = vpop.f32.mrf.mxu0
    %v9001 = vadd.f32 %v8912, %v9000
    %9002 = vmatmul.bf16.gmra.mxu0 %v7785
    %v9003 = vpop.f32.mrf.mxu0
    %v9004 = vadd.f32 %v8915, %v9003
    %v9005 = vpop.f32.mrf.mxu0
    %v9006 = vadd.f32 %v8917, %v9005
    %9007 = vdwg.mxu0
    %9008 = vmatpush.bf16.msra.mxu0 %v8401
    %9009 = vmatpush.bf16.msra.mxu0 %v8399
    %9010 = vmatpush.bf16.msra.mxu0 %v8397
    %9011 = vmatpush.bf16.msra.mxu0 %v8395
    %9012 = vmatpush.bf16.msra.mxu0 %v8393
    %9013 = vmatpush.bf16.msra.mxu0 %v8391
    %9014 = vmatpush.bf16.msra.mxu0 %v8389
    %9015 = vmatpush.bf16.msra.mxu0 %v8387
    %9016 = vmatmul.bf16.gmra.mxu0 %v7666
    %v9017 = vpop.f32.mrf.mxu0
    %v9018 = vadd.f32 %v8929, %v9017
    %v9019 = vpop.f32.mrf.mxu0
    %v9020 = vadd.f32 %v8931, %v9019
    %9021 = vmatmul.bf16.gmra.mxu0 %v7674
    %v9022 = vpop.f32.mrf.mxu0
    %v9023 = vadd.f32 %v8934, %v9022
    %v9024 = vpop.f32.mrf.mxu0
    %v9025 = vadd.f32 %v8936, %v9024
    %9026 = vmatmul.bf16.gmra.mxu0 %v7682
    %v9027 = vpop.f32.mrf.mxu0
    %v9028 = vadd.f32 %v8939, %v9027
    %v9029 = vpop.f32.mrf.mxu0
    %v9030 = vadd.f32 %v8941, %v9029
    %9031 = vmatmul.bf16.gmra.mxu0 %v7690
    %v9032 = vpop.f32.mrf.mxu0
    %v9033 = vadd.f32 %v8944, %v9032
    %v9034 = vpop.f32.mrf.mxu0
    %v9035 = vadd.f32 %v8946, %v9034
    %9036 = vmatmul.bf16.gmra.mxu0 %v7698
    %v9037 = vpop.f32.mrf.mxu0
    %v9038 = vadd.f32 %v8949, %v9037
    %v9039 = vpop.f32.mrf.mxu0
    %v9040 = vadd.f32 %v8951, %v9039
    %9041 = vmatmul.bf16.gmra.mxu0 %v7706
    %v9042 = vpop.f32.mrf.mxu0
    %v9043 = vadd.f32 %v8954, %v9042
    %v9044 = vpop.f32.mrf.mxu0
    %v9045 = vadd.f32 %v8956, %v9044
    %9046 = vmatmul.bf16.gmra.mxu0 %v7714
    %v9047 = vpop.f32.mrf.mxu0
    %v9048 = vadd.f32 %v8959, %v9047
    %v9049 = vpop.f32.mrf.mxu0
    %v9050 = vadd.f32 %v8961, %v9049
    %9051 = vmatmul.bf16.gmra.mxu0 %v7722
    %v9052 = vpop.f32.mrf.mxu0
    %v9053 = vadd.f32 %v8964, %v9052
    %v9054 = vpop.f32.mrf.mxu0
    %v9055 = vadd.f32 %v8966, %v9054
    %9056 = vmatmul.bf16.gmra.mxu0 %v7730
    %v9057 = vpop.f32.mrf.mxu0
    %v9058 = vadd.f32 %v8969, %v9057
    %v9059 = vpop.f32.mrf.mxu0
    %v9060 = vadd.f32 %v8971, %v9059
    %9061 = vmatmul.bf16.gmra.mxu0 %v7738
    %v9062 = vpop.f32.mrf.mxu0
    %v9063 = vadd.f32 %v8974, %v9062
    %v9064 = vpop.f32.mrf.mxu0
    %v9065 = vadd.f32 %v8976, %v9064
    %9066 = vmatmul.bf16.gmra.mxu0 %v7746
    %v9067 = vpop.f32.mrf.mxu0
    %v9068 = vadd.f32 %v8979, %v9067
    %v9069 = vpop.f32.mrf.mxu0
    %v9070 = vadd.f32 %v8981, %v9069
    %9071 = vmatmul.bf16.gmra.mxu0 %v7754
    %v9072 = vpop.f32.mrf.mxu0
    %v9073 = vadd.f32 %v8984, %v9072
    %v9074 = vpop.f32.mrf.mxu0
    %v9075 = vadd.f32 %v8986, %v9074
    %9076 = vmatmul.bf16.gmra.mxu0 %v7762
    %v9077 = vpop.f32.mrf.mxu0
    %v9078 = vadd.f32 %v8989, %v9077
    %v9079 = vpop.f32.mrf.mxu0
    %v9080 = vadd.f32 %v8991, %v9079
    %9081 = vmatmul.bf16.gmra.mxu0 %v7770
    %v9082 = vpop.f32.mrf.mxu0
    %v9083 = vadd.f32 %v8994, %v9082
    %v9084 = vpop.f32.mrf.mxu0
    %v9085 = vadd.f32 %v8996, %v9084
    %9086 = vmatmul.bf16.gmra.mxu0 %v7778
    %v9087 = vpop.f32.mrf.mxu0
    %v9088 = vadd.f32 %v8999, %v9087
    %v9089 = vpop.f32.mrf.mxu0
    %v9090 = vadd.f32 %v9001, %v9089
    %9091 = vmatmul.bf16.gmra.mxu0 %v7786
    %v9092 = vpop.f32.mrf.mxu0
    %v9093 = vadd.f32 %v9004, %v9092
    %v9094 = vpop.f32.mrf.mxu0
    %v9095 = vadd.f32 %v9006, %v9094
    %9096 = vdwg.mxu0
    %9097 = vmatpush.bf16.msra.mxu0 %v8417
    %9098 = vmatpush.bf16.msra.mxu0 %v8415
    %9099 = vmatpush.bf16.msra.mxu0 %v8413
    %9100 = vmatpush.bf16.msra.mxu0 %v8411
    %9101 = vmatpush.bf16.msra.mxu0 %v8409
    %9102 = vmatpush.bf16.msra.mxu0 %v8407
    %9103 = vmatpush.bf16.msra.mxu0 %v8405
    %9104 = vmatpush.bf16.msra.mxu0 %v8403
    %9105 = vmatmul.bf16.gmra.mxu0 %v7667
    %v9106 = vpop.f32.mrf.mxu0
    %v9107 = vadd.f32 %v9018, %v9106
    %v9108 = vpop.f32.mrf.mxu0
    %v9109 = vadd.f32 %v9020, %v9108
    %9110 = vmatmul.bf16.gmra.mxu0 %v7675
    %v9111 = vpop.f32.mrf.mxu0
    %v9112 = vadd.f32 %v9023, %v9111
    %v9113 = vpop.f32.mrf.mxu0
    %v9114 = vadd.f32 %v9025, %v9113
    %9115 = vmatmul.bf16.gmra.mxu0 %v7683
    %v9116 = vpop.f32.mrf.mxu0
    %v9117 = vadd.f32 %v9028, %v9116
    %v9118 = vpop.f32.mrf.mxu0
    %v9119 = vadd.f32 %v9030, %v9118
    %9120 = vmatmul.bf16.gmra.mxu0 %v7691
    %v9121 = vpop.f32.mrf.mxu0
    %v9122 = vadd.f32 %v9033, %v9121
    %v9123 = vpop.f32.mrf.mxu0
    %v9124 = vadd.f32 %v9035, %v9123
    %9125 = vmatmul.bf16.gmra.mxu0 %v7699
    %v9126 = vpop.f32.mrf.mxu0
    %v9127 = vadd.f32 %v9038, %v9126
    %v9128 = vpop.f32.mrf.mxu0
    %v9129 = vadd.f32 %v9040, %v9128
    %9130 = vmatmul.bf16.gmra.mxu0 %v7707
    %v9131 = vpop.f32.mrf.mxu0
    %v9132 = vadd.f32 %v9043, %v9131
    %v9133 = vpop.f32.mrf.mxu0
    %v9134 = vadd.f32 %v9045, %v9133
    %9135 = vmatmul.bf16.gmra.mxu0 %v7715
    %v9136 = vpop.f32.mrf.mxu0
    %v9137 = vadd.f32 %v9048, %v9136
    %v9138 = vpop.f32.mrf.mxu0
    %v9139 = vadd.f32 %v9050, %v9138
    %9140 = vmatmul.bf16.gmra.mxu0 %v7723
    %v9141 = vpop.f32.mrf.mxu0
    %v9142 = vadd.f32 %v9053, %v9141
    %v9143 = vpop.f32.mrf.mxu0
    %v9144 = vadd.f32 %v9055, %v9143
    %9145 = vmatmul.bf16.gmra.mxu0 %v7731
    %v9146 = vpop.f32.mrf.mxu0
    %v9147 = vadd.f32 %v9058, %v9146
    %v9148 = vpop.f32.mrf.mxu0
    %v9149 = vadd.f32 %v9060, %v9148
    %9150 = vmatmul.bf16.gmra.mxu0 %v7739
    %v9151 = vpop.f32.mrf.mxu0
    %v9152 = vadd.f32 %v9063, %v9151
    %v9153 = vpop.f32.mrf.mxu0
    %v9154 = vadd.f32 %v9065, %v9153
    %9155 = vmatmul.bf16.gmra.mxu0 %v7747
    %v9156 = vpop.f32.mrf.mxu0
    %v9157 = vadd.f32 %v9068, %v9156
    %v9158 = vpop.f32.mrf.mxu0
    %v9159 = vadd.f32 %v9070, %v9158
    %9160 = vmatmul.bf16.gmra.mxu0 %v7755
    %v9161 = vpop.f32.mrf.mxu0
    %v9162 = vadd.f32 %v9073, %v9161
    %v9163 = vpop.f32.mrf.mxu0
    %v9164 = vadd.f32 %v9075, %v9163
    %9165 = vmatmul.bf16.gmra.mxu0 %v7763
    %v9166 = vpop.f32.mrf.mxu0
    %v9167 = vadd.f32 %v9078, %v9166
    %v9168 = vpop.f32.mrf.mxu0
    %v9169 = vadd.f32 %v9080, %v9168
    %9170 = vmatmul.bf16.gmra.mxu0 %v7771
    %v9171 = vpop.f32.mrf.mxu0
    %v9172 = vadd.f32 %v9083, %v9171
    %v9173 = vpop.f32.mrf.mxu0
    %v9174 = vadd.f32 %v9085, %v9173
    %9175 = vmatmul.bf16.gmra.mxu0 %v7779
    %v9176 = vpop.f32.mrf.mxu0
    %v9177 = vadd.f32 %v9088, %v9176
    %v9178 = vpop.f32.mrf.mxu0
    %v9179 = vadd.f32 %v9090, %v9178
    %9180 = vmatmul.bf16.gmra.mxu0 %v7787
    %v9181 = vpop.f32.mrf.mxu0
    %v9182 = vadd.f32 %v9093, %v9181
    %v9183 = vpop.f32.mrf.mxu0
    %v9184 = vadd.f32 %v9095, %v9183
    %9185 = vdwg.mxu0
    %9186 = vmatpush.bf16.msra.mxu0 %v8433
    %9187 = vmatpush.bf16.msra.mxu0 %v8431
    %9188 = vmatpush.bf16.msra.mxu0 %v8429
    %9189 = vmatpush.bf16.msra.mxu0 %v8427
    %9190 = vmatpush.bf16.msra.mxu0 %v8425
    %9191 = vmatpush.bf16.msra.mxu0 %v8423
    %9192 = vmatpush.bf16.msra.mxu0 %v8421
    %9193 = vmatpush.bf16.msra.mxu0 %v8419
    %9194 = vmatmul.bf16.gmra.mxu0 %v7668
    %v9195 = vpop.f32.mrf.mxu0
    %v9196 = vadd.f32 %v9107, %v9195
    %v9197 = vpop.f32.mrf.mxu0
    %v9198 = vadd.f32 %v9109, %v9197
    %9199 = vmatmul.bf16.gmra.mxu0 %v7676
    %v9200 = vpop.f32.mrf.mxu0
    %v9201 = vadd.f32 %v9112, %v9200
    %v9202 = vpop.f32.mrf.mxu0
    %v9203 = vadd.f32 %v9114, %v9202
    %9204 = vmatmul.bf16.gmra.mxu0 %v7684
    %v9205 = vpop.f32.mrf.mxu0
    %v9206 = vadd.f32 %v9117, %v9205
    %v9207 = vpop.f32.mrf.mxu0
    %v9208 = vadd.f32 %v9119, %v9207
    %9209 = vmatmul.bf16.gmra.mxu0 %v7692
    %v9210 = vpop.f32.mrf.mxu0
    %v9211 = vadd.f32 %v9122, %v9210
    %v9212 = vpop.f32.mrf.mxu0
    %v9213 = vadd.f32 %v9124, %v9212
    %9214 = vmatmul.bf16.gmra.mxu0 %v7700
    %v9215 = vpop.f32.mrf.mxu0
    %v9216 = vadd.f32 %v9127, %v9215
    %v9217 = vpop.f32.mrf.mxu0
    %v9218 = vadd.f32 %v9129, %v9217
    %9219 = vmatmul.bf16.gmra.mxu0 %v7708
    %v9220 = vpop.f32.mrf.mxu0
    %v9221 = vadd.f32 %v9132, %v9220
    %v9222 = vpop.f32.mrf.mxu0
    %v9223 = vadd.f32 %v9134, %v9222
    %9224 = vmatmul.bf16.gmra.mxu0 %v7716
    %v9225 = vpop.f32.mrf.mxu0
    %v9226 = vadd.f32 %v9137, %v9225
    %v9227 = vpop.f32.mrf.mxu0
    %v9228 = vadd.f32 %v9139, %v9227
    %9229 = vmatmul.bf16.gmra.mxu0 %v7724
    %v9230 = vpop.f32.mrf.mxu0
    %v9231 = vadd.f32 %v9142, %v9230
    %v9232 = vpop.f32.mrf.mxu0
    %v9233 = vadd.f32 %v9144, %v9232
    %9234 = vmatmul.bf16.gmra.mxu0 %v7732
    %v9235 = vpop.f32.mrf.mxu0
    %v9236 = vadd.f32 %v9147, %v9235
    %v9237 = vpop.f32.mrf.mxu0
    %v9238 = vadd.f32 %v9149, %v9237
    %9239 = vmatmul.bf16.gmra.mxu0 %v7740
    %v9240 = vpop.f32.mrf.mxu0
    %v9241 = vadd.f32 %v9152, %v9240
    %v9242 = vpop.f32.mrf.mxu0
    %v9243 = vadd.f32 %v9154, %v9242
    %9244 = vmatmul.bf16.gmra.mxu0 %v7748
    %v9245 = vpop.f32.mrf.mxu0
    %v9246 = vadd.f32 %v9157, %v9245
    %v9247 = vpop.f32.mrf.mxu0
    %v9248 = vadd.f32 %v9159, %v9247
    %9249 = vmatmul.bf16.gmra.mxu0 %v7756
    %v9250 = vpop.f32.mrf.mxu0
    %v9251 = vadd.f32 %v9162, %v9250
    %v9252 = vpop.f32.mrf.mxu0
    %v9253 = vadd.f32 %v9164, %v9252
    %9254 = vmatmul.bf16.gmra.mxu0 %v7764
    %v9255 = vpop.f32.mrf.mxu0
    %v9256 = vadd.f32 %v9167, %v9255
    %v9257 = vpop.f32.mrf.mxu0
    %v9258 = vadd.f32 %v9169, %v9257
    %9259 = vmatmul.bf16.gmra.mxu0 %v7772
    %v9260 = vpop.f32.mrf.mxu0
    %v9261 = vadd.f32 %v9172, %v9260
    %v9262 = vpop.f32.mrf.mxu0
    %v9263 = vadd.f32 %v9174, %v9262
    %9264 = vmatmul.bf16.gmra.mxu0 %v7780
    %v9265 = vpop.f32.mrf.mxu0
    %v9266 = vadd.f32 %v9177, %v9265
    %v9267 = vpop.f32.mrf.mxu0
    %v9268 = vadd.f32 %v9179, %v9267
    %9269 = vmatmul.bf16.gmra.mxu0 %v7788
    %v9270 = vpop.f32.mrf.mxu0
    %v9271 = vadd.f32 %v9182, %v9270
    %v9272 = vpop.f32.mrf.mxu0
    %v9273 = vadd.f32 %v9184, %v9272
    %9274 = vdwg.mxu0
    %9275 = vmatpush.bf16.msra.mxu0 %v8322
    %9276 = vmatpush.bf16.msra.mxu0 %v8320
    %9277 = vmatpush.bf16.msra.mxu0 %v8318
    %9278 = vmatpush.bf16.msra.mxu0 %v8316
    %9279 = vmatpush.bf16.msra.mxu0 %v8314
    %9280 = vmatpush.bf16.msra.mxu0 %v8312
    %9281 = vmatpush.bf16.msra.mxu0 %v8310
    %9282 = vmatpush.bf16.msra.mxu0 %v8308
    %9283 = vmatmul.bf16.gmra.mxu0 %v7661
    %v9284 = vpop.f32.mrf.mxu0
    %v9285 = vadd.f32 %v7920, %v9284
    %v9286 = vpop.f32.mrf.mxu0
    %v9287 = vadd.f32 %v7920, %v9286
    %9288 = vmatmul.bf16.gmra.mxu0 %v7669
    %v9289 = vpop.f32.mrf.mxu0
    %v9290 = vadd.f32 %v7920, %v9289
    %v9291 = vpop.f32.mrf.mxu0
    %v9292 = vadd.f32 %v7920, %v9291
    %9293 = vmatmul.bf16.gmra.mxu0 %v7677
    %v9294 = vpop.f32.mrf.mxu0
    %v9295 = vadd.f32 %v7920, %v9294
    %v9296 = vpop.f32.mrf.mxu0
    %v9297 = vadd.f32 %v7920, %v9296
    %9298 = vmatmul.bf16.gmra.mxu0 %v7685
    %v9299 = vpop.f32.mrf.mxu0
    %v9300 = vadd.f32 %v7920, %v9299
    %v9301 = vpop.f32.mrf.mxu0
    %v9302 = vadd.f32 %v7920, %v9301
    %9303 = vmatmul.bf16.gmra.mxu0 %v7693
    %v9304 = vpop.f32.mrf.mxu0
    %v9305 = vadd.f32 %v7920, %v9304
    %v9306 = vpop.f32.mrf.mxu0
    %v9307 = vadd.f32 %v7920, %v9306
    %9308 = vmatmul.bf16.gmra.mxu0 %v7701
    %v9309 = vpop.f32.mrf.mxu0
    %v9310 = vadd.f32 %v7920, %v9309
    %v9311 = vpop.f32.mrf.mxu0
    %v9312 = vadd.f32 %v7920, %v9311
    %9313 = vmatmul.bf16.gmra.mxu0 %v7709
    %v9314 = vpop.f32.mrf.mxu0
    %v9315 = vadd.f32 %v7920, %v9314
    %v9316 = vpop.f32.mrf.mxu0
    %v9317 = vadd.f32 %v7920, %v9316
    %9318 = vmatmul.bf16.gmra.mxu0 %v7717
    %v9319 = vpop.f32.mrf.mxu0
    %v9320 = vadd.f32 %v7920, %v9319
    %v9321 = vpop.f32.mrf.mxu0
    %v9322 = vadd.f32 %v7920, %v9321
    %9323 = vmatmul.bf16.gmra.mxu0 %v7725
    %v9324 = vpop.f32.mrf.mxu0
    %v9325 = vadd.f32 %v7920, %v9324
    %v9326 = vpop.f32.mrf.mxu0
    %v9327 = vadd.f32 %v7920, %v9326
    %9328 = vmatmul.bf16.gmra.mxu0 %v7733
    %v9329 = vpop.f32.mrf.mxu0
    %v9330 = vadd.f32 %v7920, %v9329
    %v9331 = vpop.f32.mrf.mxu0
    %v9332 = vadd.f32 %v7920, %v9331
    %9333 = vmatmul.bf16.gmra.mxu0 %v7741
    %v9334 = vpop.f32.mrf.mxu0
    %v9335 = vadd.f32 %v7920, %v9334
    %v9336 = vpop.f32.mrf.mxu0
    %v9337 = vadd.f32 %v7920, %v9336
    %9338 = vmatmul.bf16.gmra.mxu0 %v7749
    %v9339 = vpop.f32.mrf.mxu0
    %v9340 = vadd.f32 %v7920, %v9339
    %v9341 = vpop.f32.mrf.mxu0
    %v9342 = vadd.f32 %v7920, %v9341
    %9343 = vmatmul.bf16.gmra.mxu0 %v7757
    %v9344 = vpop.f32.mrf.mxu0
    %v9345 = vadd.f32 %v7920, %v9344
    %v9346 = vpop.f32.mrf.mxu0
    %v9347 = vadd.f32 %v7920, %v9346
    %9348 = vmatmul.bf16.gmra.mxu0 %v7765
    %v9349 = vpop.f32.mrf.mxu0
    %v9350 = vadd.f32 %v7920, %v9349
    %v9351 = vpop.f32.mrf.mxu0
    %v9352 = vadd.f32 %v7920, %v9351
    %9353 = vmatmul.bf16.gmra.mxu0 %v7773
    %v9354 = vpop.f32.mrf.mxu0
    %v9355 = vadd.f32 %v7920, %v9354
    %v9356 = vpop.f32.mrf.mxu0
    %v9357 = vadd.f32 %v7920, %v9356
    %9358 = vmatmul.bf16.gmra.mxu0 %v7781
    %v9359 = vpop.f32.mrf.mxu0
    %v9360 = vadd.f32 %v7920, %v9359
    %v9361 = vpop.f32.mrf.mxu0
    %v9362 = vadd.f32 %v7920, %v9361
    %9363 = vdwg.mxu0
    %9364 = vmatpush.bf16.msra.mxu0 %v8338
    %9365 = vmatpush.bf16.msra.mxu0 %v8336
    %9366 = vmatpush.bf16.msra.mxu0 %v8334
    %9367 = vmatpush.bf16.msra.mxu0 %v8332
    %9368 = vmatpush.bf16.msra.mxu0 %v8330
    %9369 = vmatpush.bf16.msra.mxu0 %v8328
    %9370 = vmatpush.bf16.msra.mxu0 %v8326
    %9371 = vmatpush.bf16.msra.mxu0 %v8324
    %9372 = vmatmul.bf16.gmra.mxu0 %v7662
    %v9373 = vpop.f32.mrf.mxu0
    %v9374 = vadd.f32 %v9285, %v9373
    %v9375 = vpop.f32.mrf.mxu0
    %v9376 = vadd.f32 %v9287, %v9375
    %9377 = vmatmul.bf16.gmra.mxu0 %v7670
    %v9378 = vpop.f32.mrf.mxu0
    %v9379 = vadd.f32 %v9290, %v9378
    %v9380 = vpop.f32.mrf.mxu0
    %v9381 = vadd.f32 %v9292, %v9380
    %9382 = vmatmul.bf16.gmra.mxu0 %v7678
    %v9383 = vpop.f32.mrf.mxu0
    %v9384 = vadd.f32 %v9295, %v9383
    %v9385 = vpop.f32.mrf.mxu0
    %v9386 = vadd.f32 %v9297, %v9385
    %9387 = vmatmul.bf16.gmra.mxu0 %v7686
    %v9388 = vpop.f32.mrf.mxu0
    %v9389 = vadd.f32 %v9300, %v9388
    %v9390 = vpop.f32.mrf.mxu0
    %v9391 = vadd.f32 %v9302, %v9390
    %9392 = vmatmul.bf16.gmra.mxu0 %v7694
    %v9393 = vpop.f32.mrf.mxu0
    %v9394 = vadd.f32 %v9305, %v9393
    %v9395 = vpop.f32.mrf.mxu0
    %v9396 = vadd.f32 %v9307, %v9395
    %9397 = vmatmul.bf16.gmra.mxu0 %v7702
    %v9398 = vpop.f32.mrf.mxu0
    %v9399 = vadd.f32 %v9310, %v9398
    %v9400 = vpop.f32.mrf.mxu0
    %v9401 = vadd.f32 %v9312, %v9400
    %9402 = vmatmul.bf16.gmra.mxu0 %v7710
    %v9403 = vpop.f32.mrf.mxu0
    %v9404 = vadd.f32 %v9315, %v9403
    %v9405 = vpop.f32.mrf.mxu0
    %v9406 = vadd.f32 %v9317, %v9405
    %9407 = vmatmul.bf16.gmra.mxu0 %v7718
    %v9408 = vpop.f32.mrf.mxu0
    %v9409 = vadd.f32 %v9320, %v9408
    %v9410 = vpop.f32.mrf.mxu0
    %v9411 = vadd.f32 %v9322, %v9410
    %9412 = vmatmul.bf16.gmra.mxu0 %v7726
    %v9413 = vpop.f32.mrf.mxu0
    %v9414 = vadd.f32 %v9325, %v9413
    %v9415 = vpop.f32.mrf.mxu0
    %v9416 = vadd.f32 %v9327, %v9415
    %9417 = vmatmul.bf16.gmra.mxu0 %v7734
    %v9418 = vpop.f32.mrf.mxu0
    %v9419 = vadd.f32 %v9330, %v9418
    %v9420 = vpop.f32.mrf.mxu0
    %v9421 = vadd.f32 %v9332, %v9420
    %9422 = vmatmul.bf16.gmra.mxu0 %v7742
    %v9423 = vpop.f32.mrf.mxu0
    %v9424 = vadd.f32 %v9335, %v9423
    %v9425 = vpop.f32.mrf.mxu0
    %v9426 = vadd.f32 %v9337, %v9425
    %9427 = vmatmul.bf16.gmra.mxu0 %v7750
    %v9428 = vpop.f32.mrf.mxu0
    %v9429 = vadd.f32 %v9340, %v9428
    %v9430 = vpop.f32.mrf.mxu0
    %v9431 = vadd.f32 %v9342, %v9430
    %9432 = vmatmul.bf16.gmra.mxu0 %v7758
    %v9433 = vpop.f32.mrf.mxu0
    %v9434 = vadd.f32 %v9345, %v9433
    %v9435 = vpop.f32.mrf.mxu0
    %v9436 = vadd.f32 %v9347, %v9435
    %9437 = vmatmul.bf16.gmra.mxu0 %v7766
    %v9438 = vpop.f32.mrf.mxu0
    %v9439 = vadd.f32 %v9350, %v9438
    %v9440 = vpop.f32.mrf.mxu0
    %v9441 = vadd.f32 %v9352, %v9440
    %9442 = vmatmul.bf16.gmra.mxu0 %v7774
    %v9443 = vpop.f32.mrf.mxu0
    %v9444 = vadd.f32 %v9355, %v9443
    %v9445 = vpop.f32.mrf.mxu0
    %v9446 = vadd.f32 %v9357, %v9445
    %9447 = vmatmul.bf16.gmra.mxu0 %v7782
    %v9448 = vpop.f32.mrf.mxu0
    %v9449 = vadd.f32 %v9360, %v9448
    %v9450 = vpop.f32.mrf.mxu0
    %v9451 = vadd.f32 %v9362, %v9450
    %9452 = vdwg.mxu0
    %9453 = vmatpush.bf16.msra.mxu0 %v8354
    %9454 = vmatpush.bf16.msra.mxu0 %v8352
    %9455 = vmatpush.bf16.msra.mxu0 %v8350
    %9456 = vmatpush.bf16.msra.mxu0 %v8348
    %9457 = vmatpush.bf16.msra.mxu0 %v8346
    %9458 = vmatpush.bf16.msra.mxu0 %v8344
    %9459 = vmatpush.bf16.msra.mxu0 %v8342
    %9460 = vmatpush.bf16.msra.mxu0 %v8340
    %9461 = vmatmul.bf16.gmra.mxu0 %v7663
    %v9462 = vpop.f32.mrf.mxu0
    %v9463 = vadd.f32 %v9374, %v9462
    %v9464 = vpop.f32.mrf.mxu0
    %v9465 = vadd.f32 %v9376, %v9464
    %9466 = vmatmul.bf16.gmra.mxu0 %v7671
    %v9467 = vpop.f32.mrf.mxu0
    %v9468 = vadd.f32 %v9379, %v9467
    %v9469 = vpop.f32.mrf.mxu0
    %v9470 = vadd.f32 %v9381, %v9469
    %9471 = vmatmul.bf16.gmra.mxu0 %v7679
    %v9472 = vpop.f32.mrf.mxu0
    %v9473 = vadd.f32 %v9384, %v9472
    %v9474 = vpop.f32.mrf.mxu0
    %v9475 = vadd.f32 %v9386, %v9474
    %9476 = vmatmul.bf16.gmra.mxu0 %v7687
    %v9477 = vpop.f32.mrf.mxu0
    %v9478 = vadd.f32 %v9389, %v9477
    %v9479 = vpop.f32.mrf.mxu0
    %v9480 = vadd.f32 %v9391, %v9479
    %9481 = vmatmul.bf16.gmra.mxu0 %v7695
    %v9482 = vpop.f32.mrf.mxu0
    %v9483 = vadd.f32 %v9394, %v9482
    %v9484 = vpop.f32.mrf.mxu0
    %v9485 = vadd.f32 %v9396, %v9484
    %9486 = vmatmul.bf16.gmra.mxu0 %v7703
    %v9487 = vpop.f32.mrf.mxu0
    %v9488 = vadd.f32 %v9399, %v9487
    %v9489 = vpop.f32.mrf.mxu0
    %v9490 = vadd.f32 %v9401, %v9489
    %9491 = vmatmul.bf16.gmra.mxu0 %v7711
    %v9492 = vpop.f32.mrf.mxu0
    %v9493 = vadd.f32 %v9404, %v9492
    %v9494 = vpop.f32.mrf.mxu0
    %v9495 = vadd.f32 %v9406, %v9494
    %9496 = vmatmul.bf16.gmra.mxu0 %v7719
    %v9497 = vpop.f32.mrf.mxu0
    %v9498 = vadd.f32 %v9409, %v9497
    %v9499 = vpop.f32.mrf.mxu0
    %v9500 = vadd.f32 %v9411, %v9499
    %9501 = vmatmul.bf16.gmra.mxu0 %v7727
    %v9502 = vpop.f32.mrf.mxu0
    %v9503 = vadd.f32 %v9414, %v9502
    %v9504 = vpop.f32.mrf.mxu0
    %v9505 = vadd.f32 %v9416, %v9504
    %9506 = vmatmul.bf16.gmra.mxu0 %v7735
    %v9507 = vpop.f32.mrf.mxu0
    %v9508 = vadd.f32 %v9419, %v9507
    %v9509 = vpop.f32.mrf.mxu0
    %v9510 = vadd.f32 %v9421, %v9509
    %9511 = vmatmul.bf16.gmra.mxu0 %v7743
    %v9512 = vpop.f32.mrf.mxu0
    %v9513 = vadd.f32 %v9424, %v9512
    %v9514 = vpop.f32.mrf.mxu0
    %v9515 = vadd.f32 %v9426, %v9514
    %9516 = vmatmul.bf16.gmra.mxu0 %v7751
    %v9517 = vpop.f32.mrf.mxu0
    %v9518 = vadd.f32 %v9429, %v9517
    %v9519 = vpop.f32.mrf.mxu0
    %v9520 = vadd.f32 %v9431, %v9519
    %9521 = vmatmul.bf16.gmra.mxu0 %v7759
    %v9522 = vpop.f32.mrf.mxu0
    %v9523 = vadd.f32 %v9434, %v9522
    %v9524 = vpop.f32.mrf.mxu0
    %v9525 = vadd.f32 %v9436, %v9524
    %9526 = vmatmul.bf16.gmra.mxu0 %v7767
    %v9527 = vpop.f32.mrf.mxu0
    %v9528 = vadd.f32 %v9439, %v9527
    %v9529 = vpop.f32.mrf.mxu0
    %v9530 = vadd.f32 %v9441, %v9529
    %9531 = vmatmul.bf16.gmra.mxu0 %v7775
    %v9532 = vpop.f32.mrf.mxu0
    %v9533 = vadd.f32 %v9444, %v9532
    %v9534 = vpop.f32.mrf.mxu0
    %v9535 = vadd.f32 %v9446, %v9534
    %9536 = vmatmul.bf16.gmra.mxu0 %v7783
    %v9537 = vpop.f32.mrf.mxu0
    %v9538 = vadd.f32 %v9449, %v9537
    %v9539 = vpop.f32.mrf.mxu0
    %v9540 = vadd.f32 %v9451, %v9539
    %9541 = vdwg.mxu0
    %9542 = vmatpush.bf16.msra.mxu0 %v8370
    %9543 = vmatpush.bf16.msra.mxu0 %v8368
    %9544 = vmatpush.bf16.msra.mxu0 %v8366
    %9545 = vmatpush.bf16.msra.mxu0 %v8364
    %9546 = vmatpush.bf16.msra.mxu0 %v8362
    %9547 = vmatpush.bf16.msra.mxu0 %v8360
    %9548 = vmatpush.bf16.msra.mxu0 %v8358
    %9549 = vmatpush.bf16.msra.mxu0 %v8356
    %9550 = vmatmul.bf16.gmra.mxu0 %v7664
    %v9551 = vpop.f32.mrf.mxu0
    %v9552 = vadd.f32 %v9463, %v9551
    %v9553 = vpop.f32.mrf.mxu0
    %v9554 = vadd.f32 %v9465, %v9553
    %9555 = vmatmul.bf16.gmra.mxu0 %v7672
    %v9556 = vpop.f32.mrf.mxu0
    %v9557 = vadd.f32 %v9468, %v9556
    %v9558 = vpop.f32.mrf.mxu0
    %v9559 = vadd.f32 %v9470, %v9558
    %9560 = vmatmul.bf16.gmra.mxu0 %v7680
    %v9561 = vpop.f32.mrf.mxu0
    %v9562 = vadd.f32 %v9473, %v9561
    %v9563 = vpop.f32.mrf.mxu0
    %v9564 = vadd.f32 %v9475, %v9563
    %9565 = vmatmul.bf16.gmra.mxu0 %v7688
    %v9566 = vpop.f32.mrf.mxu0
    %v9567 = vadd.f32 %v9478, %v9566
    %v9568 = vpop.f32.mrf.mxu0
    %v9569 = vadd.f32 %v9480, %v9568
    %9570 = vmatmul.bf16.gmra.mxu0 %v7696
    %v9571 = vpop.f32.mrf.mxu0
    %v9572 = vadd.f32 %v9483, %v9571
    %v9573 = vpop.f32.mrf.mxu0
    %v9574 = vadd.f32 %v9485, %v9573
    %9575 = vmatmul.bf16.gmra.mxu0 %v7704
    %v9576 = vpop.f32.mrf.mxu0
    %v9577 = vadd.f32 %v9488, %v9576
    %v9578 = vpop.f32.mrf.mxu0
    %v9579 = vadd.f32 %v9490, %v9578
    %9580 = vmatmul.bf16.gmra.mxu0 %v7712
    %v9581 = vpop.f32.mrf.mxu0
    %v9582 = vadd.f32 %v9493, %v9581
    %v9583 = vpop.f32.mrf.mxu0
    %v9584 = vadd.f32 %v9495, %v9583
    %9585 = vmatmul.bf16.gmra.mxu0 %v7720
    %v9586 = vpop.f32.mrf.mxu0
    %v9587 = vadd.f32 %v9498, %v9586
    %v9588 = vpop.f32.mrf.mxu0
    %v9589 = vadd.f32 %v9500, %v9588
    %9590 = vmatmul.bf16.gmra.mxu0 %v7728
    %v9591 = vpop.f32.mrf.mxu0
    %v9592 = vadd.f32 %v9503, %v9591
    %v9593 = vpop.f32.mrf.mxu0
    %v9594 = vadd.f32 %v9505, %v9593
    %9595 = vmatmul.bf16.gmra.mxu0 %v7736
    %v9596 = vpop.f32.mrf.mxu0
    %v9597 = vadd.f32 %v9508, %v9596
    %v9598 = vpop.f32.mrf.mxu0
    %v9599 = vadd.f32 %v9510, %v9598
    %9600 = vmatmul.bf16.gmra.mxu0 %v7744
    %v9601 = vpop.f32.mrf.mxu0
    %v9602 = vadd.f32 %v9513, %v9601
    %v9603 = vpop.f32.mrf.mxu0
    %v9604 = vadd.f32 %v9515, %v9603
    %9605 = vmatmul.bf16.gmra.mxu0 %v7752
    %v9606 = vpop.f32.mrf.mxu0
    %v9607 = vadd.f32 %v9518, %v9606
    %v9608 = vpop.f32.mrf.mxu0
    %v9609 = vadd.f32 %v9520, %v9608
    %9610 = vmatmul.bf16.gmra.mxu0 %v7760
    %v9611 = vpop.f32.mrf.mxu0
    %v9612 = vadd.f32 %v9523, %v9611
    %v9613 = vpop.f32.mrf.mxu0
    %v9614 = vadd.f32 %v9525, %v9613
    %9615 = vmatmul.bf16.gmra.mxu0 %v7768
    %v9616 = vpop.f32.mrf.mxu0
    %v9617 = vadd.f32 %v9528, %v9616
    %v9618 = vpop.f32.mrf.mxu0
    %v9619 = vadd.f32 %v9530, %v9618
    %9620 = vmatmul.bf16.gmra.mxu0 %v7776
    %v9621 = vpop.f32.mrf.mxu0
    %v9622 = vadd.f32 %v9533, %v9621
    %v9623 = vpop.f32.mrf.mxu0
    %v9624 = vadd.f32 %v9535, %v9623
    %9625 = vmatmul.bf16.gmra.mxu0 %v7784
    %v9626 = vpop.f32.mrf.mxu0
    %v9627 = vadd.f32 %v9538, %v9626
    %v9628 = vpop.f32.mrf.mxu0
    %v9629 = vadd.f32 %v9540, %v9628
    %9630 = vdwg.mxu0
    %9631 = vmatpush.bf16.msra.mxu0 %v8386
    %9632 = vmatpush.bf16.msra.mxu0 %v8384
    %9633 = vmatpush.bf16.msra.mxu0 %v8382
    %9634 = vmatpush.bf16.msra.mxu0 %v8380
    %9635 = vmatpush.bf16.msra.mxu0 %v8378
    %9636 = vmatpush.bf16.msra.mxu0 %v8376
    %9637 = vmatpush.bf16.msra.mxu0 %v8374
    %9638 = vmatpush.bf16.msra.mxu0 %v8372
    %9639 = vmatmul.bf16.gmra.mxu0 %v7665
    %v9640 = vpop.f32.mrf.mxu0
    %v9641 = vadd.f32 %v9552, %v9640
    %v9642 = vpop.f32.mrf.mxu0
    %v9643 = vadd.f32 %v9554, %v9642
    %9644 = vmatmul.bf16.gmra.mxu0 %v7673
    %v9645 = vpop.f32.mrf.mxu0
    %v9646 = vadd.f32 %v9557, %v9645
    %v9647 = vpop.f32.mrf.mxu0
    %v9648 = vadd.f32 %v9559, %v9647
    %9649 = vmatmul.bf16.gmra.mxu0 %v7681
    %v9650 = vpop.f32.mrf.mxu0
    %v9651 = vadd.f32 %v9562, %v9650
    %v9652 = vpop.f32.mrf.mxu0
    %v9653 = vadd.f32 %v9564, %v9652
    %9654 = vmatmul.bf16.gmra.mxu0 %v7689
    %v9655 = vpop.f32.mrf.mxu0
    %v9656 = vadd.f32 %v9567, %v9655
    %v9657 = vpop.f32.mrf.mxu0
    %v9658 = vadd.f32 %v9569, %v9657
    %9659 = vmatmul.bf16.gmra.mxu0 %v7697
    %v9660 = vpop.f32.mrf.mxu0
    %v9661 = vadd.f32 %v9572, %v9660
    %v9662 = vpop.f32.mrf.mxu0
    %v9663 = vadd.f32 %v9574, %v9662
    %9664 = vmatmul.bf16.gmra.mxu0 %v7705
    %v9665 = vpop.f32.mrf.mxu0
    %v9666 = vadd.f32 %v9577, %v9665
    %v9667 = vpop.f32.mrf.mxu0
    %v9668 = vadd.f32 %v9579, %v9667
    %9669 = vmatmul.bf16.gmra.mxu0 %v7713
    %v9670 = vpop.f32.mrf.mxu0
    %v9671 = vadd.f32 %v9582, %v9670
    %v9672 = vpop.f32.mrf.mxu0
    %v9673 = vadd.f32 %v9584, %v9672
    %9674 = vmatmul.bf16.gmra.mxu0 %v7721
    %v9675 = vpop.f32.mrf.mxu0
    %v9676 = vadd.f32 %v9587, %v9675
    %v9677 = vpop.f32.mrf.mxu0
    %v9678 = vadd.f32 %v9589, %v9677
    %9679 = vmatmul.bf16.gmra.mxu0 %v7729
    %v9680 = vpop.f32.mrf.mxu0
    %v9681 = vadd.f32 %v9592, %v9680
    %v9682 = vpop.f32.mrf.mxu0
    %v9683 = vadd.f32 %v9594, %v9682
    %9684 = vmatmul.bf16.gmra.mxu0 %v7737
    %v9685 = vpop.f32.mrf.mxu0
    %v9686 = vadd.f32 %v9597, %v9685
    %v9687 = vpop.f32.mrf.mxu0
    %v9688 = vadd.f32 %v9599, %v9687
    %9689 = vmatmul.bf16.gmra.mxu0 %v7745
    %v9690 = vpop.f32.mrf.mxu0
    %v9691 = vadd.f32 %v9602, %v9690
    %v9692 = vpop.f32.mrf.mxu0
    %v9693 = vadd.f32 %v9604, %v9692
    %9694 = vmatmul.bf16.gmra.mxu0 %v7753
    %v9695 = vpop.f32.mrf.mxu0
    %v9696 = vadd.f32 %v9607, %v9695
    %v9697 = vpop.f32.mrf.mxu0
    %v9698 = vadd.f32 %v9609, %v9697
    %9699 = vmatmul.bf16.gmra.mxu0 %v7761
    %v9700 = vpop.f32.mrf.mxu0
    %v9701 = vadd.f32 %v9612, %v9700
    %v9702 = vpop.f32.mrf.mxu0
    %v9703 = vadd.f32 %v9614, %v9702
    %9704 = vmatmul.bf16.gmra.mxu0 %v7769
    %v9705 = vpop.f32.mrf.mxu0
    %v9706 = vadd.f32 %v9617, %v9705
    %v9707 = vpop.f32.mrf.mxu0
    %v9708 = vadd.f32 %v9619, %v9707
    %9709 = vmatmul.bf16.gmra.mxu0 %v7777
    %v9710 = vpop.f32.mrf.mxu0
    %v9711 = vadd.f32 %v9622, %v9710
    %v9712 = vpop.f32.mrf.mxu0
    %v9713 = vadd.f32 %v9624, %v9712
    %9714 = vmatmul.bf16.gmra.mxu0 %v7785
    %v9715 = vpop.f32.mrf.mxu0
    %v9716 = vadd.f32 %v9627, %v9715
    %v9717 = vpop.f32.mrf.mxu0
    %v9718 = vadd.f32 %v9629, %v9717
    %9719 = vdwg.mxu0
    %9720 = vmatpush.bf16.msra.mxu0 %v8402
    %9721 = vmatpush.bf16.msra.mxu0 %v8400
    %9722 = vmatpush.bf16.msra.mxu0 %v8398
    %9723 = vmatpush.bf16.msra.mxu0 %v8396
    %9724 = vmatpush.bf16.msra.mxu0 %v8394
    %9725 = vmatpush.bf16.msra.mxu0 %v8392
    %9726 = vmatpush.bf16.msra.mxu0 %v8390
    %9727 = vmatpush.bf16.msra.mxu0 %v8388
    %9728 = vmatmul.bf16.gmra.mxu0 %v7666
    %v9729 = vpop.f32.mrf.mxu0
    %v9730 = vadd.f32 %v9641, %v9729
    %v9731 = vpop.f32.mrf.mxu0
    %v9732 = vadd.f32 %v9643, %v9731
    %9733 = vmatmul.bf16.gmra.mxu0 %v7674
    %v9734 = vpop.f32.mrf.mxu0
    %v9735 = vadd.f32 %v9646, %v9734
    %v9736 = vpop.f32.mrf.mxu0
    %v9737 = vadd.f32 %v9648, %v9736
    %9738 = vmatmul.bf16.gmra.mxu0 %v7682
    %v9739 = vpop.f32.mrf.mxu0
    %v9740 = vadd.f32 %v9651, %v9739
    %v9741 = vpop.f32.mrf.mxu0
    %v9742 = vadd.f32 %v9653, %v9741
    %9743 = vmatmul.bf16.gmra.mxu0 %v7690
    %v9744 = vpop.f32.mrf.mxu0
    %v9745 = vadd.f32 %v9656, %v9744
    %v9746 = vpop.f32.mrf.mxu0
    %v9747 = vadd.f32 %v9658, %v9746
    %9748 = vmatmul.bf16.gmra.mxu0 %v7698
    %v9749 = vpop.f32.mrf.mxu0
    %v9750 = vadd.f32 %v9661, %v9749
    %v9751 = vpop.f32.mrf.mxu0
    %v9752 = vadd.f32 %v9663, %v9751
    %9753 = vmatmul.bf16.gmra.mxu0 %v7706
    %v9754 = vpop.f32.mrf.mxu0
    %v9755 = vadd.f32 %v9666, %v9754
    %v9756 = vpop.f32.mrf.mxu0
    %v9757 = vadd.f32 %v9668, %v9756
    %9758 = vmatmul.bf16.gmra.mxu0 %v7714
    %v9759 = vpop.f32.mrf.mxu0
    %v9760 = vadd.f32 %v9671, %v9759
    %v9761 = vpop.f32.mrf.mxu0
    %v9762 = vadd.f32 %v9673, %v9761
    %9763 = vmatmul.bf16.gmra.mxu0 %v7722
    %v9764 = vpop.f32.mrf.mxu0
    %v9765 = vadd.f32 %v9676, %v9764
    %v9766 = vpop.f32.mrf.mxu0
    %v9767 = vadd.f32 %v9678, %v9766
    %9768 = vmatmul.bf16.gmra.mxu0 %v7730
    %v9769 = vpop.f32.mrf.mxu0
    %v9770 = vadd.f32 %v9681, %v9769
    %v9771 = vpop.f32.mrf.mxu0
    %v9772 = vadd.f32 %v9683, %v9771
    %9773 = vmatmul.bf16.gmra.mxu0 %v7738
    %v9774 = vpop.f32.mrf.mxu0
    %v9775 = vadd.f32 %v9686, %v9774
    %v9776 = vpop.f32.mrf.mxu0
    %v9777 = vadd.f32 %v9688, %v9776
    %9778 = vmatmul.bf16.gmra.mxu0 %v7746
    %v9779 = vpop.f32.mrf.mxu0
    %v9780 = vadd.f32 %v9691, %v9779
    %v9781 = vpop.f32.mrf.mxu0
    %v9782 = vadd.f32 %v9693, %v9781
    %9783 = vmatmul.bf16.gmra.mxu0 %v7754
    %v9784 = vpop.f32.mrf.mxu0
    %v9785 = vadd.f32 %v9696, %v9784
    %v9786 = vpop.f32.mrf.mxu0
    %v9787 = vadd.f32 %v9698, %v9786
    %9788 = vmatmul.bf16.gmra.mxu0 %v7762
    %v9789 = vpop.f32.mrf.mxu0
    %v9790 = vadd.f32 %v9701, %v9789
    %v9791 = vpop.f32.mrf.mxu0
    %v9792 = vadd.f32 %v9703, %v9791
    %9793 = vmatmul.bf16.gmra.mxu0 %v7770
    %v9794 = vpop.f32.mrf.mxu0
    %v9795 = vadd.f32 %v9706, %v9794
    %v9796 = vpop.f32.mrf.mxu0
    %v9797 = vadd.f32 %v9708, %v9796
    %9798 = vmatmul.bf16.gmra.mxu0 %v7778
    %v9799 = vpop.f32.mrf.mxu0
    %v9800 = vadd.f32 %v9711, %v9799
    %v9801 = vpop.f32.mrf.mxu0
    %v9802 = vadd.f32 %v9713, %v9801
    %9803 = vmatmul.bf16.gmra.mxu0 %v7786
    %v9804 = vpop.f32.mrf.mxu0
    %v9805 = vadd.f32 %v9716, %v9804
    %v9806 = vpop.f32.mrf.mxu0
    %v9807 = vadd.f32 %v9718, %v9806
    %9808 = vdwg.mxu0
    %9809 = vmatpush.bf16.msra.mxu0 %v8418
    %9810 = vmatpush.bf16.msra.mxu0 %v8416
    %9811 = vmatpush.bf16.msra.mxu0 %v8414
    %9812 = vmatpush.bf16.msra.mxu0 %v8412
    %9813 = vmatpush.bf16.msra.mxu0 %v8410
    %9814 = vmatpush.bf16.msra.mxu0 %v8408
    %9815 = vmatpush.bf16.msra.mxu0 %v8406
    %9816 = vmatpush.bf16.msra.mxu0 %v8404
    %9817 = vmatmul.bf16.gmra.mxu0 %v7667
    %v9818 = vpop.f32.mrf.mxu0
    %v9819 = vadd.f32 %v9730, %v9818
    %v9820 = vpop.f32.mrf.mxu0
    %v9821 = vadd.f32 %v9732, %v9820
    %9822 = vmatmul.bf16.gmra.mxu0 %v7675
    %v9823 = vpop.f32.mrf.mxu0
    %v9824 = vadd.f32 %v9735, %v9823
    %v9825 = vpop.f32.mrf.mxu0
    %v9826 = vadd.f32 %v9737, %v9825
    %9827 = vmatmul.bf16.gmra.mxu0 %v7683
    %v9828 = vpop.f32.mrf.mxu0
    %v9829 = vadd.f32 %v9740, %v9828
    %v9830 = vpop.f32.mrf.mxu0
    %v9831 = vadd.f32 %v9742, %v9830
    %9832 = vmatmul.bf16.gmra.mxu0 %v7691
    %v9833 = vpop.f32.mrf.mxu0
    %v9834 = vadd.f32 %v9745, %v9833
    %v9835 = vpop.f32.mrf.mxu0
    %v9836 = vadd.f32 %v9747, %v9835
    %9837 = vmatmul.bf16.gmra.mxu0 %v7699
    %v9838 = vpop.f32.mrf.mxu0
    %v9839 = vadd.f32 %v9750, %v9838
    %v9840 = vpop.f32.mrf.mxu0
    %v9841 = vadd.f32 %v9752, %v9840
    %9842 = vmatmul.bf16.gmra.mxu0 %v7707
    %v9843 = vpop.f32.mrf.mxu0
    %v9844 = vadd.f32 %v9755, %v9843
    %v9845 = vpop.f32.mrf.mxu0
    %v9846 = vadd.f32 %v9757, %v9845
    %9847 = vmatmul.bf16.gmra.mxu0 %v7715
    %v9848 = vpop.f32.mrf.mxu0
    %v9849 = vadd.f32 %v9760, %v9848
    %v9850 = vpop.f32.mrf.mxu0
    %v9851 = vadd.f32 %v9762, %v9850
    %9852 = vmatmul.bf16.gmra.mxu0 %v7723
    %v9853 = vpop.f32.mrf.mxu0
    %v9854 = vadd.f32 %v9765, %v9853
    %v9855 = vpop.f32.mrf.mxu0
    %v9856 = vadd.f32 %v9767, %v9855
    %9857 = vmatmul.bf16.gmra.mxu0 %v7731
    %v9858 = vpop.f32.mrf.mxu0
    %v9859 = vadd.f32 %v9770, %v9858
    %v9860 = vpop.f32.mrf.mxu0
    %v9861 = vadd.f32 %v9772, %v9860
    %9862 = vmatmul.bf16.gmra.mxu0 %v7739
    %v9863 = vpop.f32.mrf.mxu0
    %v9864 = vadd.f32 %v9775, %v9863
    %v9865 = vpop.f32.mrf.mxu0
    %v9866 = vadd.f32 %v9777, %v9865
    %9867 = vmatmul.bf16.gmra.mxu0 %v7747
    %v9868 = vpop.f32.mrf.mxu0
    %v9869 = vadd.f32 %v9780, %v9868
    %v9870 = vpop.f32.mrf.mxu0
    %v9871 = vadd.f32 %v9782, %v9870
    %9872 = vmatmul.bf16.gmra.mxu0 %v7755
    %v9873 = vpop.f32.mrf.mxu0
    %v9874 = vadd.f32 %v9785, %v9873
    %v9875 = vpop.f32.mrf.mxu0
    %v9876 = vadd.f32 %v9787, %v9875
    %9877 = vmatmul.bf16.gmra.mxu0 %v7763
    %v9878 = vpop.f32.mrf.mxu0
    %v9879 = vadd.f32 %v9790, %v9878
    %v9880 = vpop.f32.mrf.mxu0
    %v9881 = vadd.f32 %v9792, %v9880
    %9882 = vmatmul.bf16.gmra.mxu0 %v7771
    %v9883 = vpop.f32.mrf.mxu0
    %v9884 = vadd.f32 %v9795, %v9883
    %v9885 = vpop.f32.mrf.mxu0
    %v9886 = vadd.f32 %v9797, %v9885
    %9887 = vmatmul.bf16.gmra.mxu0 %v7779
    %v9888 = vpop.f32.mrf.mxu0
    %v9889 = vadd.f32 %v9800, %v9888
    %v9890 = vpop.f32.mrf.mxu0
    %v9891 = vadd.f32 %v9802, %v9890
    %9892 = vmatmul.bf16.gmra.mxu0 %v7787
    %v9893 = vpop.f32.mrf.mxu0
    %v9894 = vadd.f32 %v9805, %v9893
    %v9895 = vpop.f32.mrf.mxu0
    %v9896 = vadd.f32 %v9807, %v9895
    %9897 = vdwg.mxu0
    %9898 = vmatpush.bf16.msra.mxu0 %v8434
    %9899 = vmatpush.bf16.msra.mxu0 %v8432
    %9900 = vmatpush.bf16.msra.mxu0 %v8430
    %9901 = vmatpush.bf16.msra.mxu0 %v8428
    %9902 = vmatpush.bf16.msra.mxu0 %v8426
    %9903 = vmatpush.bf16.msra.mxu0 %v8424
    %9904 = vmatpush.bf16.msra.mxu0 %v8422
    %9905 = vmatpush.bf16.msra.mxu0 %v8420
    %9906 = vmatmul.bf16.gmra.mxu0 %v7668
    %v9907 = vpop.f32.mrf.mxu0
    %v9908 = vadd.f32 %v9819, %v9907
    %v9909 = vpop.f32.mrf.mxu0
    %v9910 = vadd.f32 %v9821, %v9909
    %9911 = vmatmul.bf16.gmra.mxu0 %v7676
    %v9912 = vpop.f32.mrf.mxu0
    %v9913 = vadd.f32 %v9824, %v9912
    %v9914 = vpop.f32.mrf.mxu0
    %v9915 = vadd.f32 %v9826, %v9914
    %9916 = vmatmul.bf16.gmra.mxu0 %v7684
    %v9917 = vpop.f32.mrf.mxu0
    %v9918 = vadd.f32 %v9829, %v9917
    %v9919 = vpop.f32.mrf.mxu0
    %v9920 = vadd.f32 %v9831, %v9919
    %9921 = vmatmul.bf16.gmra.mxu0 %v7692
    %v9922 = vpop.f32.mrf.mxu0
    %v9923 = vadd.f32 %v9834, %v9922
    %v9924 = vpop.f32.mrf.mxu0
    %v9925 = vadd.f32 %v9836, %v9924
    %9926 = vmatmul.bf16.gmra.mxu0 %v7700
    %v9927 = vpop.f32.mrf.mxu0
    %v9928 = vadd.f32 %v9839, %v9927
    %v9929 = vpop.f32.mrf.mxu0
    %v9930 = vadd.f32 %v9841, %v9929
    %9931 = vmatmul.bf16.gmra.mxu0 %v7708
    %v9932 = vpop.f32.mrf.mxu0
    %v9933 = vadd.f32 %v9844, %v9932
    %v9934 = vpop.f32.mrf.mxu0
    %v9935 = vadd.f32 %v9846, %v9934
    %9936 = vmatmul.bf16.gmra.mxu0 %v7716
    %v9937 = vpop.f32.mrf.mxu0
    %v9938 = vadd.f32 %v9849, %v9937
    %v9939 = vpop.f32.mrf.mxu0
    %v9940 = vadd.f32 %v9851, %v9939
    %9941 = vmatmul.bf16.gmra.mxu0 %v7724
    %v9942 = vpop.f32.mrf.mxu0
    %v9943 = vadd.f32 %v9854, %v9942
    %v9944 = vpop.f32.mrf.mxu0
    %v9945 = vadd.f32 %v9856, %v9944
    %9946 = vmatmul.bf16.gmra.mxu0 %v7732
    %v9947 = vpop.f32.mrf.mxu0
    %v9948 = vadd.f32 %v9859, %v9947
    %v9949 = vpop.f32.mrf.mxu0
    %v9950 = vadd.f32 %v9861, %v9949
    %9951 = vmatmul.bf16.gmra.mxu0 %v7740
    %v9952 = vpop.f32.mrf.mxu0
    %v9953 = vadd.f32 %v9864, %v9952
    %v9954 = vpop.f32.mrf.mxu0
    %v9955 = vadd.f32 %v9866, %v9954
    %9956 = vmatmul.bf16.gmra.mxu0 %v7748
    %v9957 = vpop.f32.mrf.mxu0
    %v9958 = vadd.f32 %v9869, %v9957
    %v9959 = vpop.f32.mrf.mxu0
    %v9960 = vadd.f32 %v9871, %v9959
    %9961 = vmatmul.bf16.gmra.mxu0 %v7756
    %v9962 = vpop.f32.mrf.mxu0
    %v9963 = vadd.f32 %v9874, %v9962
    %v9964 = vpop.f32.mrf.mxu0
    %v9965 = vadd.f32 %v9876, %v9964
    %9966 = vmatmul.bf16.gmra.mxu0 %v7764
    %v9967 = vpop.f32.mrf.mxu0
    %v9968 = vadd.f32 %v9879, %v9967
    %v9969 = vpop.f32.mrf.mxu0
    %v9970 = vadd.f32 %v9881, %v9969
    %9971 = vmatmul.bf16.gmra.mxu0 %v7772
    %v9972 = vpop.f32.mrf.mxu0
    %v9973 = vadd.f32 %v9884, %v9972
    %v9974 = vpop.f32.mrf.mxu0
    %v9975 = vadd.f32 %v9886, %v9974
    %9976 = vmatmul.bf16.gmra.mxu0 %v7780
    %v9977 = vpop.f32.mrf.mxu0
    %v9978 = vadd.f32 %v9889, %v9977
    %v9979 = vpop.f32.mrf.mxu0
    %v9980 = vadd.f32 %v9891, %v9979
    %9981 = vmatmul.bf16.gmra.mxu0 %v7788
    %v9982 = vpop.f32.mrf.mxu0
    %v9983 = vadd.f32 %v9894, %v9982
    %v9984 = vpop.f32.mrf.mxu0
    %v9985 = vadd.f32 %v9896, %v9984
    %9986 = vdwg.mxu0
    %v9987 = vtanh.pop %v9196
    %v9988 = vtanh.pop %v9908
    %v9989 = vtanh.pop %v9198
    %v9990 = vtanh.pop %v9910
    %v9991 = vtanh.pop %v9201
    %v9992 = vtanh.pop %v9913
    %v9993 = vtanh.pop %v9203
    %v9994 = vtanh.pop %v9915
    %v9995 = vtanh.pop %v9206
    %v9996 = vtanh.pop %v9918
    %v9997 = vtanh.pop %v9208
    %v9998 = vtanh.pop %v9920
    %v9999 = vtanh.pop %v9211
    %v10000 = vtanh.pop %v9923
    %v10001 = vtanh.pop %v9213
    %v10002 = vtanh.pop %v9925
    %v10003 = vtanh.pop %v9216
    %v10004 = vtanh.pop %v9928
    %v10005 = vtanh.pop %v9218
    %v10006 = vtanh.pop %v9930
    %v10007 = vtanh.pop %v9221
    %v10008 = vtanh.pop %v9933
    %v10009 = vtanh.pop %v9223
    %v10010 = vtanh.pop %v9935
    %v10011 = vtanh.pop %v9226
    %v10012 = vtanh.pop %v9938
    %v10013 = vtanh.pop %v9228
    %v10014 = vtanh.pop %v9940
    %v10015 = vtanh.pop %v9231
    %v10016 = vtanh.pop %v9943
    %v10017 = vtanh.pop %v9233
    %v10018 = vtanh.pop %v9945
    %v10019 = vtanh.pop %v9236
    %v10020 = vtanh.pop %v9948
    %v10021 = vtanh.pop %v9238
    %v10022 = vtanh.pop %v9950
    %v10023 = vtanh.pop %v9241
    %v10024 = vtanh.pop %v9953
    %v10025 = vtanh.pop %v9243
    %v10026 = vtanh.pop %v9955
    %v10027 = vtanh.pop %v9246
    %v10028 = vtanh.pop %v9958
    %v10029 = vtanh.pop %v9248
    %v10030 = vtanh.pop %v9960
    %v10031 = vtanh.pop %v9251
    %v10032 = vtanh.pop %v9963
    %v10033 = vtanh.pop %v9253
    %v10034 = vtanh.pop %v9965
    %v10035 = vtanh.pop %v9256
    %v10036 = vtanh.pop %v9968
    %v10037 = vtanh.pop %v9258
    %v10038 = vtanh.pop %v9970
    %v10039 = vtanh.pop %v9261
    %v10040 = vtanh.pop %v9973
    %v10041 = vtanh.pop %v9263
    %v10042 = vtanh.pop %v9975
    %v10043 = vtanh.pop %v9266
    %v10044 = vtanh.pop %v9978
    %v10045 = vtanh.pop %v9268
    %v10046 = vtanh.pop %v9980
    %v10047 = vtanh.pop %v9271
    %v10048 = vtanh.pop %v9983
    %v10049 = vtanh.pop %v9273
    %v10050 = vtanh.pop %v9985
    %10051 = vst [vmem:[%s11] sm:$0xff] %v9987
    %10052 = vst [vmem:[%s11 + $0x8] sm:$0xff] %v9988
    %10053 = vst [vmem:[%s11 + $0x10] sm:$0xff] %v9989
    %10054 = vst [vmem:[%s11 + $0x18] sm:$0xff] %v9990
    %10055 = vst [vmem:[%s11 + $0x20] sm:$0xff] %v9991
    %10056 = vst [vmem:[%s11 + $0x28] sm:$0xff] %v9992
    %10057 = vst [vmem:[%s11 + $0x30] sm:$0xff] %v9993
    %10058 = vst [vmem:[%s11 + $0x38] sm:$0xff] %v9994
    %10059 = vst [vmem:[%s11 + $0x40] sm:$0xff] %v9995
    %10060 = vst [vmem:[%s11 + $0x48] sm:$0xff] %v9996
    %10061 = vst [vmem:[%s11 + $0x50] sm:$0xff] %v9997
    %10062 = vst [vmem:[%s11 + $0x58] sm:$0xff] %v9998
    %10063 = vst [vmem:[%s11 + $0x60] sm:$0xff] %v9999
    %10064 = vst [vmem:[%s11 + $0x68] sm:$0xff] %v10000
    %10065 = vst [vmem:[%s11 + $0x70] sm:$0xff] %v10001
    %10066 = vst [vmem:[%s11 + $0x78] sm:$0xff] %v10002
    %10067 = vst [vmem:[%s11 + $0x80] sm:$0xff] %v10003
    %10068 = vst [vmem:[%s11 + $0x88] sm:$0xff] %v10004
    %10069 = vst [vmem:[%s11 + $0x90] sm:$0xff] %v10005
    %10070 = vst [vmem:[%s11 + $0x98] sm:$0xff] %v10006
    %10071 = vst [vmem:[%s11 + $0xa0] sm:$0xff] %v10007
    %10072 = vst [vmem:[%s11 + $0xa8] sm:$0xff] %v10008
    %10073 = vst [vmem:[%s11 + $0xb0] sm:$0xff] %v10009
    %10074 = vst [vmem:[%s11 + $0xb8] sm:$0xff] %v10010
    %10075 = vst [vmem:[%s11 + $0xc0] sm:$0xff] %v10011
    %10076 = vst [vmem:[%s11 + $0xc8] sm:$0xff] %v10012
    %10077 = vst [vmem:[%s11 + $0xd0] sm:$0xff] %v10013
    %10078 = vst [vmem:[%s11 + $0xd8] sm:$0xff] %v10014
    %10079 = vst [vmem:[%s11 + $0xe0] sm:$0xff] %v10015
    %10080 = vst [vmem:[%s11 + $0xe8] sm:$0xff] %v10016
    %10081 = vst [vmem:[%s11 + $0xf0] sm:$0xff] %v10017
    %10082 = vst [vmem:[%s11 + $0xf8] sm:$0xff] %v10018
    %10083 = vst [vmem:[%s11 + $0x100] sm:$0xff] %v10019
    %10084 = vst [vmem:[%s11 + $0x108] sm:$0xff] %v10020
    %10085 = vst [vmem:[%s11 + $0x110] sm:$0xff] %v10021
    %10086 = vst [vmem:[%s11 + $0x118] sm:$0xff] %v10022
    %10087 = vst [vmem:[%s11 + $0x120] sm:$0xff] %v10023
    %10088 = vst [vmem:[%s11 + $0x128] sm:$0xff] %v10024
    %10089 = vst [vmem:[%s11 + $0x130] sm:$0xff] %v10025
    %10090 = vst [vmem:[%s11 + $0x138] sm:$0xff] %v10026
    %10091 = vst [vmem:[%s11 + $0x140] sm:$0xff] %v10027
    %10092 = vst [vmem:[%s11 + $0x148] sm:$0xff] %v10028
    %10093 = vst [vmem:[%s11 + $0x150] sm:$0xff] %v10029
    %10094 = vst [vmem:[%s11 + $0x158] sm:$0xff] %v10030
    %10095 = vst [vmem:[%s11 + $0x160] sm:$0xff] %v10031
    %10096 = vst [vmem:[%s11 + $0x168] sm:$0xff] %v10032
    %10097 = vst [vmem:[%s11 + $0x170] sm:$0xff] %v10033
    %10098 = vst [vmem:[%s11 + $0x178] sm:$0xff] %v10034
    %10099 = vst [vmem:[%s11 + $0x180] sm:$0xff] %v10035
    %10100 = vst [vmem:[%s11 + $0x188] sm:$0xff] %v10036
    %10101 = vst [vmem:[%s11 + $0x190] sm:$0xff] %v10037
    %10102 = vst [vmem:[%s11 + $0x198] sm:$0xff] %v10038
    %10103 = vst [vmem:[%s11 + $0x1a0] sm:$0xff] %v10039
    %10104 = vst [vmem:[%s11 + $0x1a8] sm:$0xff] %v10040
    %10105 = vst [vmem:[%s11 + $0x1b0] sm:$0xff] %v10041
    %10106 = vst [vmem:[%s11 + $0x1b8] sm:$0xff] %v10042
    %10107 = vst [vmem:[%s11 + $0x1c0] sm:$0xff] %v10043
    %10108 = vst [vmem:[%s11 + $0x1c8] sm:$0xff] %v10044
    %10109 = vst [vmem:[%s11 + $0x1d0] sm:$0xff] %v10045
    %10110 = vst [vmem:[%s11 + $0x1d8] sm:$0xff] %v10046
    %10111 = vst [vmem:[%s11 + $0x1e0] sm:$0xff] %v10047
    %10112 = vst [vmem:[%s11 + $0x1e8] sm:$0xff] %v10048
    %10113 = vst [vmem:[%s11 + $0x1f0] sm:$0xff] %v10049
    %10114 = vst [vmem:[%s11 + $0x1f8] sm:$0xff] %v10050
    // Predicated region
    $region54: #{cgan_generator_forward.1} parent=1 // pred_check
      _
    $region55: #{cgan_generator_forward.1} parent=1 // pred_check_branch
      %10116 = sbr.rel (0) target = $region57
    $region56: #{cgan_generator_forward.1} parent=1 // pred_region
      _
    $region57: #{cgan_generator_forward.1} parent=1 // pred_fallthru
      _
    // Predicated region
    $region58: #{cgan_generator_forward.1} parent=1 // pred_check
      _
    $region59: #{cgan_generator_forward.1} parent=1 // pred_check_branch
      %10118 = sbr.rel (0) target = $region61
    $region60: #{cgan_generator_forward.1} parent=1 // pred_region
      _
    $region61: #{cgan_generator_forward.1} parent=1 // pred_fallthru
      _
    %10119 = vsyncpa [#allocation3], 1
    %10120 = vsyncpa [#allocation5], 1

</llo_original>
